<compile_context>
chip_gen: v7x
topology: tpu7x:2x2x1
jax: 0.10.0
libtpu: 0.0.40
codegen_flags: <defaults>
</compile_context>

<pallas_src>
import functools

import jax
import jax.numpy as jnp
from jax import lax
from jax.experimental import pallas as pl
from jax.experimental.pallas import tpu as pltpu

LN_EPS = 1e-6
ACT_DTYPE = jnp.bfloat16            # inter-kernel activation storage dtype
_MAX_ROW_TILE = 8192
_MIN_ROW_TILE = 8
_MAX_K_TILE = 2048                  # K tile (multiple of 128) for the accumulating dense
_VMEM_ROW_BUDGET = 12 * 1024 * 1024
_VMEM_LIMIT = 64 * 1024 * 1024


def _gelu(x):
    # TODO(synk): PyTorch nn.GELU defaults to the exact erf form; tanh approx is used
    # here for guaranteed Mosaic lowering (|diff| ~ 1e-3).
    return jax.nn.gelu(x, approximate=True)


def _mxu_dot(a, b):
    # Weights arrive pre-cast to bf16 (cast once in the wrapper, outside pallas_call);
    # only the activation tile may need a cast here (no-op when already bf16).
    return jnp.dot(a.astype(jnp.bfloat16), b, preferred_element_type=jnp.float32)


# ---------------------------------------------------------------------------
# Pallas kernels
# ---------------------------------------------------------------------------
def _complex_layernorm_parts(xr, xi, gr, gi, br, bi, eps):
    # "Naive" complex LayerNorm over the channel dim: per-part mean, shared variance
    # E[(r-mu_r)^2 + (i-mu_i)^2], complex affine.  Operates on separate real/imag parts
    # to avoid extra mid-vreg splits where the caller already has them apart.
    mu_r = jnp.mean(xr, axis=-1, keepdims=True)
    mu_i = jnp.mean(xi, axis=-1, keepdims=True)
    dr = xr - mu_r
    di = xi - mu_i
    inv = lax.rsqrt(jnp.mean(dr * dr + di * di, axis=-1, keepdims=True) + eps)
    nr = dr * inv
    ni = di * inv
    return nr * gr - ni * gi + br, nr * gi + ni * gr + bi


def _packed_layernorm(x, gr, gi, br, bi, c, eps):
    yr, yi = _complex_layernorm_parts(x[:, :c], x[:, c:], gr, gi, br, bi, eps)
    return jnp.concatenate([yr, yi], axis=-1)


def _dense_acc_kernel(x_ref, w_ref, b_ref, o_ref, acc_ref):
    # Row-tiled dense with K-tiled f32 accumulator (grid = (rows, K); K is "arbitrary").
    @pl.when(pl.program_id(1) == 0)
    def _init():
        acc_ref[...] = jnp.zeros_like(acc_ref)

    acc_ref[...] += _mxu_dot(x_ref[...], w_ref[...])

    @pl.when(pl.program_id(1) == pl.num_programs(1) - 1)
    def _finalize():
        o_ref[...] = (acc_ref[...] + b_ref[...]).astype(o_ref.dtype)


def _inproj_norm_kernel(x_ref, w_ref, vec_ref, o_ref, *, c, eps):
    # packed complex 1x1 conv (no bias) fused with complex LayerNorm
    y = _mxu_dot(x_ref[...], w_ref[...])
    v = vec_ref[...]                                   # (2, 2C): [gamma], [beta]
    out = _packed_layernorm(y, v[0:1, :c], v[0:1, c:], v[1:2, :c], v[1:2, c:], c, eps)
    o_ref[...] = out.astype(o_ref.dtype)


def _layernorm_kernel(x_ref, vec_ref, o_ref, *, c, eps):
    # Stand-alone complex LayerNorm (only used when num_blocks == 0).
    v = vec_ref[...]
    x = x_ref[...].astype(jnp.float32)
    out = _packed_layernorm(x, v[0:1, :c], v[0:1, c:], v[1:2, :c], v[1:2, c:], c, eps)
    o_ref[...] = out.astype(o_ref.dtype)


def _convnext_kernel(a_ref, bq_ref, res_ref, vec_ref, b1_ref, w1_ref, w2_ref,
                     o_ref, *, c, eps, final_norm):
    # Fused ComplexConvNeXtBlock2d channel path:
    #   dw-conv real/imag recombination -> dw-bias -> complex LN -> pwconv1 -> GELU ->
    #   pwconv2 -> layer-scale -> residual [-> fused output LN on the last block].
    # vec rows: 0 dw-bias, 1 layer-scale, 2 b2, 3 norm-gamma, 4 norm-beta,
    #           5 out-norm-gamma, 6 out-norm-beta  (all packed 2C, f32)
    v = vec_ref[...]
    a = a_ref[...].astype(jnp.float32)      # [xr*wr | xi*wr]  (grouped conv with wr)
    bq = bq_ref[...].astype(jnp.float32)    # [xr*wi | xi*wi]  (grouped conv with wi)
    # complex depthwise recombination (fused; avoids an HBM round trip for dw)
    xr = a[:, :c] - bq[:, c:] + v[0:1, :c]
    xi = bq[:, :c] + a[:, c:] + v[0:1, c:]
    nr, ni = _complex_layernorm_parts(xr, xi, v[3:4, :c], v[3:4, c:],
                                      v[4:5, :c], v[4:5, c:], eps)
    a_n = jnp.concatenate([nr, ni], axis=-1)
    h = _mxu_dot(a_n, w1_ref[...]) + b1_ref[...]       # packed complex pwconv1
    h = _gelu(h.astype(jnp.bfloat16))                  # bf16 gate; bf16 needed for MXU anyway
    o = _mxu_dot(h, w2_ref[...]) + v[2:3, :]           # packed complex pwconv2
    y = res_ref[...].astype(jnp.float32) + v[1:2, :] * o
    if final_norm:                                     # fused output_norm (last block)
        y = _packed_layernorm(y, v[5:6, :c], v[5:6, c:], v[6:7, :c], v[6:7, c:], c, eps)
    o_ref[...] = y.astype(o_ref.dtype)


# ---------------------------------------------------------------------------
# Tiling helpers
# ---------------------------------------------------------------------------
def _round_up(x, m):
    return ((x + m - 1) // m) * m


def _choose_tile(n_rows, bytes_per_row, min_steps=2):
    """Even row split: largest tile under the VMEM budget, at least `min_steps` grid
    steps (so v7x's two TensorCores both get work) and minimal padding waste."""
    max_rows = max(_MIN_ROW_TILE, _VMEM_ROW_BUDGET // max(bytes_per_row, 1))
    max_rows = min(_MAX_ROW_TILE, max(_MIN_ROW_TILE, (max_rows // 8) * 8))
    n_steps = max(min_steps, -(-n_rows // max_rows))
    tile = max(_MIN_ROW_TILE, _round_up(-(-n_rows // n_steps), 8))
    return tile, tile * n_steps


def _pad_rows(x, n_pad):
    n = x.shape[0]
    if n == n_pad:
        return x
    return jnp.pad(x, ((0, n_pad - n), (0, 0)))


def _cparams(semantics):
    return pltpu.CompilerParams(dimension_semantics=semantics,
                                vmem_limit_bytes=_VMEM_LIMIT)


# ---------------------------------------------------------------------------
# Pallas wrappers
# ---------------------------------------------------------------------------
def dense_rows(x, w, b=None, out_dtype=ACT_DTYPE):
    """(N, K) rows @ (K, M) weight (+ bias), K-tiled with an f32 accumulator."""
    n, k = x.shape
    m = w.shape[1]
    if b is None:
        b = jnp.zeros((m,), jnp.float32)
    w = w.astype(jnp.bfloat16)                 # cast once here, not per grid step
    b = b.reshape(1, m).astype(jnp.float32)

    if k <= _MAX_K_TILE:
        tk, k_pad = k, k
    else:
        tk = _MAX_K_TILE
        k_pad = _round_up(k, tk)

    out_b = jnp.dtype(out_dtype).itemsize
    row_bytes = 2 * (2 * tk) + 2 * (out_b * m) + 4 * m     # dbl-buffered IO + acc
    tile, n_pad = _choose_tile(n, row_bytes, min_steps=2)

    x_p = _pad_rows(x.astype(jnp.bfloat16), n_pad)
    if k_pad != k:
        x_p = jnp.pad(x_p, ((0, 0), (0, k_pad - k)))
        w = jnp.pad(w, ((0, k_pad - k), (0, 0)))

    y = pl.pallas_call(
        _dense_acc_kernel,
        grid=(n_pad // tile, k_pad // tk),
        in_specs=[pl.BlockSpec((tile, tk), lambda i, kk: (i, kk)),
                  pl.BlockSpec((tk, m), lambda i, kk: (kk, 0)),
                  pl.BlockSpec((1, m), lambda i, kk: (0, 0))],
        out_specs=pl.BlockSpec((tile, m), lambda i, kk: (i, 0)),
        out_shape=jax.ShapeDtypeStruct((n_pad, m), out_dtype),
        scratch_shapes=[pltpu.VMEM((tile, m), jnp.float32)],
        compiler_params=_cparams(("parallel", "arbitrary")),
    )(x_p, w, b)
    return y[:n]


def input_proj_norm(x_pad, w_packed, norm_vec, tile, *, c, eps=LN_EPS):
    n_pad, kin = x_pad.shape
    kernel = functools.partial(_inproj_norm_kernel, c=c, eps=eps)
    return pl.pallas_call(
        kernel,
        grid=(n_pad // tile,),
        in_specs=[pl.BlockSpec((tile, kin), lambda i: (i, 0)),
                  pl.BlockSpec((kin, 2 * c), lambda i: (0, 0)),
                  pl.BlockSpec((2, 2 * c), lambda i: (0, 0))],
        out_specs=pl.BlockSpec((tile, 2 * c), lambda i: (i, 0)),
        out_shape=jax.ShapeDtypeStruct((n_pad, 2 * c), ACT_DTYPE),
        compiler_params=_cparams(("parallel",)),
    )(x_pad, w_packed.astype(jnp.bfloat16), norm_vec.astype(jnp.float32))


def packed_layernorm(x_pad, norm_vec, tile, *, c, eps=LN_EPS):
    n_pad = x_pad.shape[0]
    kernel = functools.partial(_layernorm_kernel, c=c, eps=eps)
    return pl.pallas_call(
        kernel,
        grid=(n_pad // tile,),
        in_specs=[pl.BlockSpec((tile, 2 * c), lambda i: (i, 0)),
                  pl.BlockSpec((2, 2 * c), lambda i: (0, 0))],
        out_specs=pl.BlockSpec((tile, 2 * c), lambda i: (i, 0)),
        out_shape=jax.ShapeDtypeStruct((n_pad, 2 * c), ACT_DTYPE),
        compiler_params=_cparams(("parallel",)),
    )(x_pad, norm_vec.astype(jnp.float32))


def convnext_block_rows(a_pad, bq_pad, res_pad, vec, b1, w1, w2, tile, *, c,
                        final_norm, eps=LN_EPS):
    """Fused ConvNeXt channel path (dw recombination .. residual [+ output LN])."""
    n_pad = a_pad.shape[0]
    h2 = w1.shape[1]
    kernel = functools.partial(_convnext_kernel, c=c, eps=eps, final_norm=final_norm)
    return pl.pallas_call(
        kernel,
        grid=(n_pad // tile,),
        in_specs=[pl.BlockSpec((tile, 2 * c), lambda i: (i, 0)),
                  pl.BlockSpec((tile, 2 * c), lambda i: (i, 0)),
                  pl.BlockSpec((tile, 2 * c), lambda i: (i, 0)),
                  pl.BlockSpec((7, 2 * c), lambda i: (0, 0)),
                  pl.BlockSpec((1, h2), lambda i: (0, 0)),
                  pl.BlockSpec((2 * c, h2), lambda i: (0, 0)),
                  pl.BlockSpec((h2, 2 * c), lambda i: (0, 0))],
        out_specs=pl.BlockSpec((tile, 2 * c), lambda i: (i, 0)),
        out_shape=jax.ShapeDtypeStruct((n_pad, 2 * c), ACT_DTYPE),
        compiler_params=_cparams(("parallel",)),
    )(a_pad, bq_pad, res_pad, vec.astype(jnp.float32), b1.astype(jnp.float32),
      w1.astype(jnp.bfloat16), w2.astype(jnp.bfloat16))


# ---------------------------------------------------------------------------
# Plain-JAX glue (tiny FLOP share)
# ---------------------------------------------------------------------------
def pack_complex_weight(wr, wi):
    """(Cin, Cout) complex -> (2Cin, 2Cout) real so [xr|xi] @ W = [yr|yi]."""
    return jnp.concatenate(
        [jnp.concatenate([wr, wi], axis=1),
         jnp.concatenate([-wi, wr], axis=1)], axis=0)


def _im2col_1d_reflect(x, k):
    """(B, C, T) -> (B*T, C*k) with reflect padding over T."""
    # TODO(synk): could be replaced by k shifted pl.ds loads inside the dense kernel to
    # avoid the k-fold HBM expansion (modest win, largest on v5e).
    b, c, t = x.shape
    pad = k // 2
    xp = jnp.pad(x, ((0, 0), (0, 0), (pad, pad)), mode="reflect")
    cols = jnp.stack([xp[:, :, j:j + t] for j in range(k)], axis=3)  # (B,C,T,K)
    return cols.transpose(0, 2, 1, 3).reshape(b * t, c * k)


def complex_dwconv2d_pair(x, wr, wi):
    """Depthwise grouped Conv2d of packed x with wr and wi separately (zero padding).

    x: (B, F, T, 2C) packed [real|imag], bf16.  Returns (a, b) each (B, F, T, 2C) bf16:
      a = [xr*wr | xi*wr],  b = [xr*wi | xi*wi]
    The complex recombination + dw bias are fused into the ConvNeXt Pallas kernel.
    """
    # TODO(synk): depthwise 2-D stencil kept in lax.conv (tiny FLOP share); a single
    # grouped conv or a halo'd Pallas stencil would halve the reads of x.
    c = wr.shape[0]
    k = wr.shape[-1]
    pad = k // 2
    wr_hw = jnp.transpose(wr[:, 0], (1, 2, 0))                        # (kh, kw, C)
    wi_hw = jnp.transpose(wi[:, 0], (1, 2, 0))
    w_r2 = jnp.concatenate([wr_hw, wr_hw], axis=-1)[:, :, None, :].astype(jnp.bfloat16)
    w_i2 = jnp.concatenate([wi_hw, wi_hw], axis=-1)[:, :, None, :].astype(jnp.bfloat16)
    dn = ("NHWC", "HWIO", "NHWC")
    conv = lambda w: lax.conv_general_dilated(
        x, w, (1, 1), [(pad, pad), (pad, pad)],
        feature_group_count=2 * c, dimension_numbers=dn,
        preferred_element_type=jnp.float32).astype(jnp.bfloat16)
    return conv(w_r2), conv(w_i2)


def make_stft_basis(n_fft, hop):
    n_bins = n_fft // 2 + 1
    n = jnp.arange(n_fft, dtype=jnp.float32)[:, None]
    k = jnp.arange(n_bins, dtype=jnp.float32)[None, :]
    ang = 2.0 * jnp.pi * n * k / n_fft                                # (n_fft, n_bins)
    window = 0.5 - 0.5 * jnp.cos(
        2.0 * jnp.pi * jnp.arange(n_fft, dtype=jnp.float32) / n_fft)  # periodic Hann
    fwd_wr = window[:, None] * jnp.cos(ang)                           # analysis rDFT
    fwd_wi = -window[:, None] * jnp.sin(ang)
    scale = jnp.where((jnp.arange(n_bins) == 0) | (jnp.arange(n_bins) == n_fft // 2),
                      1.0, 2.0).astype(jnp.float32)
    inv_wr = (scale[:, None] * jnp.cos(ang.T)) / n_fft                # synthesis irDFT
    inv_wi = (scale[:, None] * jnp.sin(ang.T)) / n_fft
    return window, fwd_wr, fwd_wi, inv_wr, inv_wi


def make_output_basis(op, inv_wr, inv_wi, window, c, n_bins, n_fft):
    """Fuse output_proj (C->1 complex 1x1 conv) with the iDFT + synthesis window."""
    wr_op = op["wr"][:, 0]                                            # (C,)
    wi_op = op["wi"][:, 0]
    w_real = (wr_op[None, :, None] * inv_wr[:, None, :]
              - wi_op[None, :, None] * inv_wi[:, None, :])            # (F, C, n_fft)
    w_imag = -(wi_op[None, :, None] * inv_wr[:, None, :]
               + wr_op[None, :, None] * inv_wi[:, None, :])
    w = jnp.concatenate([w_real, w_imag], axis=1).reshape(n_bins * 2 * c, n_fft)
    bias = jnp.sum(op["br"][0] * inv_wr - op["bi"][0] * inv_wi, axis=0)
    return w * window[None, :], bias * window


def frame_signal(x, n_fft, hop):
    """x: (B, frames*hop) -> framed (B*frames, n_fft) with reflect padding."""
    # TODO(synk): framing uses (n_fft - hop)//2 reflect padding (wavehax convention),
    # not torch center=True n_fft//2.
    b, samples = x.shape
    t = samples // hop
    pad = (n_fft - hop) // 2
    xp = jnp.pad(x, ((0, 0), (pad, pad)), mode="reflect")
    idx = jnp.arange(t)[:, None] * hop + jnp.arange(n_fft)[None, :]
    return xp[:, idx].reshape(b * t, n_fft)


def overlap_add(frames, b, t, n_fft, hop, window):
    """frames: (B*T, n_fft), already synthesis-windowed -> (B, T*hop)."""
    pad = (n_fft - hop) // 2
    total = t * hop + 2 * pad
    idx = (jnp.arange(t)[:, None] * hop + jnp.arange(n_fft)[None, :]).reshape(-1)
    sig = jnp.zeros((b, total), jnp.float32).at[:, idx].add(frames.reshape(b, -1))
    env = jnp.zeros((total,), jnp.float32).at[idx].add(jnp.tile(window * window, t))
    sig = sig / jnp.maximum(env, 1e-8)[None, :]
    return sig[:, pad:pad + t * hop]


def generate_sine(f0, hop_length, sample_rate, amplitude=0.1):
    """Deterministic sine prior. f0: (B, 1, frames) -> (B, 1, frames*hop)."""
    # TODO(synk): wavehax prior generators also add Gaussian noise / random initial
    # phase inside torch.no_grad(); omitted for determinism.
    f0_up = jnp.repeat(f0, hop_length, axis=-1)
    vuv = (f0_up > 0.0).astype(jnp.float32)
    phase = 2.0 * jnp.pi * jnp.cumsum(f0_up / sample_rate, axis=-1)
    return amplitude * vuv * jnp.sin(phase)


# ---------------------------------------------------------------------------
# Parameter init (deterministic, synthetic) and forward pass
# ---------------------------------------------------------------------------
def init_params(key, *, in_channels, channels, mult_channels, kernel_size,
                num_blocks, n_bins):
    def trunc(k, shape, std=0.02):
        return std * jax.random.truncated_normal(k, -2.0, 2.0, shape, jnp.float32)

    keys = iter(jax.random.split(key, 128))
    k7 = 7
    hidden = channels * mult_channels
    p = {
        "prior_proj": dict(wr=trunc(next(keys), (n_bins * k7, n_bins)),
                           wi=trunc(next(keys), (n_bins * k7, n_bins)),
                           br=jnp.zeros((n_bins,)), bi=jnp.zeros((n_bins,))),
        "cond_proj": dict(wr=trunc(next(keys), (in_channels * k7, n_bins)),
                          wi=trunc(next(keys), (in_channels * k7, n_bins)),
                          br=jnp.zeros((n_bins,)), bi=jnp.zeros((n_bins,))),
        "input_proj": dict(wr=trunc(next(keys), (3, channels)),
                           wi=trunc(next(keys), (3, channels))),  # bias=False
        "input_norm": dict(gr=jnp.ones((channels,)), gi=jnp.zeros((channels,)),
                           br=jnp.zeros((channels,)), bi=jnp.zeros((channels,))),
        "output_norm": dict(gr=jnp.ones((channels,)), gi=jnp.zeros((channels,)),
                            br=jnp.zeros((channels,)), bi=jnp.zeros((channels,))),
        "output_proj": dict(wr=trunc(next(keys), (channels, 1)),
                            wi=trunc(next(keys), (channels, 1)),
                            br=jnp.zeros((1,)), bi=jnp.zeros((1,))),
    }
    blocks = []
    for _ in range(num_blocks):
        blocks.append(dict(
            dw=dict(wr=trunc(next(keys), (channels, 1, kernel_size, kernel_size)),
                    wi=trunc(next(keys), (channels, 1, kernel_size, kernel_size)),
                    br=jnp.zeros((channels,)), bi=jnp.zeros((channels,))),
            norm_gr=jnp.ones((channels,)), norm_gi=jnp.zeros((channels,)),
            norm_br=jnp.zeros((channels,)), norm_bi=jnp.zeros((channels,)),
            w1r=trunc(next(keys), (channels, hidden)),
            w1i=trunc(next(keys), (channels, hidden)),
            b1r=jnp.zeros((hidden,)), b1i=jnp.zeros((hidden,)),
            w2r=trunc(next(keys), (hidden, channels)),
            w2i=trunc(next(keys), (hidden, channels)),
            b2r=jnp.zeros((channels,)), b2i=jnp.zeros((channels,)),
            ls_r=jnp.full((channels,), 1.0 / num_blocks),
            ls_i=jnp.full((channels,), 1.0 / num_blocks),
        ))
    p["blocks"] = blocks
    return p


def complex_wavehax_forward(params, cond, f0, *, n_fft, hop_length, sample_rate):
    b, _, frames = cond.shape
    n_bins = n_fft // 2 + 1
    c = params["input_norm"]["gr"].shape[0]
    window, fwd_wr, fwd_wi, inv_wr, inv_wi = make_stft_basis(n_fft, hop_length)

    # 1) prior waveform + forward STFT (real-input fast path: single dense)
    prior = generate_sine(f0, hop_length, sample_rate)           # (B, 1, frames*hop)
    framed = frame_signal(prior[:, 0], n_fft, hop_length)        # (B*T, n_fft)
    w_fwd = jnp.concatenate([fwd_wr, fwd_wi], axis=1)            # (n_fft, 2*n_bins)
    spec = dense_rows(framed, w_fwd)                             # (B*T, 2*n_bins) bf16
    real_bft = spec[:, :n_bins].reshape(b, frames, n_bins).transpose(0, 2, 1)
    imag_bft = spec[:, n_bins:].reshape(b, frames, n_bins).transpose(0, 2, 1)

    # 2) 1-D complex projections (kernel 7, reflect padding) as packed denses
    pp = params["prior_proj"]
    xr_cols = _im2col_1d_reflect(real_bft, 7)
    xi_cols = _im2col_1d_reflect(imag_bft, 7)
    y = dense_rows(jnp.concatenate([xr_cols, xi_cols], axis=1),
                   pack_complex_weight(pp["wr"], pp["wi"]),
                   jnp.concatenate([pp["br"], pp["bi"]]))
    rproj_bft = y[:, :n_bins].reshape(b, frames, n_bins).transpose(0, 2, 1)
    iproj_bft = y[:, n_bins:].reshape(b, frames, n_bins).transpose(0, 2, 1)

    cp = params["cond_proj"]
    cond_cols = _im2col_1d_reflect(cond, 7)
    # cond fed as both real and imag parts (matches cond_proj(cond, cond)):
    #   yr = cond @ (wr - wi) + br ; yi = cond @ (wr + wi) + bi
    w_cond = jnp.concatenate([cp["wr"] - cp["wi"], cp["wr"] + cp["wi"]], axis=1)
    yc = dense_rows(cond_cols, w_cond, jnp.concatenate([cp["br"], cp["bi"]]))
    cr_bft = yc[:, :n_bins].reshape(b, frames, n_bins).transpose(0, 2, 1)
    ci_bft = yc[:, n_bins:].reshape(b, frames, n_bins).transpose(0, 2, 1)

    # 3) stack -> packed channels-last rows (B*F*T, 6), stored bf16
    xr3 = jnp.stack([real_bft, rproj_bft, cr_bft], axis=-1)      # (B, F, T, 3)
    xi3 = jnp.stack([imag_bft, iproj_bft, ci_bft], axis=-1)
    x6 = jnp.concatenate([xr3, xi3], axis=-1).reshape(b * n_bins * frames, 6)
    x6 = x6.astype(ACT_DTYPE)

    n2d = b * n_bins * frames
    hidden = params["blocks"][0]["w1r"].shape[1] if params["blocks"] else c
    two_c, two_h = 2 * c, 2 * hidden
    # bf16 I/O blocks (double-buffered) + rough f32 intermediate footprint per row
    row_bytes = 2 * (2 * 4 * two_c) + 4 * (8 * two_c + 2 * two_h)
    tile2d, n2d_pad = _choose_tile(n2d, row_bytes, min_steps=2)
    x6 = _pad_rows(x6, n2d_pad)

    # 4) input projection (complex 1x1 conv, no bias) + complex layer norm (fused)
    ip, nin = params["input_proj"], params["input_norm"]
    w_in = pack_complex_weight(ip["wr"], ip["wi"])               # (6, 2C)
    nvec = jnp.stack([jnp.concatenate([nin["gr"], nin["gi"]]),
                      jnp.concatenate([nin["br"], nin["bi"]])], axis=0)
    x = input_proj_norm(x6, w_in, nvec, tile2d, c=c)             # (n2d_pad, 2C) bf16

    # 5) ComplexConvNeXtBlock2d stack; output_norm fused into the last block's kernel
    non = params["output_norm"]
    num_blocks = len(params["blocks"])
    for blk_i, bp in enumerate(params["blocks"]):
        final = (blk_i == num_blocks - 1)
        spatial = x[:n2d].reshape(b, n_bins, frames, two_c)      # pure reshape (NHWC)
        a_conv, b_conv = complex_dwconv2d_pair(spatial, bp["dw"]["wr"], bp["dw"]["wi"])
        a_pad = _pad_rows(a_conv.reshape(n2d, two_c), n2d_pad)
        b_pad = _pad_rows(b_conv.reshape(n2d, two_c), n2d_pad)
        if final:
            out_g = jnp.concatenate([non["gr"], non["gi"]])
            out_b = jnp.concatenate([non["br"], non["bi"]])
        else:
            out_g = jnp.ones((two_c,), jnp.float32)
            out_b = jnp.zeros((two_c,), jnp.float32)
        vec = jnp.stack([
            jnp.concatenate([bp["dw"]["br"], bp["dw"]["bi"]]),   # dw bias
            jnp.concatenate([bp["ls_r"], bp["ls_i"]]),           # layer scale
            jnp.concatenate([bp["b2r"], bp["b2i"]]),             # pwconv2 bias
            jnp.concatenate([bp["norm_gr"], bp["norm_gi"]]),     # norm gamma
            jnp.concatenate([bp["norm_br"], bp["norm_bi"]]),     # norm beta
            out_g, out_b], axis=0)                               # fused output norm
        b1 = jnp.concatenate([bp["b1r"], bp["b1i"]]).reshape(1, -1)
        x = convnext_block_rows(a_pad, b_pad, x, vec, b1,
                                pack_complex_weight(bp["w1r"], bp["w1i"]),
                                pack_complex_weight(bp["w2r"], bp["w2i"]),
                                tile2d, c=c, final_norm=final)

    if num_blocks == 0:                                          # rare fallback path
        ovec = jnp.stack([jnp.concatenate([non["gr"], non["gi"]]),
                          jnp.concatenate([non["br"], non["bi"]])], axis=0)
        x = packed_layernorm(x, ovec, tile2d, c=c)

    # 6) fused (output_proj ∘ inverse DFT ∘ synthesis window), K-tiled accumulation
    w_out, b_out = make_output_basis(params["output_proj"], inv_wr, inv_wi,
                                     window, c, n_bins, n_fft)
    rows_bt = (x[:n2d].reshape(b, n_bins, frames, two_c)
               .transpose(0, 2, 1, 3).reshape(b * frames, n_bins * two_c))
    wav_frames = dense_rows(rows_bt, w_out, b_out, out_dtype=jnp.float32)

    # 7) overlap-add -> (B, 1, frames*hop)
    wav = overlap_add(wav_frames, b, frames, n_fft, hop_length, window)
    return wav[:, None, :], prior


if __name__ == "__main__":
    key = jax.random.PRNGKey(0)
    k_cond, k_f0, k_param = jax.random.split(key, 3)

    # Small config consistent with the module's constructor.
    batch = 2
    in_channels = 8
    frames = 8
    channels = 8
    mult_channels = 2
    kernel_size = 3
    num_blocks = 2
    n_fft = 16
    hop_length = 4
    sample_rate = 16000
    n_bins = n_fft // 2 + 1

    cond = jax.random.normal(k_cond, (batch, in_channels, frames), jnp.float32)
    f0 = 100.0 + 100.0 * jax.random.uniform(k_f0, (batch, 1, frames), jnp.float32)

    params = init_params(k_param, in_channels=in_channels, channels=channels,
                         mult_channels=mult_channels, kernel_size=kernel_size,
                         num_blocks=num_blocks, n_bins=n_bins)

    fwd = jax.jit(functools.partial(complex_wavehax_forward, n_fft=n_fft,
                                    hop_length=hop_length, sample_rate=sample_rate))
    wav, prior = fwd(params, cond, f0)
    jax.block_until_ready((wav, prior))

    assert wav.shape == (batch, 1, frames * hop_length), wav.shape
    assert prior.shape == (batch, 1, frames * hop_length), prior.shape
    assert bool(jnp.all(jnp.isfinite(wav))) and bool(jnp.all(jnp.isfinite(prior)))
    print("KERNEL_OK")
</pallas_src>

<mosaic_0001>
module attributes {stable_mosaic.version = 11 : i64} {
  func.func private @main(%arg0: i32) attributes {dimension_semantics = [#tpu.dimension_semantics<core_parallel>], iteration_bounds = array<i64: 2>, tpu.core_type = #tpu.core_type<sc_scalar_subcore>, window_params = []} {
    return
  }
}

module attributes {stable_mosaic.version = 11 : i64} {
  func.func private @main(%arg0: i32) attributes {dimension_semantics = [#tpu.dimension_semantics<core_parallel>], iteration_bounds = array<i64: 2>, tpu.core_type = #tpu.core_type<sc_scalar_subcore>, window_params = []} {
    return
  }
}

module attributes {stable_mosaic.version = 11 : i64} {
  func.func @_dense_acc_kernel(%arg0: i32, %arg1: i32, %arg2: memref<8x16xbf16, #tpu.memory_space<vmem>>, %arg3: memref<16x18xbf16, #tpu.memory_space<vmem>>, %arg4: memref<1x18xf32, #tpu.memory_space<vmem>>, %arg5: memref<8x18xbf16, #tpu.memory_space<vmem>>, %arg6: memref<8x18xf32, #tpu.memory_space<vmem>>) attributes {dimension_semantics = [#tpu.dimension_semantics<parallel>, #tpu.dimension_semantics<arbitrary>], iteration_bounds = array<i64: 2, 1>, scalar_prefetch = 0 : i64, scratch_operands = 1 : i64, tpu.core_type = #tpu.core_type<tc>, window_params = [{transform_indices = @transform_0, window_bounds = array<i64: 8, 16>}, {transform_indices = @transform_1, window_bounds = array<i64: 16, 18>}, {pipeline_mode = #tpu.pipeline_mode<synchronous>, transform_indices = @transform_2, window_bounds = array<i64: 1, 18>}, {transform_indices = @transform_3, window_bounds = array<i64: 8, 18>}]} {
    %c0_i32 = arith.constant 0 : i32
    %0 = arith.cmpi eq, %arg1, %c0_i32 : i32
    %1 = arith.extui %0 : i1 to i32
    %c0_i32_0 = arith.constant 0 : i32
    %2 = arith.cmpi ne, %1, %c0_i32_0 : i32
    scf.if %2 {
      %cst_10 = arith.constant 0.000000e+00 : f32
      %12 = vector.broadcast %cst_10 : f32 to vector<8x18xf32>
      %c0_11 = arith.constant 0 : index
      %c0_12 = arith.constant 0 : index
      %13 = vector.load %arg6[%c0_11, %c0_12] : memref<8x18xf32, #tpu.memory_space<vmem>>, vector<8x18xf32>
      tpu.vector_store %arg6[%c0_11, %c0_12], %12 {strides = array<i32>} : memref<8x18xf32, #tpu.memory_space<vmem>>, vector<8x18xf32>,
    } else {
    }
    %c0 = arith.constant 0 : index
    %c0_1 = arith.constant 0 : index
    %3 = vector.load %arg6[%c0, %c0_1] : memref<8x18xf32, #tpu.memory_space<vmem>>, vector<8x18xf32>
    %c0_2 = arith.constant 0 : index
    %c0_3 = arith.constant 0 : index
    %4 = vector.load %arg2[%c0_2, %c0_3] : memref<8x16xbf16, #tpu.memory_space<vmem>>, vector<8x16xbf16>
    %c0_4 = arith.constant 0 : index
    %c0_5 = arith.constant 0 : index
    %5 = vector.load %arg3[%c0_4, %c0_5] : memref<16x18xbf16, #tpu.memory_space<vmem>>, vector<16x18xbf16>
    %cst = arith.constant dense<0.000000e+00> : vector<8x18xf32>
    %6 = tpu.matmul %4, %5, %cst {dimension_numbers = #tpu.dot_dimension_numbers<[1], [0], [0], [1], [0, 0, 1, 1], [], []>} : vector<8x16xbf16>, vector<16x18xbf16>, vector<8x18xf32> -> vector<8x18xf32>
    %7 = arith.addf %3, %6 : vector<8x18xf32>
    %c0_6 = arith.constant 0 : index
    %c0_7 = arith.constant 0 : index
    %8 = vector.load %arg6[%c0_6, %c0_7] : memref<8x18xf32, #tpu.memory_space<vmem>>, vector<8x18xf32>
    tpu.vector_store %arg6[%c0_6, %c0_7], %7 {strides = array<i32>} : memref<8x18xf32, #tpu.memory_space<vmem>>, vector<8x18xf32>,
    %c0_i32_8 = arith.constant 0 : i32
    %9 = arith.cmpi eq, %arg1, %c0_i32_8 : i32
    %10 = arith.extui %9 : i1 to i32
    %c0_i32_9 = arith.constant 0 : i32
    %11 = arith.cmpi ne, %10, %c0_i32_9 : i32
    scf.if %11 {
      %c0_10 = arith.constant 0 : index
      %c0_11 = arith.constant 0 : index
      %12 = vector.load %arg6[%c0_10, %c0_11] : memref<8x18xf32, #tpu.memory_space<vmem>>, vector<8x18xf32>
      %c0_12 = arith.constant 0 : index
      %c0_13 = arith.constant 0 : index
      %13 = vector.load %arg4[%c0_12, %c0_13] : memref<1x18xf32, #tpu.memory_space<vmem>>, vector<1x18xf32>
      %14 = vector.broadcast %13 : vector<1x18xf32> to vector<8x18xf32>
      %15 = arith.addf %12, %14 : vector<8x18xf32>
      %16 = arith.truncf %15 : vector<8x18xf32> to vector<8x18xbf16>
      %c0_14 = arith.constant 0 : index
      %c0_15 = arith.constant 0 : index
      %17 = vector.load %arg5[%c0_14, %c0_15] : memref<8x18xbf16, #tpu.memory_space<vmem>>, vector<8x18xbf16>
      tpu.vector_store %arg5[%c0_14, %c0_15], %16 {strides = array<i32>} : memref<8x18xbf16, #tpu.memory_space<vmem>>, vector<8x18xbf16>,
    } else {
    }
    return
  }
  func.func @transform_0(%arg0: i32, %arg1: i32) -> (i32, i32) {
    %c0_i32 = arith.constant 0 : i32
    return %arg0, %arg1 : i32, i32
  }
  func.func @transform_1(%arg0: i32, %arg1: i32) -> (i32, i32) {
    %c0_i32 = arith.constant 0 : i32
    %c0_i32_0 = arith.constant 0 : i32
    return %arg1, %c0_i32 : i32, i32
  }
  func.func @transform_2(%arg0: i32, %arg1: i32) -> (i32, i32) {
    %c0_i32 = arith.constant 0 : i32
    %c0_i32_0 = arith.constant 0 : i32
    %c0_i32_1 = arith.constant 0 : i32
    return %c0_i32, %c0_i32_0 : i32, i32
  }
  func.func @transform_3(%arg0: i32, %arg1: i32) -> (i32, i32) {
    %c0_i32 = arith.constant 0 : i32
    %c0_i32_0 = arith.constant 0 : i32
    return %arg0, %c0_i32 : i32, i32
  }
}

module attributes {stable_mosaic.version = 11 : i64} {
  func.func @_dense_acc_kernel(%arg0: i32, %arg1: i32, %arg2: memref<8x126xbf16, #tpu.memory_space<vmem>>, %arg3: memref<126x18xbf16, #tpu.memory_space<vmem>>, %arg4: memref<1x18xf32, #tpu.memory_space<vmem>>, %arg5: memref<8x18xbf16, #tpu.memory_space<vmem>>, %arg6: memref<8x18xf32, #tpu.memory_space<vmem>>) attributes {dimension_semantics = [#tpu.dimension_semantics<parallel>, #tpu.dimension_semantics<arbitrary>], iteration_bounds = array<i64: 2, 1>, scalar_prefetch = 0 : i64, scratch_operands = 1 : i64, tpu.core_type = #tpu.core_type<tc>, window_params = [{transform_indices = @transform_0, window_bounds = array<i64: 8, 126>}, {transform_indices = @transform_1, window_bounds = array<i64: 126, 18>}, {pipeline_mode = #tpu.pipeline_mode<synchronous>, transform_indices = @transform_2, window_bounds = array<i64: 1, 18>}, {transform_indices = @transform_3, window_bounds = array<i64: 8, 18>}]} {
    %c0_i32 = arith.constant 0 : i32
    %0 = arith.cmpi eq, %arg1, %c0_i32 : i32
    %1 = arith.extui %0 : i1 to i32
    %c0_i32_0 = arith.constant 0 : i32
    %2 = arith.cmpi ne, %1, %c0_i32_0 : i32
    scf.if %2 {
      %cst_10 = arith.constant 0.000000e+00 : f32
      %12 = vector.broadcast %cst_10 : f32 to vector<8x18xf32>
      %c0_11 = arith.constant 0 : index
      %c0_12 = arith.constant 0 : index
      %13 = vector.load %arg6[%c0_11, %c0_12] : memref<8x18xf32, #tpu.memory_space<vmem>>, vector<8x18xf32>
      tpu.vector_store %arg6[%c0_11, %c0_12], %12 {strides = array<i32>} : memref<8x18xf32, #tpu.memory_space<vmem>>, vector<8x18xf32>,
    } else {
    }
    %c0 = arith.constant 0 : index
    %c0_1 = arith.constant 0 : index
    %3 = vector.load %arg6[%c0, %c0_1] : memref<8x18xf32, #tpu.memory_space<vmem>>, vector<8x18xf32>
    %c0_2 = arith.constant 0 : index
    %c0_3 = arith.constant 0 : index
    %4 = vector.load %arg2[%c0_2, %c0_3] : memref<8x126xbf16, #tpu.memory_space<vmem>>, vector<8x126xbf16>
    %c0_4 = arith.constant 0 : index
    %c0_5 = arith.constant 0 : index
    %5 = vector.load %arg3[%c0_4, %c0_5] : memref<126x18xbf16, #tpu.memory_space<vmem>>, vector<126x18xbf16>
    %cst = arith.constant dense<0.000000e+00> : vector<8x18xf32>
    %6 = tpu.matmul %4, %5, %cst {dimension_numbers = #tpu.dot_dimension_numbers<[1], [0], [0], [1], [0, 0, 1, 1], [], []>} : vector<8x126xbf16>, vector<126x18xbf16>, vector<8x18xf32> -> vector<8x18xf32>
    %7 = arith.addf %3, %6 : vector<8x18xf32>
    %c0_6 = arith.constant 0 : index
    %c0_7 = arith.constant 0 : index
    %8 = vector.load %arg6[%c0_6, %c0_7] : memref<8x18xf32, #tpu.memory_space<vmem>>, vector<8x18xf32>
    tpu.vector_store %arg6[%c0_6, %c0_7], %7 {strides = array<i32>} : memref<8x18xf32, #tpu.memory_space<vmem>>, vector<8x18xf32>,
    %c0_i32_8 = arith.constant 0 : i32
    %9 = arith.cmpi eq, %arg1, %c0_i32_8 : i32
    %10 = arith.extui %9 : i1 to i32
    %c0_i32_9 = arith.constant 0 : i32
    %11 = arith.cmpi ne, %10, %c0_i32_9 : i32
    scf.if %11 {
      %c0_10 = arith.constant 0 : index
      %c0_11 = arith.constant 0 : index
      %12 = vector.load %arg6[%c0_10, %c0_11] : memref<8x18xf32, #tpu.memory_space<vmem>>, vector<8x18xf32>
      %c0_12 = arith.constant 0 : index
      %c0_13 = arith.constant 0 : index
      %13 = vector.load %arg4[%c0_12, %c0_13] : memref<1x18xf32, #tpu.memory_space<vmem>>, vector<1x18xf32>
      %14 = vector.broadcast %13 : vector<1x18xf32> to vector<8x18xf32>
      %15 = arith.addf %12, %14 : vector<8x18xf32>
      %16 = arith.truncf %15 : vector<8x18xf32> to vector<8x18xbf16>
      %c0_14 = arith.constant 0 : index
      %c0_15 = arith.constant 0 : index
      %17 = vector.load %arg5[%c0_14, %c0_15] : memref<8x18xbf16, #tpu.memory_space<vmem>>, vector<8x18xbf16>
      tpu.vector_store %arg5[%c0_14, %c0_15], %16 {strides = array<i32>} : memref<8x18xbf16, #tpu.memory_space<vmem>>, vector<8x18xbf16>,
    } else {
    }
    return
  }
  func.func @transform_0(%arg0: i32, %arg1: i32) -> (i32, i32) {
    %c0_i32 = arith.constant 0 : i32
    return %arg0, %arg1 : i32, i32
  }
  func.func @transform_1(%arg0: i32, %arg1: i32) -> (i32, i32) {
    %c0_i32 = arith.constant 0 : i32
    %c0_i32_0 = arith.constant 0 : i32
    return %arg1, %c0_i32 : i32, i32
  }
  func.func @transform_2(%arg0: i32, %arg1: i32) -> (i32, i32) {
    %c0_i32 = arith.constant 0 : i32
    %c0_i32_0 = arith.constant 0 : i32
    %c0_i32_1 = arith.constant 0 : i32
    return %c0_i32, %c0_i32_0 : i32, i32
  }
  func.func @transform_3(%arg0: i32, %arg1: i32) -> (i32, i32) {
    %c0_i32 = arith.constant 0 : i32
    %c0_i32_0 = arith.constant 0 : i32
    return %arg0, %c0_i32 : i32, i32
  }
}

module attributes {stable_mosaic.version = 11 : i64} {
  func.func @_dense_acc_kernel(%arg0: i32, %arg1: i32, %arg2: memref<8x56xbf16, #tpu.memory_space<vmem>>, %arg3: memref<56x18xbf16, #tpu.memory_space<vmem>>, %arg4: memref<1x18xf32, #tpu.memory_space<vmem>>, %arg5: memref<8x18xbf16, #tpu.memory_space<vmem>>, %arg6: memref<8x18xf32, #tpu.memory_space<vmem>>) attributes {dimension_semantics = [#tpu.dimension_semantics<parallel>, #tpu.dimension_semantics<arbitrary>], iteration_bounds = array<i64: 2, 1>, scalar_prefetch = 0 : i64, scratch_operands = 1 : i64, tpu.core_type = #tpu.core_type<tc>, window_params = [{transform_indices = @transform_0, window_bounds = array<i64: 8, 56>}, {transform_indices = @transform_1, window_bounds = array<i64: 56, 18>}, {pipeline_mode = #tpu.pipeline_mode<synchronous>, transform_indices = @transform_2, window_bounds = array<i64: 1, 18>}, {transform_indices = @transform_3, window_bounds = array<i64: 8, 18>}]} {
    %c0_i32 = arith.constant 0 : i32
    %0 = arith.cmpi eq, %arg1, %c0_i32 : i32
    %1 = arith.extui %0 : i1 to i32
    %c0_i32_0 = arith.constant 0 : i32
    %2 = arith.cmpi ne, %1, %c0_i32_0 : i32
    scf.if %2 {
      %cst_10 = arith.constant 0.000000e+00 : f32
      %12 = vector.broadcast %cst_10 : f32 to vector<8x18xf32>
      %c0_11 = arith.constant 0 : index
      %c0_12 = arith.constant 0 : index
      %13 = vector.load %arg6[%c0_11, %c0_12] : memref<8x18xf32, #tpu.memory_space<vmem>>, vector<8x18xf32>
      tpu.vector_store %arg6[%c0_11, %c0_12], %12 {strides = array<i32>} : memref<8x18xf32, #tpu.memory_space<vmem>>, vector<8x18xf32>,
    } else {
    }
    %c0 = arith.constant 0 : index
    %c0_1 = arith.constant 0 : index
    %3 = vector.load %arg6[%c0, %c0_1] : memref<8x18xf32, #tpu.memory_space<vmem>>, vector<8x18xf32>
    %c0_2 = arith.constant 0 : index
    %c0_3 = arith.constant 0 : index
    %4 = vector.load %arg2[%c0_2, %c0_3] : memref<8x56xbf16, #tpu.memory_space<vmem>>, vector<8x56xbf16>
    %c0_4 = arith.constant 0 : index
    %c0_5 = arith.constant 0 : index
    %5 = vector.load %arg3[%c0_4, %c0_5] : memref<56x18xbf16, #tpu.memory_space<vmem>>, vector<56x18xbf16>
    %cst = arith.constant dense<0.000000e+00> : vector<8x18xf32>
    %6 = tpu.matmul %4, %5, %cst {dimension_numbers = #tpu.dot_dimension_numbers<[1], [0], [0], [1], [0, 0, 1, 1], [], []>} : vector<8x56xbf16>, vector<56x18xbf16>, vector<8x18xf32> -> vector<8x18xf32>
    %7 = arith.addf %3, %6 : vector<8x18xf32>
    %c0_6 = arith.constant 0 : index
    %c0_7 = arith.constant 0 : index
    %8 = vector.load %arg6[%c0_6, %c0_7] : memref<8x18xf32, #tpu.memory_space<vmem>>, vector<8x18xf32>
    tpu.vector_store %arg6[%c0_6, %c0_7], %7 {strides = array<i32>} : memref<8x18xf32, #tpu.memory_space<vmem>>, vector<8x18xf32>,
    %c0_i32_8 = arith.constant 0 : i32
    %9 = arith.cmpi eq, %arg1, %c0_i32_8 : i32
    %10 = arith.extui %9 : i1 to i32
    %c0_i32_9 = arith.constant 0 : i32
    %11 = arith.cmpi ne, %10, %c0_i32_9 : i32
    scf.if %11 {
      %c0_10 = arith.constant 0 : index
      %c0_11 = arith.constant 0 : index
      %12 = vector.load %arg6[%c0_10, %c0_11] : memref<8x18xf32, #tpu.memory_space<vmem>>, vector<8x18xf32>
      %c0_12 = arith.constant 0 : index
      %c0_13 = arith.constant 0 : index
      %13 = vector.load %arg4[%c0_12, %c0_13] : memref<1x18xf32, #tpu.memory_space<vmem>>, vector<1x18xf32>
      %14 = vector.broadcast %13 : vector<1x18xf32> to vector<8x18xf32>
      %15 = arith.addf %12, %14 : vector<8x18xf32>
      %16 = arith.truncf %15 : vector<8x18xf32> to vector<8x18xbf16>
      %c0_14 = arith.constant 0 : index
      %c0_15 = arith.constant 0 : index
      %17 = vector.load %arg5[%c0_14, %c0_15] : memref<8x18xbf16, #tpu.memory_space<vmem>>, vector<8x18xbf16>
      tpu.vector_store %arg5[%c0_14, %c0_15], %16 {strides = array<i32>} : memref<8x18xbf16, #tpu.memory_space<vmem>>, vector<8x18xbf16>,
    } else {
    }
    return
  }
  func.func @transform_0(%arg0: i32, %arg1: i32) -> (i32, i32) {
    %c0_i32 = arith.constant 0 : i32
    return %arg0, %arg1 : i32, i32
  }
  func.func @transform_1(%arg0: i32, %arg1: i32) -> (i32, i32) {
    %c0_i32 = arith.constant 0 : i32
    %c0_i32_0 = arith.constant 0 : i32
    return %arg1, %c0_i32 : i32, i32
  }
  func.func @transform_2(%arg0: i32, %arg1: i32) -> (i32, i32) {
    %c0_i32 = arith.constant 0 : i32
    %c0_i32_0 = arith.constant 0 : i32
    %c0_i32_1 = arith.constant 0 : i32
    return %c0_i32, %c0_i32_0 : i32, i32
  }
  func.func @transform_3(%arg0: i32, %arg1: i32) -> (i32, i32) {
    %c0_i32 = arith.constant 0 : i32
    %c0_i32_0 = arith.constant 0 : i32
    return %arg0, %c0_i32 : i32, i32
  }
}

module attributes {stable_mosaic.version = 11 : i64} {
  func.func @_inproj_norm_kernel(%arg0: i32, %arg1: memref<72x6xbf16, #tpu.memory_space<vmem>>, %arg2: memref<6x16xbf16, #tpu.memory_space<vmem>>, %arg3: memref<2x16xf32, #tpu.memory_space<vmem>>, %arg4: memref<72x16xbf16, #tpu.memory_space<vmem>>) attributes {dimension_semantics = [#tpu.dimension_semantics<parallel>], iteration_bounds = array<i64: 2>, scalar_prefetch = 0 : i64, scratch_operands = 0 : i64, tpu.core_type = #tpu.core_type<tc>, window_params = [{transform_indices = @transform_0, window_bounds = array<i64: 72, 6>}, {pipeline_mode = #tpu.pipeline_mode<synchronous>, transform_indices = @transform_1, window_bounds = array<i64: 6, 16>}, {pipeline_mode = #tpu.pipeline_mode<synchronous>, transform_indices = @transform_2, window_bounds = array<i64: 2, 16>}, {transform_indices = @transform_3, window_bounds = array<i64: 72, 16>}]} {
    %c0 = arith.constant 0 : index
    %c0_0 = arith.constant 0 : index
    %0 = vector.load %arg1[%c0, %c0_0] : memref<72x6xbf16, #tpu.memory_space<vmem>>, vector<72x6xbf16>
    %c0_1 = arith.constant 0 : index
    %c0_2 = arith.constant 0 : index
    %1 = vector.load %arg2[%c0_1, %c0_2] : memref<6x16xbf16, #tpu.memory_space<vmem>>, vector<6x16xbf16>
    %cst = arith.constant dense<0.000000e+00> : vector<72x16xf32>
    %2 = tpu.matmul %0, %1, %cst {dimension_numbers = #tpu.dot_dimension_numbers<[1], [0], [0], [1], [0, 0, 1, 1], [], []>} : vector<72x6xbf16>, vector<6x16xbf16>, vector<72x16xf32> -> vector<72x16xf32>
    %c0_3 = arith.constant 0 : index
    %c0_4 = arith.constant 0 : index
    %3 = vector.load %arg3[%c0_3, %c0_4] : memref<2x16xf32, #tpu.memory_space<vmem>>, vector<2x16xf32>
    %4 = vector.extract_strided_slice %3 {offsets = [0, 0], sizes = [1, 8], strides = [1, 1]} : vector<2x16xf32> to vector<1x8xf32>
    %5 = vector.extract_strided_slice %3 {offsets = [0, 8], sizes = [1, 8], strides = [1, 1]} : vector<2x16xf32> to vector<1x8xf32>
    %6 = vector.extract_strided_slice %3 {offsets = [1, 0], sizes = [1, 8], strides = [1, 1]} : vector<2x16xf32> to vector<1x8xf32>
    %7 = vector.extract_strided_slice %3 {offsets = [1, 8], sizes = [1, 8], strides = [1, 1]} : vector<2x16xf32> to vector<1x8xf32>
    %8 = vector.extract_strided_slice %2 {offsets = [0, 0], sizes = [72, 8], strides = [1, 1]} : vector<72x16xf32> to vector<72x8xf32>
    %9 = vector.extract_strided_slice %2 {offsets = [0, 8], sizes = [72, 8], strides = [1, 1]} : vector<72x16xf32> to vector<72x8xf32>
    %cst_5 = arith.constant dense<0.000000e+00> : vector<72xf32>
    %10 = vector.multi_reduction <add>, %8, %cst_5 [1] : vector<72x8xf32> to vector<72xf32>
    %11 = vector.shape_cast %10 : vector<72xf32> to vector<72x1xf32>
    %cst_6 = arith.constant 8.000000e+00 : f32
    %12 = vector.broadcast %cst_6 : f32 to vector<72x1xf32>
    %13 = arith.divf %11, %12 : vector<72x1xf32>
    %cst_7 = arith.constant dense<0.000000e+00> : vector<72xf32>
    %14 = vector.multi_reduction <add>, %9, %cst_7 [1] : vector<72x8xf32> to vector<72xf32>
    %15 = vector.shape_cast %14 : vector<72xf32> to vector<72x1xf32>
    %cst_8 = arith.constant 8.000000e+00 : f32
    %16 = vector.broadcast %cst_8 : f32 to vector<72x1xf32>
    %17 = arith.divf %15, %16 : vector<72x1xf32>
    %18 = vector.broadcast %13 : vector<72x1xf32> to vector<72x8xf32>
    %19 = arith.subf %8, %18 : vector<72x8xf32>
    %20 = vector.broadcast %17 : vector<72x1xf32> to vector<72x8xf32>
    %21 = arith.subf %9, %20 : vector<72x8xf32>
    %22 = arith.mulf %19, %19 : vector<72x8xf32>
    %23 = arith.mulf %21, %21 : vector<72x8xf32>
    %24 = arith.addf %22, %23 : vector<72x8xf32>
    %cst_9 = arith.constant dense<0.000000e+00> : vector<72xf32>
    %25 = vector.multi_reduction <add>, %24, %cst_9 [1] : vector<72x8xf32> to vector<72xf32>
    %26 = vector.shape_cast %25 : vector<72xf32> to vector<72x1xf32>
    %cst_10 = arith.constant 8.000000e+00 : f32
    %27 = vector.broadcast %cst_10 : f32 to vector<72x1xf32>
    %28 = arith.divf %26, %27 : vector<72x1xf32>
    %cst_11 = arith.constant 9.99999997E-7 : f32
    %29 = vector.broadcast %cst_11 : f32 to vector<72x1xf32>
    %30 = arith.addf %28, %29 : vector<72x1xf32>
    %31 = math.rsqrt %30 : vector<72x1xf32>
    %32 = vector.broadcast %31 : vector<72x1xf32> to vector<72x8xf32>
    %33 = arith.mulf %19, %32 : vector<72x8xf32>
    %34 = vector.broadcast %31 : vector<72x1xf32> to vector<72x8xf32>
    %35 = arith.mulf %21, %34 : vector<72x8xf32>
    %36 = vector.broadcast %4 : vector<1x8xf32> to vector<72x8xf32>
    %37 = arith.mulf %33, %36 : vector<72x8xf32>
    %38 = vector.broadcast %5 : vector<1x8xf32> to vector<72x8xf32>
    %39 = arith.mulf %35, %38 : vector<72x8xf32>
    %40 = arith.subf %37, %39 : vector<72x8xf32>
    %41 = vector.broadcast %6 : vector<1x8xf32> to vector<72x8xf32>
    %42 = arith.addf %40, %41 : vector<72x8xf32>
    %43 = vector.broadcast %5 : vector<1x8xf32> to vector<72x8xf32>
    %44 = arith.mulf %33, %43 : vector<72x8xf32>
    %45 = vector.broadcast %4 : vector<1x8xf32> to vector<72x8xf32>
    %46 = arith.mulf %35, %45 : vector<72x8xf32>
    %47 = arith.addf %44, %46 : vector<72x8xf32>
    %48 = vector.broadcast %7 : vector<1x8xf32> to vector<72x8xf32>
    %49 = arith.addf %47, %48 : vector<72x8xf32>
    %50 = tpu.concatenate %42, %49 in 1 : vector<72x8xf32>, vector<72x8xf32> -> vector<72x16xf32>
    %51 = arith.truncf %50 : vector<72x16xf32> to vector<72x16xbf16>
    %c0_12 = arith.constant 0 : index
    %c0_13 = arith.constant 0 : index
    %52 = vector.load %arg4[%c0_12, %c0_13] : memref<72x16xbf16, #tpu.memory_space<vmem>>, vector<72x16xbf16>
    tpu.vector_store %arg4[%c0_12, %c0_13], %51 {strides = array<i32>} : memref<72x16xbf16, #tpu.memory_space<vmem>>, vector<72x16xbf16>,
    return
  }
  func.func @transform_0(%arg0: i32) -> (i32, i32) {
    %c0_i32 = arith.constant 0 : i32
    %c0_i32_0 = arith.constant 0 : i32
    return %arg0, %c0_i32 : i32, i32
  }
  func.func @transform_1(%arg0: i32) -> (i32, i32) {
    %c0_i32 = arith.constant 0 : i32
    %c0_i32_0 = arith.constant 0 : i32
    %c0_i32_1 = arith.constant 0 : i32
    return %c0_i32, %c0_i32_0 : i32, i32
  }
  func.func @transform_2(%arg0: i32) -> (i32, i32) {
    %c0_i32 = arith.constant 0 : i32
    %c0_i32_0 = arith.constant 0 : i32
    %c0_i32_1 = arith.constant 0 : i32
    return %c0_i32, %c0_i32_0 : i32, i32
  }
  func.func @transform_3(%arg0: i32) -> (i32, i32) {
    %c0_i32 = arith.constant 0 : i32
    %c0_i32_0 = arith.constant 0 : i32
    return %arg0, %c0_i32 : i32, i32
  }
}

module attributes {stable_mosaic.version = 11 : i64} {
  func.func @_convnext_kernel(%arg0: i32, %arg1: memref<72x16xbf16, #tpu.memory_space<vmem>>, %arg2: memref<72x16xbf16, #tpu.memory_space<vmem>>, %arg3: memref<72x16xbf16, #tpu.memory_space<vmem>>, %arg4: memref<7x16xf32, #tpu.memory_space<vmem>>, %arg5: memref<1x32xf32, #tpu.memory_space<vmem>>, %arg6: memref<16x32xbf16, #tpu.memory_space<vmem>>, %arg7: memref<32x16xbf16, #tpu.memory_space<vmem>>, %arg8: memref<72x16xbf16, #tpu.memory_space<vmem>>) attributes {dimension_semantics = [#tpu.dimension_semantics<parallel>], iteration_bounds = array<i64: 2>, scalar_prefetch = 0 : i64, scratch_operands = 0 : i64, tpu.core_type = #tpu.core_type<tc>, window_params = [{transform_indices = @transform_0, window_bounds = array<i64: 72, 16>}, {transform_indices = @transform_1, window_bounds = array<i64: 72, 16>}, {transform_indices = @transform_2, window_bounds = array<i64: 72, 16>}, {pipeline_mode = #tpu.pipeline_mode<synchronous>, transform_indices = @transform_3, window_bounds = array<i64: 7, 16>}, {pipeline_mode = #tpu.pipeline_mode<synchronous>, transform_indices = @transform_4, window_bounds = array<i64: 1, 32>}, {pipeline_mode = #tpu.pipeline_mode<synchronous>, transform_indices = @transform_5, window_bounds = array<i64: 16, 32>}, {pipeline_mode = #tpu.pipeline_mode<synchronous>, transform_indices = @transform_6, window_bounds = array<i64: 32, 16>}, {transform_indices = @transform_7, window_bounds = array<i64: 72, 16>}]} {
    %c0 = arith.constant 0 : index
    %c0_0 = arith.constant 0 : index
    %0 = vector.load %arg4[%c0, %c0_0] : memref<7x16xf32, #tpu.memory_space<vmem>>, vector<7x16xf32>
    %c0_1 = arith.constant 0 : index
    %c0_2 = arith.constant 0 : index
    %1 = vector.load %arg1[%c0_1, %c0_2] : memref<72x16xbf16, #tpu.memory_space<vmem>>, vector<72x16xbf16>
    %2 = arith.extf %1 : vector<72x16xbf16> to vector<72x16xf32>
    %c0_3 = arith.constant 0 : index
    %c0_4 = arith.constant 0 : index
    %3 = vector.load %arg2[%c0_3, %c0_4] : memref<72x16xbf16, #tpu.memory_space<vmem>>, vector<72x16xbf16>
    %4 = arith.extf %3 : vector<72x16xbf16> to vector<72x16xf32>
    %5 = vector.extract_strided_slice %2 {offsets = [0, 0], sizes = [72, 8], strides = [1, 1]} : vector<72x16xf32> to vector<72x8xf32>
    %6 = vector.extract_strided_slice %4 {offsets = [0, 8], sizes = [72, 8], strides = [1, 1]} : vector<72x16xf32> to vector<72x8xf32>
    %7 = arith.subf %5, %6 : vector<72x8xf32>
    %8 = vector.extract_strided_slice %0 {offsets = [0, 0], sizes = [1, 8], strides = [1, 1]} : vector<7x16xf32> to vector<1x8xf32>
    %9 = vector.broadcast %8 : vector<1x8xf32> to vector<72x8xf32>
    %10 = arith.addf %7, %9 : vector<72x8xf32>
    %11 = vector.extract_strided_slice %4 {offsets = [0, 0], sizes = [72, 8], strides = [1, 1]} : vector<72x16xf32> to vector<72x8xf32>
    %12 = vector.extract_strided_slice %2 {offsets = [0, 8], sizes = [72, 8], strides = [1, 1]} : vector<72x16xf32> to vector<72x8xf32>
    %13 = arith.addf %11, %12 : vector<72x8xf32>
    %14 = vector.extract_strided_slice %0 {offsets = [0, 8], sizes = [1, 8], strides = [1, 1]} : vector<7x16xf32> to vector<1x8xf32>
    %15 = vector.broadcast %14 : vector<1x8xf32> to vector<72x8xf32>
    %16 = arith.addf %13, %15 : vector<72x8xf32>
    %17 = vector.extract_strided_slice %0 {offsets = [3, 0], sizes = [1, 8], strides = [1, 1]} : vector<7x16xf32> to vector<1x8xf32>
    %18 = vector.extract_strided_slice %0 {offsets = [3, 8], sizes = [1, 8], strides = [1, 1]} : vector<7x16xf32> to vector<1x8xf32>
    %19 = vector.extract_strided_slice %0 {offsets = [4, 0], sizes = [1, 8], strides = [1, 1]} : vector<7x16xf32> to vector<1x8xf32>
    %20 = vector.extract_strided_slice %0 {offsets = [4, 8], sizes = [1, 8], strides = [1, 1]} : vector<7x16xf32> to vector<1x8xf32>
    %cst = arith.constant dense<0.000000e+00> : vector<72xf32>
    %21 = vector.multi_reduction <add>, %10, %cst [1] : vector<72x8xf32> to vector<72xf32>
    %22 = vector.shape_cast %21 : vector<72xf32> to vector<72x1xf32>
    %cst_5 = arith.constant 8.000000e+00 : f32
    %23 = vector.broadcast %cst_5 : f32 to vector<72x1xf32>
    %24 = arith.divf %22, %23 : vector<72x1xf32>
    %cst_6 = arith.constant dense<0.000000e+00> : vector<72xf32>
    %25 = vector.multi_reduction <add>, %16, %cst_6 [1] : vector<72x8xf32> to vector<72xf32>
    %26 = vector.shape_cast %25 : vector<72xf32> to vector<72x1xf32>
    %cst_7 = arith.constant 8.000000e+00 : f32
    %27 = vector.broadcast %cst_7 : f32 to vector<72x1xf32>
    %28 = arith.divf %26, %27 : vector<72x1xf32>
    %29 = vector.broadcast %24 : vector<72x1xf32> to vector<72x8xf32>
    %30 = arith.subf %10, %29 : vector<72x8xf32>
    %31 = vector.broadcast %28 : vector<72x1xf32> to vector<72x8xf32>
    %32 = arith.subf %16, %31 : vector<72x8xf32>
    %33 = arith.mulf %30, %30 : vector<72x8xf32>
    %34 = arith.mulf %32, %32 : vector<72x8xf32>
    %35 = arith.addf %33, %34 : vector<72x8xf32>
    %cst_8 = arith.constant dense<0.000000e+00> : vector<72xf32>
    %36 = vector.multi_reduction <add>, %35, %cst_8 [1] : vector<72x8xf32> to vector<72xf32>
    %37 = vector.shape_cast %36 : vector<72xf32> to vector<72x1xf32>
    %cst_9 = arith.constant 8.000000e+00 : f32
    %38 = vector.broadcast %cst_9 : f32 to vector<72x1xf32>
    %39 = arith.divf %37, %38 : vector<72x1xf32>
    %cst_10 = arith.constant 9.99999997E-7 : f32
    %40 = vector.broadcast %cst_10 : f32 to vector<72x1xf32>
    %41 = arith.addf %39, %40 : vector<72x1xf32>
    %42 = math.rsqrt %41 : vector<72x1xf32>
    %43 = vector.broadcast %42 : vector<72x1xf32> to vector<72x8xf32>
    %44 = arith.mulf %30, %43 : vector<72x8xf32>
    %45 = vector.broadcast %42 : vector<72x1xf32> to vector<72x8xf32>
    %46 = arith.mulf %32, %45 : vector<72x8xf32>
    %47 = vector.broadcast %17 : vector<1x8xf32> to vector<72x8xf32>
    %48 = arith.mulf %44, %47 : vector<72x8xf32>
    %49 = vector.broadcast %18 : vector<1x8xf32> to vector<72x8xf32>
    %50 = arith.mulf %46, %49 : vector<72x8xf32>
    %51 = arith.subf %48, %50 : vector<72x8xf32>
    %52 = vector.broadcast %19 : vector<1x8xf32> to vector<72x8xf32>
    %53 = arith.addf %51, %52 : vector<72x8xf32>
    %54 = vector.broadcast %18 : vector<1x8xf32> to vector<72x8xf32>
    %55 = arith.mulf %44, %54 : vector<72x8xf32>
    %56 = vector.broadcast %17 : vector<1x8xf32> to vector<72x8xf32>
    %57 = arith.mulf %46, %56 : vector<72x8xf32>
    %58 = arith.addf %55, %57 : vector<72x8xf32>
    %59 = vector.broadcast %20 : vector<1x8xf32> to vector<72x8xf32>
    %60 = arith.addf %58, %59 : vector<72x8xf32>
    %61 = tpu.concatenate %53, %60 in 1 : vector<72x8xf32>, vector<72x8xf32> -> vector<72x16xf32>
    %c0_11 = arith.constant 0 : index
    %c0_12 = arith.constant 0 : index
    %62 = vector.load %arg6[%c0_11, %c0_12] : memref<16x32xbf16, #tpu.memory_space<vmem>>, vector<16x32xbf16>
    %63 = arith.truncf %61 : vector<72x16xf32> to vector<72x16xbf16>
    %cst_13 = arith.constant dense<0.000000e+00> : vector<72x32xf32>
    %64 = tpu.matmul %63, %62, %cst_13 {dimension_numbers = #tpu.dot_dimension_numbers<[1], [0], [0], [1], [0, 0, 1, 1], [], []>} : vector<72x16xbf16>, vector<16x32xbf16>, vector<72x32xf32> -> vector<72x32xf32>
    %c0_14 = arith.constant 0 : index
    %c0_15 = arith.constant 0 : index
    %65 = vector.load %arg5[%c0_14, %c0_15] : memref<1x32xf32, #tpu.memory_space<vmem>>, vector<1x32xf32>
    %66 = vector.broadcast %65 : vector<1x32xf32> to vector<72x32xf32>
    %67 = arith.addf %64, %66 : vector<72x32xf32>
    %68 = arith.truncf %67 : vector<72x32xf32> to vector<72x32xbf16>
    %69 = arith.mulf %68, %68 : vector<72x32xbf16>
    %70 = arith.mulf %68, %69 : vector<72x32xbf16>
    %cst_16 = arith.constant 4.467770e-02 : bf16
    %71 = vector.broadcast %cst_16 : bf16 to vector<72x32xbf16>
    %72 = arith.mulf %71, %70 : vector<72x32xbf16>
    %73 = arith.addf %68, %72 : vector<72x32xbf16>
    %cst_17 = arith.constant 7.968750e-01 : bf16
    %74 = vector.broadcast %cst_17 : bf16 to vector<72x32xbf16>
    %75 = arith.mulf %74, %73 : vector<72x32xbf16>
    %76 = math.tanh %75 : vector<72x32xbf16>
    %cst_18 = arith.constant 1.000000e+00 : bf16
    %77 = vector.broadcast %cst_18 : bf16 to vector<72x32xbf16>
    %78 = arith.addf %77, %76 : vector<72x32xbf16>
    %cst_19 = arith.constant 5.000000e-01 : bf16
    %79 = vector.broadcast %cst_19 : bf16 to vector<72x32xbf16>
    %80 = arith.mulf %79, %78 : vector<72x32xbf16>
    %81 = arith.mulf %68, %80 : vector<72x32xbf16>
    %c0_20 = arith.constant 0 : index
    %c0_21 = arith.constant 0 : index
    %82 = vector.load %arg7[%c0_20, %c0_21] : memref<32x16xbf16, #tpu.memory_space<vmem>>, vector<32x16xbf16>
    %cst_22 = arith.constant dense<0.000000e+00> : vector<72x16xf32>
    %83 = tpu.matmul %81, %82, %cst_22 {dimension_numbers = #tpu.dot_dimension_numbers<[1], [0], [0], [1], [0, 0, 1, 1], [], []>} : vector<72x32xbf16>, vector<32x16xbf16>, vector<72x16xf32> -> vector<72x16xf32>
    %84 = vector.extract_strided_slice %0 {offsets = [2, 0], sizes = [1, 16], strides = [1, 1]} : vector<7x16xf32> to vector<1x16xf32>
    %85 = vector.broadcast %84 : vector<1x16xf32> to vector<72x16xf32>
    %86 = arith.addf %83, %85 : vector<72x16xf32>
    %c0_23 = arith.constant 0 : index
    %c0_24 = arith.constant 0 : index
    %87 = vector.load %arg3[%c0_23, %c0_24] : memref<72x16xbf16, #tpu.memory_space<vmem>>, vector<72x16xbf16>
    %88 = arith.extf %87 : vector<72x16xbf16> to vector<72x16xf32>
    %89 = vector.extract_strided_slice %0 {offsets = [1, 0], sizes = [1, 16], strides = [1, 1]} : vector<7x16xf32> to vector<1x16xf32>
    %90 = vector.broadcast %89 : vector<1x16xf32> to vector<72x16xf32>
    %91 = arith.mulf %90, %86 : vector<72x16xf32>
    %92 = arith.addf %88, %91 : vector<72x16xf32>
    %93 = arith.truncf %92 : vector<72x16xf32> to vector<72x16xbf16>
    %c0_25 = arith.constant 0 : index
    %c0_26 = arith.constant 0 : index
    %94 = vector.load %arg8[%c0_25, %c0_26] : memref<72x16xbf16, #tpu.memory_space<vmem>>, vector<72x16xbf16>
    tpu.vector_store %arg8[%c0_25, %c0_26], %93 {strides = array<i32>} : memref<72x16xbf16, #tpu.memory_space<vmem>>, vector<72x16xbf16>,
    return
  }
  func.func @transform_0(%arg0: i32) -> (i32, i32) {
    %c0_i32 = arith.constant 0 : i32
    %c0_i32_0 = arith.constant 0 : i32
    return %arg0, %c0_i32 : i32, i32
  }
  func.func @transform_1(%arg0: i32) -> (i32, i32) {
    %c0_i32 = arith.constant 0 : i32
    %c0_i32_0 = arith.constant 0 : i32
    return %arg0, %c0_i32 : i32, i32
  }
  func.func @transform_2(%arg0: i32) -> (i32, i32) {
    %c0_i32 = arith.constant 0 : i32
    %c0_i32_0 = arith.constant 0 : i32
    return %arg0, %c0_i32 : i32, i32
  }
  func.func @transform_3(%arg0: i32) -> (i32, i32) {
    %c0_i32 = arith.constant 0 : i32
    %c0_i32_0 = arith.constant 0 : i32
    %c0_i32_1 = arith.constant 0 : i32
    return %c0_i32, %c0_i32_0 : i32, i32
  }
  func.func @transform_4(%arg0: i32) -> (i32, i32) {
    %c0_i32 = arith.constant 0 : i32
    %c0_i32_0 = arith.constant 0 : i32
    %c0_i32_1 = arith.constant 0 : i32
    return %c0_i32, %c0_i32_0 : i32, i32
  }
  func.func @transform_5(%arg0: i32) -> (i32, i32) {
    %c0_i32 = arith.constant 0 : i32
    %c0_i32_0 = arith.constant 0 : i32
    %c0_i32_1 = arith.constant 0 : i32
    return %c0_i32, %c0_i32_0 : i32, i32
  }
  func.func @transform_6(%arg0: i32) -> (i32, i32) {
    %c0_i32 = arith.constant 0 : i32
    %c0_i32_0 = arith.constant 0 : i32
    %c0_i32_1 = arith.constant 0 : i32
    return %c0_i32, %c0_i32_0 : i32, i32
  }
  func.func @transform_7(%arg0: i32) -> (i32, i32) {
    %c0_i32 = arith.constant 0 : i32
    %c0_i32_0 = arith.constant 0 : i32
    return %arg0, %c0_i32 : i32, i32
  }
}

module attributes {stable_mosaic.version = 11 : i64} {
  func.func @_convnext_kernel(%arg0: i32, %arg1: memref<72x16xbf16, #tpu.memory_space<vmem>>, %arg2: memref<72x16xbf16, #tpu.memory_space<vmem>>, %arg3: memref<72x16xbf16, #tpu.memory_space<vmem>>, %arg4: memref<7x16xf32, #tpu.memory_space<vmem>>, %arg5: memref<1x32xf32, #tpu.memory_space<vmem>>, %arg6: memref<16x32xbf16, #tpu.memory_space<vmem>>, %arg7: memref<32x16xbf16, #tpu.memory_space<vmem>>, %arg8: memref<72x16xbf16, #tpu.memory_space<vmem>>) attributes {dimension_semantics = [#tpu.dimension_semantics<parallel>], iteration_bounds = array<i64: 2>, scalar_prefetch = 0 : i64, scratch_operands = 0 : i64, tpu.core_type = #tpu.core_type<tc>, window_params = [{transform_indices = @transform_0, window_bounds = array<i64: 72, 16>}, {transform_indices = @transform_1, window_bounds = array<i64: 72, 16>}, {transform_indices = @transform_2, window_bounds = array<i64: 72, 16>}, {pipeline_mode = #tpu.pipeline_mode<synchronous>, transform_indices = @transform_3, window_bounds = array<i64: 7, 16>}, {pipeline_mode = #tpu.pipeline_mode<synchronous>, transform_indices = @transform_4, window_bounds = array<i64: 1, 32>}, {pipeline_mode = #tpu.pipeline_mode<synchronous>, transform_indices = @transform_5, window_bounds = array<i64: 16, 32>}, {pipeline_mode = #tpu.pipeline_mode<synchronous>, transform_indices = @transform_6, window_bounds = array<i64: 32, 16>}, {transform_indices = @transform_7, window_bounds = array<i64: 72, 16>}]} {
    %c0 = arith.constant 0 : index
    %c0_0 = arith.constant 0 : index
    %0 = vector.load %arg4[%c0, %c0_0] : memref<7x16xf32, #tpu.memory_space<vmem>>, vector<7x16xf32>
    %c0_1 = arith.constant 0 : index
    %c0_2 = arith.constant 0 : index
    %1 = vector.load %arg1[%c0_1, %c0_2] : memref<72x16xbf16, #tpu.memory_space<vmem>>, vector<72x16xbf16>
    %2 = arith.extf %1 : vector<72x16xbf16> to vector<72x16xf32>
    %c0_3 = arith.constant 0 : index
    %c0_4 = arith.constant 0 : index
    %3 = vector.load %arg2[%c0_3, %c0_4] : memref<72x16xbf16, #tpu.memory_space<vmem>>, vector<72x16xbf16>
    %4 = arith.extf %3 : vector<72x16xbf16> to vector<72x16xf32>
    %5 = vector.extract_strided_slice %2 {offsets = [0, 0], sizes = [72, 8], strides = [1, 1]} : vector<72x16xf32> to vector<72x8xf32>
    %6 = vector.extract_strided_slice %4 {offsets = [0, 8], sizes = [72, 8], strides = [1, 1]} : vector<72x16xf32> to vector<72x8xf32>
    %7 = arith.subf %5, %6 : vector<72x8xf32>
    %8 = vector.extract_strided_slice %0 {offsets = [0, 0], sizes = [1, 8], strides = [1, 1]} : vector<7x16xf32> to vector<1x8xf32>
    %9 = vector.broadcast %8 : vector<1x8xf32> to vector<72x8xf32>
    %10 = arith.addf %7, %9 : vector<72x8xf32>
    %11 = vector.extract_strided_slice %4 {offsets = [0, 0], sizes = [72, 8], strides = [1, 1]} : vector<72x16xf32> to vector<72x8xf32>
    %12 = vector.extract_strided_slice %2 {offsets = [0, 8], sizes = [72, 8], strides = [1, 1]} : vector<72x16xf32> to vector<72x8xf32>
    %13 = arith.addf %11, %12 : vector<72x8xf32>
    %14 = vector.extract_strided_slice %0 {offsets = [0, 8], sizes = [1, 8], strides = [1, 1]} : vector<7x16xf32> to vector<1x8xf32>
    %15 = vector.broadcast %14 : vector<1x8xf32> to vector<72x8xf32>
    %16 = arith.addf %13, %15 : vector<72x8xf32>
    %17 = vector.extract_strided_slice %0 {offsets = [3, 0], sizes = [1, 8], strides = [1, 1]} : vector<7x16xf32> to vector<1x8xf32>
    %18 = vector.extract_strided_slice %0 {offsets = [3, 8], sizes = [1, 8], strides = [1, 1]} : vector<7x16xf32> to vector<1x8xf32>
    %19 = vector.extract_strided_slice %0 {offsets = [4, 0], sizes = [1, 8], strides = [1, 1]} : vector<7x16xf32> to vector<1x8xf32>
    %20 = vector.extract_strided_slice %0 {offsets = [4, 8], sizes = [1, 8], strides = [1, 1]} : vector<7x16xf32> to vector<1x8xf32>
    %cst = arith.constant dense<0.000000e+00> : vector<72xf32>
    %21 = vector.multi_reduction <add>, %10, %cst [1] : vector<72x8xf32> to vector<72xf32>
    %22 = vector.shape_cast %21 : vector<72xf32> to vector<72x1xf32>
    %cst_5 = arith.constant 8.000000e+00 : f32
    %23 = vector.broadcast %cst_5 : f32 to vector<72x1xf32>
    %24 = arith.divf %22, %23 : vector<72x1xf32>
    %cst_6 = arith.constant dense<0.000000e+00> : vector<72xf32>
    %25 = vector.multi_reduction <add>, %16, %cst_6 [1] : vector<72x8xf32> to vector<72xf32>
    %26 = vector.shape_cast %25 : vector<72xf32> to vector<72x1xf32>
    %cst_7 = arith.constant 8.000000e+00 : f32
    %27 = vector.broadcast %cst_7 : f32 to vector<72x1xf32>
    %28 = arith.divf %26, %27 : vector<72x1xf32>
    %29 = vector.broadcast %24 : vector<72x1xf32> to vector<72x8xf32>
    %30 = arith.subf %10, %29 : vector<72x8xf32>
    %31 = vector.broadcast %28 : vector<72x1xf32> to vector<72x8xf32>
    %32 = arith.subf %16, %31 : vector<72x8xf32>
    %33 = arith.mulf %30, %30 : vector<72x8xf32>
    %34 = arith.mulf %32, %32 : vector<72x8xf32>
    %35 = arith.addf %33, %34 : vector<72x8xf32>
    %cst_8 = arith.constant dense<0.000000e+00> : vector<72xf32>
    %36 = vector.multi_reduction <add>, %35, %cst_8 [1] : vector<72x8xf32> to vector<72xf32>
    %37 = vector.shape_cast %36 : vector<72xf32> to vector<72x1xf32>
    %cst_9 = arith.constant 8.000000e+00 : f32
    %38 = vector.broadcast %cst_9 : f32 to vector<72x1xf32>
    %39 = arith.divf %37, %38 : vector<72x1xf32>
    %cst_10 = arith.constant 9.99999997E-7 : f32
    %40 = vector.broadcast %cst_10 : f32 to vector<72x1xf32>
    %41 = arith.addf %39, %40 : vector<72x1xf32>
    %42 = math.rsqrt %41 : vector<72x1xf32>
    %43 = vector.broadcast %42 : vector<72x1xf32> to vector<72x8xf32>
    %44 = arith.mulf %30, %43 : vector<72x8xf32>
    %45 = vector.broadcast %42 : vector<72x1xf32> to vector<72x8xf32>
    %46 = arith.mulf %32, %45 : vector<72x8xf32>
    %47 = vector.broadcast %17 : vector<1x8xf32> to vector<72x8xf32>
    %48 = arith.mulf %44, %47 : vector<72x8xf32>
    %49 = vector.broadcast %18 : vector<1x8xf32> to vector<72x8xf32>
    %50 = arith.mulf %46, %49 : vector<72x8xf32>
    %51 = arith.subf %48, %50 : vector<72x8xf32>
    %52 = vector.broadcast %19 : vector<1x8xf32> to vector<72x8xf32>
    %53 = arith.addf %51, %52 : vector<72x8xf32>
    %54 = vector.broadcast %18 : vector<1x8xf32> to vector<72x8xf32>
    %55 = arith.mulf %44, %54 : vector<72x8xf32>
    %56 = vector.broadcast %17 : vector<1x8xf32> to vector<72x8xf32>
    %57 = arith.mulf %46, %56 : vector<72x8xf32>
    %58 = arith.addf %55, %57 : vector<72x8xf32>
    %59 = vector.broadcast %20 : vector<1x8xf32> to vector<72x8xf32>
    %60 = arith.addf %58, %59 : vector<72x8xf32>
    %61 = tpu.concatenate %53, %60 in 1 : vector<72x8xf32>, vector<72x8xf32> -> vector<72x16xf32>
    %c0_11 = arith.constant 0 : index
    %c0_12 = arith.constant 0 : index
    %62 = vector.load %arg6[%c0_11, %c0_12] : memref<16x32xbf16, #tpu.memory_space<vmem>>, vector<16x32xbf16>
    %63 = arith.truncf %61 : vector<72x16xf32> to vector<72x16xbf16>
    %cst_13 = arith.constant dense<0.000000e+00> : vector<72x32xf32>
    %64 = tpu.matmul %63, %62, %cst_13 {dimension_numbers = #tpu.dot_dimension_numbers<[1], [0], [0], [1], [0, 0, 1, 1], [], []>} : vector<72x16xbf16>, vector<16x32xbf16>, vector<72x32xf32> -> vector<72x32xf32>
    %c0_14 = arith.constant 0 : index
    %c0_15 = arith.constant 0 : index
    %65 = vector.load %arg5[%c0_14, %c0_15] : memref<1x32xf32, #tpu.memory_space<vmem>>, vector<1x32xf32>
    %66 = vector.broadcast %65 : vector<1x32xf32> to vector<72x32xf32>
    %67 = arith.addf %64, %66 : vector<72x32xf32>
    %68 = arith.truncf %67 : vector<72x32xf32> to vector<72x32xbf16>
    %69 = arith.mulf %68, %68 : vector<72x32xbf16>
    %70 = arith.mulf %68, %69 : vector<72x32xbf16>
    %cst_16 = arith.constant 4.467770e-02 : bf16
    %71 = vector.broadcast %cst_16 : bf16 to vector<72x32xbf16>
    %72 = arith.mulf %71, %70 : vector<72x32xbf16>
    %73 = arith.addf %68, %72 : vector<72x32xbf16>
    %cst_17 = arith.constant 7.968750e-01 : bf16
    %74 = vector.broadcast %cst_17 : bf16 to vector<72x32xbf16>
    %75 = arith.mulf %74, %73 : vector<72x32xbf16>
    %76 = math.tanh %75 : vector<72x32xbf16>
    %cst_18 = arith.constant 1.000000e+00 : bf16
    %77 = vector.broadcast %cst_18 : bf16 to vector<72x32xbf16>
    %78 = arith.addf %77, %76 : vector<72x32xbf16>
    %cst_19 = arith.constant 5.000000e-01 : bf16
    %79 = vector.broadcast %cst_19 : bf16 to vector<72x32xbf16>
    %80 = arith.mulf %79, %78 : vector<72x32xbf16>
    %81 = arith.mulf %68, %80 : vector<72x32xbf16>
    %c0_20 = arith.constant 0 : index
    %c0_21 = arith.constant 0 : index
    %82 = vector.load %arg7[%c0_20, %c0_21] : memref<32x16xbf16, #tpu.memory_space<vmem>>, vector<32x16xbf16>
    %cst_22 = arith.constant dense<0.000000e+00> : vector<72x16xf32>
    %83 = tpu.matmul %81, %82, %cst_22 {dimension_numbers = #tpu.dot_dimension_numbers<[1], [0], [0], [1], [0, 0, 1, 1], [], []>} : vector<72x32xbf16>, vector<32x16xbf16>, vector<72x16xf32> -> vector<72x16xf32>
    %84 = vector.extract_strided_slice %0 {offsets = [2, 0], sizes = [1, 16], strides = [1, 1]} : vector<7x16xf32> to vector<1x16xf32>
    %85 = vector.broadcast %84 : vector<1x16xf32> to vector<72x16xf32>
    %86 = arith.addf %83, %85 : vector<72x16xf32>
    %c0_23 = arith.constant 0 : index
    %c0_24 = arith.constant 0 : index
    %87 = vector.load %arg3[%c0_23, %c0_24] : memref<72x16xbf16, #tpu.memory_space<vmem>>, vector<72x16xbf16>
    %88 = arith.extf %87 : vector<72x16xbf16> to vector<72x16xf32>
    %89 = vector.extract_strided_slice %0 {offsets = [1, 0], sizes = [1, 16], strides = [1, 1]} : vector<7x16xf32> to vector<1x16xf32>
    %90 = vector.broadcast %89 : vector<1x16xf32> to vector<72x16xf32>
    %91 = arith.mulf %90, %86 : vector<72x16xf32>
    %92 = arith.addf %88, %91 : vector<72x16xf32>
    %93 = vector.extract_strided_slice %0 {offsets = [5, 0], sizes = [1, 8], strides = [1, 1]} : vector<7x16xf32> to vector<1x8xf32>
    %94 = vector.extract_strided_slice %0 {offsets = [5, 8], sizes = [1, 8], strides = [1, 1]} : vector<7x16xf32> to vector<1x8xf32>
    %95 = vector.extract_strided_slice %0 {offsets = [6, 0], sizes = [1, 8], strides = [1, 1]} : vector<7x16xf32> to vector<1x8xf32>
    %96 = vector.extract_strided_slice %0 {offsets = [6, 8], sizes = [1, 8], strides = [1, 1]} : vector<7x16xf32> to vector<1x8xf32>
    %97 = vector.extract_strided_slice %92 {offsets = [0, 0], sizes = [72, 8], strides = [1, 1]} : vector<72x16xf32> to vector<72x8xf32>
    %98 = vector.extract_strided_slice %92 {offsets = [0, 8], sizes = [72, 8], strides = [1, 1]} : vector<72x16xf32> to vector<72x8xf32>
    %cst_25 = arith.constant dense<0.000000e+00> : vector<72xf32>
    %99 = vector.multi_reduction <add>, %97, %cst_25 [1] : vector<72x8xf32> to vector<72xf32>
    %100 = vector.shape_cast %99 : vector<72xf32> to vector<72x1xf32>
    %cst_26 = arith.constant 8.000000e+00 : f32
    %101 = vector.broadcast %cst_26 : f32 to vector<72x1xf32>
    %102 = arith.divf %100, %101 : vector<72x1xf32>
    %cst_27 = arith.constant dense<0.000000e+00> : vector<72xf32>
    %103 = vector.multi_reduction <add>, %98, %cst_27 [1] : vector<72x8xf32> to vector<72xf32>
    %104 = vector.shape_cast %103 : vector<72xf32> to vector<72x1xf32>
    %cst_28 = arith.constant 8.000000e+00 : f32
    %105 = vector.broadcast %cst_28 : f32 to vector<72x1xf32>
    %106 = arith.divf %104, %105 : vector<72x1xf32>
    %107 = vector.broadcast %102 : vector<72x1xf32> to vector<72x8xf32>
    %108 = arith.subf %97, %107 : vector<72x8xf32>
    %109 = vector.broadcast %106 : vector<72x1xf32> to vector<72x8xf32>
    %110 = arith.subf %98, %109 : vector<72x8xf32>
    %111 = arith.mulf %108, %108 : vector<72x8xf32>
    %112 = arith.mulf %110, %110 : vector<72x8xf32>
    %113 = arith.addf %111, %112 : vector<72x8xf32>
    %cst_29 = arith.constant dense<0.000000e+00> : vector<72xf32>
    %114 = vector.multi_reduction <add>, %113, %cst_29 [1] : vector<72x8xf32> to vector<72xf32>
    %115 = vector.shape_cast %114 : vector<72xf32> to vector<72x1xf32>
    %cst_30 = arith.constant 8.000000e+00 : f32
    %116 = vector.broadcast %cst_30 : f32 to vector<72x1xf32>
    %117 = arith.divf %115, %116 : vector<72x1xf32>
    %cst_31 = arith.constant 9.99999997E-7 : f32
    %118 = vector.broadcast %cst_31 : f32 to vector<72x1xf32>
    %119 = arith.addf %117, %118 : vector<72x1xf32>
    %120 = math.rsqrt %119 : vector<72x1xf32>
    %121 = vector.broadcast %120 : vector<72x1xf32> to vector<72x8xf32>
    %122 = arith.mulf %108, %121 : vector<72x8xf32>
    %123 = vector.broadcast %120 : vector<72x1xf32> to vector<72x8xf32>
    %124 = arith.mulf %110, %123 : vector<72x8xf32>
    %125 = vector.broadcast %93 : vector<1x8xf32> to vector<72x8xf32>
    %126 = arith.mulf %122, %125 : vector<72x8xf32>
    %127 = vector.broadcast %94 : vector<1x8xf32> to vector<72x8xf32>
    %128 = arith.mulf %124, %127 : vector<72x8xf32>
    %129 = arith.subf %126, %128 : vector<72x8xf32>
    %130 = vector.broadcast %95 : vector<1x8xf32> to vector<72x8xf32>
    %131 = arith.addf %129, %130 : vector<72x8xf32>
    %132 = vector.broadcast %94 : vector<1x8xf32> to vector<72x8xf32>
    %133 = arith.mulf %122, %132 : vector<72x8xf32>
    %134 = vector.broadcast %93 : vector<1x8xf32> to vector<72x8xf32>
    %135 = arith.mulf %124, %134 : vector<72x8xf32>
    %136 = arith.addf %133, %135 : vector<72x8xf32>
    %137 = vector.broadcast %96 : vector<1x8xf32> to vector<72x8xf32>
    %138 = arith.addf %136, %137 : vector<72x8xf32>
    %139 = tpu.concatenate %131, %138 in 1 : vector<72x8xf32>, vector<72x8xf32> -> vector<72x16xf32>
    %140 = arith.truncf %139 : vector<72x16xf32> to vector<72x16xbf16>
    %c0_32 = arith.constant 0 : index
    %c0_33 = arith.constant 0 : index
    %141 = vector.load %arg8[%c0_32, %c0_33] : memref<72x16xbf16, #tpu.memory_space<vmem>>, vector<72x16xbf16>
    tpu.vector_store %arg8[%c0_32, %c0_33], %140 {strides = array<i32>} : memref<72x16xbf16, #tpu.memory_space<vmem>>, vector<72x16xbf16>,
    return
  }
  func.func @transform_0(%arg0: i32) -> (i32, i32) {
    %c0_i32 = arith.constant 0 : i32
    %c0_i32_0 = arith.constant 0 : i32
    return %arg0, %c0_i32 : i32, i32
  }
  func.func @transform_1(%arg0: i32) -> (i32, i32) {
    %c0_i32 = arith.constant 0 : i32
    %c0_i32_0 = arith.constant 0 : i32
    return %arg0, %c0_i32 : i32, i32
  }
  func.func @transform_2(%arg0: i32) -> (i32, i32) {
    %c0_i32 = arith.constant 0 : i32
    %c0_i32_0 = arith.constant 0 : i32
    return %arg0, %c0_i32 : i32, i32
  }
  func.func @transform_3(%arg0: i32) -> (i32, i32) {
    %c0_i32 = arith.constant 0 : i32
    %c0_i32_0 = arith.constant 0 : i32
    %c0_i32_1 = arith.constant 0 : i32
    return %c0_i32, %c0_i32_0 : i32, i32
  }
  func.func @transform_4(%arg0: i32) -> (i32, i32) {
    %c0_i32 = arith.constant 0 : i32
    %c0_i32_0 = arith.constant 0 : i32
    %c0_i32_1 = arith.constant 0 : i32
    return %c0_i32, %c0_i32_0 : i32, i32
  }
  func.func @transform_5(%arg0: i32) -> (i32, i32) {
    %c0_i32 = arith.constant 0 : i32
    %c0_i32_0 = arith.constant 0 : i32
    %c0_i32_1 = arith.constant 0 : i32
    return %c0_i32, %c0_i32_0 : i32, i32
  }
  func.func @transform_6(%arg0: i32) -> (i32, i32) {
    %c0_i32 = arith.constant 0 : i32
    %c0_i32_0 = arith.constant 0 : i32
    %c0_i32_1 = arith.constant 0 : i32
    return %c0_i32, %c0_i32_0 : i32, i32
  }
  func.func @transform_7(%arg0: i32) -> (i32, i32) {
    %c0_i32 = arith.constant 0 : i32
    %c0_i32_0 = arith.constant 0 : i32
    return %arg0, %c0_i32 : i32, i32
  }
}

module attributes {stable_mosaic.version = 11 : i64} {
  func.func @_dense_acc_kernel(%arg0: i32, %arg1: i32, %arg2: memref<8x144xbf16, #tpu.memory_space<vmem>>, %arg3: memref<144x16xbf16, #tpu.memory_space<vmem>>, %arg4: memref<1x16xf32, #tpu.memory_space<vmem>>, %arg5: memref<8x16xf32, #tpu.memory_space<vmem>>, %arg6: memref<8x16xf32, #tpu.memory_space<vmem>>) attributes {dimension_semantics = [#tpu.dimension_semantics<parallel>, #tpu.dimension_semantics<arbitrary>], iteration_bounds = array<i64: 2, 1>, scalar_prefetch = 0 : i64, scratch_operands = 1 : i64, tpu.core_type = #tpu.core_type<tc>, window_params = [{transform_indices = @transform_0, window_bounds = array<i64: 8, 144>}, {transform_indices = @transform_1, window_bounds = array<i64: 144, 16>}, {pipeline_mode = #tpu.pipeline_mode<synchronous>, transform_indices = @transform_2, window_bounds = array<i64: 1, 16>}, {transform_indices = @transform_3, window_bounds = array<i64: 8, 16>}]} {
    %c0_i32 = arith.constant 0 : i32
    %0 = arith.cmpi eq, %arg1, %c0_i32 : i32
    %1 = arith.extui %0 : i1 to i32
    %c0_i32_0 = arith.constant 0 : i32
    %2 = arith.cmpi ne, %1, %c0_i32_0 : i32
    scf.if %2 {
      %cst_10 = arith.constant 0.000000e+00 : f32
      %12 = vector.broadcast %cst_10 : f32 to vector<8x16xf32>
      %c0_11 = arith.constant 0 : index
      %c0_12 = arith.constant 0 : index
      %13 = vector.load %arg6[%c0_11, %c0_12] : memref<8x16xf32, #tpu.memory_space<vmem>>, vector<8x16xf32>
      tpu.vector_store %arg6[%c0_11, %c0_12], %12 {strides = array<i32>} : memref<8x16xf32, #tpu.memory_space<vmem>>, vector<8x16xf32>,
    } else {
    }
    %c0 = arith.constant 0 : index
    %c0_1 = arith.constant 0 : index
    %3 = vector.load %arg6[%c0, %c0_1] : memref<8x16xf32, #tpu.memory_space<vmem>>, vector<8x16xf32>
    %c0_2 = arith.constant 0 : index
    %c0_3 = arith.constant 0 : index
    %4 = vector.load %arg2[%c0_2, %c0_3] : memref<8x144xbf16, #tpu.memory_space<vmem>>, vector<8x144xbf16>
    %c0_4 = arith.constant 0 : index
    %c0_5 = arith.constant 0 : index
    %5 = vector.load %arg3[%c0_4, %c0_5] : memref<144x16xbf16, #tpu.memory_space<vmem>>, vector<144x16xbf16>
    %cst = arith.constant dense<0.000000e+00> : vector<8x16xf32>
    %6 = tpu.matmul %4, %5, %cst {dimension_numbers = #tpu.dot_dimension_numbers<[1], [0], [0], [1], [0, 0, 1, 1], [], []>} : vector<8x144xbf16>, vector<144x16xbf16>, vector<8x16xf32> -> vector<8x16xf32>
    %7 = arith.addf %3, %6 : vector<8x16xf32>
    %c0_6 = arith.constant 0 : index
    %c0_7 = arith.constant 0 : index
    %8 = vector.load %arg6[%c0_6, %c0_7] : memref<8x16xf32, #tpu.memory_space<vmem>>, vector<8x16xf32>
    tpu.vector_store %arg6[%c0_6, %c0_7], %7 {strides = array<i32>} : memref<8x16xf32, #tpu.memory_space<vmem>>, vector<8x16xf32>,
    %c0_i32_8 = arith.constant 0 : i32
    %9 = arith.cmpi eq, %arg1, %c0_i32_8 : i32
    %10 = arith.extui %9 : i1 to i32
    %c0_i32_9 = arith.constant 0 : i32
    %11 = arith.cmpi ne, %10, %c0_i32_9 : i32
    scf.if %11 {
      %c0_10 = arith.constant 0 : index
      %c0_11 = arith.constant 0 : index
      %12 = vector.load %arg6[%c0_10, %c0_11] : memref<8x16xf32, #tpu.memory_space<vmem>>, vector<8x16xf32>
      %c0_12 = arith.constant 0 : index
      %c0_13 = arith.constant 0 : index
      %13 = vector.load %arg4[%c0_12, %c0_13] : memref<1x16xf32, #tpu.memory_space<vmem>>, vector<1x16xf32>
      %14 = vector.broadcast %13 : vector<1x16xf32> to vector<8x16xf32>
      %15 = arith.addf %12, %14 : vector<8x16xf32>
      %c0_14 = arith.constant 0 : index
      %c0_15 = arith.constant 0 : index
      %16 = vector.load %arg5[%c0_14, %c0_15] : memref<8x16xf32, #tpu.memory_space<vmem>>, vector<8x16xf32>
      tpu.vector_store %arg5[%c0_14, %c0_15], %15 {strides = array<i32>} : memref<8x16xf32, #tpu.memory_space<vmem>>, vector<8x16xf32>,
    } else {
    }
    return
  }
  func.func @transform_0(%arg0: i32, %arg1: i32) -> (i32, i32) {
    %c0_i32 = arith.constant 0 : i32
    return %arg0, %arg1 : i32, i32
  }
  func.func @transform_1(%arg0: i32, %arg1: i32) -> (i32, i32) {
    %c0_i32 = arith.constant 0 : i32
    %c0_i32_0 = arith.constant 0 : i32
    return %arg1, %c0_i32 : i32, i32
  }
  func.func @transform_2(%arg0: i32, %arg1: i32) -> (i32, i32) {
    %c0_i32 = arith.constant 0 : i32
    %c0_i32_0 = arith.constant 0 : i32
    %c0_i32_1 = arith.constant 0 : i32
    return %c0_i32, %c0_i32_0 : i32, i32
  }
  func.func @transform_3(%arg0: i32, %arg1: i32) -> (i32, i32) {
    %c0_i32 = arith.constant 0 : i32
    %c0_i32_0 = arith.constant 0 : i32
    return %arg0, %c0_i32 : i32, i32
  }
}

</mosaic_0001>

<llo_original>
// kernel: mul.9
$region0: #{mul.9}
  #allocation0 [shape = 's32[1]{0}', space=sflag, size = 0x4, scoped, tag = 'scoped memory for mul.9']
  %s0 = inlined_call_operand.vmem [shape: f32[2,32], index: 0, kind: input, shape index: {}]
  %s1 = inlined_call_operand.vmem [shape: f32[2,32], index: 1, kind: input, shape index: {}]
  %s2 = inlined_call_operand.vmem [shape: bf16[2,32], index: 2, kind: output, shape index: {}]
  %v3 = vld [vmem:[%s0] sm:$0x3]
  %v4 = vld [vmem:[%s1] sm:$0x3]
  %5 = xla_tuple %v3, %v4
  %6 = xla_tuple %5
  %v7 = vmul.f32 %v3, %v4
  %8 = xla_tuple %v7
  %v9 = vpack.c.bf16 0.0, %v7
  %10 = vst [vmem:[%s2] sm:$0x1] %v9

// kernel: neg.12
$region0: #{neg.12}
  #allocation2 [shape = 's32[1]{0}', space=sflag, size = 0x4, scoped, tag = 'scoped memory for neg.12']
  %s0 = inlined_call_operand.vmem [shape: f32[16,8], index: 0, kind: input, shape index: {}]
  %s1 = inlined_call_operand.hbm [shape: bf16[16,8], index: 1, kind: output, shape index: {}]
  $region1: #{neg.12} parent=0
    #allocation0 [shape = 'u8[2048]{0}', space=vmem, size = 0x800, scoped, tag = 'operand span for operand 1']
    #allocation1 [shape = 's32[1]{0}', space=sflag, size = 0x4, scoped, tag = 'scoped memory for neg.12']
    %2 = vsyncpa [#allocation1], 0
    %v3 = vld [vmem:[%s0] sm:$0xff]
    %4 = xla_tuple %v3
    %5 = xla_tuple %4
    %v6 = vxor.u32 %v3, 2147483648
    %7 = xla_tuple %v6
    %v8 = vpack.c.bf16 0.0, %v6
    %9 = vst [vmem:[#allocation0] sm:$0xf] %v8
    %s11 = ssub.s32 64, 64
    %12 = vsyncadd [#allocation1], %s11
    %s14 = sshll.u32 [#allocation0], 4
    %s15 = int_to_ptr.vmem [resolvable:$true] %s14
    %17 = dma.vmem_to_hbm [thread:$0]  %s15, 64, %s1, [#allocation1]
    %18 = dma.done [#allocation1], 64
    %19 = vsyncpa [#allocation1], 1

// kernel: complex_wavehax_forward.7
$region0: #{complex_wavehax_forward.7}
  #allocation0 [shape = 'u32[]', space=smem, size = 0x4, offset = 0x4, fixed_abs, tag = 'smem constant byte address 0x4 - core index']
  #allocation1 [shape = 'u32[144,128]{1,0:T(1,128)}', space=vmem, size = 0x12000, scoped, tag = 'internal scratch']
  #allocation2 [shape = 'f32[8,18]{1,0:T(8,128)}', space=vmem, size = 0x1000, scoped, tag = 'scratch operand']
  %s0 = inlined_call_operand.hbm [shape: bf16[16,16], index: 0, kind: input, shape index: {}]
  %s1 = inlined_call_operand.hbm [shape: bf16[16,18], index: 1, kind: input, shape index: {}]
  %s2 = inlined_call_operand.hbm [shape: f32[1,18], index: 2, kind: input, shape index: {}]
  %s3 = inlined_call_operand.hbm [shape: bf16[16,18], index: 3, kind: output, shape index: {}]
  %s4 = sld [smem:[#allocation0]]
  $region65: #{complex_wavehax_forward.7} parent=0
    _
  %s6 = ssub.s32 1, %s4
  %s7 = scalar_select 0, %s6, %s4
  $region1: #{complex_wavehax_forward.7} parent=0
    #allocation3 [shape = 'u8[4096]{0}', space=vmem, size = 0x1000, scoped, tag = 'input window, operand 0']
    #allocation4 [shape = 's32[2]{0}', space=sflag, size = 0x8, scoped, tag = 'scoped memory for complex_wavehax_forward.7']
    #allocation5 [shape = 's32[2]{0}', space=sflag, size = 0x8, scoped, tag = 'scoped memory for complex_wavehax_forward.7']
    #allocation6 [shape = 'u8[4096]{0}', space=vmem, size = 0x1000, scoped, tag = 'input window, operand 1, single buffered']
    #allocation7 [shape = 's32[1]{0}', space=sflag, size = 0x4, scoped, tag = 'scoped memory for complex_wavehax_forward.7']
    #allocation8 [shape = 'u8[512]{0}', space=vmem, size = 0x400, scoped, tag = 'input window, operand 2, single buffered']
    #allocation9 [shape = 'u8[4096]{0}', space=vmem, size = 0x1000, scoped, tag = 'output window, operand 0']
    %8 = vsyncpa [#allocation4], 0
    %s9 = scalar_lea.sflag [#allocation4], 1
    %10 = vsyncpa %s9, 0
    %11 = vsyncpa [#allocation7], 0
    %12 = vsyncpa [#allocation5], 0
    %s13 = scalar_lea.sflag [#allocation5], 1
    %14 = vsyncpa %s13, 0
    loop: start=0, step=1, limit=4
    $region2: #{complex_wavehax_forward.7} parent=1 // loop_pre_header
      _
    $region3: #{complex_wavehax_forward.7} parent=1 // loop_header
      %s16 = sphi 0, %s20
      %p17 = scmp.ge.s32.totalorder %s16, 4
      %s23 = sphi 0, %s35
      %s24 = sphi 0, %s31
      %s25 = sphi 0, %s23
      %s26 = sphi 0, %s24
      %s27 = sphi 0, %s25
      %s28 = sphi 0, %s26
      %s40 = sphi 0, %s42
      %s43 = sphi 0, %s40
      %s44 = sphi 0, %s43
      %s60 = sphi 0, %s44
      %s66 = sphi 0, %s68
      %s69 = sphi 0, %s66
      %s70 = sphi 0, %s69
      %s86 = sphi 0, %s70
      %s90 = sphi 0, %s90
      %s92 = sphi 0, %s90
      %s93 = sphi 0, %s92
      %s107 = sphi 0, %s93
      %s113 = sphi 0, %s115
      %s116 = sphi 0, %s113
      %s117 = sphi 0, %s116
      %s133 = sphi 0, %s117
    $region4: #{complex_wavehax_forward.7} parent=1 // loop_header_branch
      %19 = sbr.rel (%p17) target = $region8
    $region5: #{complex_wavehax_forward.7} parent=1 // loop_body
      %s21 = ssub.s32 %s16, 1
      %s22 = ssub.s32 %s16, 2
      %s29 = sadd.s32 1, %s24
      %p30 = scmp.ge.s32.totalorder %s29, 1
      %s31 = scalar_select %p30, 0, %s29
      %s32 = sadd.s32 1, %s23
      %s33 = scalar_select %p30, %s32, %s23
      %p34 = scmp.ge.s32.totalorder %s33, 2
      %s35 = scalar_select %p34, 0, %s33
      %s36 = ssub.s32 %s23, %s35
      %s37 = ssub.s32 %s24, %s31
      %s38 = sor.u32 %s36, %s37
      %p39 = scmp.eq.s32.totalorder %s38, 0
      %s41 = sadd.s32 %s40, 1
      %s42 = scalar_select %p39, %s40, %s41
      %p45 = pneg %p39
      %p46 = scmp.eq.s32.totalorder %s16, 1
      %p47 = por %p45, %p46
      %p48 = scmp.ne.s32.totalorder %s40, %s43
      %p49 = scmp.eq.s32.totalorder %s16, 0
      %p50 = por %p48, %p49
      %p51 = scmp.ne.s32.totalorder %s40, %s43
      %p52 = scmp.eq.s32.totalorder %s21, 1
      %p53 = por %p51, %p52
      %p54 = scmp.ne.s32.totalorder %s43, %s44
      %p55 = scmp.eq.s32.totalorder %s21, 0
      %p56 = por %p54, %p55
      %p57 = scmp.ne.s32.totalorder %s43, %s44
      %p58 = scmp.eq.s32.totalorder %s22, 1
      %p59 = por %p57, %p58
      %p61 = scmp.ne.s32.totalorder %s44, %s60
      %p62 = scmp.eq.s32.totalorder %s22, 0
      %p63 = por %p61, %p62
      %s64 = ssub.s32 %s24, %s31
      %p65 = scmp.eq.s32.totalorder %s64, 0
      %s67 = sadd.s32 %s66, 1
      %s68 = scalar_select %p65, %s66, %s67
      %p71 = pneg %p65
      %p72 = scmp.eq.s32.totalorder %s16, 1
      %p73 = por %p71, %p72
      %p74 = scmp.ne.s32.totalorder %s66, %s69
      %p75 = scmp.eq.s32.totalorder %s16, 0
      %p76 = por %p74, %p75
      %p77 = scmp.ne.s32.totalorder %s66, %s69
      %p78 = scmp.eq.s32.totalorder %s21, 1
      %p79 = por %p77, %p78
      %p80 = scmp.ne.s32.totalorder %s69, %s70
      %p81 = scmp.eq.s32.totalorder %s21, 0
      %p82 = por %p80, %p81
      %p83 = scmp.ne.s32.totalorder %s69, %s70
      %p84 = scmp.eq.s32.totalorder %s22, 1
      %p85 = por %p83, %p84
      %p87 = scmp.ne.s32.totalorder %s70, %s86
      %p88 = scmp.eq.s32.totalorder %s22, 0
      %p89 = por %p87, %p88
      %s91 = sadd.s32 %s90, 1
      %p94 = scmp.eq.s32.totalorder %s16, 1
      %p95 = scmp.ne.s32.totalorder %s90, %s92
      %p96 = scmp.eq.s32.totalorder %s16, 0
      %p97 = por %p95, %p96
      %p98 = scmp.ne.s32.totalorder %s90, %s92
      %p99 = scmp.eq.s32.totalorder %s21, 1
      %p100 = por %p98, %p99
      %p101 = scmp.ne.s32.totalorder %s92, %s93
      %p102 = scmp.eq.s32.totalorder %s21, 0
      %p103 = por %p101, %p102
      %p104 = scmp.ne.s32.totalorder %s92, %s93
      %p105 = scmp.eq.s32.totalorder %s22, 1
      %p106 = por %p104, %p105
      %p108 = scmp.ne.s32.totalorder %s93, %s107
      %p109 = scmp.eq.s32.totalorder %s22, 0
      %p110 = por %p108, %p109
      %s111 = ssub.s32 %s23, %s35
      %p112 = scmp.eq.s32.totalorder %s111, 0
      %s114 = sadd.s32 %s113, 1
      %s115 = scalar_select %p112, %s113, %s114
      %p118 = pneg %p112
      %p119 = scmp.eq.s32.totalorder %s16, 1
      %p120 = por %p118, %p119
      %p121 = scmp.ne.s32.totalorder %s113, %s116
      %p122 = scmp.eq.s32.totalorder %s16, 0
      %p123 = por %p121, %p122
      %p124 = scmp.ne.s32.totalorder %s113, %s116
      %p125 = scmp.eq.s32.totalorder %s21, 1
      %p126 = por %p124, %p125
      %p127 = scmp.ne.s32.totalorder %s116, %s117
      %p128 = scmp.eq.s32.totalorder %s21, 0
      %p129 = por %p127, %p128
      %p130 = scmp.ne.s32.totalorder %s116, %s117
      %p131 = scmp.eq.s32.totalorder %s22, 1
      %p132 = por %p130, %p131
      %p134 = scmp.ne.s32.totalorder %s117, %s133
      %p135 = scmp.eq.s32.totalorder %s22, 0
      %p136 = por %p134, %p135
      %p137 = scmp.le.s32.totalorder 1, %s16
      %p138 = scmp.lt.s32.totalorder %s16, 3
      %p139 = pnand %p137, %p138
      %p140 = pneg %p139
      // Predicated region
      $region9: #{complex_wavehax_forward.7} parent=5 // pred_check
        _
      $region10: #{complex_wavehax_forward.7} parent=5 // pred_check_branch
        %142 = sbr.rel (%p139) target = $region12
      $region11: #{complex_wavehax_forward.7} parent=5 // pred_region
        %s143 = ssub.s32 %s16, 1
        // Predicated region
        $region13: #{complex_wavehax_forward.7} parent=11 // pred_check
          %p144 = pneg %p82
        $region14: #{complex_wavehax_forward.7} parent=11 // pred_check_branch
          %146 = sbr.rel (%p144) target = $region16
        $region15: #{complex_wavehax_forward.7} parent=11 // pred_region
          %s147 = smul.u32 2, %s26
          %s149 = ssub.s32 128, 128
          %150 = vsyncadd [#allocation7], %s149
          %s151 = smul.addr %s147, 64
          %s152 = scalar_lea.hbm %s1, %s151
          %s153 = sshll.u32 [#allocation6], 4
          %s154 = int_to_ptr.vmem [resolvable:$true] %s153
          %159 = dma.hbm_to_vmem [thread:$0]  %s152, 128, %s154, [#allocation7], 64, 64, 4
        $region16: #{complex_wavehax_forward.7} parent=11 // pred_fallthru
          _
        // Predicated region
        $region17: #{complex_wavehax_forward.7} parent=11 // pred_check
          %p160 = pneg %p103
        $region18: #{complex_wavehax_forward.7} parent=11 // pred_check_branch
          %162 = sbr.rel (%p160) target = $region20
        $region19: #{complex_wavehax_forward.7} parent=11 // pred_region
          %s164 = ssub.s32 16, 16
          %165 = vsyncadd [#allocation7], %s164
          %s167 = sshll.u32 [#allocation8], 4
          %s168 = int_to_ptr.vmem [resolvable:$true] %s167
          %170 = dma.hbm_to_vmem [thread:$0]  %s2, 16, %s168, [#allocation7]
        $region20: #{complex_wavehax_forward.7} parent=11 // pred_fallthru
          _
      $region12: #{complex_wavehax_forward.7} parent=5 // pred_fallthru
        _
      %p171 = scmp.lt.s32.totalorder %s16, 2
      // Predicated region
      $region21: #{complex_wavehax_forward.7} parent=5 // pred_check
        %p172 = pneg %p171
      $region22: #{complex_wavehax_forward.7} parent=5 // pred_check_branch
        %174 = sbr.rel (%p172) target = $region24
      $region23: #{complex_wavehax_forward.7} parent=5 // pred_region
        // Predicated region
        $region25: #{complex_wavehax_forward.7} parent=23 // pred_check
          %p175 = pneg %p50
        $region26: #{complex_wavehax_forward.7} parent=23 // pred_check_branch
          %177 = sbr.rel (%p175) target = $region28
        $region27: #{complex_wavehax_forward.7} parent=23 // pred_region
          %s178 = sand.u32 %s40, 1
          %s179 = scalar_lea.sflag [#allocation4], %s178
          %s180 = sand.u32 %s40, 1
          %s181 = smul.addr %s180, 4
          %s182 = scalar_lea.vmem [#allocation3], %s181
          %s184 = ssub.s32 64, 64
          %185 = vsyncadd %s179, %s184
          %s186 = sadd.s32 %s24, %s23
          %s187 = smul.addr %s186, 64
          %s188 = scalar_lea.hbm %s0, %s187
          %s190 = sshll.u32 %s182, 4
          %s191 = int_to_ptr.vmem [resolvable:$true] %s190
          %193 = dma.hbm_to_vmem [thread:$0]  %s188, 64, %s191, %s179
        $region28: #{complex_wavehax_forward.7} parent=23 // pred_fallthru
          _
      $region24: #{complex_wavehax_forward.7} parent=5 // pred_fallthru
        _
      %p194 = scmp.le.s32.totalorder 1, %s16
      %p195 = scmp.lt.s32.totalorder %s16, 3
      %p196 = pnand %p194, %p195
      %p197 = pneg %p196
      // Predicated region
      $region29: #{complex_wavehax_forward.7} parent=5 // pred_check
        _
      $region30: #{complex_wavehax_forward.7} parent=5 // pred_check_branch
        %199 = sbr.rel (%p196) target = $region32
      $region31: #{complex_wavehax_forward.7} parent=5 // pred_region
        %s200 = ssub.s32 %s16, 1
        %s201 = sand.u32 %s43, 1
        %s202 = scalar_lea.sflag [#allocation4], %s201
        %s203 = sand.u32 %s43, 1
        %s204 = smul.addr %s203, 4
        %s205 = scalar_lea.vmem [#allocation3], %s204
        // Predicated region
        $region33: #{complex_wavehax_forward.7} parent=31 // pred_check
          %p206 = pneg %p56
        $region34: #{complex_wavehax_forward.7} parent=31 // pred_check_branch
          %208 = sbr.rel (%p206) target = $region36
        $region35: #{complex_wavehax_forward.7} parent=31 // pred_region
          %209 = dma.done %s202, 64
        $region36: #{complex_wavehax_forward.7} parent=31 // pred_fallthru
          _
        // Predicated region
        $region37: #{complex_wavehax_forward.7} parent=31 // pred_check
          %p210 = pneg %p82
        $region38: #{complex_wavehax_forward.7} parent=31 // pred_check_branch
          %212 = sbr.rel (%p210) target = $region40
        $region39: #{complex_wavehax_forward.7} parent=31 // pred_region
          %213 = dma.done [#allocation7], 128
        $region40: #{complex_wavehax_forward.7} parent=31 // pred_fallthru
          _
        // Predicated region
        $region41: #{complex_wavehax_forward.7} parent=31 // pred_check
          %p214 = pneg %p103
        $region42: #{complex_wavehax_forward.7} parent=31 // pred_check_branch
          %216 = sbr.rel (%p214) target = $region44
        $region43: #{complex_wavehax_forward.7} parent=31 // pred_region
          %217 = dma.done [#allocation7], 16
        $region44: #{complex_wavehax_forward.7} parent=31 // pred_fallthru
          _
        %s218 = sand.u32 %s43, 1
        %s219 = scalar_lea.sflag [#allocation4], %s218
        %s220 = sand.u32 %s43, 1
        %s221 = smul.addr %s220, 4
        %s222 = scalar_lea.vmem [#allocation3], %s221
        %p223 = pneg %p56
        %p224 = pneg %p53
        %p225 = pneg %p82
        %p226 = pneg %p79
        %p227 = pneg %p103
        %p228 = pneg %p100
        %p229 = pneg %p129
        %p230 = pneg %p126
        %s231 = sand.u32 %s116, 1
        %s232 = scalar_lea.sflag [#allocation5], %s231
        %s233 = sand.u32 %s116, 1
        %s234 = smul.addr %s233, 4
        %s235 = scalar_lea.vmem [#allocation9], %s234
        %s236 = smul.u32 2, %s26
        %p238 = scmp.eq.s32.totalorder %s26, 0
        // Predicated region
        $region45: #{complex_wavehax_forward.7} parent=31 // pred_check
          %p239 = pneg %p238
        $region46: #{complex_wavehax_forward.7} parent=31 // pred_check_branch
          %241 = sbr.rel (%p239) target = $region48
        $region47: #{complex_wavehax_forward.7} parent=31 // pred_region
          %vm242 = vcmask 146432
          %243 = vst.msk [vmem:[#allocation2] sm:$0xff] %vm242, 0.0
        $region48: #{complex_wavehax_forward.7} parent=31 // pred_fallthru
          _
        %v244 = vld [vmem:[#allocation2] sm:$0xff]
        %v245 = vld [vmem:[%s205] sm:$0xf]
        %v246 = vld [vmem:[#allocation6] sm:$0xf]
        %v247 = vld [vmem:[#allocation6 + $0x4] sm:$0xf]
        %v250 = vunpack.c.l.b16 %v246
        %v251 = vunpack.c.l.b16 %v247
        %v252 = vpack.c.b16 %v251, %v250
        %vm254 = vcmask 130048
        %v256 = vsel %vm254, %v245, 0
        %258 = vmatprep.subr.bf16.mxu0 0
        %259 = vmatpush1.bf16.msra.mxu0 %v252
        %260 = vmatprep.subr.bf16.mxu0 0
        %261 = vmatpush1.bf16.msra.mxu0 0
        %262 = vmatprep.subr.bf16.mxu0 0
        %263 = vmatpush1.bf16.msra.mxu0 0
        %264 = vmatprep.subr.bf16.mxu0 0
        %265 = vmatpush1.bf16.msra.mxu0 0
        %266 = vmatprep.subr.bf16.mxu0 0
        %267 = vmatpush1.bf16.msra.mxu0 0
        %268 = vmatprep.subr.bf16.mxu0 0
        %269 = vmatpush1.bf16.msra.mxu0 0
        %270 = vmatprep.subr.bf16.mxu0 0
        %271 = vmatpush1.bf16.msra.mxu0 0
        %272 = vmatprep.subr.bf16.mxu0 0
        %273 = vmatpush1.bf16.msra.mxu0 0
        %274 = vmatprep.subr.bf16.mxu0 0
        %275 = vmatpush1.bf16.msra.mxu0 0
        %276 = vmatprep.subr.bf16.mxu0 0
        %277 = vmatpush1.bf16.msra.mxu0 0
        %278 = vmatprep.subr.bf16.mxu0 0
        %279 = vmatpush1.bf16.msra.mxu0 0
        %280 = vmatprep.subr.bf16.mxu0 0
        %281 = vmatpush1.bf16.msra.mxu0 0
        %282 = vmatprep.subr.bf16.mxu0 0
        %283 = vmatpush1.bf16.msra.mxu0 0
        %284 = vmatprep.subr.bf16.mxu0 0
        %285 = vmatpush1.bf16.msra.mxu0 0
        %286 = vmatprep.subr.bf16.mxu0 0
        %287 = vmatpush1.bf16.msra.mxu0 0
        %288 = vmatprep.subr.bf16.mxu0 0
        %289 = vmatpush1.bf16.msra.mxu0 0
        %290 = vmatprep.mubr.bf16.mxu0 0
        %291 = vmatmul.mubr.bf16.gmra.mrb[0].mxu0 %v256
        %v292 = vpop.f32.mrb[0].mxu0
        %v293 = vadd.f32 0.0, %v292
        %v294 = vpop.f32.mrb[0].mxu0
        %v295 = vpop.f32.mrb[0].mxu0
        %v296 = vpop.f32.mrb[0].mxu0
        %297 = vdwg.mxu0
        %v298 = vadd.f32 %v244, %v293
        %vm299 = vcmask 146432
        %300 = vst.msk [vmem:[#allocation2] sm:$0xff] %vm299, %v298
        // Predicated region
        $region49: #{complex_wavehax_forward.7} parent=31 // pred_check
          %p301 = pneg %p238
        $region50: #{complex_wavehax_forward.7} parent=31 // pred_check_branch
          %303 = sbr.rel (%p301) target = $region52
        $region51: #{complex_wavehax_forward.7} parent=31 // pred_region
          %v304 = vld [vmem:[#allocation2] sm:$0xff]
          %v305 = vld [vmem:[#allocation8] sm:$0x1]
          %v307 = vlaneseq
          %v308 = vshrl.u32 %v307, 7
          %v309 = vsub.s32 0, %v308
          %v310 = vrot.slane %v305, %v309
          %v312 = vadd.f32 %v304, %v310
          %v313 = vpack.c.bf16 %v312, %v312
          %vm314 = vcmask 142336
          %315 = vst.msk [vmem:[%s235] sm:$0xf] %vm314, %v313
        $region52: #{complex_wavehax_forward.7} parent=31 // pred_fallthru
          _
        %s316 = sand.u32 %s116, 1
        %s317 = scalar_lea.sflag [#allocation5], %s316
        %s318 = sand.u32 %s116, 1
        %s319 = smul.addr %s318, 4
        %s320 = scalar_lea.vmem [#allocation9], %s319
        // Predicated region
        $region53: #{complex_wavehax_forward.7} parent=31 // pred_check
          %p321 = pneg %p126
        $region54: #{complex_wavehax_forward.7} parent=31 // pred_check_branch
          %323 = sbr.rel (%p321) target = $region56
        $region55: #{complex_wavehax_forward.7} parent=31 // pred_region
          %s325 = ssub.s32 64, 64
          %326 = vsyncadd %s317, %s325
          %s327 = smul.addr %s25, 64
          %s328 = scalar_lea.hbm %s3, %s327
          %s330 = sshll.u32 %s320, 4
          %s331 = int_to_ptr.vmem [resolvable:$true] %s330
          %333 = dma.vmem_to_hbm [thread:$0]  %s331, 64, %s328, %s317
        $region56: #{complex_wavehax_forward.7} parent=31 // pred_fallthru
          _
      $region32: #{complex_wavehax_forward.7} parent=5 // pred_fallthru
        _
      %p334 = scmp.le.s32.totalorder 2, %s16
      // Predicated region
      $region57: #{complex_wavehax_forward.7} parent=5 // pred_check
        %p335 = pneg %p334
      $region58: #{complex_wavehax_forward.7} parent=5 // pred_check_branch
        %337 = sbr.rel (%p335) target = $region60
      $region59: #{complex_wavehax_forward.7} parent=5 // pred_region
        %s338 = ssub.s32 %s16, 2
        // Predicated region
        $region61: #{complex_wavehax_forward.7} parent=59 // pred_check
          %p339 = pneg %p132
        $region62: #{complex_wavehax_forward.7} parent=59 // pred_check_branch
          %341 = sbr.rel (%p339) target = $region64
        $region63: #{complex_wavehax_forward.7} parent=59 // pred_region
          %s342 = sand.u32 %s117, 1
          %s343 = scalar_lea.sflag [#allocation5], %s342
          %s344 = sand.u32 %s117, 1
          %s345 = smul.addr %s344, 4
          %s346 = scalar_lea.vmem [#allocation9], %s345
          %347 = dma.done %s343, 64
        $region64: #{complex_wavehax_forward.7} parent=59 // pred_fallthru
          _
      $region60: #{complex_wavehax_forward.7} parent=5 // pred_fallthru
        _
    $region6: #{complex_wavehax_forward.7} parent=1 // loop_footer
      %s20 = sadd.s32 1, %s16
    $region7: #{complex_wavehax_forward.7} parent=1 // loop_footer_branch
      %15 = sbr.rel target = $region3
    $region8: #{complex_wavehax_forward.7} parent=1 // loop_exit
      _
    %348 = vsyncpa [#allocation4], 1
    %s349 = scalar_lea.sflag [#allocation4], 1
    %350 = vsyncpa %s349, 1
    %351 = vsyncpa [#allocation7], 1
    %352 = vsyncpa [#allocation5], 1
    %s353 = scalar_lea.sflag [#allocation5], 1
    %354 = vsyncpa %s353, 1

// kernel: complex_wavehax_forward.8
$region0: #{complex_wavehax_forward.8}
  #allocation0 [shape = 'u32[]', space=smem, size = 0x4, offset = 0x4, fixed_abs, tag = 'smem constant byte address 0x4 - core index']
  #allocation1 [shape = 'u32[144,128]{1,0:T(1,128)}', space=vmem, size = 0x12000, scoped, tag = 'internal scratch']
  #allocation2 [shape = 'f32[8,18]{1,0:T(8,128)}', space=vmem, size = 0x1000, scoped, tag = 'scratch operand']
  %s0 = inlined_call_operand.hbm [shape: bf16[16,126], index: 0, kind: input, shape index: {}]
  %s1 = inlined_call_operand.hbm [shape: bf16[126,18], index: 1, kind: input, shape index: {}]
  %s2 = inlined_call_operand.hbm [shape: f32[1,18], index: 2, kind: input, shape index: {}]
  %s3 = inlined_call_operand.hbm [shape: bf16[16,18], index: 3, kind: output, shape index: {}]
  %s4 = sld [smem:[#allocation0]]
  $region65: #{complex_wavehax_forward.8} parent=0
    _
  %s6 = ssub.s32 1, %s4
  %s7 = scalar_select 0, %s6, %s4
  $region1: #{complex_wavehax_forward.8} parent=0
    #allocation3 [shape = 'u8[4096]{0}', space=vmem, size = 0x1000, scoped, tag = 'input window, operand 0']
    #allocation4 [shape = 's32[2]{0}', space=sflag, size = 0x8, scoped, tag = 'scoped memory for complex_wavehax_forward.8']
    #allocation5 [shape = 's32[2]{0}', space=sflag, size = 0x8, scoped, tag = 'scoped memory for complex_wavehax_forward.8']
    #allocation6 [shape = 'u8[32768]{0}', space=vmem, size = 0x8000, scoped, tag = 'input window, operand 1, single buffered']
    #allocation7 [shape = 's32[1]{0}', space=sflag, size = 0x4, scoped, tag = 'scoped memory for complex_wavehax_forward.8']
    #allocation8 [shape = 'u8[512]{0}', space=vmem, size = 0x400, scoped, tag = 'input window, operand 2, single buffered']
    #allocation9 [shape = 'u8[4096]{0}', space=vmem, size = 0x1000, scoped, tag = 'output window, operand 0']
    %8 = vsyncpa [#allocation4], 0
    %s9 = scalar_lea.sflag [#allocation4], 1
    %10 = vsyncpa %s9, 0
    %11 = vsyncpa [#allocation7], 0
    %12 = vsyncpa [#allocation5], 0
    %s13 = scalar_lea.sflag [#allocation5], 1
    %14 = vsyncpa %s13, 0
    loop: start=0, step=1, limit=4
    $region2: #{complex_wavehax_forward.8} parent=1 // loop_pre_header
      _
    $region3: #{complex_wavehax_forward.8} parent=1 // loop_header
      %s16 = sphi 0, %s20
      %p17 = scmp.ge.s32.totalorder %s16, 4
      %s23 = sphi 0, %s35
      %s24 = sphi 0, %s31
      %s25 = sphi 0, %s23
      %s26 = sphi 0, %s24
      %s27 = sphi 0, %s25
      %s28 = sphi 0, %s26
      %s40 = sphi 0, %s42
      %s43 = sphi 0, %s40
      %s44 = sphi 0, %s43
      %s60 = sphi 0, %s44
      %s66 = sphi 0, %s68
      %s69 = sphi 0, %s66
      %s70 = sphi 0, %s69
      %s86 = sphi 0, %s70
      %s90 = sphi 0, %s90
      %s92 = sphi 0, %s90
      %s93 = sphi 0, %s92
      %s107 = sphi 0, %s93
      %s113 = sphi 0, %s115
      %s116 = sphi 0, %s113
      %s117 = sphi 0, %s116
      %s133 = sphi 0, %s117
    $region4: #{complex_wavehax_forward.8} parent=1 // loop_header_branch
      %19 = sbr.rel (%p17) target = $region8
    $region5: #{complex_wavehax_forward.8} parent=1 // loop_body
      %s21 = ssub.s32 %s16, 1
      %s22 = ssub.s32 %s16, 2
      %s29 = sadd.s32 1, %s24
      %p30 = scmp.ge.s32.totalorder %s29, 1
      %s31 = scalar_select %p30, 0, %s29
      %s32 = sadd.s32 1, %s23
      %s33 = scalar_select %p30, %s32, %s23
      %p34 = scmp.ge.s32.totalorder %s33, 2
      %s35 = scalar_select %p34, 0, %s33
      %s36 = ssub.s32 %s23, %s35
      %s37 = ssub.s32 %s24, %s31
      %s38 = sor.u32 %s36, %s37
      %p39 = scmp.eq.s32.totalorder %s38, 0
      %s41 = sadd.s32 %s40, 1
      %s42 = scalar_select %p39, %s40, %s41
      %p45 = pneg %p39
      %p46 = scmp.eq.s32.totalorder %s16, 1
      %p47 = por %p45, %p46
      %p48 = scmp.ne.s32.totalorder %s40, %s43
      %p49 = scmp.eq.s32.totalorder %s16, 0
      %p50 = por %p48, %p49
      %p51 = scmp.ne.s32.totalorder %s40, %s43
      %p52 = scmp.eq.s32.totalorder %s21, 1
      %p53 = por %p51, %p52
      %p54 = scmp.ne.s32.totalorder %s43, %s44
      %p55 = scmp.eq.s32.totalorder %s21, 0
      %p56 = por %p54, %p55
      %p57 = scmp.ne.s32.totalorder %s43, %s44
      %p58 = scmp.eq.s32.totalorder %s22, 1
      %p59 = por %p57, %p58
      %p61 = scmp.ne.s32.totalorder %s44, %s60
      %p62 = scmp.eq.s32.totalorder %s22, 0
      %p63 = por %p61, %p62
      %s64 = ssub.s32 %s24, %s31
      %p65 = scmp.eq.s32.totalorder %s64, 0
      %s67 = sadd.s32 %s66, 1
      %s68 = scalar_select %p65, %s66, %s67
      %p71 = pneg %p65
      %p72 = scmp.eq.s32.totalorder %s16, 1
      %p73 = por %p71, %p72
      %p74 = scmp.ne.s32.totalorder %s66, %s69
      %p75 = scmp.eq.s32.totalorder %s16, 0
      %p76 = por %p74, %p75
      %p77 = scmp.ne.s32.totalorder %s66, %s69
      %p78 = scmp.eq.s32.totalorder %s21, 1
      %p79 = por %p77, %p78
      %p80 = scmp.ne.s32.totalorder %s69, %s70
      %p81 = scmp.eq.s32.totalorder %s21, 0
      %p82 = por %p80, %p81
      %p83 = scmp.ne.s32.totalorder %s69, %s70
      %p84 = scmp.eq.s32.totalorder %s22, 1
      %p85 = por %p83, %p84
      %p87 = scmp.ne.s32.totalorder %s70, %s86
      %p88 = scmp.eq.s32.totalorder %s22, 0
      %p89 = por %p87, %p88
      %s91 = sadd.s32 %s90, 1
      %p94 = scmp.eq.s32.totalorder %s16, 1
      %p95 = scmp.ne.s32.totalorder %s90, %s92
      %p96 = scmp.eq.s32.totalorder %s16, 0
      %p97 = por %p95, %p96
      %p98 = scmp.ne.s32.totalorder %s90, %s92
      %p99 = scmp.eq.s32.totalorder %s21, 1
      %p100 = por %p98, %p99
      %p101 = scmp.ne.s32.totalorder %s92, %s93
      %p102 = scmp.eq.s32.totalorder %s21, 0
      %p103 = por %p101, %p102
      %p104 = scmp.ne.s32.totalorder %s92, %s93
      %p105 = scmp.eq.s32.totalorder %s22, 1
      %p106 = por %p104, %p105
      %p108 = scmp.ne.s32.totalorder %s93, %s107
      %p109 = scmp.eq.s32.totalorder %s22, 0
      %p110 = por %p108, %p109
      %s111 = ssub.s32 %s23, %s35
      %p112 = scmp.eq.s32.totalorder %s111, 0
      %s114 = sadd.s32 %s113, 1
      %s115 = scalar_select %p112, %s113, %s114
      %p118 = pneg %p112
      %p119 = scmp.eq.s32.totalorder %s16, 1
      %p120 = por %p118, %p119
      %p121 = scmp.ne.s32.totalorder %s113, %s116
      %p122 = scmp.eq.s32.totalorder %s16, 0
      %p123 = por %p121, %p122
      %p124 = scmp.ne.s32.totalorder %s113, %s116
      %p125 = scmp.eq.s32.totalorder %s21, 1
      %p126 = por %p124, %p125
      %p127 = scmp.ne.s32.totalorder %s116, %s117
      %p128 = scmp.eq.s32.totalorder %s21, 0
      %p129 = por %p127, %p128
      %p130 = scmp.ne.s32.totalorder %s116, %s117
      %p131 = scmp.eq.s32.totalorder %s22, 1
      %p132 = por %p130, %p131
      %p134 = scmp.ne.s32.totalorder %s117, %s133
      %p135 = scmp.eq.s32.totalorder %s22, 0
      %p136 = por %p134, %p135
      %p137 = scmp.le.s32.totalorder 1, %s16
      %p138 = scmp.lt.s32.totalorder %s16, 3
      %p139 = pnand %p137, %p138
      %p140 = pneg %p139
      // Predicated region
      $region9: #{complex_wavehax_forward.8} parent=5 // pred_check
        _
      $region10: #{complex_wavehax_forward.8} parent=5 // pred_check_branch
        %142 = sbr.rel (%p139) target = $region12
      $region11: #{complex_wavehax_forward.8} parent=5 // pred_region
        %s143 = ssub.s32 %s16, 1
        // Predicated region
        $region13: #{complex_wavehax_forward.8} parent=11 // pred_check
          %p144 = pneg %p82
        $region14: #{complex_wavehax_forward.8} parent=11 // pred_check_branch
          %146 = sbr.rel (%p144) target = $region16
        $region15: #{complex_wavehax_forward.8} parent=11 // pred_region
          %s147 = smul.u32 16, %s26
          %s149 = ssub.s32 1024, 1024
          %150 = vsyncadd [#allocation7], %s149
          %s151 = smul.addr %s147, 64
          %s152 = scalar_lea.hbm %s1, %s151
          %s153 = sshll.u32 [#allocation6], 4
          %s154 = int_to_ptr.vmem [resolvable:$true] %s153
          %159 = dma.hbm_to_vmem [thread:$0]  %s152, 1024, %s154, [#allocation7], 64, 64, 4
        $region16: #{complex_wavehax_forward.8} parent=11 // pred_fallthru
          _
        // Predicated region
        $region17: #{complex_wavehax_forward.8} parent=11 // pred_check
          %p160 = pneg %p103
        $region18: #{complex_wavehax_forward.8} parent=11 // pred_check_branch
          %162 = sbr.rel (%p160) target = $region20
        $region19: #{complex_wavehax_forward.8} parent=11 // pred_region
          %s164 = ssub.s32 16, 16
          %165 = vsyncadd [#allocation7], %s164
          %s167 = sshll.u32 [#allocation8], 4
          %s168 = int_to_ptr.vmem [resolvable:$true] %s167
          %170 = dma.hbm_to_vmem [thread:$0]  %s2, 16, %s168, [#allocation7]
        $region20: #{complex_wavehax_forward.8} parent=11 // pred_fallthru
          _
      $region12: #{complex_wavehax_forward.8} parent=5 // pred_fallthru
        _
      %p171 = scmp.lt.s32.totalorder %s16, 2
      // Predicated region
      $region21: #{complex_wavehax_forward.8} parent=5 // pred_check
        %p172 = pneg %p171
      $region22: #{complex_wavehax_forward.8} parent=5 // pred_check_branch
        %174 = sbr.rel (%p172) target = $region24
      $region23: #{complex_wavehax_forward.8} parent=5 // pred_region
        // Predicated region
        $region25: #{complex_wavehax_forward.8} parent=23 // pred_check
          %p175 = pneg %p50
        $region26: #{complex_wavehax_forward.8} parent=23 // pred_check_branch
          %177 = sbr.rel (%p175) target = $region28
        $region27: #{complex_wavehax_forward.8} parent=23 // pred_region
          %s178 = sand.u32 %s40, 1
          %s179 = scalar_lea.sflag [#allocation4], %s178
          %s180 = sand.u32 %s40, 1
          %s181 = smul.addr %s180, 4
          %s182 = scalar_lea.vmem [#allocation3], %s181
          %s184 = ssub.s32 64, 64
          %185 = vsyncadd %s179, %s184
          %s186 = sadd.s32 %s24, %s23
          %s187 = smul.addr %s186, 64
          %s188 = scalar_lea.hbm %s0, %s187
          %s190 = sshll.u32 %s182, 4
          %s191 = int_to_ptr.vmem [resolvable:$true] %s190
          %193 = dma.hbm_to_vmem [thread:$0]  %s188, 64, %s191, %s179
        $region28: #{complex_wavehax_forward.8} parent=23 // pred_fallthru
          _
      $region24: #{complex_wavehax_forward.8} parent=5 // pred_fallthru
        _
      %p194 = scmp.le.s32.totalorder 1, %s16
      %p195 = scmp.lt.s32.totalorder %s16, 3
      %p196 = pnand %p194, %p195
      %p197 = pneg %p196
      // Predicated region
      $region29: #{complex_wavehax_forward.8} parent=5 // pred_check
        _
      $region30: #{complex_wavehax_forward.8} parent=5 // pred_check_branch
        %199 = sbr.rel (%p196) target = $region32
      $region31: #{complex_wavehax_forward.8} parent=5 // pred_region
        %s200 = ssub.s32 %s16, 1
        %s201 = sand.u32 %s43, 1
        %s202 = scalar_lea.sflag [#allocation4], %s201
        %s203 = sand.u32 %s43, 1
        %s204 = smul.addr %s203, 4
        %s205 = scalar_lea.vmem [#allocation3], %s204
        // Predicated region
        $region33: #{complex_wavehax_forward.8} parent=31 // pred_check
          %p206 = pneg %p56
        $region34: #{complex_wavehax_forward.8} parent=31 // pred_check_branch
          %208 = sbr.rel (%p206) target = $region36
        $region35: #{complex_wavehax_forward.8} parent=31 // pred_region
          %209 = dma.done %s202, 64
        $region36: #{complex_wavehax_forward.8} parent=31 // pred_fallthru
          _
        // Predicated region
        $region37: #{complex_wavehax_forward.8} parent=31 // pred_check
          %p210 = pneg %p82
        $region38: #{complex_wavehax_forward.8} parent=31 // pred_check_branch
          %212 = sbr.rel (%p210) target = $region40
        $region39: #{complex_wavehax_forward.8} parent=31 // pred_region
          %213 = dma.done [#allocation7], 1024
        $region40: #{complex_wavehax_forward.8} parent=31 // pred_fallthru
          _
        // Predicated region
        $region41: #{complex_wavehax_forward.8} parent=31 // pred_check
          %p214 = pneg %p103
        $region42: #{complex_wavehax_forward.8} parent=31 // pred_check_branch
          %216 = sbr.rel (%p214) target = $region44
        $region43: #{complex_wavehax_forward.8} parent=31 // pred_region
          %217 = dma.done [#allocation7], 16
        $region44: #{complex_wavehax_forward.8} parent=31 // pred_fallthru
          _
        %s218 = sand.u32 %s43, 1
        %s219 = scalar_lea.sflag [#allocation4], %s218
        %s220 = sand.u32 %s43, 1
        %s221 = smul.addr %s220, 4
        %s222 = scalar_lea.vmem [#allocation3], %s221
        %p223 = pneg %p56
        %p224 = pneg %p53
        %p225 = pneg %p82
        %p226 = pneg %p79
        %p227 = pneg %p103
        %p228 = pneg %p100
        %p229 = pneg %p129
        %p230 = pneg %p126
        %s231 = sand.u32 %s116, 1
        %s232 = scalar_lea.sflag [#allocation5], %s231
        %s233 = sand.u32 %s116, 1
        %s234 = smul.addr %s233, 4
        %s235 = scalar_lea.vmem [#allocation9], %s234
        %s236 = smul.u32 16, %s26
        %p238 = scmp.eq.s32.totalorder %s26, 0
        // Predicated region
        $region45: #{complex_wavehax_forward.8} parent=31 // pred_check
          %p239 = pneg %p238
        $region46: #{complex_wavehax_forward.8} parent=31 // pred_check_branch
          %241 = sbr.rel (%p239) target = $region48
        $region47: #{complex_wavehax_forward.8} parent=31 // pred_region
          %vm242 = vcmask 146432
          %243 = vst.msk [vmem:[#allocation2] sm:$0xff] %vm242, 0.0
        $region48: #{complex_wavehax_forward.8} parent=31 // pred_fallthru
          _
        %v244 = vld [vmem:[#allocation2] sm:$0xff]
        %v245 = vld [vmem:[%s205] sm:$0xf]
        %v246 = vld [vmem:[#allocation6] sm:$0xf]
        %v247 = vld [vmem:[#allocation6 + $0x4] sm:$0xf]
        %v248 = vld [vmem:[#allocation6 + $0x8] sm:$0xf]
        %v249 = vld [vmem:[#allocation6 + $0xc] sm:$0xf]
        %v250 = vld [vmem:[#allocation6 + $0x10] sm:$0xf]
        %v251 = vld [vmem:[#allocation6 + $0x14] sm:$0xf]
        %v252 = vld [vmem:[#allocation6 + $0x18] sm:$0xf]
        %v253 = vld [vmem:[#allocation6 + $0x1c] sm:$0xf]
        %v254 = vld [vmem:[#allocation6 + $0x20] sm:$0xf]
        %v255 = vld [vmem:[#allocation6 + $0x24] sm:$0xf]
        %v256 = vld [vmem:[#allocation6 + $0x28] sm:$0xf]
        %v257 = vld [vmem:[#allocation6 + $0x2c] sm:$0xf]
        %v258 = vld [vmem:[#allocation6 + $0x30] sm:$0xf]
        %v259 = vld [vmem:[#allocation6 + $0x34] sm:$0xf]
        %v260 = vld [vmem:[#allocation6 + $0x38] sm:$0xf]
        %v261 = vld [vmem:[#allocation6 + $0x3c] sm:$0x7]
        %v278 = vunpack.c.l.b16 %v246
        %v279 = vunpack.c.l.b16 %v247
        %v280 = vunpack.c.l.b16 %v248
        %v281 = vunpack.c.l.b16 %v249
        %v282 = vunpack.c.l.b16 %v250
        %v283 = vunpack.c.l.b16 %v251
        %v284 = vunpack.c.l.b16 %v252
        %v285 = vunpack.c.l.b16 %v253
        %v286 = vunpack.c.l.b16 %v254
        %v287 = vunpack.c.l.b16 %v255
        %v288 = vunpack.c.l.b16 %v256
        %v289 = vunpack.c.l.b16 %v257
        %v290 = vunpack.c.l.b16 %v258
        %v291 = vunpack.c.l.b16 %v259
        %v292 = vunpack.c.l.b16 %v260
        %v293 = vunpack.c.l.b16 %v261
        %v294 = vpack.c.b16 %v279, %v278
        %v295 = vpack.c.b16 %v281, %v280
        %v296 = vpack.c.b16 %v283, %v282
        %v297 = vpack.c.b16 %v285, %v284
        %v298 = vpack.c.b16 %v287, %v286
        %v299 = vpack.c.b16 %v289, %v288
        %v300 = vpack.c.b16 %v291, %v290
        %v301 = vpack.c.b16 %v293, %v292
        %vm309 = vcmask 1031168
        %v311 = vsel %vm309, %v245, 0
        %vm313 = vcmask 1046528
        %v315 = vsel %vm313, %v301, 0
        %317 = vmatprep.subr.bf16.mxu0 0
        %318 = vmatpush1.bf16.msra.mxu0 %v294
        %319 = vmatprep.subr.bf16.mxu0 0
        %320 = vmatpush1.bf16.msra.mxu0 %v295
        %321 = vmatprep.subr.bf16.mxu0 0
        %322 = vmatpush1.bf16.msra.mxu0 %v296
        %323 = vmatprep.subr.bf16.mxu0 0
        %324 = vmatpush1.bf16.msra.mxu0 %v297
        %325 = vmatprep.subr.bf16.mxu0 0
        %326 = vmatpush1.bf16.msra.mxu0 %v298
        %327 = vmatprep.subr.bf16.mxu0 0
        %328 = vmatpush1.bf16.msra.mxu0 %v299
        %329 = vmatprep.subr.bf16.mxu0 0
        %330 = vmatpush1.bf16.msra.mxu0 %v300
        %331 = vmatprep.subr.bf16.mxu0 0
        %332 = vmatpush1.bf16.msra.mxu0 %v315
        %333 = vmatprep.subr.bf16.mxu0 0
        %334 = vmatpush1.bf16.msra.mxu0 0
        %335 = vmatprep.subr.bf16.mxu0 0
        %336 = vmatpush1.bf16.msra.mxu0 0
        %337 = vmatprep.subr.bf16.mxu0 0
        %338 = vmatpush1.bf16.msra.mxu0 0
        %339 = vmatprep.subr.bf16.mxu0 0
        %340 = vmatpush1.bf16.msra.mxu0 0
        %341 = vmatprep.subr.bf16.mxu0 0
        %342 = vmatpush1.bf16.msra.mxu0 0
        %343 = vmatprep.subr.bf16.mxu0 0
        %344 = vmatpush1.bf16.msra.mxu0 0
        %345 = vmatprep.subr.bf16.mxu0 0
        %346 = vmatpush1.bf16.msra.mxu0 0
        %347 = vmatprep.subr.bf16.mxu0 0
        %348 = vmatpush1.bf16.msra.mxu0 0
        %349 = vmatprep.mubr.bf16.mxu0 0
        %350 = vmatmul.mubr.bf16.gmra.mrb[0].mxu0 %v311
        %v351 = vpop.f32.mrb[0].mxu0
        %v352 = vadd.f32 0.0, %v351
        %v353 = vpop.f32.mrb[0].mxu0
        %v354 = vpop.f32.mrb[0].mxu0
        %v355 = vpop.f32.mrb[0].mxu0
        %356 = vdwg.mxu0
        %v357 = vadd.f32 %v244, %v352
        %vm358 = vcmask 146432
        %359 = vst.msk [vmem:[#allocation2] sm:$0xff] %vm358, %v357
        // Predicated region
        $region49: #{complex_wavehax_forward.8} parent=31 // pred_check
          %p360 = pneg %p238
        $region50: #{complex_wavehax_forward.8} parent=31 // pred_check_branch
          %362 = sbr.rel (%p360) target = $region52
        $region51: #{complex_wavehax_forward.8} parent=31 // pred_region
          %v363 = vld [vmem:[#allocation2] sm:$0xff]
          %v364 = vld [vmem:[#allocation8] sm:$0x1]
          %v366 = vlaneseq
          %v367 = vshrl.u32 %v366, 7
          %v368 = vsub.s32 0, %v367
          %v369 = vrot.slane %v364, %v368
          %v371 = vadd.f32 %v363, %v369
          %v372 = vpack.c.bf16 %v371, %v371
          %vm373 = vcmask 142336
          %374 = vst.msk [vmem:[%s235] sm:$0xf] %vm373, %v372
        $region52: #{complex_wavehax_forward.8} parent=31 // pred_fallthru
          _
        %s375 = sand.u32 %s116, 1
        %s376 = scalar_lea.sflag [#allocation5], %s375
        %s377 = sand.u32 %s116, 1
        %s378 = smul.addr %s377, 4
        %s379 = scalar_lea.vmem [#allocation9], %s378
        // Predicated region
        $region53: #{complex_wavehax_forward.8} parent=31 // pred_check
          %p380 = pneg %p126
        $region54: #{complex_wavehax_forward.8} parent=31 // pred_check_branch
          %382 = sbr.rel (%p380) target = $region56
        $region55: #{complex_wavehax_forward.8} parent=31 // pred_region
          %s384 = ssub.s32 64, 64
          %385 = vsyncadd %s376, %s384
          %s386 = smul.addr %s25, 64
          %s387 = scalar_lea.hbm %s3, %s386
          %s389 = sshll.u32 %s379, 4
          %s390 = int_to_ptr.vmem [resolvable:$true] %s389
          %392 = dma.vmem_to_hbm [thread:$0]  %s390, 64, %s387, %s376
        $region56: #{complex_wavehax_forward.8} parent=31 // pred_fallthru
          _
      $region32: #{complex_wavehax_forward.8} parent=5 // pred_fallthru
        _
      %p393 = scmp.le.s32.totalorder 2, %s16
      // Predicated region
      $region57: #{complex_wavehax_forward.8} parent=5 // pred_check
        %p394 = pneg %p393
      $region58: #{complex_wavehax_forward.8} parent=5 // pred_check_branch
        %396 = sbr.rel (%p394) target = $region60
      $region59: #{complex_wavehax_forward.8} parent=5 // pred_region
        %s397 = ssub.s32 %s16, 2
        // Predicated region
        $region61: #{complex_wavehax_forward.8} parent=59 // pred_check
          %p398 = pneg %p132
        $region62: #{complex_wavehax_forward.8} parent=59 // pred_check_branch
          %400 = sbr.rel (%p398) target = $region64
        $region63: #{complex_wavehax_forward.8} parent=59 // pred_region
          %s401 = sand.u32 %s117, 1
          %s402 = scalar_lea.sflag [#allocation5], %s401
          %s403 = sand.u32 %s117, 1
          %s404 = smul.addr %s403, 4
          %s405 = scalar_lea.vmem [#allocation9], %s404
          %406 = dma.done %s402, 64
        $region64: #{complex_wavehax_forward.8} parent=59 // pred_fallthru
          _
      $region60: #{complex_wavehax_forward.8} parent=5 // pred_fallthru
        _
    $region6: #{complex_wavehax_forward.8} parent=1 // loop_footer
      %s20 = sadd.s32 1, %s16
    $region7: #{complex_wavehax_forward.8} parent=1 // loop_footer_branch
      %15 = sbr.rel target = $region3
    $region8: #{complex_wavehax_forward.8} parent=1 // loop_exit
      _
    %407 = vsyncpa [#allocation4], 1
    %s408 = scalar_lea.sflag [#allocation4], 1
    %409 = vsyncpa %s408, 1
    %410 = vsyncpa [#allocation7], 1
    %411 = vsyncpa [#allocation5], 1
    %s412 = scalar_lea.sflag [#allocation5], 1
    %413 = vsyncpa %s412, 1

// kernel: complex_wavehax_forward.9
$region0: #{complex_wavehax_forward.9}
  #allocation0 [shape = 'u32[]', space=smem, size = 0x4, offset = 0x4, fixed_abs, tag = 'smem constant byte address 0x4 - core index']
  #allocation1 [shape = 'u32[144,128]{1,0:T(1,128)}', space=vmem, size = 0x12000, scoped, tag = 'internal scratch']
  #allocation2 [shape = 'f32[8,18]{1,0:T(8,128)}', space=vmem, size = 0x1000, scoped, tag = 'scratch operand']
  %s0 = inlined_call_operand.hbm [shape: bf16[16,56], index: 0, kind: input, shape index: {}]
  %s1 = inlined_call_operand.hbm [shape: bf16[56,18], index: 1, kind: input, shape index: {}]
  %s2 = inlined_call_operand.hbm [shape: f32[1,18], index: 2, kind: input, shape index: {}]
  %s3 = inlined_call_operand.hbm [shape: bf16[16,18], index: 3, kind: output, shape index: {}]
  %s4 = sld [smem:[#allocation0]]
  $region65: #{complex_wavehax_forward.9} parent=0
    _
  %s6 = ssub.s32 1, %s4
  %s7 = scalar_select 0, %s6, %s4
  $region1: #{complex_wavehax_forward.9} parent=0
    #allocation3 [shape = 'u8[4096]{0}', space=vmem, size = 0x1000, scoped, tag = 'input window, operand 0']
    #allocation4 [shape = 's32[2]{0}', space=sflag, size = 0x8, scoped, tag = 'scoped memory for complex_wavehax_forward.9']
    #allocation5 [shape = 's32[2]{0}', space=sflag, size = 0x8, scoped, tag = 'scoped memory for complex_wavehax_forward.9']
    #allocation6 [shape = 'u8[14336]{0}', space=vmem, size = 0x3800, scoped, tag = 'input window, operand 1, single buffered']
    #allocation7 [shape = 's32[1]{0}', space=sflag, size = 0x4, scoped, tag = 'scoped memory for complex_wavehax_forward.9']
    #allocation8 [shape = 'u8[512]{0}', space=vmem, size = 0x400, scoped, tag = 'input window, operand 2, single buffered']
    #allocation9 [shape = 'u8[4096]{0}', space=vmem, size = 0x1000, scoped, tag = 'output window, operand 0']
    %8 = vsyncpa [#allocation4], 0
    %s9 = scalar_lea.sflag [#allocation4], 1
    %10 = vsyncpa %s9, 0
    %11 = vsyncpa [#allocation7], 0
    %12 = vsyncpa [#allocation5], 0
    %s13 = scalar_lea.sflag [#allocation5], 1
    %14 = vsyncpa %s13, 0
    loop: start=0, step=1, limit=4
    $region2: #{complex_wavehax_forward.9} parent=1 // loop_pre_header
      _
    $region3: #{complex_wavehax_forward.9} parent=1 // loop_header
      %s16 = sphi 0, %s20
      %p17 = scmp.ge.s32.totalorder %s16, 4
      %s23 = sphi 0, %s35
      %s24 = sphi 0, %s31
      %s25 = sphi 0, %s23
      %s26 = sphi 0, %s24
      %s27 = sphi 0, %s25
      %s28 = sphi 0, %s26
      %s40 = sphi 0, %s42
      %s43 = sphi 0, %s40
      %s44 = sphi 0, %s43
      %s60 = sphi 0, %s44
      %s66 = sphi 0, %s68
      %s69 = sphi 0, %s66
      %s70 = sphi 0, %s69
      %s86 = sphi 0, %s70
      %s90 = sphi 0, %s90
      %s92 = sphi 0, %s90
      %s93 = sphi 0, %s92
      %s107 = sphi 0, %s93
      %s113 = sphi 0, %s115
      %s116 = sphi 0, %s113
      %s117 = sphi 0, %s116
      %s133 = sphi 0, %s117
    $region4: #{complex_wavehax_forward.9} parent=1 // loop_header_branch
      %19 = sbr.rel (%p17) target = $region8
    $region5: #{complex_wavehax_forward.9} parent=1 // loop_body
      %s21 = ssub.s32 %s16, 1
      %s22 = ssub.s32 %s16, 2
      %s29 = sadd.s32 1, %s24
      %p30 = scmp.ge.s32.totalorder %s29, 1
      %s31 = scalar_select %p30, 0, %s29
      %s32 = sadd.s32 1, %s23
      %s33 = scalar_select %p30, %s32, %s23
      %p34 = scmp.ge.s32.totalorder %s33, 2
      %s35 = scalar_select %p34, 0, %s33
      %s36 = ssub.s32 %s23, %s35
      %s37 = ssub.s32 %s24, %s31
      %s38 = sor.u32 %s36, %s37
      %p39 = scmp.eq.s32.totalorder %s38, 0
      %s41 = sadd.s32 %s40, 1
      %s42 = scalar_select %p39, %s40, %s41
      %p45 = pneg %p39
      %p46 = scmp.eq.s32.totalorder %s16, 1
      %p47 = por %p45, %p46
      %p48 = scmp.ne.s32.totalorder %s40, %s43
      %p49 = scmp.eq.s32.totalorder %s16, 0
      %p50 = por %p48, %p49
      %p51 = scmp.ne.s32.totalorder %s40, %s43
      %p52 = scmp.eq.s32.totalorder %s21, 1
      %p53 = por %p51, %p52
      %p54 = scmp.ne.s32.totalorder %s43, %s44
      %p55 = scmp.eq.s32.totalorder %s21, 0
      %p56 = por %p54, %p55
      %p57 = scmp.ne.s32.totalorder %s43, %s44
      %p58 = scmp.eq.s32.totalorder %s22, 1
      %p59 = por %p57, %p58
      %p61 = scmp.ne.s32.totalorder %s44, %s60
      %p62 = scmp.eq.s32.totalorder %s22, 0
      %p63 = por %p61, %p62
      %s64 = ssub.s32 %s24, %s31
      %p65 = scmp.eq.s32.totalorder %s64, 0
      %s67 = sadd.s32 %s66, 1
      %s68 = scalar_select %p65, %s66, %s67
      %p71 = pneg %p65
      %p72 = scmp.eq.s32.totalorder %s16, 1
      %p73 = por %p71, %p72
      %p74 = scmp.ne.s32.totalorder %s66, %s69
      %p75 = scmp.eq.s32.totalorder %s16, 0
      %p76 = por %p74, %p75
      %p77 = scmp.ne.s32.totalorder %s66, %s69
      %p78 = scmp.eq.s32.totalorder %s21, 1
      %p79 = por %p77, %p78
      %p80 = scmp.ne.s32.totalorder %s69, %s70
      %p81 = scmp.eq.s32.totalorder %s21, 0
      %p82 = por %p80, %p81
      %p83 = scmp.ne.s32.totalorder %s69, %s70
      %p84 = scmp.eq.s32.totalorder %s22, 1
      %p85 = por %p83, %p84
      %p87 = scmp.ne.s32.totalorder %s70, %s86
      %p88 = scmp.eq.s32.totalorder %s22, 0
      %p89 = por %p87, %p88
      %s91 = sadd.s32 %s90, 1
      %p94 = scmp.eq.s32.totalorder %s16, 1
      %p95 = scmp.ne.s32.totalorder %s90, %s92
      %p96 = scmp.eq.s32.totalorder %s16, 0
      %p97 = por %p95, %p96
      %p98 = scmp.ne.s32.totalorder %s90, %s92
      %p99 = scmp.eq.s32.totalorder %s21, 1
      %p100 = por %p98, %p99
      %p101 = scmp.ne.s32.totalorder %s92, %s93
      %p102 = scmp.eq.s32.totalorder %s21, 0
      %p103 = por %p101, %p102
      %p104 = scmp.ne.s32.totalorder %s92, %s93
      %p105 = scmp.eq.s32.totalorder %s22, 1
      %p106 = por %p104, %p105
      %p108 = scmp.ne.s32.totalorder %s93, %s107
      %p109 = scmp.eq.s32.totalorder %s22, 0
      %p110 = por %p108, %p109
      %s111 = ssub.s32 %s23, %s35
      %p112 = scmp.eq.s32.totalorder %s111, 0
      %s114 = sadd.s32 %s113, 1
      %s115 = scalar_select %p112, %s113, %s114
      %p118 = pneg %p112
      %p119 = scmp.eq.s32.totalorder %s16, 1
      %p120 = por %p118, %p119
      %p121 = scmp.ne.s32.totalorder %s113, %s116
      %p122 = scmp.eq.s32.totalorder %s16, 0
      %p123 = por %p121, %p122
      %p124 = scmp.ne.s32.totalorder %s113, %s116
      %p125 = scmp.eq.s32.totalorder %s21, 1
      %p126 = por %p124, %p125
      %p127 = scmp.ne.s32.totalorder %s116, %s117
      %p128 = scmp.eq.s32.totalorder %s21, 0
      %p129 = por %p127, %p128
      %p130 = scmp.ne.s32.totalorder %s116, %s117
      %p131 = scmp.eq.s32.totalorder %s22, 1
      %p132 = por %p130, %p131
      %p134 = scmp.ne.s32.totalorder %s117, %s133
      %p135 = scmp.eq.s32.totalorder %s22, 0
      %p136 = por %p134, %p135
      %p137 = scmp.le.s32.totalorder 1, %s16
      %p138 = scmp.lt.s32.totalorder %s16, 3
      %p139 = pnand %p137, %p138
      %p140 = pneg %p139
      // Predicated region
      $region9: #{complex_wavehax_forward.9} parent=5 // pred_check
        _
      $region10: #{complex_wavehax_forward.9} parent=5 // pred_check_branch
        %142 = sbr.rel (%p139) target = $region12
      $region11: #{complex_wavehax_forward.9} parent=5 // pred_region
        %s143 = ssub.s32 %s16, 1
        // Predicated region
        $region13: #{complex_wavehax_forward.9} parent=11 // pred_check
          %p144 = pneg %p82
        $region14: #{complex_wavehax_forward.9} parent=11 // pred_check_branch
          %146 = sbr.rel (%p144) target = $region16
        $region15: #{complex_wavehax_forward.9} parent=11 // pred_region
          %s147 = smul.u32 7, %s26
          %s149 = ssub.s32 448, 448
          %150 = vsyncadd [#allocation7], %s149
          %s151 = smul.addr %s147, 64
          %s152 = scalar_lea.hbm %s1, %s151
          %s153 = sshll.u32 [#allocation6], 4
          %s154 = int_to_ptr.vmem [resolvable:$true] %s153
          %159 = dma.hbm_to_vmem [thread:$0]  %s152, 448, %s154, [#allocation7], 64, 64, 4
        $region16: #{complex_wavehax_forward.9} parent=11 // pred_fallthru
          _
        // Predicated region
        $region17: #{complex_wavehax_forward.9} parent=11 // pred_check
          %p160 = pneg %p103
        $region18: #{complex_wavehax_forward.9} parent=11 // pred_check_branch
          %162 = sbr.rel (%p160) target = $region20
        $region19: #{complex_wavehax_forward.9} parent=11 // pred_region
          %s164 = ssub.s32 16, 16
          %165 = vsyncadd [#allocation7], %s164
          %s167 = sshll.u32 [#allocation8], 4
          %s168 = int_to_ptr.vmem [resolvable:$true] %s167
          %170 = dma.hbm_to_vmem [thread:$0]  %s2, 16, %s168, [#allocation7]
        $region20: #{complex_wavehax_forward.9} parent=11 // pred_fallthru
          _
      $region12: #{complex_wavehax_forward.9} parent=5 // pred_fallthru
        _
      %p171 = scmp.lt.s32.totalorder %s16, 2
      // Predicated region
      $region21: #{complex_wavehax_forward.9} parent=5 // pred_check
        %p172 = pneg %p171
      $region22: #{complex_wavehax_forward.9} parent=5 // pred_check_branch
        %174 = sbr.rel (%p172) target = $region24
      $region23: #{complex_wavehax_forward.9} parent=5 // pred_region
        // Predicated region
        $region25: #{complex_wavehax_forward.9} parent=23 // pred_check
          %p175 = pneg %p50
        $region26: #{complex_wavehax_forward.9} parent=23 // pred_check_branch
          %177 = sbr.rel (%p175) target = $region28
        $region27: #{complex_wavehax_forward.9} parent=23 // pred_region
          %s178 = sand.u32 %s40, 1
          %s179 = scalar_lea.sflag [#allocation4], %s178
          %s180 = sand.u32 %s40, 1
          %s181 = smul.addr %s180, 4
          %s182 = scalar_lea.vmem [#allocation3], %s181
          %s184 = ssub.s32 64, 64
          %185 = vsyncadd %s179, %s184
          %s186 = sadd.s32 %s24, %s23
          %s187 = smul.addr %s186, 64
          %s188 = scalar_lea.hbm %s0, %s187
          %s190 = sshll.u32 %s182, 4
          %s191 = int_to_ptr.vmem [resolvable:$true] %s190
          %193 = dma.hbm_to_vmem [thread:$0]  %s188, 64, %s191, %s179
        $region28: #{complex_wavehax_forward.9} parent=23 // pred_fallthru
          _
      $region24: #{complex_wavehax_forward.9} parent=5 // pred_fallthru
        _
      %p194 = scmp.le.s32.totalorder 1, %s16
      %p195 = scmp.lt.s32.totalorder %s16, 3
      %p196 = pnand %p194, %p195
      %p197 = pneg %p196
      // Predicated region
      $region29: #{complex_wavehax_forward.9} parent=5 // pred_check
        _
      $region30: #{complex_wavehax_forward.9} parent=5 // pred_check_branch
        %199 = sbr.rel (%p196) target = $region32
      $region31: #{complex_wavehax_forward.9} parent=5 // pred_region
        %s200 = ssub.s32 %s16, 1
        %s201 = sand.u32 %s43, 1
        %s202 = scalar_lea.sflag [#allocation4], %s201
        %s203 = sand.u32 %s43, 1
        %s204 = smul.addr %s203, 4
        %s205 = scalar_lea.vmem [#allocation3], %s204
        // Predicated region
        $region33: #{complex_wavehax_forward.9} parent=31 // pred_check
          %p206 = pneg %p56
        $region34: #{complex_wavehax_forward.9} parent=31 // pred_check_branch
          %208 = sbr.rel (%p206) target = $region36
        $region35: #{complex_wavehax_forward.9} parent=31 // pred_region
          %209 = dma.done %s202, 64
        $region36: #{complex_wavehax_forward.9} parent=31 // pred_fallthru
          _
        // Predicated region
        $region37: #{complex_wavehax_forward.9} parent=31 // pred_check
          %p210 = pneg %p82
        $region38: #{complex_wavehax_forward.9} parent=31 // pred_check_branch
          %212 = sbr.rel (%p210) target = $region40
        $region39: #{complex_wavehax_forward.9} parent=31 // pred_region
          %213 = dma.done [#allocation7], 448
        $region40: #{complex_wavehax_forward.9} parent=31 // pred_fallthru
          _
        // Predicated region
        $region41: #{complex_wavehax_forward.9} parent=31 // pred_check
          %p214 = pneg %p103
        $region42: #{complex_wavehax_forward.9} parent=31 // pred_check_branch
          %216 = sbr.rel (%p214) target = $region44
        $region43: #{complex_wavehax_forward.9} parent=31 // pred_region
          %217 = dma.done [#allocation7], 16
        $region44: #{complex_wavehax_forward.9} parent=31 // pred_fallthru
          _
        %s218 = sand.u32 %s43, 1
        %s219 = scalar_lea.sflag [#allocation4], %s218
        %s220 = sand.u32 %s43, 1
        %s221 = smul.addr %s220, 4
        %s222 = scalar_lea.vmem [#allocation3], %s221
        %p223 = pneg %p56
        %p224 = pneg %p53
        %p225 = pneg %p82
        %p226 = pneg %p79
        %p227 = pneg %p103
        %p228 = pneg %p100
        %p229 = pneg %p129
        %p230 = pneg %p126
        %s231 = sand.u32 %s116, 1
        %s232 = scalar_lea.sflag [#allocation5], %s231
        %s233 = sand.u32 %s116, 1
        %s234 = smul.addr %s233, 4
        %s235 = scalar_lea.vmem [#allocation9], %s234
        %s236 = smul.u32 7, %s26
        %p238 = scmp.eq.s32.totalorder %s26, 0
        // Predicated region
        $region45: #{complex_wavehax_forward.9} parent=31 // pred_check
          %p239 = pneg %p238
        $region46: #{complex_wavehax_forward.9} parent=31 // pred_check_branch
          %241 = sbr.rel (%p239) target = $region48
        $region47: #{complex_wavehax_forward.9} parent=31 // pred_region
          %vm242 = vcmask 146432
          %243 = vst.msk [vmem:[#allocation2] sm:$0xff] %vm242, 0.0
        $region48: #{complex_wavehax_forward.9} parent=31 // pred_fallthru
          _
        %v244 = vld [vmem:[#allocation2] sm:$0xff]
        %v245 = vld [vmem:[%s205] sm:$0xf]
        %v246 = vld [vmem:[#allocation6] sm:$0xf]
        %v247 = vld [vmem:[#allocation6 + $0x4] sm:$0xf]
        %v248 = vld [vmem:[#allocation6 + $0x8] sm:$0xf]
        %v249 = vld [vmem:[#allocation6 + $0xc] sm:$0xf]
        %v250 = vld [vmem:[#allocation6 + $0x10] sm:$0xf]
        %v251 = vld [vmem:[#allocation6 + $0x14] sm:$0xf]
        %v252 = vld [vmem:[#allocation6 + $0x18] sm:$0xf]
        %v260 = vunpack.c.l.b16 %v246
        %v261 = vunpack.c.l.b16 %v247
        %v262 = vunpack.c.l.b16 %v248
        %v263 = vunpack.c.l.b16 %v249
        %v264 = vunpack.c.l.b16 %v250
        %v265 = vunpack.c.l.b16 %v251
        %v266 = vunpack.c.l.b16 %v252
        %v267 = vpack.c.b16 %v261, %v260
        %v268 = vpack.c.b16 %v263, %v262
        %v269 = vpack.c.b16 %v265, %v264
        %v270 = vpack.c.b16 %v266, %v266
        %vm274 = vcmask 457728
        %v276 = vsel %vm274, %v245, 0
        %vm278 = vcmask 1043456
        %v280 = vsel %vm278, %v270, 0
        %282 = vmatprep.subr.bf16.mxu0 0
        %283 = vmatpush1.bf16.msra.mxu0 %v267
        %284 = vmatprep.subr.bf16.mxu0 0
        %285 = vmatpush1.bf16.msra.mxu0 %v268
        %286 = vmatprep.subr.bf16.mxu0 0
        %287 = vmatpush1.bf16.msra.mxu0 %v269
        %288 = vmatprep.subr.bf16.mxu0 0
        %289 = vmatpush1.bf16.msra.mxu0 %v280
        %290 = vmatprep.subr.bf16.mxu0 0
        %291 = vmatpush1.bf16.msra.mxu0 0
        %292 = vmatprep.subr.bf16.mxu0 0
        %293 = vmatpush1.bf16.msra.mxu0 0
        %294 = vmatprep.subr.bf16.mxu0 0
        %295 = vmatpush1.bf16.msra.mxu0 0
        %296 = vmatprep.subr.bf16.mxu0 0
        %297 = vmatpush1.bf16.msra.mxu0 0
        %298 = vmatprep.subr.bf16.mxu0 0
        %299 = vmatpush1.bf16.msra.mxu0 0
        %300 = vmatprep.subr.bf16.mxu0 0
        %301 = vmatpush1.bf16.msra.mxu0 0
        %302 = vmatprep.subr.bf16.mxu0 0
        %303 = vmatpush1.bf16.msra.mxu0 0
        %304 = vmatprep.subr.bf16.mxu0 0
        %305 = vmatpush1.bf16.msra.mxu0 0
        %306 = vmatprep.subr.bf16.mxu0 0
        %307 = vmatpush1.bf16.msra.mxu0 0
        %308 = vmatprep.subr.bf16.mxu0 0
        %309 = vmatpush1.bf16.msra.mxu0 0
        %310 = vmatprep.subr.bf16.mxu0 0
        %311 = vmatpush1.bf16.msra.mxu0 0
        %312 = vmatprep.subr.bf16.mxu0 0
        %313 = vmatpush1.bf16.msra.mxu0 0
        %314 = vmatprep.mubr.bf16.mxu0 0
        %315 = vmatmul.mubr.bf16.gmra.mrb[0].mxu0 %v276
        %v316 = vpop.f32.mrb[0].mxu0
        %v317 = vadd.f32 0.0, %v316
        %v318 = vpop.f32.mrb[0].mxu0
        %v319 = vpop.f32.mrb[0].mxu0
        %v320 = vpop.f32.mrb[0].mxu0
        %321 = vdwg.mxu0
        %v322 = vadd.f32 %v244, %v317
        %vm323 = vcmask 146432
        %324 = vst.msk [vmem:[#allocation2] sm:$0xff] %vm323, %v322
        // Predicated region
        $region49: #{complex_wavehax_forward.9} parent=31 // pred_check
          %p325 = pneg %p238
        $region50: #{complex_wavehax_forward.9} parent=31 // pred_check_branch
          %327 = sbr.rel (%p325) target = $region52
        $region51: #{complex_wavehax_forward.9} parent=31 // pred_region
          %v328 = vld [vmem:[#allocation2] sm:$0xff]
          %v329 = vld [vmem:[#allocation8] sm:$0x1]
          %v331 = vlaneseq
          %v332 = vshrl.u32 %v331, 7
          %v333 = vsub.s32 0, %v332
          %v334 = vrot.slane %v329, %v333
          %v336 = vadd.f32 %v328, %v334
          %v337 = vpack.c.bf16 %v336, %v336
          %vm338 = vcmask 142336
          %339 = vst.msk [vmem:[%s235] sm:$0xf] %vm338, %v337
        $region52: #{complex_wavehax_forward.9} parent=31 // pred_fallthru
          _
        %s340 = sand.u32 %s116, 1
        %s341 = scalar_lea.sflag [#allocation5], %s340
        %s342 = sand.u32 %s116, 1
        %s343 = smul.addr %s342, 4
        %s344 = scalar_lea.vmem [#allocation9], %s343
        // Predicated region
        $region53: #{complex_wavehax_forward.9} parent=31 // pred_check
          %p345 = pneg %p126
        $region54: #{complex_wavehax_forward.9} parent=31 // pred_check_branch
          %347 = sbr.rel (%p345) target = $region56
        $region55: #{complex_wavehax_forward.9} parent=31 // pred_region
          %s349 = ssub.s32 64, 64
          %350 = vsyncadd %s341, %s349
          %s351 = smul.addr %s25, 64
          %s352 = scalar_lea.hbm %s3, %s351
          %s354 = sshll.u32 %s344, 4
          %s355 = int_to_ptr.vmem [resolvable:$true] %s354
          %357 = dma.vmem_to_hbm [thread:$0]  %s355, 64, %s352, %s341
        $region56: #{complex_wavehax_forward.9} parent=31 // pred_fallthru
          _
      $region32: #{complex_wavehax_forward.9} parent=5 // pred_fallthru
        _
      %p358 = scmp.le.s32.totalorder 2, %s16
      // Predicated region
      $region57: #{complex_wavehax_forward.9} parent=5 // pred_check
        %p359 = pneg %p358
      $region58: #{complex_wavehax_forward.9} parent=5 // pred_check_branch
        %361 = sbr.rel (%p359) target = $region60
      $region59: #{complex_wavehax_forward.9} parent=5 // pred_region
        %s362 = ssub.s32 %s16, 2
        // Predicated region
        $region61: #{complex_wavehax_forward.9} parent=59 // pred_check
          %p363 = pneg %p132
        $region62: #{complex_wavehax_forward.9} parent=59 // pred_check_branch
          %365 = sbr.rel (%p363) target = $region64
        $region63: #{complex_wavehax_forward.9} parent=59 // pred_region
          %s366 = sand.u32 %s117, 1
          %s367 = scalar_lea.sflag [#allocation5], %s366
          %s368 = sand.u32 %s117, 1
          %s369 = smul.addr %s368, 4
          %s370 = scalar_lea.vmem [#allocation9], %s369
          %371 = dma.done %s367, 64
        $region64: #{complex_wavehax_forward.9} parent=59 // pred_fallthru
          _
      $region60: #{complex_wavehax_forward.9} parent=5 // pred_fallthru
        _
    $region6: #{complex_wavehax_forward.9} parent=1 // loop_footer
      %s20 = sadd.s32 1, %s16
    $region7: #{complex_wavehax_forward.9} parent=1 // loop_footer_branch
      %15 = sbr.rel target = $region3
    $region8: #{complex_wavehax_forward.9} parent=1 // loop_exit
      _
    %372 = vsyncpa [#allocation4], 1
    %s373 = scalar_lea.sflag [#allocation4], 1
    %374 = vsyncpa %s373, 1
    %375 = vsyncpa [#allocation7], 1
    %376 = vsyncpa [#allocation5], 1
    %s377 = scalar_lea.sflag [#allocation5], 1
    %378 = vsyncpa %s377, 1

// kernel: complex_wavehax_forward.10
$region0: #{complex_wavehax_forward.10}
  #allocation0 [shape = 'u32[]', space=smem, size = 0x4, offset = 0x4, fixed_abs, tag = 'smem constant byte address 0x4 - core index']
  #allocation1 [shape = 'u32[144,128]{1,0:T(1,128)}', space=vmem, size = 0x12000, scoped, tag = 'internal scratch']
  %s0 = inlined_call_operand.hbm [shape: bf16[144,6], index: 0, kind: input, shape index: {}]
  %s1 = inlined_call_operand.hbm [shape: bf16[6,16], index: 1, kind: input, shape index: {}]
  %s2 = inlined_call_operand.hbm [shape: f32[2,16], index: 2, kind: input, shape index: {}]
  %s3 = inlined_call_operand.hbm [shape: bf16[144,16], index: 3, kind: output, shape index: {}]
  %s4 = sld [smem:[#allocation0]]
  $region57: #{complex_wavehax_forward.10} parent=0
    _
  %s6 = ssub.s32 1, %s4
  %s7 = scalar_select 0, %s6, %s4
  $region1: #{complex_wavehax_forward.10} parent=0
    #allocation2 [shape = 'u8[36864]{0}', space=vmem, size = 0x9000, scoped, tag = 'input window, operand 0']
    #allocation3 [shape = 's32[2]{0}', space=sflag, size = 0x8, scoped, tag = 'scoped memory for complex_wavehax_forward.10']
    #allocation4 [shape = 's32[2]{0}', space=sflag, size = 0x8, scoped, tag = 'scoped memory for complex_wavehax_forward.10']
    #allocation5 [shape = 'u8[2048]{0}', space=vmem, size = 0x800, scoped, tag = 'input window, operand 1, single buffered']
    #allocation6 [shape = 's32[1]{0}', space=sflag, size = 0x4, scoped, tag = 'scoped memory for complex_wavehax_forward.10']
    #allocation7 [shape = 'u8[1024]{0}', space=vmem, size = 0x400, scoped, tag = 'input window, operand 2, single buffered']
    #allocation8 [shape = 'u8[36864]{0}', space=vmem, size = 0x9000, scoped, tag = 'output window, operand 0']
    %8 = vsyncpa [#allocation3], 0
    %s9 = scalar_lea.sflag [#allocation3], 1
    %10 = vsyncpa %s9, 0
    %11 = vsyncpa [#allocation6], 0
    %12 = vsyncpa [#allocation4], 0
    %s13 = scalar_lea.sflag [#allocation4], 1
    %14 = vsyncpa %s13, 0
    loop: start=0, step=1, limit=4
    $region2: #{complex_wavehax_forward.10} parent=1 // loop_pre_header
      _
    $region3: #{complex_wavehax_forward.10} parent=1 // loop_header
      %s16 = sphi 0, %s20
      %p17 = scmp.ge.s32.totalorder %s16, 4
      %s26 = sphi 0, %s28
      %s29 = sphi 0, %s26
      %s30 = sphi 0, %s29
      %s46 = sphi 0, %s30
      %s50 = sphi 0, %s50
      %s52 = sphi 0, %s50
      %s53 = sphi 0, %s52
      %s67 = sphi 0, %s53
      %s71 = sphi 0, %s71
      %s73 = sphi 0, %s71
      %s74 = sphi 0, %s73
      %s88 = sphi 0, %s74
      %s94 = sphi 0, %s96
      %s97 = sphi 0, %s94
      %s98 = sphi 0, %s97
      %s114 = sphi 0, %s98
    $region4: #{complex_wavehax_forward.10} parent=1 // loop_header_branch
      %19 = sbr.rel (%p17) target = $region8
    $region5: #{complex_wavehax_forward.10} parent=1 // loop_body
      %s21 = ssub.s32 %s16, 1
      %s22 = ssub.s32 %s16, 2
      %s23 = sadd.s32 %s16, 1
      %s24 = ssub.s32 %s16, %s23
      %p25 = scmp.eq.s32.totalorder %s24, 0
      %s27 = sadd.s32 %s26, 1
      %s28 = scalar_select %p25, %s26, %s27
      %p31 = pneg %p25
      %p32 = scmp.eq.s32.totalorder %s16, 1
      %p33 = por %p31, %p32
      %p34 = scmp.ne.s32.totalorder %s26, %s29
      %p35 = scmp.eq.s32.totalorder %s16, 0
      %p36 = por %p34, %p35
      %p37 = scmp.ne.s32.totalorder %s26, %s29
      %p38 = scmp.eq.s32.totalorder %s21, 1
      %p39 = por %p37, %p38
      %p40 = scmp.ne.s32.totalorder %s29, %s30
      %p41 = scmp.eq.s32.totalorder %s21, 0
      %p42 = por %p40, %p41
      %p43 = scmp.ne.s32.totalorder %s29, %s30
      %p44 = scmp.eq.s32.totalorder %s22, 1
      %p45 = por %p43, %p44
      %p47 = scmp.ne.s32.totalorder %s30, %s46
      %p48 = scmp.eq.s32.totalorder %s22, 0
      %p49 = por %p47, %p48
      %s51 = sadd.s32 %s50, 1
      %p54 = scmp.eq.s32.totalorder %s16, 1
      %p55 = scmp.ne.s32.totalorder %s50, %s52
      %p56 = scmp.eq.s32.totalorder %s16, 0
      %p57 = por %p55, %p56
      %p58 = scmp.ne.s32.totalorder %s50, %s52
      %p59 = scmp.eq.s32.totalorder %s21, 1
      %p60 = por %p58, %p59
      %p61 = scmp.ne.s32.totalorder %s52, %s53
      %p62 = scmp.eq.s32.totalorder %s21, 0
      %p63 = por %p61, %p62
      %p64 = scmp.ne.s32.totalorder %s52, %s53
      %p65 = scmp.eq.s32.totalorder %s22, 1
      %p66 = por %p64, %p65
      %p68 = scmp.ne.s32.totalorder %s53, %s67
      %p69 = scmp.eq.s32.totalorder %s22, 0
      %p70 = por %p68, %p69
      %s72 = sadd.s32 %s71, 1
      %p75 = scmp.eq.s32.totalorder %s16, 1
      %p76 = scmp.ne.s32.totalorder %s71, %s73
      %p77 = scmp.eq.s32.totalorder %s16, 0
      %p78 = por %p76, %p77
      %p79 = scmp.ne.s32.totalorder %s71, %s73
      %p80 = scmp.eq.s32.totalorder %s21, 1
      %p81 = por %p79, %p80
      %p82 = scmp.ne.s32.totalorder %s73, %s74
      %p83 = scmp.eq.s32.totalorder %s21, 0
      %p84 = por %p82, %p83
      %p85 = scmp.ne.s32.totalorder %s73, %s74
      %p86 = scmp.eq.s32.totalorder %s22, 1
      %p87 = por %p85, %p86
      %p89 = scmp.ne.s32.totalorder %s74, %s88
      %p90 = scmp.eq.s32.totalorder %s22, 0
      %p91 = por %p89, %p90
      %s92 = ssub.s32 %s16, %s23
      %p93 = scmp.eq.s32.totalorder %s92, 0
      %s95 = sadd.s32 %s94, 1
      %s96 = scalar_select %p93, %s94, %s95
      %p99 = pneg %p93
      %p100 = scmp.eq.s32.totalorder %s16, 1
      %p101 = por %p99, %p100
      %p102 = scmp.ne.s32.totalorder %s94, %s97
      %p103 = scmp.eq.s32.totalorder %s16, 0
      %p104 = por %p102, %p103
      %p105 = scmp.ne.s32.totalorder %s94, %s97
      %p106 = scmp.eq.s32.totalorder %s21, 1
      %p107 = por %p105, %p106
      %p108 = scmp.ne.s32.totalorder %s97, %s98
      %p109 = scmp.eq.s32.totalorder %s21, 0
      %p110 = por %p108, %p109
      %p111 = scmp.ne.s32.totalorder %s97, %s98
      %p112 = scmp.eq.s32.totalorder %s22, 1
      %p113 = por %p111, %p112
      %p115 = scmp.ne.s32.totalorder %s98, %s114
      %p116 = scmp.eq.s32.totalorder %s22, 0
      %p117 = por %p115, %p116
      %p118 = scmp.le.s32.totalorder 1, %s16
      %p119 = scmp.lt.s32.totalorder %s16, 3
      %p120 = pnand %p118, %p119
      %p121 = pneg %p120
      // Predicated region
      $region9: #{complex_wavehax_forward.10} parent=5 // pred_check
        _
      $region10: #{complex_wavehax_forward.10} parent=5 // pred_check_branch
        %123 = sbr.rel (%p120) target = $region12
      $region11: #{complex_wavehax_forward.10} parent=5 // pred_region
        %s124 = ssub.s32 %s16, 1
        // Predicated region
        $region13: #{complex_wavehax_forward.10} parent=11 // pred_check
          %p125 = pneg %p63
        $region14: #{complex_wavehax_forward.10} parent=11 // pred_check_branch
          %127 = sbr.rel (%p125) target = $region16
        $region15: #{complex_wavehax_forward.10} parent=11 // pred_region
          %s129 = ssub.s32 64, 64
          %130 = vsyncadd [#allocation6], %s129
          %s132 = sshll.u32 [#allocation5], 4
          %s133 = int_to_ptr.vmem [resolvable:$true] %s132
          %135 = dma.hbm_to_vmem [thread:$0]  %s1, 64, %s133, [#allocation6]
        $region16: #{complex_wavehax_forward.10} parent=11 // pred_fallthru
          _
        // Predicated region
        $region17: #{complex_wavehax_forward.10} parent=11 // pred_check
          %p136 = pneg %p84
        $region18: #{complex_wavehax_forward.10} parent=11 // pred_check_branch
          %138 = sbr.rel (%p136) target = $region20
        $region19: #{complex_wavehax_forward.10} parent=11 // pred_region
          %s140 = ssub.s32 32, 32
          %141 = vsyncadd [#allocation6], %s140
          %s143 = sshll.u32 [#allocation7], 4
          %s144 = int_to_ptr.vmem [resolvable:$true] %s143
          %146 = dma.hbm_to_vmem [thread:$0]  %s2, 32, %s144, [#allocation6]
        $region20: #{complex_wavehax_forward.10} parent=11 // pred_fallthru
          _
      $region12: #{complex_wavehax_forward.10} parent=5 // pred_fallthru
        _
      %p147 = scmp.lt.s32.totalorder %s16, 2
      // Predicated region
      $region21: #{complex_wavehax_forward.10} parent=5 // pred_check
        %p148 = pneg %p147
      $region22: #{complex_wavehax_forward.10} parent=5 // pred_check_branch
        %150 = sbr.rel (%p148) target = $region24
      $region23: #{complex_wavehax_forward.10} parent=5 // pred_region
        // Predicated region
        $region25: #{complex_wavehax_forward.10} parent=23 // pred_check
          %p151 = pneg %p36
        $region26: #{complex_wavehax_forward.10} parent=23 // pred_check_branch
          %153 = sbr.rel (%p151) target = $region28
        $region27: #{complex_wavehax_forward.10} parent=23 // pred_region
          %s154 = sand.u32 %s26, 1
          %s155 = scalar_lea.sflag [#allocation3], %s154
          %s156 = sand.u32 %s26, 1
          %s157 = smul.addr %s156, 36
          %s158 = scalar_lea.vmem [#allocation2], %s157
          %s159 = smul.u32 9, %s16
          %s161 = ssub.s32 576, 576
          %162 = vsyncadd %s155, %s161
          %s163 = smul.addr %s159, 64
          %s164 = scalar_lea.hbm %s0, %s163
          %s165 = sshll.u32 %s158, 4
          %s166 = int_to_ptr.vmem [resolvable:$true] %s165
          %171 = dma.hbm_to_vmem [thread:$0]  %s164, 576, %s166, %s155, 64, 64, 4
        $region28: #{complex_wavehax_forward.10} parent=23 // pred_fallthru
          _
      $region24: #{complex_wavehax_forward.10} parent=5 // pred_fallthru
        _
      %p172 = scmp.le.s32.totalorder 1, %s16
      %p173 = scmp.lt.s32.totalorder %s16, 3
      %p174 = pnand %p172, %p173
      %p175 = pneg %p174
      // Predicated region
      $region29: #{complex_wavehax_forward.10} parent=5 // pred_check
        _
      $region30: #{complex_wavehax_forward.10} parent=5 // pred_check_branch
        %177 = sbr.rel (%p174) target = $region32
      $region31: #{complex_wavehax_forward.10} parent=5 // pred_region
        %s178 = ssub.s32 %s16, 1
        %s179 = sand.u32 %s29, 1
        %s180 = scalar_lea.sflag [#allocation3], %s179
        %s181 = sand.u32 %s29, 1
        %s182 = smul.addr %s181, 36
        %s183 = scalar_lea.vmem [#allocation2], %s182
        // Predicated region
        $region33: #{complex_wavehax_forward.10} parent=31 // pred_check
          %p184 = pneg %p42
        $region34: #{complex_wavehax_forward.10} parent=31 // pred_check_branch
          %186 = sbr.rel (%p184) target = $region36
        $region35: #{complex_wavehax_forward.10} parent=31 // pred_region
          %187 = dma.done %s180, 576
        $region36: #{complex_wavehax_forward.10} parent=31 // pred_fallthru
          _
        // Predicated region
        $region37: #{complex_wavehax_forward.10} parent=31 // pred_check
          %p188 = pneg %p63
        $region38: #{complex_wavehax_forward.10} parent=31 // pred_check_branch
          %190 = sbr.rel (%p188) target = $region40
        $region39: #{complex_wavehax_forward.10} parent=31 // pred_region
          %191 = dma.done [#allocation6], 64
        $region40: #{complex_wavehax_forward.10} parent=31 // pred_fallthru
          _
        // Predicated region
        $region41: #{complex_wavehax_forward.10} parent=31 // pred_check
          %p192 = pneg %p84
        $region42: #{complex_wavehax_forward.10} parent=31 // pred_check_branch
          %194 = sbr.rel (%p192) target = $region44
        $region43: #{complex_wavehax_forward.10} parent=31 // pred_region
          %195 = dma.done [#allocation6], 32
        $region44: #{complex_wavehax_forward.10} parent=31 // pred_fallthru
          _
        %s196 = sand.u32 %s29, 1
        %s197 = scalar_lea.sflag [#allocation3], %s196
        %s198 = sand.u32 %s29, 1
        %s199 = smul.addr %s198, 36
        %s200 = scalar_lea.vmem [#allocation2], %s199
        %p201 = pneg %p42
        %p202 = pneg %p39
        %p203 = pneg %p63
        %p204 = pneg %p60
        %p205 = pneg %p84
        %p206 = pneg %p81
        %p207 = pneg %p110
        %p208 = pneg %p107
        %s209 = sand.u32 %s97, 1
        %s210 = scalar_lea.sflag [#allocation4], %s209
        %s211 = sand.u32 %s97, 1
        %s212 = smul.addr %s211, 36
        %s213 = scalar_lea.vmem [#allocation8], %s212
        %s214 = smul.u32 9, %s21
        %s215 = smul.u32 9, %s21
        %v217 = vld [vmem:[%s183] sm:$0xf]
        %v218 = vld [vmem:[%s183 + $0x4] sm:$0xf]
        %v219 = vld [vmem:[%s183 + $0x8] sm:$0xf]
        %v220 = vld [vmem:[%s183 + $0xc] sm:$0xf]
        %v221 = vld [vmem:[%s183 + $0x10] sm:$0xf]
        %v222 = vld [vmem:[%s183 + $0x14] sm:$0xf]
        %v223 = vld [vmem:[%s183 + $0x18] sm:$0xf]
        %v224 = vld [vmem:[%s183 + $0x1c] sm:$0xf]
        %v225 = vld [vmem:[%s183 + $0x20] sm:$0xf]
        %v226 = vld [vmem:[#allocation5] sm:$0x7]
        %v236 = vunpack.c.l.b16 %v217
        %v237 = vunpack.c.l.b16 %v218
        %v238 = vunpack.c.l.b16 %v219
        %v239 = vunpack.c.l.b16 %v220
        %v240 = vunpack.c.l.b16 %v221
        %v241 = vunpack.c.l.b16 %v222
        %v242 = vunpack.c.l.b16 %v223
        %v243 = vunpack.c.l.b16 %v224
        %v244 = vunpack.c.l.b16 %v225
        %v245 = vpack.c.b16 %v237, %v236
        %v246 = vpack.c.b16 %v239, %v238
        %v247 = vpack.c.b16 %v241, %v240
        %v248 = vpack.c.b16 %v243, %v242
        %v249 = vpack.c.b16 %v244, %v244
        %vm250 = vcmask 48128
        %v252 = vsel %vm250, %v245, 0
        %v255 = vsel %vm250, %v246, 0
        %v258 = vsel %vm250, %v247, 0
        %v261 = vsel %vm250, %v248, 0
        %v264 = vsel %vm250, %v249, 0
        %vm266 = vcmask 1042432
        %v268 = vsel %vm266, %v226, 0
        %270 = vmatprep.subr.bf16.mxu0 0
        %271 = vmatpush1.bf16.msra.mxu0 %v268
        %272 = vmatprep.subr.bf16.mxu0 0
        %273 = vmatpush1.bf16.msra.mxu0 0
        %274 = vmatprep.subr.bf16.mxu0 0
        %275 = vmatpush1.bf16.msra.mxu0 0
        %276 = vmatprep.subr.bf16.mxu0 0
        %277 = vmatpush1.bf16.msra.mxu0 0
        %278 = vmatprep.subr.bf16.mxu0 0
        %279 = vmatpush1.bf16.msra.mxu0 0
        %280 = vmatprep.subr.bf16.mxu0 0
        %281 = vmatpush1.bf16.msra.mxu0 0
        %282 = vmatprep.subr.bf16.mxu0 0
        %283 = vmatpush1.bf16.msra.mxu0 0
        %284 = vmatprep.subr.bf16.mxu0 0
        %285 = vmatpush1.bf16.msra.mxu0 0
        %286 = vmatprep.subr.bf16.mxu0 0
        %287 = vmatpush1.bf16.msra.mxu0 0
        %288 = vmatprep.subr.bf16.mxu0 0
        %289 = vmatpush1.bf16.msra.mxu0 0
        %290 = vmatprep.subr.bf16.mxu0 0
        %291 = vmatpush1.bf16.msra.mxu0 0
        %292 = vmatprep.subr.bf16.mxu0 0
        %293 = vmatpush1.bf16.msra.mxu0 0
        %294 = vmatprep.subr.bf16.mxu0 0
        %295 = vmatpush1.bf16.msra.mxu0 0
        %296 = vmatprep.subr.bf16.mxu0 0
        %297 = vmatpush1.bf16.msra.mxu0 0
        %298 = vmatprep.subr.bf16.mxu0 0
        %299 = vmatpush1.bf16.msra.mxu0 0
        %300 = vmatprep.subr.bf16.mxu0 0
        %301 = vmatpush1.bf16.msra.mxu0 0
        %302 = vmatprep.mubr.bf16.mxu0 0
        %303 = vmatmul.mubr.bf16.gmra.mrb[0].mxu0 %v252
        %v304 = vpop.f32.mrb[0].mxu0
        %v305 = vadd.f32 0.0, %v304
        %v306 = vpop.f32.mrb[0].mxu0
        %v307 = vpop.f32.mrb[0].mxu0
        %v308 = vadd.f32 0.0, %v307
        %v309 = vpop.f32.mrb[0].mxu0
        %310 = vmatprep.mubr.bf16.mxu0 0
        %311 = vmatmul.mubr.bf16.gmra.mrb[0].mxu0 %v255
        %v312 = vpop.f32.mrb[0].mxu0
        %v313 = vadd.f32 0.0, %v312
        %v314 = vpop.f32.mrb[0].mxu0
        %v315 = vpop.f32.mrb[0].mxu0
        %v316 = vadd.f32 0.0, %v315
        %v317 = vpop.f32.mrb[0].mxu0
        %318 = vmatprep.mubr.bf16.mxu0 0
        %319 = vmatmul.mubr.bf16.gmra.mrb[0].mxu0 %v258
        %v320 = vpop.f32.mrb[0].mxu0
        %v321 = vadd.f32 0.0, %v320
        %v322 = vpop.f32.mrb[0].mxu0
        %v323 = vpop.f32.mrb[0].mxu0
        %v324 = vadd.f32 0.0, %v323
        %v325 = vpop.f32.mrb[0].mxu0
        %326 = vmatprep.mubr.bf16.mxu0 0
        %327 = vmatmul.mubr.bf16.gmra.mrb[0].mxu0 %v261
        %v328 = vpop.f32.mrb[0].mxu0
        %v329 = vadd.f32 0.0, %v328
        %v330 = vpop.f32.mrb[0].mxu0
        %v331 = vpop.f32.mrb[0].mxu0
        %v332 = vadd.f32 0.0, %v331
        %v333 = vpop.f32.mrb[0].mxu0
        %334 = vmatprep.mubr.bf16.mxu0 0
        %335 = vmatmul.mubr.bf16.gmra.mrb[0].mxu0 %v264
        %v336 = vpop.f32.mrb[0].mxu0
        %v337 = vadd.f32 0.0, %v336
        %v338 = vpop.f32.mrb[0].mxu0
        %v339 = vpop.f32.mrb[0].mxu0
        %v340 = vpop.f32.mrb[0].mxu0
        %341 = vdwg.mxu0
        %v342 = vld [vmem:[#allocation7] sm:$0x3]
        %vm343 = vcmask 64512
        %v344 = vsel %vm343, %v305, 0.0
        %345 = vadd.xlane.f32.xlu0 %v344
        %v346 = vpop.xlane.xlu0 %345
        %v347 = vsel %vm343, %v308, 0.0
        %348 = vadd.xlane.f32.xlu0 %v347
        %v349 = vpop.xlane.xlu0 %348
        %v350 = vsel %vm343, %v313, 0.0
        %351 = vadd.xlane.f32.xlu0 %v350
        %v352 = vpop.xlane.xlu0 %351
        %v353 = vsel %vm343, %v316, 0.0
        %354 = vadd.xlane.f32.xlu0 %v353
        %v355 = vpop.xlane.xlu0 %354
        %v356 = vsel %vm343, %v321, 0.0
        %357 = vadd.xlane.f32.xlu0 %v356
        %v358 = vpop.xlane.xlu0 %357
        %v359 = vsel %vm343, %v324, 0.0
        %360 = vadd.xlane.f32.xlu0 %v359
        %v361 = vpop.xlane.xlu0 %360
        %v362 = vsel %vm343, %v329, 0.0
        %363 = vadd.xlane.f32.xlu0 %v362
        %v364 = vpop.xlane.xlu0 %363
        %v365 = vsel %vm343, %v332, 0.0
        %366 = vadd.xlane.f32.xlu0 %v365
        %v367 = vpop.xlane.xlu0 %366
        %v368 = vsel %vm343, %v337, 0.0
        %369 = vadd.xlane.f32.xlu0 %v368
        %v370 = vpop.xlane.xlu0 %369
        %v371 = vrcp.pop 8.0
        %v372 = vmul.f32 %v346, %v371
        %v373 = vmul.f32 %v349, %v371
        %v374 = vmul.f32 %v352, %v371
        %v375 = vmul.f32 %v355, %v371
        %v376 = vmul.f32 %v358, %v371
        %v377 = vmul.f32 %v361, %v371
        %v378 = vmul.f32 %v364, %v371
        %v379 = vmul.f32 %v367, %v371
        %v380 = vmul.f32 %v370, %v371
        %390 = vrot.lane.b32.xlu0 %v305, 120
        %v391 = vpop.permute.xlu0 %390
        %392 = vrot.lane.b32.xlu0 %v308, 120
        %v393 = vpop.permute.xlu0 %392
        %394 = vrot.lane.b32.xlu0 %v313, 120
        %v395 = vpop.permute.xlu0 %394
        %396 = vrot.lane.b32.xlu0 %v316, 120
        %v397 = vpop.permute.xlu0 %396
        %398 = vrot.lane.b32.xlu0 %v321, 120
        %v399 = vpop.permute.xlu0 %398
        %400 = vrot.lane.b32.xlu0 %v324, 120
        %v401 = vpop.permute.xlu0 %400
        %402 = vrot.lane.b32.xlu0 %v329, 120
        %v403 = vpop.permute.xlu0 %402
        %404 = vrot.lane.b32.xlu0 %v332, 120
        %v405 = vpop.permute.xlu0 %404
        %406 = vrot.lane.b32.xlu0 %v337, 120
        %v407 = vpop.permute.xlu0 %406
        %v417 = vsel %vm343, %v391, 0.0
        %418 = vadd.xlane.f32.xlu0 %v417
        %v419 = vpop.xlane.xlu0 %418
        %v420 = vsel %vm343, %v393, 0.0
        %421 = vadd.xlane.f32.xlu0 %v420
        %v422 = vpop.xlane.xlu0 %421
        %v423 = vsel %vm343, %v395, 0.0
        %424 = vadd.xlane.f32.xlu0 %v423
        %v425 = vpop.xlane.xlu0 %424
        %v426 = vsel %vm343, %v397, 0.0
        %427 = vadd.xlane.f32.xlu0 %v426
        %v428 = vpop.xlane.xlu0 %427
        %v429 = vsel %vm343, %v399, 0.0
        %430 = vadd.xlane.f32.xlu0 %v429
        %v431 = vpop.xlane.xlu0 %430
        %v432 = vsel %vm343, %v401, 0.0
        %433 = vadd.xlane.f32.xlu0 %v432
        %v434 = vpop.xlane.xlu0 %433
        %v435 = vsel %vm343, %v403, 0.0
        %436 = vadd.xlane.f32.xlu0 %v435
        %v437 = vpop.xlane.xlu0 %436
        %v438 = vsel %vm343, %v405, 0.0
        %439 = vadd.xlane.f32.xlu0 %v438
        %v440 = vpop.xlane.xlu0 %439
        %v441 = vsel %vm343, %v407, 0.0
        %442 = vadd.xlane.f32.xlu0 %v441
        %v443 = vpop.xlane.xlu0 %442
        %v444 = vmul.f32 %v419, %v371
        %v445 = vmul.f32 %v422, %v371
        %v446 = vmul.f32 %v425, %v371
        %v447 = vmul.f32 %v428, %v371
        %v448 = vmul.f32 %v431, %v371
        %v449 = vmul.f32 %v434, %v371
        %v450 = vmul.f32 %v437, %v371
        %v451 = vmul.f32 %v440, %v371
        %v452 = vmul.f32 %v443, %v371
        %v453 = vsub.f32 %v305, %v372
        %v454 = vsub.f32 %v308, %v373
        %v455 = vsub.f32 %v313, %v374
        %v456 = vsub.f32 %v316, %v375
        %v457 = vsub.f32 %v321, %v376
        %v458 = vsub.f32 %v324, %v377
        %v459 = vsub.f32 %v329, %v378
        %v460 = vsub.f32 %v332, %v379
        %v461 = vsub.f32 %v337, %v380
        %v462 = vsub.f32 %v305, %v444
        %v463 = vsub.f32 %v308, %v445
        %v464 = vsub.f32 %v313, %v446
        %v465 = vsub.f32 %v316, %v447
        %v466 = vsub.f32 %v321, %v448
        %v467 = vsub.f32 %v324, %v449
        %v468 = vsub.f32 %v329, %v450
        %v469 = vsub.f32 %v332, %v451
        %v470 = vsub.f32 %v337, %v452
        %v471 = vmul.f32 %v453, %v453
        %v472 = vmul.f32 %v454, %v454
        %v473 = vmul.f32 %v455, %v455
        %v474 = vmul.f32 %v456, %v456
        %v475 = vmul.f32 %v457, %v457
        %v476 = vmul.f32 %v458, %v458
        %v477 = vmul.f32 %v459, %v459
        %v478 = vmul.f32 %v460, %v460
        %v479 = vmul.f32 %v461, %v461
        %v480 = vmul.f32 %v462, %v462
        %v481 = vmul.f32 %v463, %v463
        %v482 = vmul.f32 %v464, %v464
        %v483 = vmul.f32 %v465, %v465
        %v484 = vmul.f32 %v466, %v466
        %v485 = vmul.f32 %v467, %v467
        %v486 = vmul.f32 %v468, %v468
        %v487 = vmul.f32 %v469, %v469
        %v488 = vmul.f32 %v470, %v470
        %498 = vrot.lane.b32.xlu0 %v480, 120
        %v499 = vpop.permute.xlu0 %498
        %500 = vrot.lane.b32.xlu0 %v481, 120
        %v501 = vpop.permute.xlu0 %500
        %502 = vrot.lane.b32.xlu0 %v482, 120
        %v503 = vpop.permute.xlu0 %502
        %504 = vrot.lane.b32.xlu0 %v483, 120
        %v505 = vpop.permute.xlu0 %504
        %506 = vrot.lane.b32.xlu0 %v484, 120
        %v507 = vpop.permute.xlu0 %506
        %508 = vrot.lane.b32.xlu0 %v485, 120
        %v509 = vpop.permute.xlu0 %508
        %510 = vrot.lane.b32.xlu0 %v486, 120
        %v511 = vpop.permute.xlu0 %510
        %512 = vrot.lane.b32.xlu0 %v487, 120
        %v513 = vpop.permute.xlu0 %512
        %514 = vrot.lane.b32.xlu0 %v488, 120
        %v515 = vpop.permute.xlu0 %514
        %v525 = vadd.f32 %v471, %v499
        %v526 = vadd.f32 %v472, %v501
        %v527 = vadd.f32 %v473, %v503
        %v528 = vadd.f32 %v474, %v505
        %v529 = vadd.f32 %v475, %v507
        %v530 = vadd.f32 %v476, %v509
        %v531 = vadd.f32 %v477, %v511
        %v532 = vadd.f32 %v478, %v513
        %v533 = vadd.f32 %v479, %v515
        %v534 = vsel %vm343, %v525, 0.0
        %535 = vadd.xlane.f32.xlu0 %v534
        %v536 = vpop.xlane.xlu0 %535
        %v537 = vsel %vm343, %v526, 0.0
        %538 = vadd.xlane.f32.xlu0 %v537
        %v539 = vpop.xlane.xlu0 %538
        %v540 = vsel %vm343, %v527, 0.0
        %541 = vadd.xlane.f32.xlu0 %v540
        %v542 = vpop.xlane.xlu0 %541
        %v543 = vsel %vm343, %v528, 0.0
        %544 = vadd.xlane.f32.xlu0 %v543
        %v545 = vpop.xlane.xlu0 %544
        %v546 = vsel %vm343, %v529, 0.0
        %547 = vadd.xlane.f32.xlu0 %v546
        %v548 = vpop.xlane.xlu0 %547
        %v549 = vsel %vm343, %v530, 0.0
        %550 = vadd.xlane.f32.xlu0 %v549
        %v551 = vpop.xlane.xlu0 %550
        %v552 = vsel %vm343, %v531, 0.0
        %553 = vadd.xlane.f32.xlu0 %v552
        %v554 = vpop.xlane.xlu0 %553
        %v555 = vsel %vm343, %v532, 0.0
        %556 = vadd.xlane.f32.xlu0 %v555
        %v557 = vpop.xlane.xlu0 %556
        %v558 = vsel %vm343, %v533, 0.0
        %559 = vadd.xlane.f32.xlu0 %v558
        %v560 = vpop.xlane.xlu0 %559
        %v561 = vmul.f32 %v536, %v371
        %v562 = vmul.f32 %v539, %v371
        %v563 = vmul.f32 %v542, %v371
        %v564 = vmul.f32 %v545, %v371
        %v565 = vmul.f32 %v548, %v371
        %v566 = vmul.f32 %v551, %v371
        %v567 = vmul.f32 %v554, %v371
        %v568 = vmul.f32 %v557, %v371
        %v569 = vmul.f32 %v560, %v371
        %v570 = vadd.f32 %v561, 1e-06
        %v571 = vadd.f32 %v562, 1e-06
        %v572 = vadd.f32 %v563, 1e-06
        %v573 = vadd.f32 %v564, 1e-06
        %v574 = vadd.f32 %v565, 1e-06
        %v575 = vadd.f32 %v566, 1e-06
        %v576 = vadd.f32 %v567, 1e-06
        %v577 = vadd.f32 %v568, 1e-06
        %v578 = vadd.f32 %v569, 1e-06
        %v579 = vrsqrt.pop %v570
        %v580 = vrsqrt.pop %v571
        %v581 = vrsqrt.pop %v572
        %v582 = vrsqrt.pop %v573
        %v583 = vrsqrt.pop %v574
        %v584 = vrsqrt.pop %v575
        %v585 = vrsqrt.pop %v576
        %v586 = vrsqrt.pop %v577
        %v587 = vrsqrt.pop %v578
        %v588 = vmul.f32 %v453, %v579
        %v589 = vmul.f32 %v454, %v580
        %v590 = vmul.f32 %v455, %v581
        %v591 = vmul.f32 %v456, %v582
        %v592 = vmul.f32 %v457, %v583
        %v593 = vmul.f32 %v458, %v584
        %v594 = vmul.f32 %v459, %v585
        %v595 = vmul.f32 %v460, %v586
        %v596 = vmul.f32 %v461, %v587
        %v597 = vmul.f32 %v462, %v579
        %v598 = vmul.f32 %v463, %v580
        %v599 = vmul.f32 %v464, %v581
        %v600 = vmul.f32 %v465, %v582
        %v601 = vmul.f32 %v466, %v583
        %v602 = vmul.f32 %v467, %v584
        %v603 = vmul.f32 %v468, %v585
        %v604 = vmul.f32 %v469, %v586
        %v605 = vmul.f32 %v470, %v587
        %v606 = vlaneseq
        %v607 = vshrl.u32 %v606, 7
        %v608 = vsub.s32 0, %v607
        %v609 = vrot.slane %v342, %v608
        %v610 = vmul.f32 %v588, %v609
        %v611 = vmul.f32 %v589, %v609
        %v612 = vmul.f32 %v590, %v609
        %v613 = vmul.f32 %v591, %v609
        %v614 = vmul.f32 %v592, %v609
        %v615 = vmul.f32 %v593, %v609
        %v616 = vmul.f32 %v594, %v609
        %v617 = vmul.f32 %v595, %v609
        %v618 = vmul.f32 %v596, %v609
        %v619 = vmul.f32 %v597, %v609
        %v620 = vmul.f32 %v598, %v609
        %v621 = vmul.f32 %v599, %v609
        %v622 = vmul.f32 %v600, %v609
        %v623 = vmul.f32 %v601, %v609
        %v624 = vmul.f32 %v602, %v609
        %v625 = vmul.f32 %v603, %v609
        %v626 = vmul.f32 %v604, %v609
        %v627 = vmul.f32 %v605, %v609
        %637 = vrot.lane.b32.xlu0 %v619, 120
        %v638 = vpop.permute.xlu0 %637
        %639 = vrot.lane.b32.xlu0 %v620, 120
        %v640 = vpop.permute.xlu0 %639
        %641 = vrot.lane.b32.xlu0 %v621, 120
        %v642 = vpop.permute.xlu0 %641
        %643 = vrot.lane.b32.xlu0 %v622, 120
        %v644 = vpop.permute.xlu0 %643
        %645 = vrot.lane.b32.xlu0 %v623, 120
        %v646 = vpop.permute.xlu0 %645
        %647 = vrot.lane.b32.xlu0 %v624, 120
        %v648 = vpop.permute.xlu0 %647
        %649 = vrot.lane.b32.xlu0 %v625, 120
        %v650 = vpop.permute.xlu0 %649
        %651 = vrot.lane.b32.xlu0 %v626, 120
        %v652 = vpop.permute.xlu0 %651
        %653 = vrot.lane.b32.xlu0 %v627, 120
        %v654 = vpop.permute.xlu0 %653
        %v664 = vsub.f32 %v610, %v638
        %v665 = vsub.f32 %v611, %v640
        %v666 = vsub.f32 %v612, %v642
        %v667 = vsub.f32 %v613, %v644
        %v668 = vsub.f32 %v614, %v646
        %v669 = vsub.f32 %v615, %v648
        %v670 = vsub.f32 %v616, %v650
        %v671 = vsub.f32 %v617, %v652
        %v672 = vsub.f32 %v618, %v654
        %v673 = vlaneseq
        %v674 = vshrl.u32 %v673, 7
        %v675 = vsub.s32 1, %v674
        %v676 = vrot.slane %v342, %v675
        %v677 = vadd.f32 %v664, %v676
        %v678 = vadd.f32 %v665, %v676
        %v679 = vadd.f32 %v666, %v676
        %v680 = vadd.f32 %v667, %v676
        %v681 = vadd.f32 %v668, %v676
        %v682 = vadd.f32 %v669, %v676
        %v683 = vadd.f32 %v670, %v676
        %v684 = vadd.f32 %v671, %v676
        %v685 = vadd.f32 %v672, %v676
        %687 = vrot.lane.b32.xlu0 %v609, 120
        %v688 = vpop.permute.xlu0 %687
        %v690 = vmul.f32 %v588, %v688
        %v691 = vmul.f32 %v589, %v688
        %v692 = vmul.f32 %v590, %v688
        %v693 = vmul.f32 %v591, %v688
        %v694 = vmul.f32 %v592, %v688
        %v695 = vmul.f32 %v593, %v688
        %v696 = vmul.f32 %v594, %v688
        %v697 = vmul.f32 %v595, %v688
        %v698 = vmul.f32 %v596, %v688
        %699 = vrot.lane.b32.xlu0 %v609, 8
        %v700 = vpop.permute.xlu0 %699
        %v702 = vmul.f32 %v597, %v700
        %v703 = vmul.f32 %v598, %v700
        %v704 = vmul.f32 %v599, %v700
        %v705 = vmul.f32 %v600, %v700
        %v706 = vmul.f32 %v601, %v700
        %v707 = vmul.f32 %v602, %v700
        %v708 = vmul.f32 %v603, %v700
        %v709 = vmul.f32 %v604, %v700
        %v710 = vmul.f32 %v605, %v700
        %720 = vrot.lane.b32.xlu0 %v702, 120
        %v721 = vpop.permute.xlu0 %720
        %722 = vrot.lane.b32.xlu0 %v703, 120
        %v723 = vpop.permute.xlu0 %722
        %724 = vrot.lane.b32.xlu0 %v704, 120
        %v725 = vpop.permute.xlu0 %724
        %726 = vrot.lane.b32.xlu0 %v705, 120
        %v727 = vpop.permute.xlu0 %726
        %728 = vrot.lane.b32.xlu0 %v706, 120
        %v729 = vpop.permute.xlu0 %728
        %730 = vrot.lane.b32.xlu0 %v707, 120
        %v731 = vpop.permute.xlu0 %730
        %732 = vrot.lane.b32.xlu0 %v708, 120
        %v733 = vpop.permute.xlu0 %732
        %734 = vrot.lane.b32.xlu0 %v709, 120
        %v735 = vpop.permute.xlu0 %734
        %736 = vrot.lane.b32.xlu0 %v710, 120
        %v737 = vpop.permute.xlu0 %736
        %v747 = vadd.f32 %v690, %v721
        %v748 = vadd.f32 %v691, %v723
        %v749 = vadd.f32 %v692, %v725
        %v750 = vadd.f32 %v693, %v727
        %v751 = vadd.f32 %v694, %v729
        %v752 = vadd.f32 %v695, %v731
        %v753 = vadd.f32 %v696, %v733
        %v754 = vadd.f32 %v697, %v735
        %v755 = vadd.f32 %v698, %v737
        %757 = vrot.lane.b32.xlu0 %v676, 120
        %v758 = vpop.permute.xlu0 %757
        %v760 = vadd.f32 %v747, %v758
        %v761 = vadd.f32 %v748, %v758
        %v762 = vadd.f32 %v749, %v758
        %v763 = vadd.f32 %v750, %v758
        %v764 = vadd.f32 %v751, %v758
        %v765 = vadd.f32 %v752, %v758
        %v766 = vadd.f32 %v753, %v758
        %v767 = vadd.f32 %v754, %v758
        %v768 = vadd.f32 %v755, %v758
        %778 = vrot.lane.b32.xlu0 %v760, 8
        %v779 = vpop.permute.xlu0 %778
        %780 = vrot.lane.b32.xlu0 %v761, 8
        %v781 = vpop.permute.xlu0 %780
        %782 = vrot.lane.b32.xlu0 %v762, 8
        %v783 = vpop.permute.xlu0 %782
        %784 = vrot.lane.b32.xlu0 %v763, 8
        %v785 = vpop.permute.xlu0 %784
        %786 = vrot.lane.b32.xlu0 %v764, 8
        %v787 = vpop.permute.xlu0 %786
        %788 = vrot.lane.b32.xlu0 %v765, 8
        %v789 = vpop.permute.xlu0 %788
        %790 = vrot.lane.b32.xlu0 %v766, 8
        %v791 = vpop.permute.xlu0 %790
        %792 = vrot.lane.b32.xlu0 %v767, 8
        %v793 = vpop.permute.xlu0 %792
        %794 = vrot.lane.b32.xlu0 %v768, 8
        %v795 = vpop.permute.xlu0 %794
        %v805 = vsel %vm343, %v677, %v779
        %v806 = vsel %vm343, %v678, %v781
        %v807 = vsel %vm343, %v679, %v783
        %v808 = vsel %vm343, %v680, %v785
        %v809 = vsel %vm343, %v681, %v787
        %v810 = vsel %vm343, %v682, %v789
        %v811 = vsel %vm343, %v683, %v791
        %v812 = vsel %vm343, %v684, %v793
        %v813 = vsel %vm343, %v685, %v795
        %v814 = vpack.c.bf16 %v806, %v805
        %v815 = vpack.c.bf16 %v808, %v807
        %v816 = vpack.c.bf16 %v810, %v809
        %v817 = vpack.c.bf16 %v812, %v811
        %v818 = vpack.c.bf16 %v813, %v813
        %v824 = vunpack.c.l.b16 %v814
        %v825 = vunpack.c.h.b16 %v814
        %v826 = vunpack.c.l.b16 %v815
        %v827 = vunpack.c.h.b16 %v815
        %v828 = vunpack.c.l.b16 %v816
        %v829 = vunpack.c.h.b16 %v816
        %v830 = vunpack.c.l.b16 %v817
        %v831 = vunpack.c.h.b16 %v817
        %v832 = vunpack.c.l.b16 %v818
        %v833 = vpack.c.b16 %v824, %v824
        %v834 = vpack.c.b16 %v825, %v825
        %v835 = vpack.c.b16 %v826, %v826
        %v836 = vpack.c.b16 %v827, %v827
        %v837 = vpack.c.b16 %v828, %v828
        %v838 = vpack.c.b16 %v829, %v829
        %v839 = vpack.c.b16 %v830, %v830
        %v840 = vpack.c.b16 %v831, %v831
        %v841 = vpack.c.b16 %v832, %v832
        %vm851 = vcmask 125952
        %852 = vst.msk [vmem:[%s213] sm:$0xf] %vm851, %v833
        %853 = vst.msk [vmem:[%s213 + $0x4] sm:$0xf] %vm851, %v834
        %854 = vst.msk [vmem:[%s213 + $0x8] sm:$0xf] %vm851, %v835
        %855 = vst.msk [vmem:[%s213 + $0xc] sm:$0xf] %vm851, %v836
        %856 = vst.msk [vmem:[%s213 + $0x10] sm:$0xf] %vm851, %v837
        %857 = vst.msk [vmem:[%s213 + $0x14] sm:$0xf] %vm851, %v838
        %858 = vst.msk [vmem:[%s213 + $0x18] sm:$0xf] %vm851, %v839
        %859 = vst.msk [vmem:[%s213 + $0x1c] sm:$0xf] %vm851, %v840
        %860 = vst.msk [vmem:[%s213 + $0x20] sm:$0xf] %vm851, %v841
        %s861 = sand.u32 %s97, 1
        %s862 = scalar_lea.sflag [#allocation4], %s861
        %s863 = sand.u32 %s97, 1
        %s864 = smul.addr %s863, 36
        %s865 = scalar_lea.vmem [#allocation8], %s864
        // Predicated region
        $region45: #{complex_wavehax_forward.10} parent=31 // pred_check
          %p866 = pneg %p107
        $region46: #{complex_wavehax_forward.10} parent=31 // pred_check_branch
          %868 = sbr.rel (%p866) target = $region48
        $region47: #{complex_wavehax_forward.10} parent=31 // pred_region
          %s869 = smul.u32 9, %s21
          %s871 = ssub.s32 576, 576
          %872 = vsyncadd %s862, %s871
          %s873 = smul.addr %s869, 64
          %s874 = scalar_lea.hbm %s3, %s873
          %s875 = sshll.u32 %s865, 4
          %s876 = int_to_ptr.vmem [resolvable:$true] %s875
          %881 = dma.vmem_to_hbm [thread:$0]  %s876, 576, %s874, %s862, 64, 64, 4
        $region48: #{complex_wavehax_forward.10} parent=31 // pred_fallthru
          _
      $region32: #{complex_wavehax_forward.10} parent=5 // pred_fallthru
        _
      %p882 = scmp.le.s32.totalorder 2, %s16
      // Predicated region
      $region49: #{complex_wavehax_forward.10} parent=5 // pred_check
        %p883 = pneg %p882
      $region50: #{complex_wavehax_forward.10} parent=5 // pred_check_branch
        %885 = sbr.rel (%p883) target = $region52
      $region51: #{complex_wavehax_forward.10} parent=5 // pred_region
        %s886 = ssub.s32 %s16, 2
        // Predicated region
        $region53: #{complex_wavehax_forward.10} parent=51 // pred_check
          %p887 = pneg %p113
        $region54: #{complex_wavehax_forward.10} parent=51 // pred_check_branch
          %889 = sbr.rel (%p887) target = $region56
        $region55: #{complex_wavehax_forward.10} parent=51 // pred_region
          %s890 = sand.u32 %s98, 1
          %s891 = scalar_lea.sflag [#allocation4], %s890
          %s892 = sand.u32 %s98, 1
          %s893 = smul.addr %s892, 36
          %s894 = scalar_lea.vmem [#allocation8], %s893
          %895 = dma.done %s891, 576
        $region56: #{complex_wavehax_forward.10} parent=51 // pred_fallthru
          _
      $region52: #{complex_wavehax_forward.10} parent=5 // pred_fallthru
        _
    $region6: #{complex_wavehax_forward.10} parent=1 // loop_footer
      %s20 = sadd.s32 1, %s16
    $region7: #{complex_wavehax_forward.10} parent=1 // loop_footer_branch
      %15 = sbr.rel target = $region3
    $region8: #{complex_wavehax_forward.10} parent=1 // loop_exit
      _
    %896 = vsyncpa [#allocation3], 1
    %s897 = scalar_lea.sflag [#allocation3], 1
    %898 = vsyncpa %s897, 1
    %899 = vsyncpa [#allocation6], 1
    %900 = vsyncpa [#allocation4], 1
    %s901 = scalar_lea.sflag [#allocation4], 1
    %902 = vsyncpa %s901, 1

// kernel: tile.8
$region0: #{tile.8}
  #allocation0 [shape = 's32[1]{0}', space=sflag, size = 0x4, scoped, tag = 'scoped memory for tile.8']
  %s0 = inlined_call_operand.vmem [shape: f32[16], index: 0, kind: input, shape index: {}]
  %s1 = inlined_call_operand.vmem [shape: f32[8,16], index: 1, kind: output, shape index: {}]
  // Predicated region
  $region2: #{tile.8} parent=0 // pred_check
    _
  $region3: #{tile.8} parent=0 // pred_check_branch
    %3 = sbr.rel (0) target = $region5
  $region4: #{tile.8} parent=0 // pred_region
    _
  $region5: #{tile.8} parent=0 // pred_fallthru
    _
  %v4 = vld [vmem:[%s0] ss:$0 sm:$0xff]
  %5 = vst [vmem:[%s1] sm:$0xff] %v4

// kernel: complex_wavehax_forward.11
$region0: #{complex_wavehax_forward.11}
  #allocation0 [shape = 'u32[]', space=smem, size = 0x4, offset = 0x4, fixed_abs, tag = 'smem constant byte address 0x4 - core index']
  #allocation1 [shape = 'u32[144,128]{1,0:T(1,128)}', space=vmem, size = 0x12000, scoped, tag = 'internal scratch']
  %s0 = inlined_call_operand.hbm [shape: bf16[144,16], index: 0, kind: input, shape index: {}]
  %s1 = inlined_call_operand.hbm [shape: bf16[144,16], index: 1, kind: input, shape index: {}]
  %s2 = inlined_call_operand.hbm [shape: bf16[144,16], index: 2, kind: input, shape index: {}]
  %s3 = inlined_call_operand.hbm [shape: f32[7,16], index: 3, kind: input, shape index: {}]
  %s4 = inlined_call_operand.hbm [shape: f32[1,32], index: 4, kind: input, shape index: {}]
  %s5 = inlined_call_operand.hbm [shape: bf16[16,32], index: 5, kind: input, shape index: {}]
  %s6 = inlined_call_operand.hbm [shape: bf16[32,16], index: 6, kind: input, shape index: {}]
  %s7 = inlined_call_operand.hbm [shape: bf16[144,16], index: 7, kind: output, shape index: {}]
  %s8 = sld [smem:[#allocation0]]
  $region89: #{complex_wavehax_forward.11} parent=0
    _
  %s10 = ssub.s32 1, %s8
  %s11 = scalar_select 0, %s10, %s8
  $region1: #{complex_wavehax_forward.11} parent=0
    #allocation2 [shape = 'u8[36864]{0}', space=vmem, size = 0x9000, scoped, tag = 'input window, operand 0']
    #allocation3 [shape = 's32[2]{0}', space=sflag, size = 0x8, scoped, tag = 'scoped memory for complex_wavehax_forward.11']
    #allocation4 [shape = 's32[2]{0}', space=sflag, size = 0x8, scoped, tag = 'scoped memory for complex_wavehax_forward.11']
    #allocation5 [shape = 'u8[36864]{0}', space=vmem, size = 0x9000, scoped, tag = 'input window, operand 1']
    #allocation6 [shape = 's32[2]{0}', space=sflag, size = 0x8, scoped, tag = 'scoped memory for complex_wavehax_forward.11']
    #allocation7 [shape = 'u8[36864]{0}', space=vmem, size = 0x9000, scoped, tag = 'input window, operand 2']
    #allocation8 [shape = 'u8[4096]{0}', space=vmem, size = 0x1000, scoped, tag = 'input window, operand 3, single buffered']
    #allocation9 [shape = 's32[1]{0}', space=sflag, size = 0x4, scoped, tag = 'scoped memory for complex_wavehax_forward.11']
    #allocation10 [shape = 'u8[512]{0}', space=vmem, size = 0x400, scoped, tag = 'input window, operand 4, single buffered']
    #allocation11 [shape = 'u8[4096]{0}', space=vmem, size = 0x1000, scoped, tag = 'input window, operand 5, single buffered']
    #allocation12 [shape = 's32[1]{0}', space=sflag, size = 0x4, scoped, tag = 'scoped memory for complex_wavehax_forward.11']
    #allocation13 [shape = 'u8[8192]{0}', space=vmem, size = 0x2000, scoped, tag = 'input window, operand 6, single buffered']
    #allocation14 [shape = 'u8[36864]{0}', space=vmem, size = 0x9000, scoped, tag = 'output window, operand 0']
    %12 = vsyncpa [#allocation3], 0
    %s13 = scalar_lea.sflag [#allocation3], 1
    %14 = vsyncpa %s13, 0
    %15 = vsyncpa [#allocation6], 0
    %s16 = scalar_lea.sflag [#allocation6], 1
    %17 = vsyncpa %s16, 0
    %18 = vsyncpa [#allocation9], 0
    %19 = vsyncpa [#allocation12], 0
    %20 = vsyncpa [#allocation4], 0
    %s21 = scalar_lea.sflag [#allocation4], 1
    %22 = vsyncpa %s21, 0
    loop: start=0, step=1, limit=4
    $region2: #{complex_wavehax_forward.11} parent=1 // loop_pre_header
      _
    $region3: #{complex_wavehax_forward.11} parent=1 // loop_header
      %s24 = sphi 0, %s28
      %p25 = scmp.ge.s32.totalorder %s24, 4
      %s34 = sphi 0, %s36
      %s37 = sphi 0, %s34
      %s38 = sphi 0, %s37
      %s54 = sphi 0, %s38
      %s60 = sphi 0, %s62
      %s63 = sphi 0, %s60
      %s64 = sphi 0, %s63
      %s80 = sphi 0, %s64
      %s86 = sphi 0, %s88
      %s89 = sphi 0, %s86
      %s90 = sphi 0, %s89
      %s106 = sphi 0, %s90
      %s110 = sphi 0, %s110
      %s112 = sphi 0, %s110
      %s113 = sphi 0, %s112
      %s127 = sphi 0, %s113
      %s131 = sphi 0, %s131
      %s133 = sphi 0, %s131
      %s134 = sphi 0, %s133
      %s148 = sphi 0, %s134
      %s152 = sphi 0, %s152
      %s154 = sphi 0, %s152
      %s155 = sphi 0, %s154
      %s169 = sphi 0, %s155
      %s173 = sphi 0, %s173
      %s175 = sphi 0, %s173
      %s176 = sphi 0, %s175
      %s190 = sphi 0, %s176
      %s196 = sphi 0, %s198
      %s199 = sphi 0, %s196
      %s200 = sphi 0, %s199
      %s216 = sphi 0, %s200
    $region4: #{complex_wavehax_forward.11} parent=1 // loop_header_branch
      %27 = sbr.rel (%p25) target = $region8
    $region5: #{complex_wavehax_forward.11} parent=1 // loop_body
      %s29 = ssub.s32 %s24, 1
      %s30 = ssub.s32 %s24, 2
      %s31 = sadd.s32 %s24, 1
      %s32 = ssub.s32 %s24, %s31
      %p33 = scmp.eq.s32.totalorder %s32, 0
      %s35 = sadd.s32 %s34, 1
      %s36 = scalar_select %p33, %s34, %s35
      %p39 = pneg %p33
      %p40 = scmp.eq.s32.totalorder %s24, 1
      %p41 = por %p39, %p40
      %p42 = scmp.ne.s32.totalorder %s34, %s37
      %p43 = scmp.eq.s32.totalorder %s24, 0
      %p44 = por %p42, %p43
      %p45 = scmp.ne.s32.totalorder %s34, %s37
      %p46 = scmp.eq.s32.totalorder %s29, 1
      %p47 = por %p45, %p46
      %p48 = scmp.ne.s32.totalorder %s37, %s38
      %p49 = scmp.eq.s32.totalorder %s29, 0
      %p50 = por %p48, %p49
      %p51 = scmp.ne.s32.totalorder %s37, %s38
      %p52 = scmp.eq.s32.totalorder %s30, 1
      %p53 = por %p51, %p52
      %p55 = scmp.ne.s32.totalorder %s38, %s54
      %p56 = scmp.eq.s32.totalorder %s30, 0
      %p57 = por %p55, %p56
      %s58 = ssub.s32 %s24, %s31
      %p59 = scmp.eq.s32.totalorder %s58, 0
      %s61 = sadd.s32 %s60, 1
      %s62 = scalar_select %p59, %s60, %s61
      %p65 = pneg %p59
      %p66 = scmp.eq.s32.totalorder %s24, 1
      %p67 = por %p65, %p66
      %p68 = scmp.ne.s32.totalorder %s60, %s63
      %p69 = scmp.eq.s32.totalorder %s24, 0
      %p70 = por %p68, %p69
      %p71 = scmp.ne.s32.totalorder %s60, %s63
      %p72 = scmp.eq.s32.totalorder %s29, 1
      %p73 = por %p71, %p72
      %p74 = scmp.ne.s32.totalorder %s63, %s64
      %p75 = scmp.eq.s32.totalorder %s29, 0
      %p76 = por %p74, %p75
      %p77 = scmp.ne.s32.totalorder %s63, %s64
      %p78 = scmp.eq.s32.totalorder %s30, 1
      %p79 = por %p77, %p78
      %p81 = scmp.ne.s32.totalorder %s64, %s80
      %p82 = scmp.eq.s32.totalorder %s30, 0
      %p83 = por %p81, %p82
      %s84 = ssub.s32 %s24, %s31
      %p85 = scmp.eq.s32.totalorder %s84, 0
      %s87 = sadd.s32 %s86, 1
      %s88 = scalar_select %p85, %s86, %s87
      %p91 = pneg %p85
      %p92 = scmp.eq.s32.totalorder %s24, 1
      %p93 = por %p91, %p92
      %p94 = scmp.ne.s32.totalorder %s86, %s89
      %p95 = scmp.eq.s32.totalorder %s24, 0
      %p96 = por %p94, %p95
      %p97 = scmp.ne.s32.totalorder %s86, %s89
      %p98 = scmp.eq.s32.totalorder %s29, 1
      %p99 = por %p97, %p98
      %p100 = scmp.ne.s32.totalorder %s89, %s90
      %p101 = scmp.eq.s32.totalorder %s29, 0
      %p102 = por %p100, %p101
      %p103 = scmp.ne.s32.totalorder %s89, %s90
      %p104 = scmp.eq.s32.totalorder %s30, 1
      %p105 = por %p103, %p104
      %p107 = scmp.ne.s32.totalorder %s90, %s106
      %p108 = scmp.eq.s32.totalorder %s30, 0
      %p109 = por %p107, %p108
      %s111 = sadd.s32 %s110, 1
      %p114 = scmp.eq.s32.totalorder %s24, 1
      %p115 = scmp.ne.s32.totalorder %s110, %s112
      %p116 = scmp.eq.s32.totalorder %s24, 0
      %p117 = por %p115, %p116
      %p118 = scmp.ne.s32.totalorder %s110, %s112
      %p119 = scmp.eq.s32.totalorder %s29, 1
      %p120 = por %p118, %p119
      %p121 = scmp.ne.s32.totalorder %s112, %s113
      %p122 = scmp.eq.s32.totalorder %s29, 0
      %p123 = por %p121, %p122
      %p124 = scmp.ne.s32.totalorder %s112, %s113
      %p125 = scmp.eq.s32.totalorder %s30, 1
      %p126 = por %p124, %p125
      %p128 = scmp.ne.s32.totalorder %s113, %s127
      %p129 = scmp.eq.s32.totalorder %s30, 0
      %p130 = por %p128, %p129
      %s132 = sadd.s32 %s131, 1
      %p135 = scmp.eq.s32.totalorder %s24, 1
      %p136 = scmp.ne.s32.totalorder %s131, %s133
      %p137 = scmp.eq.s32.totalorder %s24, 0
      %p138 = por %p136, %p137
      %p139 = scmp.ne.s32.totalorder %s131, %s133
      %p140 = scmp.eq.s32.totalorder %s29, 1
      %p141 = por %p139, %p140
      %p142 = scmp.ne.s32.totalorder %s133, %s134
      %p143 = scmp.eq.s32.totalorder %s29, 0
      %p144 = por %p142, %p143
      %p145 = scmp.ne.s32.totalorder %s133, %s134
      %p146 = scmp.eq.s32.totalorder %s30, 1
      %p147 = por %p145, %p146
      %p149 = scmp.ne.s32.totalorder %s134, %s148
      %p150 = scmp.eq.s32.totalorder %s30, 0
      %p151 = por %p149, %p150
      %s153 = sadd.s32 %s152, 1
      %p156 = scmp.eq.s32.totalorder %s24, 1
      %p157 = scmp.ne.s32.totalorder %s152, %s154
      %p158 = scmp.eq.s32.totalorder %s24, 0
      %p159 = por %p157, %p158
      %p160 = scmp.ne.s32.totalorder %s152, %s154
      %p161 = scmp.eq.s32.totalorder %s29, 1
      %p162 = por %p160, %p161
      %p163 = scmp.ne.s32.totalorder %s154, %s155
      %p164 = scmp.eq.s32.totalorder %s29, 0
      %p165 = por %p163, %p164
      %p166 = scmp.ne.s32.totalorder %s154, %s155
      %p167 = scmp.eq.s32.totalorder %s30, 1
      %p168 = por %p166, %p167
      %p170 = scmp.ne.s32.totalorder %s155, %s169
      %p171 = scmp.eq.s32.totalorder %s30, 0
      %p172 = por %p170, %p171
      %s174 = sadd.s32 %s173, 1
      %p177 = scmp.eq.s32.totalorder %s24, 1
      %p178 = scmp.ne.s32.totalorder %s173, %s175
      %p179 = scmp.eq.s32.totalorder %s24, 0
      %p180 = por %p178, %p179
      %p181 = scmp.ne.s32.totalorder %s173, %s175
      %p182 = scmp.eq.s32.totalorder %s29, 1
      %p183 = por %p181, %p182
      %p184 = scmp.ne.s32.totalorder %s175, %s176
      %p185 = scmp.eq.s32.totalorder %s29, 0
      %p186 = por %p184, %p185
      %p187 = scmp.ne.s32.totalorder %s175, %s176
      %p188 = scmp.eq.s32.totalorder %s30, 1
      %p189 = por %p187, %p188
      %p191 = scmp.ne.s32.totalorder %s176, %s190
      %p192 = scmp.eq.s32.totalorder %s30, 0
      %p193 = por %p191, %p192
      %s194 = ssub.s32 %s24, %s31
      %p195 = scmp.eq.s32.totalorder %s194, 0
      %s197 = sadd.s32 %s196, 1
      %s198 = scalar_select %p195, %s196, %s197
      %p201 = pneg %p195
      %p202 = scmp.eq.s32.totalorder %s24, 1
      %p203 = por %p201, %p202
      %p204 = scmp.ne.s32.totalorder %s196, %s199
      %p205 = scmp.eq.s32.totalorder %s24, 0
      %p206 = por %p204, %p205
      %p207 = scmp.ne.s32.totalorder %s196, %s199
      %p208 = scmp.eq.s32.totalorder %s29, 1
      %p209 = por %p207, %p208
      %p210 = scmp.ne.s32.totalorder %s199, %s200
      %p211 = scmp.eq.s32.totalorder %s29, 0
      %p212 = por %p210, %p211
      %p213 = scmp.ne.s32.totalorder %s199, %s200
      %p214 = scmp.eq.s32.totalorder %s30, 1
      %p215 = por %p213, %p214
      %p217 = scmp.ne.s32.totalorder %s200, %s216
      %p218 = scmp.eq.s32.totalorder %s30, 0
      %p219 = por %p217, %p218
      %p220 = scmp.le.s32.totalorder 1, %s24
      %p221 = scmp.lt.s32.totalorder %s24, 3
      %p222 = pnand %p220, %p221
      %p223 = pneg %p222
      // Predicated region
      $region9: #{complex_wavehax_forward.11} parent=5 // pred_check
        _
      $region10: #{complex_wavehax_forward.11} parent=5 // pred_check_branch
        %225 = sbr.rel (%p222) target = $region12
      $region11: #{complex_wavehax_forward.11} parent=5 // pred_region
        %s226 = ssub.s32 %s24, 1
        // Predicated region
        $region13: #{complex_wavehax_forward.11} parent=11 // pred_check
          %p227 = pneg %p123
        $region14: #{complex_wavehax_forward.11} parent=11 // pred_check_branch
          %229 = sbr.rel (%p227) target = $region16
        $region15: #{complex_wavehax_forward.11} parent=11 // pred_region
          %s231 = ssub.s32 128, 128
          %232 = vsyncadd [#allocation9], %s231
          %s234 = sshll.u32 [#allocation8], 4
          %s235 = int_to_ptr.vmem [resolvable:$true] %s234
          %237 = dma.hbm_to_vmem [thread:$0]  %s3, 128, %s235, [#allocation9]
        $region16: #{complex_wavehax_forward.11} parent=11 // pred_fallthru
          _
        // Predicated region
        $region17: #{complex_wavehax_forward.11} parent=11 // pred_check
          %p238 = pneg %p144
        $region18: #{complex_wavehax_forward.11} parent=11 // pred_check_branch
          %240 = sbr.rel (%p238) target = $region20
        $region19: #{complex_wavehax_forward.11} parent=11 // pred_region
          %s242 = ssub.s32 16, 16
          %243 = vsyncadd [#allocation9], %s242
          %s245 = sshll.u32 [#allocation10], 4
          %s246 = int_to_ptr.vmem [resolvable:$true] %s245
          %248 = dma.hbm_to_vmem [thread:$0]  %s4, 16, %s246, [#allocation9]
        $region20: #{complex_wavehax_forward.11} parent=11 // pred_fallthru
          _
        // Predicated region
        $region21: #{complex_wavehax_forward.11} parent=11 // pred_check
          %p249 = pneg %p165
        $region22: #{complex_wavehax_forward.11} parent=11 // pred_check_branch
          %251 = sbr.rel (%p249) target = $region24
        $region23: #{complex_wavehax_forward.11} parent=11 // pred_region
          %s253 = ssub.s32 128, 128
          %254 = vsyncadd [#allocation12], %s253
          %s255 = sshll.u32 [#allocation11], 4
          %s256 = int_to_ptr.vmem [resolvable:$true] %s255
          %261 = dma.hbm_to_vmem [thread:$0]  %s5, 128, %s256, [#allocation12], 64, 64, 4
        $region24: #{complex_wavehax_forward.11} parent=11 // pred_fallthru
          _
        // Predicated region
        $region25: #{complex_wavehax_forward.11} parent=11 // pred_check
          %p262 = pneg %p186
        $region26: #{complex_wavehax_forward.11} parent=11 // pred_check_branch
          %264 = sbr.rel (%p262) target = $region28
        $region27: #{complex_wavehax_forward.11} parent=11 // pred_region
          %s266 = ssub.s32 256, 256
          %267 = vsyncadd [#allocation12], %s266
          %s268 = sshll.u32 [#allocation13], 4
          %s269 = int_to_ptr.vmem [resolvable:$true] %s268
          %274 = dma.hbm_to_vmem [thread:$0]  %s6, 256, %s269, [#allocation12], 64, 64, 4
        $region28: #{complex_wavehax_forward.11} parent=11 // pred_fallthru
          _
      $region12: #{complex_wavehax_forward.11} parent=5 // pred_fallthru
        _
      %p275 = scmp.lt.s32.totalorder %s24, 2
      // Predicated region
      $region29: #{complex_wavehax_forward.11} parent=5 // pred_check
        %p276 = pneg %p275
      $region30: #{complex_wavehax_forward.11} parent=5 // pred_check_branch
        %278 = sbr.rel (%p276) target = $region32
      $region31: #{complex_wavehax_forward.11} parent=5 // pred_region
        // Predicated region
        $region33: #{complex_wavehax_forward.11} parent=31 // pred_check
          %p279 = pneg %p44
        $region34: #{complex_wavehax_forward.11} parent=31 // pred_check_branch
          %281 = sbr.rel (%p279) target = $region36
        $region35: #{complex_wavehax_forward.11} parent=31 // pred_region
          %s282 = sand.u32 %s34, 1
          %s283 = scalar_lea.sflag [#allocation3], %s282
          %s284 = sand.u32 %s34, 1
          %s285 = smul.addr %s284, 36
          %s286 = scalar_lea.vmem [#allocation2], %s285
          %s287 = smul.u32 9, %s24
          %s289 = ssub.s32 576, 576
          %290 = vsyncadd %s283, %s289
          %s291 = smul.addr %s287, 64
          %s292 = scalar_lea.hbm %s0, %s291
          %s293 = sshll.u32 %s286, 4
          %s294 = int_to_ptr.vmem [resolvable:$true] %s293
          %299 = dma.hbm_to_vmem [thread:$0]  %s292, 576, %s294, %s283, 64, 64, 4
        $region36: #{complex_wavehax_forward.11} parent=31 // pred_fallthru
          _
        // Predicated region
        $region37: #{complex_wavehax_forward.11} parent=31 // pred_check
          %p300 = pneg %p70
        $region38: #{complex_wavehax_forward.11} parent=31 // pred_check_branch
          %302 = sbr.rel (%p300) target = $region40
        $region39: #{complex_wavehax_forward.11} parent=31 // pred_region
          %s303 = sand.u32 %s24, 1
          %s304 = scalar_lea.sflag [#allocation6], %s303
          %s305 = sand.u32 %s60, 1
          %s306 = smul.addr %s305, 36
          %s307 = scalar_lea.vmem [#allocation5], %s306
          %s308 = smul.u32 9, %s24
          %s310 = ssub.s32 576, 576
          %311 = vsyncadd %s304, %s310
          %s312 = smul.addr %s308, 64
          %s313 = scalar_lea.hbm %s1, %s312
          %s314 = sshll.u32 %s307, 4
          %s315 = int_to_ptr.vmem [resolvable:$true] %s314
          %320 = dma.hbm_to_vmem [thread:$0]  %s313, 576, %s315, %s304, 64, 64, 4
        $region40: #{complex_wavehax_forward.11} parent=31 // pred_fallthru
          _
        // Predicated region
        $region41: #{complex_wavehax_forward.11} parent=31 // pred_check
          %p321 = pneg %p96
        $region42: #{complex_wavehax_forward.11} parent=31 // pred_check_branch
          %323 = sbr.rel (%p321) target = $region44
        $region43: #{complex_wavehax_forward.11} parent=31 // pred_region
          %s324 = sand.u32 %s24, 1
          %s325 = scalar_lea.sflag [#allocation6], %s324
          %s326 = sand.u32 %s86, 1
          %s327 = smul.addr %s326, 36
          %s328 = scalar_lea.vmem [#allocation7], %s327
          %s329 = smul.u32 9, %s24
          %s331 = ssub.s32 576, 576
          %332 = vsyncadd %s325, %s331
          %s333 = smul.addr %s329, 64
          %s334 = scalar_lea.hbm %s2, %s333
          %s335 = sshll.u32 %s328, 4
          %s336 = int_to_ptr.vmem [resolvable:$true] %s335
          %341 = dma.hbm_to_vmem [thread:$0]  %s334, 576, %s336, %s325, 64, 64, 4
        $region44: #{complex_wavehax_forward.11} parent=31 // pred_fallthru
          _
      $region32: #{complex_wavehax_forward.11} parent=5 // pred_fallthru
        _
      %p342 = scmp.le.s32.totalorder 1, %s24
      %p343 = scmp.lt.s32.totalorder %s24, 3
      %p344 = pnand %p342, %p343
      %p345 = pneg %p344
      // Predicated region
      $region45: #{complex_wavehax_forward.11} parent=5 // pred_check
        _
      $region46: #{complex_wavehax_forward.11} parent=5 // pred_check_branch
        %347 = sbr.rel (%p344) target = $region48
      $region47: #{complex_wavehax_forward.11} parent=5 // pred_region
        %s348 = ssub.s32 %s24, 1
        %s349 = sand.u32 %s37, 1
        %s350 = scalar_lea.sflag [#allocation3], %s349
        %s351 = sand.u32 %s37, 1
        %s352 = smul.addr %s351, 36
        %s353 = scalar_lea.vmem [#allocation2], %s352
        // Predicated region
        $region49: #{complex_wavehax_forward.11} parent=47 // pred_check
          %p354 = pneg %p50
        $region50: #{complex_wavehax_forward.11} parent=47 // pred_check_branch
          %356 = sbr.rel (%p354) target = $region52
        $region51: #{complex_wavehax_forward.11} parent=47 // pred_region
          %357 = dma.done %s350, 576
        $region52: #{complex_wavehax_forward.11} parent=47 // pred_fallthru
          _
        %s358 = sand.u32 %s29, 1
        %s359 = scalar_lea.sflag [#allocation6], %s358
        %s360 = sand.u32 %s63, 1
        %s361 = smul.addr %s360, 36
        %s362 = scalar_lea.vmem [#allocation5], %s361
        // Predicated region
        $region53: #{complex_wavehax_forward.11} parent=47 // pred_check
          %p363 = pneg %p76
        $region54: #{complex_wavehax_forward.11} parent=47 // pred_check_branch
          %365 = sbr.rel (%p363) target = $region56
        $region55: #{complex_wavehax_forward.11} parent=47 // pred_region
          %366 = dma.done %s359, 576
        $region56: #{complex_wavehax_forward.11} parent=47 // pred_fallthru
          _
        %s367 = sand.u32 %s29, 1
        %s368 = scalar_lea.sflag [#allocation6], %s367
        %s369 = sand.u32 %s89, 1
        %s370 = smul.addr %s369, 36
        %s371 = scalar_lea.vmem [#allocation7], %s370
        // Predicated region
        $region57: #{complex_wavehax_forward.11} parent=47 // pred_check
          %p372 = pneg %p102
        $region58: #{complex_wavehax_forward.11} parent=47 // pred_check_branch
          %374 = sbr.rel (%p372) target = $region60
        $region59: #{complex_wavehax_forward.11} parent=47 // pred_region
          %375 = dma.done %s368, 576
        $region60: #{complex_wavehax_forward.11} parent=47 // pred_fallthru
          _
        // Predicated region
        $region61: #{complex_wavehax_forward.11} parent=47 // pred_check
          %p376 = pneg %p123
        $region62: #{complex_wavehax_forward.11} parent=47 // pred_check_branch
          %378 = sbr.rel (%p376) target = $region64
        $region63: #{complex_wavehax_forward.11} parent=47 // pred_region
          %379 = dma.done [#allocation9], 128
        $region64: #{complex_wavehax_forward.11} parent=47 // pred_fallthru
          _
        // Predicated region
        $region65: #{complex_wavehax_forward.11} parent=47 // pred_check
          %p380 = pneg %p144
        $region66: #{complex_wavehax_forward.11} parent=47 // pred_check_branch
          %382 = sbr.rel (%p380) target = $region68
        $region67: #{complex_wavehax_forward.11} parent=47 // pred_region
          %383 = dma.done [#allocation9], 16
        $region68: #{complex_wavehax_forward.11} parent=47 // pred_fallthru
          _
        // Predicated region
        $region69: #{complex_wavehax_forward.11} parent=47 // pred_check
          %p384 = pneg %p165
        $region70: #{complex_wavehax_forward.11} parent=47 // pred_check_branch
          %386 = sbr.rel (%p384) target = $region72
        $region71: #{complex_wavehax_forward.11} parent=47 // pred_region
          %387 = dma.done [#allocation12], 128
        $region72: #{complex_wavehax_forward.11} parent=47 // pred_fallthru
          _
        // Predicated region
        $region73: #{complex_wavehax_forward.11} parent=47 // pred_check
          %p388 = pneg %p186
        $region74: #{complex_wavehax_forward.11} parent=47 // pred_check_branch
          %390 = sbr.rel (%p388) target = $region76
        $region75: #{complex_wavehax_forward.11} parent=47 // pred_region
          %391 = dma.done [#allocation12], 256
        $region76: #{complex_wavehax_forward.11} parent=47 // pred_fallthru
          _
        %s392 = sand.u32 %s37, 1
        %s393 = scalar_lea.sflag [#allocation3], %s392
        %s394 = sand.u32 %s37, 1
        %s395 = smul.addr %s394, 36
        %s396 = scalar_lea.vmem [#allocation2], %s395
        %p397 = pneg %p50
        %p398 = pneg %p47
        %s399 = sand.u32 %s29, 1
        %s400 = scalar_lea.sflag [#allocation6], %s399
        %s401 = sand.u32 %s63, 1
        %s402 = smul.addr %s401, 36
        %s403 = scalar_lea.vmem [#allocation5], %s402
        %p404 = pneg %p76
        %p405 = pneg %p73
        %s406 = sand.u32 %s29, 1
        %s407 = scalar_lea.sflag [#allocation6], %s406
        %s408 = sand.u32 %s89, 1
        %s409 = smul.addr %s408, 36
        %s410 = scalar_lea.vmem [#allocation7], %s409
        %p411 = pneg %p102
        %p412 = pneg %p99
        %p413 = pneg %p123
        %p414 = pneg %p120
        %p415 = pneg %p144
        %p416 = pneg %p141
        %p417 = pneg %p165
        %p418 = pneg %p162
        %p419 = pneg %p186
        %p420 = pneg %p183
        %p421 = pneg %p212
        %p422 = pneg %p209
        %s423 = sand.u32 %s199, 1
        %s424 = scalar_lea.sflag [#allocation4], %s423
        %s425 = sand.u32 %s199, 1
        %s426 = smul.addr %s425, 36
        %s427 = scalar_lea.vmem [#allocation14], %s426
        %s428 = smul.u32 9, %s29
        %s429 = smul.u32 9, %s29
        %s430 = smul.u32 9, %s29
        %s431 = smul.u32 9, %s29
        %v437 = vld [vmem:[#allocation8] sm:$0x7f]
        %v438 = vld [vmem:[%s353] sm:$0xf]
        %v439 = vld [vmem:[%s353 + $0x4] sm:$0xf]
        %v440 = vld [vmem:[%s353 + $0x8] sm:$0xf]
        %v441 = vld [vmem:[%s353 + $0xc] sm:$0xf]
        %v442 = vld [vmem:[%s353 + $0x10] sm:$0xf]
        %v443 = vld [vmem:[%s353 + $0x14] sm:$0xf]
        %v444 = vld [vmem:[%s353 + $0x18] sm:$0xf]
        %v445 = vld [vmem:[%s353 + $0x1c] sm:$0xf]
        %v446 = vld [vmem:[%s353 + $0x20] sm:$0xf]
        %v447 = vunpack.c.l.bf16 %v438
        %v448 = vunpack.c.l.bf16 %v439
        %v449 = vunpack.c.l.bf16 %v440
        %v450 = vunpack.c.l.bf16 %v441
        %v451 = vunpack.c.l.bf16 %v442
        %v452 = vunpack.c.l.bf16 %v443
        %v453 = vunpack.c.l.bf16 %v444
        %v454 = vunpack.c.l.bf16 %v445
        %v455 = vunpack.c.l.bf16 %v446
        %v456 = vld [vmem:[%s362] sm:$0xf]
        %v457 = vld [vmem:[%s362 + $0x4] sm:$0xf]
        %v458 = vld [vmem:[%s362 + $0x8] sm:$0xf]
        %v459 = vld [vmem:[%s362 + $0xc] sm:$0xf]
        %v460 = vld [vmem:[%s362 + $0x10] sm:$0xf]
        %v461 = vld [vmem:[%s362 + $0x14] sm:$0xf]
        %v462 = vld [vmem:[%s362 + $0x18] sm:$0xf]
        %v463 = vld [vmem:[%s362 + $0x1c] sm:$0xf]
        %v464 = vld [vmem:[%s362 + $0x20] sm:$0xf]
        %v465 = vunpack.c.l.bf16 %v456
        %v466 = vunpack.c.l.bf16 %v457
        %v467 = vunpack.c.l.bf16 %v458
        %v468 = vunpack.c.l.bf16 %v459
        %v469 = vunpack.c.l.bf16 %v460
        %v470 = vunpack.c.l.bf16 %v461
        %v471 = vunpack.c.l.bf16 %v462
        %v472 = vunpack.c.l.bf16 %v463
        %v473 = vunpack.c.l.bf16 %v464
        %483 = vrot.lane.b32.xlu0 %v465, 120
        %v484 = vpop.permute.xlu0 %483
        %485 = vrot.lane.b32.xlu0 %v466, 120
        %v486 = vpop.permute.xlu0 %485
        %487 = vrot.lane.b32.xlu0 %v467, 120
        %v488 = vpop.permute.xlu0 %487
        %489 = vrot.lane.b32.xlu0 %v468, 120
        %v490 = vpop.permute.xlu0 %489
        %491 = vrot.lane.b32.xlu0 %v469, 120
        %v492 = vpop.permute.xlu0 %491
        %493 = vrot.lane.b32.xlu0 %v470, 120
        %v494 = vpop.permute.xlu0 %493
        %495 = vrot.lane.b32.xlu0 %v471, 120
        %v496 = vpop.permute.xlu0 %495
        %497 = vrot.lane.b32.xlu0 %v472, 120
        %v498 = vpop.permute.xlu0 %497
        %499 = vrot.lane.b32.xlu0 %v473, 120
        %v500 = vpop.permute.xlu0 %499
        %v510 = vsub.f32 %v447, %v484
        %v511 = vsub.f32 %v448, %v486
        %v512 = vsub.f32 %v449, %v488
        %v513 = vsub.f32 %v450, %v490
        %v514 = vsub.f32 %v451, %v492
        %v515 = vsub.f32 %v452, %v494
        %v516 = vsub.f32 %v453, %v496
        %v517 = vsub.f32 %v454, %v498
        %v518 = vsub.f32 %v455, %v500
        %v519 = vlaneseq
        %v520 = vshrl.u32 %v519, 7
        %v521 = vsub.s32 0, %v520
        %v522 = vrot.slane %v437, %v521
        %v523 = vadd.f32 %v510, %v522
        %v524 = vadd.f32 %v511, %v522
        %v525 = vadd.f32 %v512, %v522
        %v526 = vadd.f32 %v513, %v522
        %v527 = vadd.f32 %v514, %v522
        %v528 = vadd.f32 %v515, %v522
        %v529 = vadd.f32 %v516, %v522
        %v530 = vadd.f32 %v517, %v522
        %v531 = vadd.f32 %v518, %v522
        %541 = vrot.lane.b32.xlu0 %v447, 120
        %v542 = vpop.permute.xlu0 %541
        %543 = vrot.lane.b32.xlu0 %v448, 120
        %v544 = vpop.permute.xlu0 %543
        %545 = vrot.lane.b32.xlu0 %v449, 120
        %v546 = vpop.permute.xlu0 %545
        %547 = vrot.lane.b32.xlu0 %v450, 120
        %v548 = vpop.permute.xlu0 %547
        %549 = vrot.lane.b32.xlu0 %v451, 120
        %v550 = vpop.permute.xlu0 %549
        %551 = vrot.lane.b32.xlu0 %v452, 120
        %v552 = vpop.permute.xlu0 %551
        %553 = vrot.lane.b32.xlu0 %v453, 120
        %v554 = vpop.permute.xlu0 %553
        %555 = vrot.lane.b32.xlu0 %v454, 120
        %v556 = vpop.permute.xlu0 %555
        %557 = vrot.lane.b32.xlu0 %v455, 120
        %v558 = vpop.permute.xlu0 %557
        %v568 = vadd.f32 %v465, %v542
        %v569 = vadd.f32 %v466, %v544
        %v570 = vadd.f32 %v467, %v546
        %v571 = vadd.f32 %v468, %v548
        %v572 = vadd.f32 %v469, %v550
        %v573 = vadd.f32 %v470, %v552
        %v574 = vadd.f32 %v471, %v554
        %v575 = vadd.f32 %v472, %v556
        %v576 = vadd.f32 %v473, %v558
        %578 = vrot.lane.b32.xlu0 %v522, 120
        %v579 = vpop.permute.xlu0 %578
        %v581 = vadd.f32 %v568, %v579
        %v582 = vadd.f32 %v569, %v579
        %v583 = vadd.f32 %v570, %v579
        %v584 = vadd.f32 %v571, %v579
        %v585 = vadd.f32 %v572, %v579
        %v586 = vadd.f32 %v573, %v579
        %v587 = vadd.f32 %v574, %v579
        %v588 = vadd.f32 %v575, %v579
        %v589 = vadd.f32 %v576, %v579
        %vm590 = vcmask 64512
        %v591 = vsel %vm590, %v523, 0.0
        %592 = vadd.xlane.f32.xlu0 %v591
        %v593 = vpop.xlane.xlu0 %592
        %v594 = vsel %vm590, %v524, 0.0
        %595 = vadd.xlane.f32.xlu0 %v594
        %v596 = vpop.xlane.xlu0 %595
        %v597 = vsel %vm590, %v525, 0.0
        %598 = vadd.xlane.f32.xlu0 %v597
        %v599 = vpop.xlane.xlu0 %598
        %v600 = vsel %vm590, %v526, 0.0
        %601 = vadd.xlane.f32.xlu0 %v600
        %v602 = vpop.xlane.xlu0 %601
        %v603 = vsel %vm590, %v527, 0.0
        %604 = vadd.xlane.f32.xlu0 %v603
        %v605 = vpop.xlane.xlu0 %604
        %v606 = vsel %vm590, %v528, 0.0
        %607 = vadd.xlane.f32.xlu0 %v606
        %v608 = vpop.xlane.xlu0 %607
        %v609 = vsel %vm590, %v529, 0.0
        %610 = vadd.xlane.f32.xlu0 %v609
        %v611 = vpop.xlane.xlu0 %610
        %v612 = vsel %vm590, %v530, 0.0
        %613 = vadd.xlane.f32.xlu0 %v612
        %v614 = vpop.xlane.xlu0 %613
        %v615 = vsel %vm590, %v531, 0.0
        %616 = vadd.xlane.f32.xlu0 %v615
        %v617 = vpop.xlane.xlu0 %616
        %v618 = vrcp.pop 8.0
        %v619 = vmul.f32 %v593, %v618
        %v620 = vmul.f32 %v596, %v618
        %v621 = vmul.f32 %v599, %v618
        %v622 = vmul.f32 %v602, %v618
        %v623 = vmul.f32 %v605, %v618
        %v624 = vmul.f32 %v608, %v618
        %v625 = vmul.f32 %v611, %v618
        %v626 = vmul.f32 %v614, %v618
        %v627 = vmul.f32 %v617, %v618
        %v628 = vsel %vm590, %v581, 0.0
        %629 = vadd.xlane.f32.xlu0 %v628
        %v630 = vpop.xlane.xlu0 %629
        %v631 = vsel %vm590, %v582, 0.0
        %632 = vadd.xlane.f32.xlu0 %v631
        %v633 = vpop.xlane.xlu0 %632
        %v634 = vsel %vm590, %v583, 0.0
        %635 = vadd.xlane.f32.xlu0 %v634
        %v636 = vpop.xlane.xlu0 %635
        %v637 = vsel %vm590, %v584, 0.0
        %638 = vadd.xlane.f32.xlu0 %v637
        %v639 = vpop.xlane.xlu0 %638
        %v640 = vsel %vm590, %v585, 0.0
        %641 = vadd.xlane.f32.xlu0 %v640
        %v642 = vpop.xlane.xlu0 %641
        %v643 = vsel %vm590, %v586, 0.0
        %644 = vadd.xlane.f32.xlu0 %v643
        %v645 = vpop.xlane.xlu0 %644
        %v646 = vsel %vm590, %v587, 0.0
        %647 = vadd.xlane.f32.xlu0 %v646
        %v648 = vpop.xlane.xlu0 %647
        %v649 = vsel %vm590, %v588, 0.0
        %650 = vadd.xlane.f32.xlu0 %v649
        %v651 = vpop.xlane.xlu0 %650
        %v652 = vsel %vm590, %v589, 0.0
        %653 = vadd.xlane.f32.xlu0 %v652
        %v654 = vpop.xlane.xlu0 %653
        %v655 = vmul.f32 %v630, %v618
        %v656 = vmul.f32 %v633, %v618
        %v657 = vmul.f32 %v636, %v618
        %v658 = vmul.f32 %v639, %v618
        %v659 = vmul.f32 %v642, %v618
        %v660 = vmul.f32 %v645, %v618
        %v661 = vmul.f32 %v648, %v618
        %v662 = vmul.f32 %v651, %v618
        %v663 = vmul.f32 %v654, %v618
        %v664 = vsub.f32 %v523, %v619
        %v665 = vsub.f32 %v524, %v620
        %v666 = vsub.f32 %v525, %v621
        %v667 = vsub.f32 %v526, %v622
        %v668 = vsub.f32 %v527, %v623
        %v669 = vsub.f32 %v528, %v624
        %v670 = vsub.f32 %v529, %v625
        %v671 = vsub.f32 %v530, %v626
        %v672 = vsub.f32 %v531, %v627
        %v673 = vsub.f32 %v581, %v655
        %v674 = vsub.f32 %v582, %v656
        %v675 = vsub.f32 %v583, %v657
        %v676 = vsub.f32 %v584, %v658
        %v677 = vsub.f32 %v585, %v659
        %v678 = vsub.f32 %v586, %v660
        %v679 = vsub.f32 %v587, %v661
        %v680 = vsub.f32 %v588, %v662
        %v681 = vsub.f32 %v589, %v663
        %v682 = vmul.f32 %v664, %v664
        %v683 = vmul.f32 %v665, %v665
        %v684 = vmul.f32 %v666, %v666
        %v685 = vmul.f32 %v667, %v667
        %v686 = vmul.f32 %v668, %v668
        %v687 = vmul.f32 %v669, %v669
        %v688 = vmul.f32 %v670, %v670
        %v689 = vmul.f32 %v671, %v671
        %v690 = vmul.f32 %v672, %v672
        %v691 = vmul.f32 %v673, %v673
        %v692 = vmul.f32 %v674, %v674
        %v693 = vmul.f32 %v675, %v675
        %v694 = vmul.f32 %v676, %v676
        %v695 = vmul.f32 %v677, %v677
        %v696 = vmul.f32 %v678, %v678
        %v697 = vmul.f32 %v679, %v679
        %v698 = vmul.f32 %v680, %v680
        %v699 = vmul.f32 %v681, %v681
        %v700 = vadd.f32 %v682, %v691
        %v701 = vadd.f32 %v683, %v692
        %v702 = vadd.f32 %v684, %v693
        %v703 = vadd.f32 %v685, %v694
        %v704 = vadd.f32 %v686, %v695
        %v705 = vadd.f32 %v687, %v696
        %v706 = vadd.f32 %v688, %v697
        %v707 = vadd.f32 %v689, %v698
        %v708 = vadd.f32 %v690, %v699
        %v709 = vsel %vm590, %v700, 0.0
        %710 = vadd.xlane.f32.xlu0 %v709
        %v711 = vpop.xlane.xlu0 %710
        %v712 = vsel %vm590, %v701, 0.0
        %713 = vadd.xlane.f32.xlu0 %v712
        %v714 = vpop.xlane.xlu0 %713
        %v715 = vsel %vm590, %v702, 0.0
        %716 = vadd.xlane.f32.xlu0 %v715
        %v717 = vpop.xlane.xlu0 %716
        %v718 = vsel %vm590, %v703, 0.0
        %719 = vadd.xlane.f32.xlu0 %v718
        %v720 = vpop.xlane.xlu0 %719
        %v721 = vsel %vm590, %v704, 0.0
        %722 = vadd.xlane.f32.xlu0 %v721
        %v723 = vpop.xlane.xlu0 %722
        %v724 = vsel %vm590, %v705, 0.0
        %725 = vadd.xlane.f32.xlu0 %v724
        %v726 = vpop.xlane.xlu0 %725
        %v727 = vsel %vm590, %v706, 0.0
        %728 = vadd.xlane.f32.xlu0 %v727
        %v729 = vpop.xlane.xlu0 %728
        %v730 = vsel %vm590, %v707, 0.0
        %731 = vadd.xlane.f32.xlu0 %v730
        %v732 = vpop.xlane.xlu0 %731
        %v733 = vsel %vm590, %v708, 0.0
        %734 = vadd.xlane.f32.xlu0 %v733
        %v735 = vpop.xlane.xlu0 %734
        %v736 = vmul.f32 %v711, %v618
        %v737 = vmul.f32 %v714, %v618
        %v738 = vmul.f32 %v717, %v618
        %v739 = vmul.f32 %v720, %v618
        %v740 = vmul.f32 %v723, %v618
        %v741 = vmul.f32 %v726, %v618
        %v742 = vmul.f32 %v729, %v618
        %v743 = vmul.f32 %v732, %v618
        %v744 = vmul.f32 %v735, %v618
        %v745 = vadd.f32 %v736, 1e-06
        %v746 = vadd.f32 %v737, 1e-06
        %v747 = vadd.f32 %v738, 1e-06
        %v748 = vadd.f32 %v739, 1e-06
        %v749 = vadd.f32 %v740, 1e-06
        %v750 = vadd.f32 %v741, 1e-06
        %v751 = vadd.f32 %v742, 1e-06
        %v752 = vadd.f32 %v743, 1e-06
        %v753 = vadd.f32 %v744, 1e-06
        %v754 = vrsqrt.pop %v745
        %v755 = vrsqrt.pop %v746
        %v756 = vrsqrt.pop %v747
        %v757 = vrsqrt.pop %v748
        %v758 = vrsqrt.pop %v749
        %v759 = vrsqrt.pop %v750
        %v760 = vrsqrt.pop %v751
        %v761 = vrsqrt.pop %v752
        %v762 = vrsqrt.pop %v753
        %v763 = vmul.f32 %v664, %v754
        %v764 = vmul.f32 %v665, %v755
        %v765 = vmul.f32 %v666, %v756
        %v766 = vmul.f32 %v667, %v757
        %v767 = vmul.f32 %v668, %v758
        %v768 = vmul.f32 %v669, %v759
        %v769 = vmul.f32 %v670, %v760
        %v770 = vmul.f32 %v671, %v761
        %v771 = vmul.f32 %v672, %v762
        %v772 = vmul.f32 %v673, %v754
        %v773 = vmul.f32 %v674, %v755
        %v774 = vmul.f32 %v675, %v756
        %v775 = vmul.f32 %v676, %v757
        %v776 = vmul.f32 %v677, %v758
        %v777 = vmul.f32 %v678, %v759
        %v778 = vmul.f32 %v679, %v760
        %v779 = vmul.f32 %v680, %v761
        %v780 = vmul.f32 %v681, %v762
        %v781 = vlaneseq
        %v782 = vshrl.u32 %v781, 7
        %v783 = vsub.s32 3, %v782
        %v784 = vrot.slane %v437, %v783
        %v785 = vmul.f32 %v763, %v784
        %v786 = vmul.f32 %v764, %v784
        %v787 = vmul.f32 %v765, %v784
        %v788 = vmul.f32 %v766, %v784
        %v789 = vmul.f32 %v767, %v784
        %v790 = vmul.f32 %v768, %v784
        %v791 = vmul.f32 %v769, %v784
        %v792 = vmul.f32 %v770, %v784
        %v793 = vmul.f32 %v771, %v784
        %795 = vrot.lane.b32.xlu0 %v784, 120
        %v796 = vpop.permute.xlu0 %795
        %v798 = vmul.f32 %v772, %v796
        %v799 = vmul.f32 %v773, %v796
        %v800 = vmul.f32 %v774, %v796
        %v801 = vmul.f32 %v775, %v796
        %v802 = vmul.f32 %v776, %v796
        %v803 = vmul.f32 %v777, %v796
        %v804 = vmul.f32 %v778, %v796
        %v805 = vmul.f32 %v779, %v796
        %v806 = vmul.f32 %v780, %v796
        %v807 = vsub.f32 %v785, %v798
        %v808 = vsub.f32 %v786, %v799
        %v809 = vsub.f32 %v787, %v800
        %v810 = vsub.f32 %v788, %v801
        %v811 = vsub.f32 %v789, %v802
        %v812 = vsub.f32 %v790, %v803
        %v813 = vsub.f32 %v791, %v804
        %v814 = vsub.f32 %v792, %v805
        %v815 = vsub.f32 %v793, %v806
        %v816 = vlaneseq
        %v817 = vshrl.u32 %v816, 7
        %v818 = vsub.s32 4, %v817
        %v819 = vrot.slane %v437, %v818
        %v820 = vadd.f32 %v807, %v819
        %v821 = vadd.f32 %v808, %v819
        %v822 = vadd.f32 %v809, %v819
        %v823 = vadd.f32 %v810, %v819
        %v824 = vadd.f32 %v811, %v819
        %v825 = vadd.f32 %v812, %v819
        %v826 = vadd.f32 %v813, %v819
        %v827 = vadd.f32 %v814, %v819
        %v828 = vadd.f32 %v815, %v819
        %v829 = vmul.f32 %v763, %v796
        %v830 = vmul.f32 %v764, %v796
        %v831 = vmul.f32 %v765, %v796
        %v832 = vmul.f32 %v766, %v796
        %v833 = vmul.f32 %v767, %v796
        %v834 = vmul.f32 %v768, %v796
        %v835 = vmul.f32 %v769, %v796
        %v836 = vmul.f32 %v770, %v796
        %v837 = vmul.f32 %v771, %v796
        %v838 = vmul.f32 %v772, %v784
        %v839 = vmul.f32 %v773, %v784
        %v840 = vmul.f32 %v774, %v784
        %v841 = vmul.f32 %v775, %v784
        %v842 = vmul.f32 %v776, %v784
        %v843 = vmul.f32 %v777, %v784
        %v844 = vmul.f32 %v778, %v784
        %v845 = vmul.f32 %v779, %v784
        %v846 = vmul.f32 %v780, %v784
        %v847 = vadd.f32 %v829, %v838
        %v848 = vadd.f32 %v830, %v839
        %v849 = vadd.f32 %v831, %v840
        %v850 = vadd.f32 %v832, %v841
        %v851 = vadd.f32 %v833, %v842
        %v852 = vadd.f32 %v834, %v843
        %v853 = vadd.f32 %v835, %v844
        %v854 = vadd.f32 %v836, %v845
        %v855 = vadd.f32 %v837, %v846
        %857 = vrot.lane.b32.xlu0 %v819, 120
        %v858 = vpop.permute.xlu0 %857
        %v860 = vadd.f32 %v847, %v858
        %v861 = vadd.f32 %v848, %v858
        %v862 = vadd.f32 %v849, %v858
        %v863 = vadd.f32 %v850, %v858
        %v864 = vadd.f32 %v851, %v858
        %v865 = vadd.f32 %v852, %v858
        %v866 = vadd.f32 %v853, %v858
        %v867 = vadd.f32 %v854, %v858
        %v868 = vadd.f32 %v855, %v858
        %878 = vrot.lane.b32.xlu0 %v860, 8
        %v879 = vpop.permute.xlu0 %878
        %880 = vrot.lane.b32.xlu0 %v861, 8
        %v881 = vpop.permute.xlu0 %880
        %882 = vrot.lane.b32.xlu0 %v862, 8
        %v883 = vpop.permute.xlu0 %882
        %884 = vrot.lane.b32.xlu0 %v863, 8
        %v885 = vpop.permute.xlu0 %884
        %886 = vrot.lane.b32.xlu0 %v864, 8
        %v887 = vpop.permute.xlu0 %886
        %888 = vrot.lane.b32.xlu0 %v865, 8
        %v889 = vpop.permute.xlu0 %888
        %890 = vrot.lane.b32.xlu0 %v866, 8
        %v891 = vpop.permute.xlu0 %890
        %892 = vrot.lane.b32.xlu0 %v867, 8
        %v893 = vpop.permute.xlu0 %892
        %894 = vrot.lane.b32.xlu0 %v868, 8
        %v895 = vpop.permute.xlu0 %894
        %v905 = vsel %vm590, %v820, %v879
        %v906 = vsel %vm590, %v821, %v881
        %v907 = vsel %vm590, %v822, %v883
        %v908 = vsel %vm590, %v823, %v885
        %v909 = vsel %vm590, %v824, %v887
        %v910 = vsel %vm590, %v825, %v889
        %v911 = vsel %vm590, %v826, %v891
        %v912 = vsel %vm590, %v827, %v893
        %v913 = vsel %vm590, %v828, %v895
        %v914 = vld [vmem:[#allocation11] sm:$0xf]
        %v915 = vld [vmem:[#allocation11 + $0x4] sm:$0xf]
        %v916 = vpack.c.bf16 %v906, %v905
        %v917 = vpack.c.bf16 %v908, %v907
        %v918 = vpack.c.bf16 %v910, %v909
        %v919 = vpack.c.bf16 %v912, %v911
        %v920 = vpack.c.bf16 %v913, %v913
        %v921 = vld [vmem:[#allocation10] sm:$0x1]
        %v923 = vlaneseq
        %v924 = vshrl.u32 %v923, 7
        %v925 = vsub.s32 0, %v924
        %v926 = vrot.slane %v921, %v925
        %v930 = vunpack.c.l.b16 %v914
        %v931 = vunpack.c.l.b16 %v915
        %v932 = vpack.c.b16 %v931, %v930
        %vm934 = vcmask 130048
        %v936 = vsel %vm934, %v916, 0
        %v939 = vsel %vm934, %v917, 0
        %v942 = vsel %vm934, %v918, 0
        %v945 = vsel %vm934, %v919, 0
        %v948 = vsel %vm934, %v920, 0
        %950 = vmatprep.subr.bf16.mxu0 0
        %951 = vmatpush1.bf16.msra.mxu0 %v932
        %952 = vmatprep.subr.bf16.mxu0 0
        %953 = vmatpush1.bf16.msra.mxu0 0
        %954 = vmatprep.subr.bf16.mxu0 0
        %955 = vmatpush1.bf16.msra.mxu0 0
        %956 = vmatprep.subr.bf16.mxu0 0
        %957 = vmatpush1.bf16.msra.mxu0 0
        %958 = vmatprep.subr.bf16.mxu0 0
        %959 = vmatpush1.bf16.msra.mxu0 0
        %960 = vmatprep.subr.bf16.mxu0 0
        %961 = vmatpush1.bf16.msra.mxu0 0
        %962 = vmatprep.subr.bf16.mxu0 0
        %963 = vmatpush1.bf16.msra.mxu0 0
        %964 = vmatprep.subr.bf16.mxu0 0
        %965 = vmatpush1.bf16.msra.mxu0 0
        %966 = vmatprep.subr.bf16.mxu0 0
        %967 = vmatpush1.bf16.msra.mxu0 0
        %968 = vmatprep.subr.bf16.mxu0 0
        %969 = vmatpush1.bf16.msra.mxu0 0
        %970 = vmatprep.subr.bf16.mxu0 0
        %971 = vmatpush1.bf16.msra.mxu0 0
        %972 = vmatprep.subr.bf16.mxu0 0
        %973 = vmatpush1.bf16.msra.mxu0 0
        %974 = vmatprep.subr.bf16.mxu0 0
        %975 = vmatpush1.bf16.msra.mxu0 0
        %976 = vmatprep.subr.bf16.mxu0 0
        %977 = vmatpush1.bf16.msra.mxu0 0
        %978 = vmatprep.subr.bf16.mxu0 0
        %979 = vmatpush1.bf16.msra.mxu0 0
        %980 = vmatprep.subr.bf16.mxu0 0
        %981 = vmatpush1.bf16.msra.mxu0 0
        %982 = vmatprep.mubr.bf16.mxu0 0
        %983 = vmatmul.mubr.bf16.gmra.mrb[0].mxu0 %v936
        %v984 = vpop.f32.mrb[0].mxu0
        %v985 = vadd.f32 %v926, %v984
        %v986 = vpop.f32.mrb[0].mxu0
        %v987 = vpop.f32.mrb[0].mxu0
        %v988 = vadd.f32 %v926, %v987
        %v989 = vpop.f32.mrb[0].mxu0
        %990 = vmatprep.mubr.bf16.mxu0 0
        %991 = vmatmul.mubr.bf16.gmra.mrb[0].mxu0 %v939
        %v992 = vpop.f32.mrb[0].mxu0
        %v993 = vadd.f32 %v926, %v992
        %v994 = vpop.f32.mrb[0].mxu0
        %v995 = vpop.f32.mrb[0].mxu0
        %v996 = vadd.f32 %v926, %v995
        %v997 = vpop.f32.mrb[0].mxu0
        %998 = vmatprep.mubr.bf16.mxu0 0
        %999 = vmatmul.mubr.bf16.gmra.mrb[0].mxu0 %v942
        %v1000 = vpop.f32.mrb[0].mxu0
        %v1001 = vadd.f32 %v926, %v1000
        %v1002 = vpop.f32.mrb[0].mxu0
        %v1003 = vpop.f32.mrb[0].mxu0
        %v1004 = vadd.f32 %v926, %v1003
        %v1005 = vpop.f32.mrb[0].mxu0
        %1006 = vmatprep.mubr.bf16.mxu0 0
        %1007 = vmatmul.mubr.bf16.gmra.mrb[0].mxu0 %v945
        %v1008 = vpop.f32.mrb[0].mxu0
        %v1009 = vadd.f32 %v926, %v1008
        %v1010 = vpop.f32.mrb[0].mxu0
        %v1011 = vpop.f32.mrb[0].mxu0
        %v1012 = vadd.f32 %v926, %v1011
        %v1013 = vpop.f32.mrb[0].mxu0
        %1014 = vmatprep.mubr.bf16.mxu0 0
        %1015 = vmatmul.mubr.bf16.gmra.mrb[0].mxu0 %v948
        %v1016 = vpop.f32.mrb[0].mxu0
        %v1017 = vadd.f32 %v926, %v1016
        %v1018 = vpop.f32.mrb[0].mxu0
        %v1019 = vpop.f32.mrb[0].mxu0
        %v1020 = vpop.f32.mrb[0].mxu0
        %1021 = vdwg.mxu0
        %v1022 = vpack.c.bf16 %v988, %v985
        %v1023 = vpack.c.bf16 %v996, %v993
        %v1024 = vpack.c.bf16 %v1004, %v1001
        %v1025 = vpack.c.bf16 %v1012, %v1009
        %v1026 = vpack.c.bf16 %v1017, %v1017
        %v1027 = vmul.bf16 %v1022, %v1022
        %v1028 = vmul.bf16 %v1023, %v1023
        %v1029 = vmul.bf16 %v1024, %v1024
        %v1030 = vmul.bf16 %v1025, %v1025
        %v1031 = vmul.bf16 %v1026, %v1026
        %v1032 = vmul.bf16 %v1022, %v1027
        %v1033 = vmul.bf16 %v1023, %v1028
        %v1034 = vmul.bf16 %v1024, %v1029
        %v1035 = vmul.bf16 %v1025, %v1030
        %v1036 = vmul.bf16 %v1026, %v1031
        %v1037 = vmul.bf16 %v1032, 1027030327
        %v1038 = vmul.bf16 %v1033, 1027030327
        %v1039 = vmul.bf16 %v1034, 1027030327
        %v1040 = vmul.bf16 %v1035, 1027030327
        %v1041 = vmul.bf16 %v1036, 1027030327
        %v1042 = vadd.bf16 %v1022, %v1037
        %v1043 = vadd.bf16 %v1023, %v1038
        %v1044 = vadd.bf16 %v1024, %v1039
        %v1045 = vadd.bf16 %v1025, %v1040
        %v1046 = vadd.bf16 %v1026, %v1041
        %v1047 = vmul.bf16 %v1042, 1061961548
        %v1048 = vmul.bf16 %v1043, 1061961548
        %v1049 = vmul.bf16 %v1044, 1061961548
        %v1050 = vmul.bf16 %v1045, 1061961548
        %v1051 = vmul.bf16 %v1046, 1061961548
        %v1052 = vtanh.bf16.pop %v1047
        %v1053 = vtanh.bf16.pop %v1048
        %v1054 = vtanh.bf16.pop %v1049
        %v1055 = vtanh.bf16.pop %v1050
        %v1056 = vtanh.bf16.pop %v1051
        %v1057 = vadd.bf16 %v1052, 1065369472
        %v1058 = vadd.bf16 %v1053, 1065369472
        %v1059 = vadd.bf16 %v1054, 1065369472
        %v1060 = vadd.bf16 %v1055, 1065369472
        %v1061 = vadd.bf16 %v1056, 1065369472
        %v1062 = vmul.bf16 %v1057, 1056980736
        %v1063 = vmul.bf16 %v1058, 1056980736
        %v1064 = vmul.bf16 %v1059, 1056980736
        %v1065 = vmul.bf16 %v1060, 1056980736
        %v1066 = vmul.bf16 %v1061, 1056980736
        %v1067 = vmul.bf16 %v1022, %v1062
        %v1068 = vmul.bf16 %v1023, %v1063
        %v1069 = vmul.bf16 %v1024, %v1064
        %v1070 = vmul.bf16 %v1025, %v1065
        %v1071 = vmul.bf16 %v1026, %v1066
        %v1072 = vld [vmem:[#allocation13] sm:$0xf]
        %v1073 = vld [vmem:[#allocation13 + $0x4] sm:$0xf]
        %v1074 = vld [vmem:[#allocation13 + $0x8] sm:$0xf]
        %v1075 = vld [vmem:[#allocation13 + $0xc] sm:$0xf]
        %v1076 = vlaneseq
        %v1077 = vshrl.u32 %v1076, 7
        %v1078 = vsub.s32 2, %v1077
        %v1079 = vrot.slane %v437, %v1078
        %v1084 = vunpack.c.l.b16 %v1072
        %v1085 = vunpack.c.l.b16 %v1073
        %v1086 = vunpack.c.l.b16 %v1074
        %v1087 = vunpack.c.l.b16 %v1075
        %v1088 = vpack.c.b16 %v1085, %v1084
        %v1089 = vpack.c.b16 %v1087, %v1086
        %vm1092 = vcmask 261120
        %v1094 = vsel %vm1092, %v1067, 0
        %v1097 = vsel %vm1092, %v1068, 0
        %v1100 = vsel %vm1092, %v1069, 0
        %v1103 = vsel %vm1092, %v1070, 0
        %v1106 = vsel %vm1092, %v1071, 0
        %1108 = vmatprep.subr.bf16.mxu0 0
        %1109 = vmatpush1.bf16.msra.mxu0 %v1088
        %1110 = vmatprep.subr.bf16.mxu0 0
        %1111 = vmatpush1.bf16.msra.mxu0 %v1089
        %1112 = vmatprep.subr.bf16.mxu0 0
        %1113 = vmatpush1.bf16.msra.mxu0 0
        %1114 = vmatprep.subr.bf16.mxu0 0
        %1115 = vmatpush1.bf16.msra.mxu0 0
        %1116 = vmatprep.subr.bf16.mxu0 0
        %1117 = vmatpush1.bf16.msra.mxu0 0
        %1118 = vmatprep.subr.bf16.mxu0 0
        %1119 = vmatpush1.bf16.msra.mxu0 0
        %1120 = vmatprep.subr.bf16.mxu0 0
        %1121 = vmatpush1.bf16.msra.mxu0 0
        %1122 = vmatprep.subr.bf16.mxu0 0
        %1123 = vmatpush1.bf16.msra.mxu0 0
        %1124 = vmatprep.subr.bf16.mxu0 0
        %1125 = vmatpush1.bf16.msra.mxu0 0
        %1126 = vmatprep.subr.bf16.mxu0 0
        %1127 = vmatpush1.bf16.msra.mxu0 0
        %1128 = vmatprep.subr.bf16.mxu0 0
        %1129 = vmatpush1.bf16.msra.mxu0 0
        %1130 = vmatprep.subr.bf16.mxu0 0
        %1131 = vmatpush1.bf16.msra.mxu0 0
        %1132 = vmatprep.subr.bf16.mxu0 0
        %1133 = vmatpush1.bf16.msra.mxu0 0
        %1134 = vmatprep.subr.bf16.mxu0 0
        %1135 = vmatpush1.bf16.msra.mxu0 0
        %1136 = vmatprep.subr.bf16.mxu0 0
        %1137 = vmatpush1.bf16.msra.mxu0 0
        %1138 = vmatprep.subr.bf16.mxu0 0
        %1139 = vmatpush1.bf16.msra.mxu0 0
        %1140 = vmatprep.mubr.bf16.mxu0 0
        %1141 = vmatmul.mubr.bf16.gmra.mrb[0].mxu0 %v1094
        %v1142 = vpop.f32.mrb[0].mxu0
        %v1143 = vadd.f32 %v1079, %v1142
        %v1144 = vpop.f32.mrb[0].mxu0
        %v1145 = vpop.f32.mrb[0].mxu0
        %v1146 = vadd.f32 %v1079, %v1145
        %v1147 = vpop.f32.mrb[0].mxu0
        %1148 = vmatprep.mubr.bf16.mxu0 0
        %1149 = vmatmul.mubr.bf16.gmra.mrb[0].mxu0 %v1097
        %v1150 = vpop.f32.mrb[0].mxu0
        %v1151 = vadd.f32 %v1079, %v1150
        %v1152 = vpop.f32.mrb[0].mxu0
        %v1153 = vpop.f32.mrb[0].mxu0
        %v1154 = vadd.f32 %v1079, %v1153
        %v1155 = vpop.f32.mrb[0].mxu0
        %1156 = vmatprep.mubr.bf16.mxu0 0
        %1157 = vmatmul.mubr.bf16.gmra.mrb[0].mxu0 %v1100
        %v1158 = vpop.f32.mrb[0].mxu0
        %v1159 = vadd.f32 %v1079, %v1158
        %v1160 = vpop.f32.mrb[0].mxu0
        %v1161 = vpop.f32.mrb[0].mxu0
        %v1162 = vadd.f32 %v1079, %v1161
        %v1163 = vpop.f32.mrb[0].mxu0
        %1164 = vmatprep.mubr.bf16.mxu0 0
        %1165 = vmatmul.mubr.bf16.gmra.mrb[0].mxu0 %v1103
        %v1166 = vpop.f32.mrb[0].mxu0
        %v1167 = vadd.f32 %v1079, %v1166
        %v1168 = vpop.f32.mrb[0].mxu0
        %v1169 = vpop.f32.mrb[0].mxu0
        %v1170 = vadd.f32 %v1079, %v1169
        %v1171 = vpop.f32.mrb[0].mxu0
        %1172 = vmatprep.mubr.bf16.mxu0 0
        %1173 = vmatmul.mubr.bf16.gmra.mrb[0].mxu0 %v1106
        %v1174 = vpop.f32.mrb[0].mxu0
        %v1175 = vadd.f32 %v1079, %v1174
        %v1176 = vpop.f32.mrb[0].mxu0
        %v1177 = vpop.f32.mrb[0].mxu0
        %v1178 = vpop.f32.mrb[0].mxu0
        %1179 = vdwg.mxu0
        %v1180 = vld [vmem:[%s371] sm:$0xf]
        %v1181 = vld [vmem:[%s371 + $0x4] sm:$0xf]
        %v1182 = vld [vmem:[%s371 + $0x8] sm:$0xf]
        %v1183 = vld [vmem:[%s371 + $0xc] sm:$0xf]
        %v1184 = vld [vmem:[%s371 + $0x10] sm:$0xf]
        %v1185 = vld [vmem:[%s371 + $0x14] sm:$0xf]
        %v1186 = vld [vmem:[%s371 + $0x18] sm:$0xf]
        %v1187 = vld [vmem:[%s371 + $0x1c] sm:$0xf]
        %v1188 = vld [vmem:[%s371 + $0x20] sm:$0xf]
        %v1189 = vunpack.c.l.bf16 %v1180
        %v1190 = vunpack.c.l.bf16 %v1181
        %v1191 = vunpack.c.l.bf16 %v1182
        %v1192 = vunpack.c.l.bf16 %v1183
        %v1193 = vunpack.c.l.bf16 %v1184
        %v1194 = vunpack.c.l.bf16 %v1185
        %v1195 = vunpack.c.l.bf16 %v1186
        %v1196 = vunpack.c.l.bf16 %v1187
        %v1197 = vunpack.c.l.bf16 %v1188
        %v1198 = vlaneseq
        %v1199 = vshrl.u32 %v1198, 7
        %v1200 = vsub.s32 1, %v1199
        %v1201 = vrot.slane %v437, %v1200
        %v1202 = vmul.f32 %v1201, %v1143
        %v1203 = vmul.f32 %v1201, %v1146
        %v1204 = vmul.f32 %v1201, %v1151
        %v1205 = vmul.f32 %v1201, %v1154
        %v1206 = vmul.f32 %v1201, %v1159
        %v1207 = vmul.f32 %v1201, %v1162
        %v1208 = vmul.f32 %v1201, %v1167
        %v1209 = vmul.f32 %v1201, %v1170
        %v1210 = vmul.f32 %v1201, %v1175
        %v1211 = vadd.f32 %v1189, %v1202
        %v1212 = vadd.f32 %v1190, %v1203
        %v1213 = vadd.f32 %v1191, %v1204
        %v1214 = vadd.f32 %v1192, %v1205
        %v1215 = vadd.f32 %v1193, %v1206
        %v1216 = vadd.f32 %v1194, %v1207
        %v1217 = vadd.f32 %v1195, %v1208
        %v1218 = vadd.f32 %v1196, %v1209
        %v1219 = vadd.f32 %v1197, %v1210
        %v1220 = vpack.c.bf16 %v1212, %v1211
        %v1221 = vpack.c.bf16 %v1214, %v1213
        %v1222 = vpack.c.bf16 %v1216, %v1215
        %v1223 = vpack.c.bf16 %v1218, %v1217
        %v1224 = vpack.c.bf16 %v1219, %v1219
        %v1230 = vunpack.c.l.b16 %v1220
        %v1231 = vunpack.c.h.b16 %v1220
        %v1232 = vunpack.c.l.b16 %v1221
        %v1233 = vunpack.c.h.b16 %v1221
        %v1234 = vunpack.c.l.b16 %v1222
        %v1235 = vunpack.c.h.b16 %v1222
        %v1236 = vunpack.c.l.b16 %v1223
        %v1237 = vunpack.c.h.b16 %v1223
        %v1238 = vunpack.c.l.b16 %v1224
        %v1239 = vpack.c.b16 %v1230, %v1230
        %v1240 = vpack.c.b16 %v1231, %v1231
        %v1241 = vpack.c.b16 %v1232, %v1232
        %v1242 = vpack.c.b16 %v1233, %v1233
        %v1243 = vpack.c.b16 %v1234, %v1234
        %v1244 = vpack.c.b16 %v1235, %v1235
        %v1245 = vpack.c.b16 %v1236, %v1236
        %v1246 = vpack.c.b16 %v1237, %v1237
        %v1247 = vpack.c.b16 %v1238, %v1238
        %vm1257 = vcmask 125952
        %1258 = vst.msk [vmem:[%s427] sm:$0xf] %vm1257, %v1239
        %1259 = vst.msk [vmem:[%s427 + $0x4] sm:$0xf] %vm1257, %v1240
        %1260 = vst.msk [vmem:[%s427 + $0x8] sm:$0xf] %vm1257, %v1241
        %1261 = vst.msk [vmem:[%s427 + $0xc] sm:$0xf] %vm1257, %v1242
        %1262 = vst.msk [vmem:[%s427 + $0x10] sm:$0xf] %vm1257, %v1243
        %1263 = vst.msk [vmem:[%s427 + $0x14] sm:$0xf] %vm1257, %v1244
        %1264 = vst.msk [vmem:[%s427 + $0x18] sm:$0xf] %vm1257, %v1245
        %1265 = vst.msk [vmem:[%s427 + $0x1c] sm:$0xf] %vm1257, %v1246
        %1266 = vst.msk [vmem:[%s427 + $0x20] sm:$0xf] %vm1257, %v1247
        %s1267 = sand.u32 %s199, 1
        %s1268 = scalar_lea.sflag [#allocation4], %s1267
        %s1269 = sand.u32 %s199, 1
        %s1270 = smul.addr %s1269, 36
        %s1271 = scalar_lea.vmem [#allocation14], %s1270
        // Predicated region
        $region77: #{complex_wavehax_forward.11} parent=47 // pred_check
          %p1272 = pneg %p209
        $region78: #{complex_wavehax_forward.11} parent=47 // pred_check_branch
          %1274 = sbr.rel (%p1272) target = $region80
        $region79: #{complex_wavehax_forward.11} parent=47 // pred_region
          %s1275 = smul.u32 9, %s29
          %s1277 = ssub.s32 576, 576
          %1278 = vsyncadd %s1268, %s1277
          %s1279 = smul.addr %s1275, 64
          %s1280 = scalar_lea.hbm %s7, %s1279
          %s1281 = sshll.u32 %s1271, 4
          %s1282 = int_to_ptr.vmem [resolvable:$true] %s1281
          %1287 = dma.vmem_to_hbm [thread:$0]  %s1282, 576, %s1280, %s1268, 64, 64, 4
        $region80: #{complex_wavehax_forward.11} parent=47 // pred_fallthru
          _
      $region48: #{complex_wavehax_forward.11} parent=5 // pred_fallthru
        _
      %p1288 = scmp.le.s32.totalorder 2, %s24
      // Predicated region
      $region81: #{complex_wavehax_forward.11} parent=5 // pred_check
        %p1289 = pneg %p1288
      $region82: #{complex_wavehax_forward.11} parent=5 // pred_check_branch
        %1291 = sbr.rel (%p1289) target = $region84
      $region83: #{complex_wavehax_forward.11} parent=5 // pred_region
        %s1292 = ssub.s32 %s24, 2
        // Predicated region
        $region85: #{complex_wavehax_forward.11} parent=83 // pred_check
          %p1293 = pneg %p215
        $region86: #{complex_wavehax_forward.11} parent=83 // pred_check_branch
          %1295 = sbr.rel (%p1293) target = $region88
        $region87: #{complex_wavehax_forward.11} parent=83 // pred_region
          %s1296 = sand.u32 %s200, 1
          %s1297 = scalar_lea.sflag [#allocation4], %s1296
          %s1298 = sand.u32 %s200, 1
          %s1299 = smul.addr %s1298, 36
          %s1300 = scalar_lea.vmem [#allocation14], %s1299
          %1301 = dma.done %s1297, 576
        $region88: #{complex_wavehax_forward.11} parent=83 // pred_fallthru
          _
      $region84: #{complex_wavehax_forward.11} parent=5 // pred_fallthru
        _
    $region6: #{complex_wavehax_forward.11} parent=1 // loop_footer
      %s28 = sadd.s32 1, %s24
    $region7: #{complex_wavehax_forward.11} parent=1 // loop_footer_branch
      %23 = sbr.rel target = $region3
    $region8: #{complex_wavehax_forward.11} parent=1 // loop_exit
      _
    %1302 = vsyncpa [#allocation3], 1
    %s1303 = scalar_lea.sflag [#allocation3], 1
    %1304 = vsyncpa %s1303, 1
    %1305 = vsyncpa [#allocation6], 1
    %s1306 = scalar_lea.sflag [#allocation6], 1
    %1307 = vsyncpa %s1306, 1
    %1308 = vsyncpa [#allocation9], 1
    %1309 = vsyncpa [#allocation12], 1
    %1310 = vsyncpa [#allocation4], 1
    %s1311 = scalar_lea.sflag [#allocation4], 1
    %1312 = vsyncpa %s1311, 1

// kernel: complex_wavehax_forward.12
$region0: #{complex_wavehax_forward.12}
  #allocation0 [shape = 'u32[]', space=smem, size = 0x4, offset = 0x4, fixed_abs, tag = 'smem constant byte address 0x4 - core index']
  #allocation1 [shape = 'u32[144,128]{1,0:T(1,128)}', space=vmem, size = 0x12000, scoped, tag = 'internal scratch']
  %s0 = inlined_call_operand.hbm [shape: bf16[144,16], index: 0, kind: input, shape index: {}]
  %s1 = inlined_call_operand.hbm [shape: bf16[144,16], index: 1, kind: input, shape index: {}]
  %s2 = inlined_call_operand.hbm [shape: bf16[144,16], index: 2, kind: input, shape index: {}]
  %s3 = inlined_call_operand.hbm [shape: f32[7,16], index: 3, kind: input, shape index: {}]
  %s4 = inlined_call_operand.hbm [shape: f32[1,32], index: 4, kind: input, shape index: {}]
  %s5 = inlined_call_operand.hbm [shape: bf16[16,32], index: 5, kind: input, shape index: {}]
  %s6 = inlined_call_operand.hbm [shape: bf16[32,16], index: 6, kind: input, shape index: {}]
  %s7 = inlined_call_operand.hbm [shape: bf16[144,16], index: 7, kind: output, shape index: {}]
  %s8 = sld [smem:[#allocation0]]
  $region89: #{complex_wavehax_forward.12} parent=0
    _
  %s10 = ssub.s32 1, %s8
  %s11 = scalar_select 0, %s10, %s8
  $region1: #{complex_wavehax_forward.12} parent=0
    #allocation2 [shape = 'u8[36864]{0}', space=vmem, size = 0x9000, scoped, tag = 'input window, operand 0']
    #allocation3 [shape = 's32[2]{0}', space=sflag, size = 0x8, scoped, tag = 'scoped memory for complex_wavehax_forward.12']
    #allocation4 [shape = 's32[2]{0}', space=sflag, size = 0x8, scoped, tag = 'scoped memory for complex_wavehax_forward.12']
    #allocation5 [shape = 'u8[36864]{0}', space=vmem, size = 0x9000, scoped, tag = 'input window, operand 1']
    #allocation6 [shape = 's32[2]{0}', space=sflag, size = 0x8, scoped, tag = 'scoped memory for complex_wavehax_forward.12']
    #allocation7 [shape = 'u8[36864]{0}', space=vmem, size = 0x9000, scoped, tag = 'input window, operand 2']
    #allocation8 [shape = 'u8[4096]{0}', space=vmem, size = 0x1000, scoped, tag = 'input window, operand 3, single buffered']
    #allocation9 [shape = 's32[1]{0}', space=sflag, size = 0x4, scoped, tag = 'scoped memory for complex_wavehax_forward.12']
    #allocation10 [shape = 'u8[512]{0}', space=vmem, size = 0x400, scoped, tag = 'input window, operand 4, single buffered']
    #allocation11 [shape = 'u8[4096]{0}', space=vmem, size = 0x1000, scoped, tag = 'input window, operand 5, single buffered']
    #allocation12 [shape = 's32[1]{0}', space=sflag, size = 0x4, scoped, tag = 'scoped memory for complex_wavehax_forward.12']
    #allocation13 [shape = 'u8[8192]{0}', space=vmem, size = 0x2000, scoped, tag = 'input window, operand 6, single buffered']
    #allocation14 [shape = 'u8[36864]{0}', space=vmem, size = 0x9000, scoped, tag = 'output window, operand 0']
    %12 = vsyncpa [#allocation3], 0
    %s13 = scalar_lea.sflag [#allocation3], 1
    %14 = vsyncpa %s13, 0
    %15 = vsyncpa [#allocation6], 0
    %s16 = scalar_lea.sflag [#allocation6], 1
    %17 = vsyncpa %s16, 0
    %18 = vsyncpa [#allocation9], 0
    %19 = vsyncpa [#allocation12], 0
    %20 = vsyncpa [#allocation4], 0
    %s21 = scalar_lea.sflag [#allocation4], 1
    %22 = vsyncpa %s21, 0
    loop: start=0, step=1, limit=4
    $region2: #{complex_wavehax_forward.12} parent=1 // loop_pre_header
      _
    $region3: #{complex_wavehax_forward.12} parent=1 // loop_header
      %s24 = sphi 0, %s28
      %p25 = scmp.ge.s32.totalorder %s24, 4
      %s34 = sphi 0, %s36
      %s37 = sphi 0, %s34
      %s38 = sphi 0, %s37
      %s54 = sphi 0, %s38
      %s60 = sphi 0, %s62
      %s63 = sphi 0, %s60
      %s64 = sphi 0, %s63
      %s80 = sphi 0, %s64
      %s86 = sphi 0, %s88
      %s89 = sphi 0, %s86
      %s90 = sphi 0, %s89
      %s106 = sphi 0, %s90
      %s110 = sphi 0, %s110
      %s112 = sphi 0, %s110
      %s113 = sphi 0, %s112
      %s127 = sphi 0, %s113
      %s131 = sphi 0, %s131
      %s133 = sphi 0, %s131
      %s134 = sphi 0, %s133
      %s148 = sphi 0, %s134
      %s152 = sphi 0, %s152
      %s154 = sphi 0, %s152
      %s155 = sphi 0, %s154
      %s169 = sphi 0, %s155
      %s173 = sphi 0, %s173
      %s175 = sphi 0, %s173
      %s176 = sphi 0, %s175
      %s190 = sphi 0, %s176
      %s196 = sphi 0, %s198
      %s199 = sphi 0, %s196
      %s200 = sphi 0, %s199
      %s216 = sphi 0, %s200
    $region4: #{complex_wavehax_forward.12} parent=1 // loop_header_branch
      %27 = sbr.rel (%p25) target = $region8
    $region5: #{complex_wavehax_forward.12} parent=1 // loop_body
      %s29 = ssub.s32 %s24, 1
      %s30 = ssub.s32 %s24, 2
      %s31 = sadd.s32 %s24, 1
      %s32 = ssub.s32 %s24, %s31
      %p33 = scmp.eq.s32.totalorder %s32, 0
      %s35 = sadd.s32 %s34, 1
      %s36 = scalar_select %p33, %s34, %s35
      %p39 = pneg %p33
      %p40 = scmp.eq.s32.totalorder %s24, 1
      %p41 = por %p39, %p40
      %p42 = scmp.ne.s32.totalorder %s34, %s37
      %p43 = scmp.eq.s32.totalorder %s24, 0
      %p44 = por %p42, %p43
      %p45 = scmp.ne.s32.totalorder %s34, %s37
      %p46 = scmp.eq.s32.totalorder %s29, 1
      %p47 = por %p45, %p46
      %p48 = scmp.ne.s32.totalorder %s37, %s38
      %p49 = scmp.eq.s32.totalorder %s29, 0
      %p50 = por %p48, %p49
      %p51 = scmp.ne.s32.totalorder %s37, %s38
      %p52 = scmp.eq.s32.totalorder %s30, 1
      %p53 = por %p51, %p52
      %p55 = scmp.ne.s32.totalorder %s38, %s54
      %p56 = scmp.eq.s32.totalorder %s30, 0
      %p57 = por %p55, %p56
      %s58 = ssub.s32 %s24, %s31
      %p59 = scmp.eq.s32.totalorder %s58, 0
      %s61 = sadd.s32 %s60, 1
      %s62 = scalar_select %p59, %s60, %s61
      %p65 = pneg %p59
      %p66 = scmp.eq.s32.totalorder %s24, 1
      %p67 = por %p65, %p66
      %p68 = scmp.ne.s32.totalorder %s60, %s63
      %p69 = scmp.eq.s32.totalorder %s24, 0
      %p70 = por %p68, %p69
      %p71 = scmp.ne.s32.totalorder %s60, %s63
      %p72 = scmp.eq.s32.totalorder %s29, 1
      %p73 = por %p71, %p72
      %p74 = scmp.ne.s32.totalorder %s63, %s64
      %p75 = scmp.eq.s32.totalorder %s29, 0
      %p76 = por %p74, %p75
      %p77 = scmp.ne.s32.totalorder %s63, %s64
      %p78 = scmp.eq.s32.totalorder %s30, 1
      %p79 = por %p77, %p78
      %p81 = scmp.ne.s32.totalorder %s64, %s80
      %p82 = scmp.eq.s32.totalorder %s30, 0
      %p83 = por %p81, %p82
      %s84 = ssub.s32 %s24, %s31
      %p85 = scmp.eq.s32.totalorder %s84, 0
      %s87 = sadd.s32 %s86, 1
      %s88 = scalar_select %p85, %s86, %s87
      %p91 = pneg %p85
      %p92 = scmp.eq.s32.totalorder %s24, 1
      %p93 = por %p91, %p92
      %p94 = scmp.ne.s32.totalorder %s86, %s89
      %p95 = scmp.eq.s32.totalorder %s24, 0
      %p96 = por %p94, %p95
      %p97 = scmp.ne.s32.totalorder %s86, %s89
      %p98 = scmp.eq.s32.totalorder %s29, 1
      %p99 = por %p97, %p98
      %p100 = scmp.ne.s32.totalorder %s89, %s90
      %p101 = scmp.eq.s32.totalorder %s29, 0
      %p102 = por %p100, %p101
      %p103 = scmp.ne.s32.totalorder %s89, %s90
      %p104 = scmp.eq.s32.totalorder %s30, 1
      %p105 = por %p103, %p104
      %p107 = scmp.ne.s32.totalorder %s90, %s106
      %p108 = scmp.eq.s32.totalorder %s30, 0
      %p109 = por %p107, %p108
      %s111 = sadd.s32 %s110, 1
      %p114 = scmp.eq.s32.totalorder %s24, 1
      %p115 = scmp.ne.s32.totalorder %s110, %s112
      %p116 = scmp.eq.s32.totalorder %s24, 0
      %p117 = por %p115, %p116
      %p118 = scmp.ne.s32.totalorder %s110, %s112
      %p119 = scmp.eq.s32.totalorder %s29, 1
      %p120 = por %p118, %p119
      %p121 = scmp.ne.s32.totalorder %s112, %s113
      %p122 = scmp.eq.s32.totalorder %s29, 0
      %p123 = por %p121, %p122
      %p124 = scmp.ne.s32.totalorder %s112, %s113
      %p125 = scmp.eq.s32.totalorder %s30, 1
      %p126 = por %p124, %p125
      %p128 = scmp.ne.s32.totalorder %s113, %s127
      %p129 = scmp.eq.s32.totalorder %s30, 0
      %p130 = por %p128, %p129
      %s132 = sadd.s32 %s131, 1
      %p135 = scmp.eq.s32.totalorder %s24, 1
      %p136 = scmp.ne.s32.totalorder %s131, %s133
      %p137 = scmp.eq.s32.totalorder %s24, 0
      %p138 = por %p136, %p137
      %p139 = scmp.ne.s32.totalorder %s131, %s133
      %p140 = scmp.eq.s32.totalorder %s29, 1
      %p141 = por %p139, %p140
      %p142 = scmp.ne.s32.totalorder %s133, %s134
      %p143 = scmp.eq.s32.totalorder %s29, 0
      %p144 = por %p142, %p143
      %p145 = scmp.ne.s32.totalorder %s133, %s134
      %p146 = scmp.eq.s32.totalorder %s30, 1
      %p147 = por %p145, %p146
      %p149 = scmp.ne.s32.totalorder %s134, %s148
      %p150 = scmp.eq.s32.totalorder %s30, 0
      %p151 = por %p149, %p150
      %s153 = sadd.s32 %s152, 1
      %p156 = scmp.eq.s32.totalorder %s24, 1
      %p157 = scmp.ne.s32.totalorder %s152, %s154
      %p158 = scmp.eq.s32.totalorder %s24, 0
      %p159 = por %p157, %p158
      %p160 = scmp.ne.s32.totalorder %s152, %s154
      %p161 = scmp.eq.s32.totalorder %s29, 1
      %p162 = por %p160, %p161
      %p163 = scmp.ne.s32.totalorder %s154, %s155
      %p164 = scmp.eq.s32.totalorder %s29, 0
      %p165 = por %p163, %p164
      %p166 = scmp.ne.s32.totalorder %s154, %s155
      %p167 = scmp.eq.s32.totalorder %s30, 1
      %p168 = por %p166, %p167
      %p170 = scmp.ne.s32.totalorder %s155, %s169
      %p171 = scmp.eq.s32.totalorder %s30, 0
      %p172 = por %p170, %p171
      %s174 = sadd.s32 %s173, 1
      %p177 = scmp.eq.s32.totalorder %s24, 1
      %p178 = scmp.ne.s32.totalorder %s173, %s175
      %p179 = scmp.eq.s32.totalorder %s24, 0
      %p180 = por %p178, %p179
      %p181 = scmp.ne.s32.totalorder %s173, %s175
      %p182 = scmp.eq.s32.totalorder %s29, 1
      %p183 = por %p181, %p182
      %p184 = scmp.ne.s32.totalorder %s175, %s176
      %p185 = scmp.eq.s32.totalorder %s29, 0
      %p186 = por %p184, %p185
      %p187 = scmp.ne.s32.totalorder %s175, %s176
      %p188 = scmp.eq.s32.totalorder %s30, 1
      %p189 = por %p187, %p188
      %p191 = scmp.ne.s32.totalorder %s176, %s190
      %p192 = scmp.eq.s32.totalorder %s30, 0
      %p193 = por %p191, %p192
      %s194 = ssub.s32 %s24, %s31
      %p195 = scmp.eq.s32.totalorder %s194, 0
      %s197 = sadd.s32 %s196, 1
      %s198 = scalar_select %p195, %s196, %s197
      %p201 = pneg %p195
      %p202 = scmp.eq.s32.totalorder %s24, 1
      %p203 = por %p201, %p202
      %p204 = scmp.ne.s32.totalorder %s196, %s199
      %p205 = scmp.eq.s32.totalorder %s24, 0
      %p206 = por %p204, %p205
      %p207 = scmp.ne.s32.totalorder %s196, %s199
      %p208 = scmp.eq.s32.totalorder %s29, 1
      %p209 = por %p207, %p208
      %p210 = scmp.ne.s32.totalorder %s199, %s200
      %p211 = scmp.eq.s32.totalorder %s29, 0
      %p212 = por %p210, %p211
      %p213 = scmp.ne.s32.totalorder %s199, %s200
      %p214 = scmp.eq.s32.totalorder %s30, 1
      %p215 = por %p213, %p214
      %p217 = scmp.ne.s32.totalorder %s200, %s216
      %p218 = scmp.eq.s32.totalorder %s30, 0
      %p219 = por %p217, %p218
      %p220 = scmp.le.s32.totalorder 1, %s24
      %p221 = scmp.lt.s32.totalorder %s24, 3
      %p222 = pnand %p220, %p221
      %p223 = pneg %p222
      // Predicated region
      $region9: #{complex_wavehax_forward.12} parent=5 // pred_check
        _
      $region10: #{complex_wavehax_forward.12} parent=5 // pred_check_branch
        %225 = sbr.rel (%p222) target = $region12
      $region11: #{complex_wavehax_forward.12} parent=5 // pred_region
        %s226 = ssub.s32 %s24, 1
        // Predicated region
        $region13: #{complex_wavehax_forward.12} parent=11 // pred_check
          %p227 = pneg %p123
        $region14: #{complex_wavehax_forward.12} parent=11 // pred_check_branch
          %229 = sbr.rel (%p227) target = $region16
        $region15: #{complex_wavehax_forward.12} parent=11 // pred_region
          %s231 = ssub.s32 128, 128
          %232 = vsyncadd [#allocation9], %s231
          %s234 = sshll.u32 [#allocation8], 4
          %s235 = int_to_ptr.vmem [resolvable:$true] %s234
          %237 = dma.hbm_to_vmem [thread:$0]  %s3, 128, %s235, [#allocation9]
        $region16: #{complex_wavehax_forward.12} parent=11 // pred_fallthru
          _
        // Predicated region
        $region17: #{complex_wavehax_forward.12} parent=11 // pred_check
          %p238 = pneg %p144
        $region18: #{complex_wavehax_forward.12} parent=11 // pred_check_branch
          %240 = sbr.rel (%p238) target = $region20
        $region19: #{complex_wavehax_forward.12} parent=11 // pred_region
          %s242 = ssub.s32 16, 16
          %243 = vsyncadd [#allocation9], %s242
          %s245 = sshll.u32 [#allocation10], 4
          %s246 = int_to_ptr.vmem [resolvable:$true] %s245
          %248 = dma.hbm_to_vmem [thread:$0]  %s4, 16, %s246, [#allocation9]
        $region20: #{complex_wavehax_forward.12} parent=11 // pred_fallthru
          _
        // Predicated region
        $region21: #{complex_wavehax_forward.12} parent=11 // pred_check
          %p249 = pneg %p165
        $region22: #{complex_wavehax_forward.12} parent=11 // pred_check_branch
          %251 = sbr.rel (%p249) target = $region24
        $region23: #{complex_wavehax_forward.12} parent=11 // pred_region
          %s253 = ssub.s32 128, 128
          %254 = vsyncadd [#allocation12], %s253
          %s255 = sshll.u32 [#allocation11], 4
          %s256 = int_to_ptr.vmem [resolvable:$true] %s255
          %261 = dma.hbm_to_vmem [thread:$0]  %s5, 128, %s256, [#allocation12], 64, 64, 4
        $region24: #{complex_wavehax_forward.12} parent=11 // pred_fallthru
          _
        // Predicated region
        $region25: #{complex_wavehax_forward.12} parent=11 // pred_check
          %p262 = pneg %p186
        $region26: #{complex_wavehax_forward.12} parent=11 // pred_check_branch
          %264 = sbr.rel (%p262) target = $region28
        $region27: #{complex_wavehax_forward.12} parent=11 // pred_region
          %s266 = ssub.s32 256, 256
          %267 = vsyncadd [#allocation12], %s266
          %s268 = sshll.u32 [#allocation13], 4
          %s269 = int_to_ptr.vmem [resolvable:$true] %s268
          %274 = dma.hbm_to_vmem [thread:$0]  %s6, 256, %s269, [#allocation12], 64, 64, 4
        $region28: #{complex_wavehax_forward.12} parent=11 // pred_fallthru
          _
      $region12: #{complex_wavehax_forward.12} parent=5 // pred_fallthru
        _
      %p275 = scmp.lt.s32.totalorder %s24, 2
      // Predicated region
      $region29: #{complex_wavehax_forward.12} parent=5 // pred_check
        %p276 = pneg %p275
      $region30: #{complex_wavehax_forward.12} parent=5 // pred_check_branch
        %278 = sbr.rel (%p276) target = $region32
      $region31: #{complex_wavehax_forward.12} parent=5 // pred_region
        // Predicated region
        $region33: #{complex_wavehax_forward.12} parent=31 // pred_check
          %p279 = pneg %p44
        $region34: #{complex_wavehax_forward.12} parent=31 // pred_check_branch
          %281 = sbr.rel (%p279) target = $region36
        $region35: #{complex_wavehax_forward.12} parent=31 // pred_region
          %s282 = sand.u32 %s34, 1
          %s283 = scalar_lea.sflag [#allocation3], %s282
          %s284 = sand.u32 %s34, 1
          %s285 = smul.addr %s284, 36
          %s286 = scalar_lea.vmem [#allocation2], %s285
          %s287 = smul.u32 9, %s24
          %s289 = ssub.s32 576, 576
          %290 = vsyncadd %s283, %s289
          %s291 = smul.addr %s287, 64
          %s292 = scalar_lea.hbm %s0, %s291
          %s293 = sshll.u32 %s286, 4
          %s294 = int_to_ptr.vmem [resolvable:$true] %s293
          %299 = dma.hbm_to_vmem [thread:$0]  %s292, 576, %s294, %s283, 64, 64, 4
        $region36: #{complex_wavehax_forward.12} parent=31 // pred_fallthru
          _
        // Predicated region
        $region37: #{complex_wavehax_forward.12} parent=31 // pred_check
          %p300 = pneg %p70
        $region38: #{complex_wavehax_forward.12} parent=31 // pred_check_branch
          %302 = sbr.rel (%p300) target = $region40
        $region39: #{complex_wavehax_forward.12} parent=31 // pred_region
          %s303 = sand.u32 %s24, 1
          %s304 = scalar_lea.sflag [#allocation6], %s303
          %s305 = sand.u32 %s60, 1
          %s306 = smul.addr %s305, 36
          %s307 = scalar_lea.vmem [#allocation5], %s306
          %s308 = smul.u32 9, %s24
          %s310 = ssub.s32 576, 576
          %311 = vsyncadd %s304, %s310
          %s312 = smul.addr %s308, 64
          %s313 = scalar_lea.hbm %s1, %s312
          %s314 = sshll.u32 %s307, 4
          %s315 = int_to_ptr.vmem [resolvable:$true] %s314
          %320 = dma.hbm_to_vmem [thread:$0]  %s313, 576, %s315, %s304, 64, 64, 4
        $region40: #{complex_wavehax_forward.12} parent=31 // pred_fallthru
          _
        // Predicated region
        $region41: #{complex_wavehax_forward.12} parent=31 // pred_check
          %p321 = pneg %p96
        $region42: #{complex_wavehax_forward.12} parent=31 // pred_check_branch
          %323 = sbr.rel (%p321) target = $region44
        $region43: #{complex_wavehax_forward.12} parent=31 // pred_region
          %s324 = sand.u32 %s24, 1
          %s325 = scalar_lea.sflag [#allocation6], %s324
          %s326 = sand.u32 %s86, 1
          %s327 = smul.addr %s326, 36
          %s328 = scalar_lea.vmem [#allocation7], %s327
          %s329 = smul.u32 9, %s24
          %s331 = ssub.s32 576, 576
          %332 = vsyncadd %s325, %s331
          %s333 = smul.addr %s329, 64
          %s334 = scalar_lea.hbm %s2, %s333
          %s335 = sshll.u32 %s328, 4
          %s336 = int_to_ptr.vmem [resolvable:$true] %s335
          %341 = dma.hbm_to_vmem [thread:$0]  %s334, 576, %s336, %s325, 64, 64, 4
        $region44: #{complex_wavehax_forward.12} parent=31 // pred_fallthru
          _
      $region32: #{complex_wavehax_forward.12} parent=5 // pred_fallthru
        _
      %p342 = scmp.le.s32.totalorder 1, %s24
      %p343 = scmp.lt.s32.totalorder %s24, 3
      %p344 = pnand %p342, %p343
      %p345 = pneg %p344
      // Predicated region
      $region45: #{complex_wavehax_forward.12} parent=5 // pred_check
        _
      $region46: #{complex_wavehax_forward.12} parent=5 // pred_check_branch
        %347 = sbr.rel (%p344) target = $region48
      $region47: #{complex_wavehax_forward.12} parent=5 // pred_region
        %s348 = ssub.s32 %s24, 1
        %s349 = sand.u32 %s37, 1
        %s350 = scalar_lea.sflag [#allocation3], %s349
        %s351 = sand.u32 %s37, 1
        %s352 = smul.addr %s351, 36
        %s353 = scalar_lea.vmem [#allocation2], %s352
        // Predicated region
        $region49: #{complex_wavehax_forward.12} parent=47 // pred_check
          %p354 = pneg %p50
        $region50: #{complex_wavehax_forward.12} parent=47 // pred_check_branch
          %356 = sbr.rel (%p354) target = $region52
        $region51: #{complex_wavehax_forward.12} parent=47 // pred_region
          %357 = dma.done %s350, 576
        $region52: #{complex_wavehax_forward.12} parent=47 // pred_fallthru
          _
        %s358 = sand.u32 %s29, 1
        %s359 = scalar_lea.sflag [#allocation6], %s358
        %s360 = sand.u32 %s63, 1
        %s361 = smul.addr %s360, 36
        %s362 = scalar_lea.vmem [#allocation5], %s361
        // Predicated region
        $region53: #{complex_wavehax_forward.12} parent=47 // pred_check
          %p363 = pneg %p76
        $region54: #{complex_wavehax_forward.12} parent=47 // pred_check_branch
          %365 = sbr.rel (%p363) target = $region56
        $region55: #{complex_wavehax_forward.12} parent=47 // pred_region
          %366 = dma.done %s359, 576
        $region56: #{complex_wavehax_forward.12} parent=47 // pred_fallthru
          _
        %s367 = sand.u32 %s29, 1
        %s368 = scalar_lea.sflag [#allocation6], %s367
        %s369 = sand.u32 %s89, 1
        %s370 = smul.addr %s369, 36
        %s371 = scalar_lea.vmem [#allocation7], %s370
        // Predicated region
        $region57: #{complex_wavehax_forward.12} parent=47 // pred_check
          %p372 = pneg %p102
        $region58: #{complex_wavehax_forward.12} parent=47 // pred_check_branch
          %374 = sbr.rel (%p372) target = $region60
        $region59: #{complex_wavehax_forward.12} parent=47 // pred_region
          %375 = dma.done %s368, 576
        $region60: #{complex_wavehax_forward.12} parent=47 // pred_fallthru
          _
        // Predicated region
        $region61: #{complex_wavehax_forward.12} parent=47 // pred_check
          %p376 = pneg %p123
        $region62: #{complex_wavehax_forward.12} parent=47 // pred_check_branch
          %378 = sbr.rel (%p376) target = $region64
        $region63: #{complex_wavehax_forward.12} parent=47 // pred_region
          %379 = dma.done [#allocation9], 128
        $region64: #{complex_wavehax_forward.12} parent=47 // pred_fallthru
          _
        // Predicated region
        $region65: #{complex_wavehax_forward.12} parent=47 // pred_check
          %p380 = pneg %p144
        $region66: #{complex_wavehax_forward.12} parent=47 // pred_check_branch
          %382 = sbr.rel (%p380) target = $region68
        $region67: #{complex_wavehax_forward.12} parent=47 // pred_region
          %383 = dma.done [#allocation9], 16
        $region68: #{complex_wavehax_forward.12} parent=47 // pred_fallthru
          _
        // Predicated region
        $region69: #{complex_wavehax_forward.12} parent=47 // pred_check
          %p384 = pneg %p165
        $region70: #{complex_wavehax_forward.12} parent=47 // pred_check_branch
          %386 = sbr.rel (%p384) target = $region72
        $region71: #{complex_wavehax_forward.12} parent=47 // pred_region
          %387 = dma.done [#allocation12], 128
        $region72: #{complex_wavehax_forward.12} parent=47 // pred_fallthru
          _
        // Predicated region
        $region73: #{complex_wavehax_forward.12} parent=47 // pred_check
          %p388 = pneg %p186
        $region74: #{complex_wavehax_forward.12} parent=47 // pred_check_branch
          %390 = sbr.rel (%p388) target = $region76
        $region75: #{complex_wavehax_forward.12} parent=47 // pred_region
          %391 = dma.done [#allocation12], 256
        $region76: #{complex_wavehax_forward.12} parent=47 // pred_fallthru
          _
        %s392 = sand.u32 %s37, 1
        %s393 = scalar_lea.sflag [#allocation3], %s392
        %s394 = sand.u32 %s37, 1
        %s395 = smul.addr %s394, 36
        %s396 = scalar_lea.vmem [#allocation2], %s395
        %p397 = pneg %p50
        %p398 = pneg %p47
        %s399 = sand.u32 %s29, 1
        %s400 = scalar_lea.sflag [#allocation6], %s399
        %s401 = sand.u32 %s63, 1
        %s402 = smul.addr %s401, 36
        %s403 = scalar_lea.vmem [#allocation5], %s402
        %p404 = pneg %p76
        %p405 = pneg %p73
        %s406 = sand.u32 %s29, 1
        %s407 = scalar_lea.sflag [#allocation6], %s406
        %s408 = sand.u32 %s89, 1
        %s409 = smul.addr %s408, 36
        %s410 = scalar_lea.vmem [#allocation7], %s409
        %p411 = pneg %p102
        %p412 = pneg %p99
        %p413 = pneg %p123
        %p414 = pneg %p120
        %p415 = pneg %p144
        %p416 = pneg %p141
        %p417 = pneg %p165
        %p418 = pneg %p162
        %p419 = pneg %p186
        %p420 = pneg %p183
        %p421 = pneg %p212
        %p422 = pneg %p209
        %s423 = sand.u32 %s199, 1
        %s424 = scalar_lea.sflag [#allocation4], %s423
        %s425 = sand.u32 %s199, 1
        %s426 = smul.addr %s425, 36
        %s427 = scalar_lea.vmem [#allocation14], %s426
        %s428 = smul.u32 9, %s29
        %s429 = smul.u32 9, %s29
        %s430 = smul.u32 9, %s29
        %s431 = smul.u32 9, %s29
        %v437 = vld [vmem:[#allocation8] sm:$0x7f]
        %v438 = vld [vmem:[%s353] sm:$0xf]
        %v439 = vld [vmem:[%s353 + $0x4] sm:$0xf]
        %v440 = vld [vmem:[%s353 + $0x8] sm:$0xf]
        %v441 = vld [vmem:[%s353 + $0xc] sm:$0xf]
        %v442 = vld [vmem:[%s353 + $0x10] sm:$0xf]
        %v443 = vld [vmem:[%s353 + $0x14] sm:$0xf]
        %v444 = vld [vmem:[%s353 + $0x18] sm:$0xf]
        %v445 = vld [vmem:[%s353 + $0x1c] sm:$0xf]
        %v446 = vld [vmem:[%s353 + $0x20] sm:$0xf]
        %v447 = vunpack.c.l.bf16 %v438
        %v448 = vunpack.c.l.bf16 %v439
        %v449 = vunpack.c.l.bf16 %v440
        %v450 = vunpack.c.l.bf16 %v441
        %v451 = vunpack.c.l.bf16 %v442
        %v452 = vunpack.c.l.bf16 %v443
        %v453 = vunpack.c.l.bf16 %v444
        %v454 = vunpack.c.l.bf16 %v445
        %v455 = vunpack.c.l.bf16 %v446
        %v456 = vld [vmem:[%s362] sm:$0xf]
        %v457 = vld [vmem:[%s362 + $0x4] sm:$0xf]
        %v458 = vld [vmem:[%s362 + $0x8] sm:$0xf]
        %v459 = vld [vmem:[%s362 + $0xc] sm:$0xf]
        %v460 = vld [vmem:[%s362 + $0x10] sm:$0xf]
        %v461 = vld [vmem:[%s362 + $0x14] sm:$0xf]
        %v462 = vld [vmem:[%s362 + $0x18] sm:$0xf]
        %v463 = vld [vmem:[%s362 + $0x1c] sm:$0xf]
        %v464 = vld [vmem:[%s362 + $0x20] sm:$0xf]
        %v465 = vunpack.c.l.bf16 %v456
        %v466 = vunpack.c.l.bf16 %v457
        %v467 = vunpack.c.l.bf16 %v458
        %v468 = vunpack.c.l.bf16 %v459
        %v469 = vunpack.c.l.bf16 %v460
        %v470 = vunpack.c.l.bf16 %v461
        %v471 = vunpack.c.l.bf16 %v462
        %v472 = vunpack.c.l.bf16 %v463
        %v473 = vunpack.c.l.bf16 %v464
        %483 = vrot.lane.b32.xlu0 %v465, 120
        %v484 = vpop.permute.xlu0 %483
        %485 = vrot.lane.b32.xlu0 %v466, 120
        %v486 = vpop.permute.xlu0 %485
        %487 = vrot.lane.b32.xlu0 %v467, 120
        %v488 = vpop.permute.xlu0 %487
        %489 = vrot.lane.b32.xlu0 %v468, 120
        %v490 = vpop.permute.xlu0 %489
        %491 = vrot.lane.b32.xlu0 %v469, 120
        %v492 = vpop.permute.xlu0 %491
        %493 = vrot.lane.b32.xlu0 %v470, 120
        %v494 = vpop.permute.xlu0 %493
        %495 = vrot.lane.b32.xlu0 %v471, 120
        %v496 = vpop.permute.xlu0 %495
        %497 = vrot.lane.b32.xlu0 %v472, 120
        %v498 = vpop.permute.xlu0 %497
        %499 = vrot.lane.b32.xlu0 %v473, 120
        %v500 = vpop.permute.xlu0 %499
        %v510 = vsub.f32 %v447, %v484
        %v511 = vsub.f32 %v448, %v486
        %v512 = vsub.f32 %v449, %v488
        %v513 = vsub.f32 %v450, %v490
        %v514 = vsub.f32 %v451, %v492
        %v515 = vsub.f32 %v452, %v494
        %v516 = vsub.f32 %v453, %v496
        %v517 = vsub.f32 %v454, %v498
        %v518 = vsub.f32 %v455, %v500
        %v519 = vlaneseq
        %v520 = vshrl.u32 %v519, 7
        %v521 = vsub.s32 0, %v520
        %v522 = vrot.slane %v437, %v521
        %v523 = vadd.f32 %v510, %v522
        %v524 = vadd.f32 %v511, %v522
        %v525 = vadd.f32 %v512, %v522
        %v526 = vadd.f32 %v513, %v522
        %v527 = vadd.f32 %v514, %v522
        %v528 = vadd.f32 %v515, %v522
        %v529 = vadd.f32 %v516, %v522
        %v530 = vadd.f32 %v517, %v522
        %v531 = vadd.f32 %v518, %v522
        %541 = vrot.lane.b32.xlu0 %v447, 120
        %v542 = vpop.permute.xlu0 %541
        %543 = vrot.lane.b32.xlu0 %v448, 120
        %v544 = vpop.permute.xlu0 %543
        %545 = vrot.lane.b32.xlu0 %v449, 120
        %v546 = vpop.permute.xlu0 %545
        %547 = vrot.lane.b32.xlu0 %v450, 120
        %v548 = vpop.permute.xlu0 %547
        %549 = vrot.lane.b32.xlu0 %v451, 120
        %v550 = vpop.permute.xlu0 %549
        %551 = vrot.lane.b32.xlu0 %v452, 120
        %v552 = vpop.permute.xlu0 %551
        %553 = vrot.lane.b32.xlu0 %v453, 120
        %v554 = vpop.permute.xlu0 %553
        %555 = vrot.lane.b32.xlu0 %v454, 120
        %v556 = vpop.permute.xlu0 %555
        %557 = vrot.lane.b32.xlu0 %v455, 120
        %v558 = vpop.permute.xlu0 %557
        %v568 = vadd.f32 %v465, %v542
        %v569 = vadd.f32 %v466, %v544
        %v570 = vadd.f32 %v467, %v546
        %v571 = vadd.f32 %v468, %v548
        %v572 = vadd.f32 %v469, %v550
        %v573 = vadd.f32 %v470, %v552
        %v574 = vadd.f32 %v471, %v554
        %v575 = vadd.f32 %v472, %v556
        %v576 = vadd.f32 %v473, %v558
        %578 = vrot.lane.b32.xlu0 %v522, 120
        %v579 = vpop.permute.xlu0 %578
        %v581 = vadd.f32 %v568, %v579
        %v582 = vadd.f32 %v569, %v579
        %v583 = vadd.f32 %v570, %v579
        %v584 = vadd.f32 %v571, %v579
        %v585 = vadd.f32 %v572, %v579
        %v586 = vadd.f32 %v573, %v579
        %v587 = vadd.f32 %v574, %v579
        %v588 = vadd.f32 %v575, %v579
        %v589 = vadd.f32 %v576, %v579
        %vm590 = vcmask 64512
        %v591 = vsel %vm590, %v523, 0.0
        %592 = vadd.xlane.f32.xlu0 %v591
        %v593 = vpop.xlane.xlu0 %592
        %v594 = vsel %vm590, %v524, 0.0
        %595 = vadd.xlane.f32.xlu0 %v594
        %v596 = vpop.xlane.xlu0 %595
        %v597 = vsel %vm590, %v525, 0.0
        %598 = vadd.xlane.f32.xlu0 %v597
        %v599 = vpop.xlane.xlu0 %598
        %v600 = vsel %vm590, %v526, 0.0
        %601 = vadd.xlane.f32.xlu0 %v600
        %v602 = vpop.xlane.xlu0 %601
        %v603 = vsel %vm590, %v527, 0.0
        %604 = vadd.xlane.f32.xlu0 %v603
        %v605 = vpop.xlane.xlu0 %604
        %v606 = vsel %vm590, %v528, 0.0
        %607 = vadd.xlane.f32.xlu0 %v606
        %v608 = vpop.xlane.xlu0 %607
        %v609 = vsel %vm590, %v529, 0.0
        %610 = vadd.xlane.f32.xlu0 %v609
        %v611 = vpop.xlane.xlu0 %610
        %v612 = vsel %vm590, %v530, 0.0
        %613 = vadd.xlane.f32.xlu0 %v612
        %v614 = vpop.xlane.xlu0 %613
        %v615 = vsel %vm590, %v531, 0.0
        %616 = vadd.xlane.f32.xlu0 %v615
        %v617 = vpop.xlane.xlu0 %616
        %v618 = vrcp.pop 8.0
        %v619 = vmul.f32 %v593, %v618
        %v620 = vmul.f32 %v596, %v618
        %v621 = vmul.f32 %v599, %v618
        %v622 = vmul.f32 %v602, %v618
        %v623 = vmul.f32 %v605, %v618
        %v624 = vmul.f32 %v608, %v618
        %v625 = vmul.f32 %v611, %v618
        %v626 = vmul.f32 %v614, %v618
        %v627 = vmul.f32 %v617, %v618
        %v628 = vsel %vm590, %v581, 0.0
        %629 = vadd.xlane.f32.xlu0 %v628
        %v630 = vpop.xlane.xlu0 %629
        %v631 = vsel %vm590, %v582, 0.0
        %632 = vadd.xlane.f32.xlu0 %v631
        %v633 = vpop.xlane.xlu0 %632
        %v634 = vsel %vm590, %v583, 0.0
        %635 = vadd.xlane.f32.xlu0 %v634
        %v636 = vpop.xlane.xlu0 %635
        %v637 = vsel %vm590, %v584, 0.0
        %638 = vadd.xlane.f32.xlu0 %v637
        %v639 = vpop.xlane.xlu0 %638
        %v640 = vsel %vm590, %v585, 0.0
        %641 = vadd.xlane.f32.xlu0 %v640
        %v642 = vpop.xlane.xlu0 %641
        %v643 = vsel %vm590, %v586, 0.0
        %644 = vadd.xlane.f32.xlu0 %v643
        %v645 = vpop.xlane.xlu0 %644
        %v646 = vsel %vm590, %v587, 0.0
        %647 = vadd.xlane.f32.xlu0 %v646
        %v648 = vpop.xlane.xlu0 %647
        %v649 = vsel %vm590, %v588, 0.0
        %650 = vadd.xlane.f32.xlu0 %v649
        %v651 = vpop.xlane.xlu0 %650
        %v652 = vsel %vm590, %v589, 0.0
        %653 = vadd.xlane.f32.xlu0 %v652
        %v654 = vpop.xlane.xlu0 %653
        %v655 = vmul.f32 %v630, %v618
        %v656 = vmul.f32 %v633, %v618
        %v657 = vmul.f32 %v636, %v618
        %v658 = vmul.f32 %v639, %v618
        %v659 = vmul.f32 %v642, %v618
        %v660 = vmul.f32 %v645, %v618
        %v661 = vmul.f32 %v648, %v618
        %v662 = vmul.f32 %v651, %v618
        %v663 = vmul.f32 %v654, %v618
        %v664 = vsub.f32 %v523, %v619
        %v665 = vsub.f32 %v524, %v620
        %v666 = vsub.f32 %v525, %v621
        %v667 = vsub.f32 %v526, %v622
        %v668 = vsub.f32 %v527, %v623
        %v669 = vsub.f32 %v528, %v624
        %v670 = vsub.f32 %v529, %v625
        %v671 = vsub.f32 %v530, %v626
        %v672 = vsub.f32 %v531, %v627
        %v673 = vsub.f32 %v581, %v655
        %v674 = vsub.f32 %v582, %v656
        %v675 = vsub.f32 %v583, %v657
        %v676 = vsub.f32 %v584, %v658
        %v677 = vsub.f32 %v585, %v659
        %v678 = vsub.f32 %v586, %v660
        %v679 = vsub.f32 %v587, %v661
        %v680 = vsub.f32 %v588, %v662
        %v681 = vsub.f32 %v589, %v663
        %v682 = vmul.f32 %v664, %v664
        %v683 = vmul.f32 %v665, %v665
        %v684 = vmul.f32 %v666, %v666
        %v685 = vmul.f32 %v667, %v667
        %v686 = vmul.f32 %v668, %v668
        %v687 = vmul.f32 %v669, %v669
        %v688 = vmul.f32 %v670, %v670
        %v689 = vmul.f32 %v671, %v671
        %v690 = vmul.f32 %v672, %v672
        %v691 = vmul.f32 %v673, %v673
        %v692 = vmul.f32 %v674, %v674
        %v693 = vmul.f32 %v675, %v675
        %v694 = vmul.f32 %v676, %v676
        %v695 = vmul.f32 %v677, %v677
        %v696 = vmul.f32 %v678, %v678
        %v697 = vmul.f32 %v679, %v679
        %v698 = vmul.f32 %v680, %v680
        %v699 = vmul.f32 %v681, %v681
        %v700 = vadd.f32 %v682, %v691
        %v701 = vadd.f32 %v683, %v692
        %v702 = vadd.f32 %v684, %v693
        %v703 = vadd.f32 %v685, %v694
        %v704 = vadd.f32 %v686, %v695
        %v705 = vadd.f32 %v687, %v696
        %v706 = vadd.f32 %v688, %v697
        %v707 = vadd.f32 %v689, %v698
        %v708 = vadd.f32 %v690, %v699
        %v709 = vsel %vm590, %v700, 0.0
        %710 = vadd.xlane.f32.xlu0 %v709
        %v711 = vpop.xlane.xlu0 %710
        %v712 = vsel %vm590, %v701, 0.0
        %713 = vadd.xlane.f32.xlu0 %v712
        %v714 = vpop.xlane.xlu0 %713
        %v715 = vsel %vm590, %v702, 0.0
        %716 = vadd.xlane.f32.xlu0 %v715
        %v717 = vpop.xlane.xlu0 %716
        %v718 = vsel %vm590, %v703, 0.0
        %719 = vadd.xlane.f32.xlu0 %v718
        %v720 = vpop.xlane.xlu0 %719
        %v721 = vsel %vm590, %v704, 0.0
        %722 = vadd.xlane.f32.xlu0 %v721
        %v723 = vpop.xlane.xlu0 %722
        %v724 = vsel %vm590, %v705, 0.0
        %725 = vadd.xlane.f32.xlu0 %v724
        %v726 = vpop.xlane.xlu0 %725
        %v727 = vsel %vm590, %v706, 0.0
        %728 = vadd.xlane.f32.xlu0 %v727
        %v729 = vpop.xlane.xlu0 %728
        %v730 = vsel %vm590, %v707, 0.0
        %731 = vadd.xlane.f32.xlu0 %v730
        %v732 = vpop.xlane.xlu0 %731
        %v733 = vsel %vm590, %v708, 0.0
        %734 = vadd.xlane.f32.xlu0 %v733
        %v735 = vpop.xlane.xlu0 %734
        %v736 = vmul.f32 %v711, %v618
        %v737 = vmul.f32 %v714, %v618
        %v738 = vmul.f32 %v717, %v618
        %v739 = vmul.f32 %v720, %v618
        %v740 = vmul.f32 %v723, %v618
        %v741 = vmul.f32 %v726, %v618
        %v742 = vmul.f32 %v729, %v618
        %v743 = vmul.f32 %v732, %v618
        %v744 = vmul.f32 %v735, %v618
        %v745 = vadd.f32 %v736, 1e-06
        %v746 = vadd.f32 %v737, 1e-06
        %v747 = vadd.f32 %v738, 1e-06
        %v748 = vadd.f32 %v739, 1e-06
        %v749 = vadd.f32 %v740, 1e-06
        %v750 = vadd.f32 %v741, 1e-06
        %v751 = vadd.f32 %v742, 1e-06
        %v752 = vadd.f32 %v743, 1e-06
        %v753 = vadd.f32 %v744, 1e-06
        %v754 = vrsqrt.pop %v745
        %v755 = vrsqrt.pop %v746
        %v756 = vrsqrt.pop %v747
        %v757 = vrsqrt.pop %v748
        %v758 = vrsqrt.pop %v749
        %v759 = vrsqrt.pop %v750
        %v760 = vrsqrt.pop %v751
        %v761 = vrsqrt.pop %v752
        %v762 = vrsqrt.pop %v753
        %v763 = vmul.f32 %v664, %v754
        %v764 = vmul.f32 %v665, %v755
        %v765 = vmul.f32 %v666, %v756
        %v766 = vmul.f32 %v667, %v757
        %v767 = vmul.f32 %v668, %v758
        %v768 = vmul.f32 %v669, %v759
        %v769 = vmul.f32 %v670, %v760
        %v770 = vmul.f32 %v671, %v761
        %v771 = vmul.f32 %v672, %v762
        %v772 = vmul.f32 %v673, %v754
        %v773 = vmul.f32 %v674, %v755
        %v774 = vmul.f32 %v675, %v756
        %v775 = vmul.f32 %v676, %v757
        %v776 = vmul.f32 %v677, %v758
        %v777 = vmul.f32 %v678, %v759
        %v778 = vmul.f32 %v679, %v760
        %v779 = vmul.f32 %v680, %v761
        %v780 = vmul.f32 %v681, %v762
        %v781 = vlaneseq
        %v782 = vshrl.u32 %v781, 7
        %v783 = vsub.s32 3, %v782
        %v784 = vrot.slane %v437, %v783
        %v785 = vmul.f32 %v763, %v784
        %v786 = vmul.f32 %v764, %v784
        %v787 = vmul.f32 %v765, %v784
        %v788 = vmul.f32 %v766, %v784
        %v789 = vmul.f32 %v767, %v784
        %v790 = vmul.f32 %v768, %v784
        %v791 = vmul.f32 %v769, %v784
        %v792 = vmul.f32 %v770, %v784
        %v793 = vmul.f32 %v771, %v784
        %795 = vrot.lane.b32.xlu0 %v784, 120
        %v796 = vpop.permute.xlu0 %795
        %v798 = vmul.f32 %v772, %v796
        %v799 = vmul.f32 %v773, %v796
        %v800 = vmul.f32 %v774, %v796
        %v801 = vmul.f32 %v775, %v796
        %v802 = vmul.f32 %v776, %v796
        %v803 = vmul.f32 %v777, %v796
        %v804 = vmul.f32 %v778, %v796
        %v805 = vmul.f32 %v779, %v796
        %v806 = vmul.f32 %v780, %v796
        %v807 = vsub.f32 %v785, %v798
        %v808 = vsub.f32 %v786, %v799
        %v809 = vsub.f32 %v787, %v800
        %v810 = vsub.f32 %v788, %v801
        %v811 = vsub.f32 %v789, %v802
        %v812 = vsub.f32 %v790, %v803
        %v813 = vsub.f32 %v791, %v804
        %v814 = vsub.f32 %v792, %v805
        %v815 = vsub.f32 %v793, %v806
        %v816 = vlaneseq
        %v817 = vshrl.u32 %v816, 7
        %v818 = vsub.s32 4, %v817
        %v819 = vrot.slane %v437, %v818
        %v820 = vadd.f32 %v807, %v819
        %v821 = vadd.f32 %v808, %v819
        %v822 = vadd.f32 %v809, %v819
        %v823 = vadd.f32 %v810, %v819
        %v824 = vadd.f32 %v811, %v819
        %v825 = vadd.f32 %v812, %v819
        %v826 = vadd.f32 %v813, %v819
        %v827 = vadd.f32 %v814, %v819
        %v828 = vadd.f32 %v815, %v819
        %v829 = vmul.f32 %v763, %v796
        %v830 = vmul.f32 %v764, %v796
        %v831 = vmul.f32 %v765, %v796
        %v832 = vmul.f32 %v766, %v796
        %v833 = vmul.f32 %v767, %v796
        %v834 = vmul.f32 %v768, %v796
        %v835 = vmul.f32 %v769, %v796
        %v836 = vmul.f32 %v770, %v796
        %v837 = vmul.f32 %v771, %v796
        %v838 = vmul.f32 %v772, %v784
        %v839 = vmul.f32 %v773, %v784
        %v840 = vmul.f32 %v774, %v784
        %v841 = vmul.f32 %v775, %v784
        %v842 = vmul.f32 %v776, %v784
        %v843 = vmul.f32 %v777, %v784
        %v844 = vmul.f32 %v778, %v784
        %v845 = vmul.f32 %v779, %v784
        %v846 = vmul.f32 %v780, %v784
        %v847 = vadd.f32 %v829, %v838
        %v848 = vadd.f32 %v830, %v839
        %v849 = vadd.f32 %v831, %v840
        %v850 = vadd.f32 %v832, %v841
        %v851 = vadd.f32 %v833, %v842
        %v852 = vadd.f32 %v834, %v843
        %v853 = vadd.f32 %v835, %v844
        %v854 = vadd.f32 %v836, %v845
        %v855 = vadd.f32 %v837, %v846
        %857 = vrot.lane.b32.xlu0 %v819, 120
        %v858 = vpop.permute.xlu0 %857
        %v860 = vadd.f32 %v847, %v858
        %v861 = vadd.f32 %v848, %v858
        %v862 = vadd.f32 %v849, %v858
        %v863 = vadd.f32 %v850, %v858
        %v864 = vadd.f32 %v851, %v858
        %v865 = vadd.f32 %v852, %v858
        %v866 = vadd.f32 %v853, %v858
        %v867 = vadd.f32 %v854, %v858
        %v868 = vadd.f32 %v855, %v858
        %878 = vrot.lane.b32.xlu0 %v860, 8
        %v879 = vpop.permute.xlu0 %878
        %880 = vrot.lane.b32.xlu0 %v861, 8
        %v881 = vpop.permute.xlu0 %880
        %882 = vrot.lane.b32.xlu0 %v862, 8
        %v883 = vpop.permute.xlu0 %882
        %884 = vrot.lane.b32.xlu0 %v863, 8
        %v885 = vpop.permute.xlu0 %884
        %886 = vrot.lane.b32.xlu0 %v864, 8
        %v887 = vpop.permute.xlu0 %886
        %888 = vrot.lane.b32.xlu0 %v865, 8
        %v889 = vpop.permute.xlu0 %888
        %890 = vrot.lane.b32.xlu0 %v866, 8
        %v891 = vpop.permute.xlu0 %890
        %892 = vrot.lane.b32.xlu0 %v867, 8
        %v893 = vpop.permute.xlu0 %892
        %894 = vrot.lane.b32.xlu0 %v868, 8
        %v895 = vpop.permute.xlu0 %894
        %v905 = vsel %vm590, %v820, %v879
        %v906 = vsel %vm590, %v821, %v881
        %v907 = vsel %vm590, %v822, %v883
        %v908 = vsel %vm590, %v823, %v885
        %v909 = vsel %vm590, %v824, %v887
        %v910 = vsel %vm590, %v825, %v889
        %v911 = vsel %vm590, %v826, %v891
        %v912 = vsel %vm590, %v827, %v893
        %v913 = vsel %vm590, %v828, %v895
        %v914 = vld [vmem:[#allocation11] sm:$0xf]
        %v915 = vld [vmem:[#allocation11 + $0x4] sm:$0xf]
        %v916 = vpack.c.bf16 %v906, %v905
        %v917 = vpack.c.bf16 %v908, %v907
        %v918 = vpack.c.bf16 %v910, %v909
        %v919 = vpack.c.bf16 %v912, %v911
        %v920 = vpack.c.bf16 %v913, %v913
        %v921 = vld [vmem:[#allocation10] sm:$0x1]
        %v923 = vlaneseq
        %v924 = vshrl.u32 %v923, 7
        %v925 = vsub.s32 0, %v924
        %v926 = vrot.slane %v921, %v925
        %v930 = vunpack.c.l.b16 %v914
        %v931 = vunpack.c.l.b16 %v915
        %v932 = vpack.c.b16 %v931, %v930
        %vm934 = vcmask 130048
        %v936 = vsel %vm934, %v916, 0
        %v939 = vsel %vm934, %v917, 0
        %v942 = vsel %vm934, %v918, 0
        %v945 = vsel %vm934, %v919, 0
        %v948 = vsel %vm934, %v920, 0
        %950 = vmatprep.subr.bf16.mxu0 0
        %951 = vmatpush1.bf16.msra.mxu0 %v932
        %952 = vmatprep.subr.bf16.mxu0 0
        %953 = vmatpush1.bf16.msra.mxu0 0
        %954 = vmatprep.subr.bf16.mxu0 0
        %955 = vmatpush1.bf16.msra.mxu0 0
        %956 = vmatprep.subr.bf16.mxu0 0
        %957 = vmatpush1.bf16.msra.mxu0 0
        %958 = vmatprep.subr.bf16.mxu0 0
        %959 = vmatpush1.bf16.msra.mxu0 0
        %960 = vmatprep.subr.bf16.mxu0 0
        %961 = vmatpush1.bf16.msra.mxu0 0
        %962 = vmatprep.subr.bf16.mxu0 0
        %963 = vmatpush1.bf16.msra.mxu0 0
        %964 = vmatprep.subr.bf16.mxu0 0
        %965 = vmatpush1.bf16.msra.mxu0 0
        %966 = vmatprep.subr.bf16.mxu0 0
        %967 = vmatpush1.bf16.msra.mxu0 0
        %968 = vmatprep.subr.bf16.mxu0 0
        %969 = vmatpush1.bf16.msra.mxu0 0
        %970 = vmatprep.subr.bf16.mxu0 0
        %971 = vmatpush1.bf16.msra.mxu0 0
        %972 = vmatprep.subr.bf16.mxu0 0
        %973 = vmatpush1.bf16.msra.mxu0 0
        %974 = vmatprep.subr.bf16.mxu0 0
        %975 = vmatpush1.bf16.msra.mxu0 0
        %976 = vmatprep.subr.bf16.mxu0 0
        %977 = vmatpush1.bf16.msra.mxu0 0
        %978 = vmatprep.subr.bf16.mxu0 0
        %979 = vmatpush1.bf16.msra.mxu0 0
        %980 = vmatprep.subr.bf16.mxu0 0
        %981 = vmatpush1.bf16.msra.mxu0 0
        %982 = vmatprep.mubr.bf16.mxu0 0
        %983 = vmatmul.mubr.bf16.gmra.mrb[0].mxu0 %v936
        %v984 = vpop.f32.mrb[0].mxu0
        %v985 = vadd.f32 %v926, %v984
        %v986 = vpop.f32.mrb[0].mxu0
        %v987 = vpop.f32.mrb[0].mxu0
        %v988 = vadd.f32 %v926, %v987
        %v989 = vpop.f32.mrb[0].mxu0
        %990 = vmatprep.mubr.bf16.mxu0 0
        %991 = vmatmul.mubr.bf16.gmra.mrb[0].mxu0 %v939
        %v992 = vpop.f32.mrb[0].mxu0
        %v993 = vadd.f32 %v926, %v992
        %v994 = vpop.f32.mrb[0].mxu0
        %v995 = vpop.f32.mrb[0].mxu0
        %v996 = vadd.f32 %v926, %v995
        %v997 = vpop.f32.mrb[0].mxu0
        %998 = vmatprep.mubr.bf16.mxu0 0
        %999 = vmatmul.mubr.bf16.gmra.mrb[0].mxu0 %v942
        %v1000 = vpop.f32.mrb[0].mxu0
        %v1001 = vadd.f32 %v926, %v1000
        %v1002 = vpop.f32.mrb[0].mxu0
        %v1003 = vpop.f32.mrb[0].mxu0
        %v1004 = vadd.f32 %v926, %v1003
        %v1005 = vpop.f32.mrb[0].mxu0
        %1006 = vmatprep.mubr.bf16.mxu0 0
        %1007 = vmatmul.mubr.bf16.gmra.mrb[0].mxu0 %v945
        %v1008 = vpop.f32.mrb[0].mxu0
        %v1009 = vadd.f32 %v926, %v1008
        %v1010 = vpop.f32.mrb[0].mxu0
        %v1011 = vpop.f32.mrb[0].mxu0
        %v1012 = vadd.f32 %v926, %v1011
        %v1013 = vpop.f32.mrb[0].mxu0
        %1014 = vmatprep.mubr.bf16.mxu0 0
        %1015 = vmatmul.mubr.bf16.gmra.mrb[0].mxu0 %v948
        %v1016 = vpop.f32.mrb[0].mxu0
        %v1017 = vadd.f32 %v926, %v1016
        %v1018 = vpop.f32.mrb[0].mxu0
        %v1019 = vpop.f32.mrb[0].mxu0
        %v1020 = vpop.f32.mrb[0].mxu0
        %1021 = vdwg.mxu0
        %v1022 = vpack.c.bf16 %v988, %v985
        %v1023 = vpack.c.bf16 %v996, %v993
        %v1024 = vpack.c.bf16 %v1004, %v1001
        %v1025 = vpack.c.bf16 %v1012, %v1009
        %v1026 = vpack.c.bf16 %v1017, %v1017
        %v1027 = vmul.bf16 %v1022, %v1022
        %v1028 = vmul.bf16 %v1023, %v1023
        %v1029 = vmul.bf16 %v1024, %v1024
        %v1030 = vmul.bf16 %v1025, %v1025
        %v1031 = vmul.bf16 %v1026, %v1026
        %v1032 = vmul.bf16 %v1022, %v1027
        %v1033 = vmul.bf16 %v1023, %v1028
        %v1034 = vmul.bf16 %v1024, %v1029
        %v1035 = vmul.bf16 %v1025, %v1030
        %v1036 = vmul.bf16 %v1026, %v1031
        %v1037 = vmul.bf16 %v1032, 1027030327
        %v1038 = vmul.bf16 %v1033, 1027030327
        %v1039 = vmul.bf16 %v1034, 1027030327
        %v1040 = vmul.bf16 %v1035, 1027030327
        %v1041 = vmul.bf16 %v1036, 1027030327
        %v1042 = vadd.bf16 %v1022, %v1037
        %v1043 = vadd.bf16 %v1023, %v1038
        %v1044 = vadd.bf16 %v1024, %v1039
        %v1045 = vadd.bf16 %v1025, %v1040
        %v1046 = vadd.bf16 %v1026, %v1041
        %v1047 = vmul.bf16 %v1042, 1061961548
        %v1048 = vmul.bf16 %v1043, 1061961548
        %v1049 = vmul.bf16 %v1044, 1061961548
        %v1050 = vmul.bf16 %v1045, 1061961548
        %v1051 = vmul.bf16 %v1046, 1061961548
        %v1052 = vtanh.bf16.pop %v1047
        %v1053 = vtanh.bf16.pop %v1048
        %v1054 = vtanh.bf16.pop %v1049
        %v1055 = vtanh.bf16.pop %v1050
        %v1056 = vtanh.bf16.pop %v1051
        %v1057 = vadd.bf16 %v1052, 1065369472
        %v1058 = vadd.bf16 %v1053, 1065369472
        %v1059 = vadd.bf16 %v1054, 1065369472
        %v1060 = vadd.bf16 %v1055, 1065369472
        %v1061 = vadd.bf16 %v1056, 1065369472
        %v1062 = vmul.bf16 %v1057, 1056980736
        %v1063 = vmul.bf16 %v1058, 1056980736
        %v1064 = vmul.bf16 %v1059, 1056980736
        %v1065 = vmul.bf16 %v1060, 1056980736
        %v1066 = vmul.bf16 %v1061, 1056980736
        %v1067 = vmul.bf16 %v1022, %v1062
        %v1068 = vmul.bf16 %v1023, %v1063
        %v1069 = vmul.bf16 %v1024, %v1064
        %v1070 = vmul.bf16 %v1025, %v1065
        %v1071 = vmul.bf16 %v1026, %v1066
        %v1072 = vld [vmem:[#allocation13] sm:$0xf]
        %v1073 = vld [vmem:[#allocation13 + $0x4] sm:$0xf]
        %v1074 = vld [vmem:[#allocation13 + $0x8] sm:$0xf]
        %v1075 = vld [vmem:[#allocation13 + $0xc] sm:$0xf]
        %v1076 = vlaneseq
        %v1077 = vshrl.u32 %v1076, 7
        %v1078 = vsub.s32 2, %v1077
        %v1079 = vrot.slane %v437, %v1078
        %v1084 = vunpack.c.l.b16 %v1072
        %v1085 = vunpack.c.l.b16 %v1073
        %v1086 = vunpack.c.l.b16 %v1074
        %v1087 = vunpack.c.l.b16 %v1075
        %v1088 = vpack.c.b16 %v1085, %v1084
        %v1089 = vpack.c.b16 %v1087, %v1086
        %vm1092 = vcmask 261120
        %v1094 = vsel %vm1092, %v1067, 0
        %v1097 = vsel %vm1092, %v1068, 0
        %v1100 = vsel %vm1092, %v1069, 0
        %v1103 = vsel %vm1092, %v1070, 0
        %v1106 = vsel %vm1092, %v1071, 0
        %1108 = vmatprep.subr.bf16.mxu0 0
        %1109 = vmatpush1.bf16.msra.mxu0 %v1088
        %1110 = vmatprep.subr.bf16.mxu0 0
        %1111 = vmatpush1.bf16.msra.mxu0 %v1089
        %1112 = vmatprep.subr.bf16.mxu0 0
        %1113 = vmatpush1.bf16.msra.mxu0 0
        %1114 = vmatprep.subr.bf16.mxu0 0
        %1115 = vmatpush1.bf16.msra.mxu0 0
        %1116 = vmatprep.subr.bf16.mxu0 0
        %1117 = vmatpush1.bf16.msra.mxu0 0
        %1118 = vmatprep.subr.bf16.mxu0 0
        %1119 = vmatpush1.bf16.msra.mxu0 0
        %1120 = vmatprep.subr.bf16.mxu0 0
        %1121 = vmatpush1.bf16.msra.mxu0 0
        %1122 = vmatprep.subr.bf16.mxu0 0
        %1123 = vmatpush1.bf16.msra.mxu0 0
        %1124 = vmatprep.subr.bf16.mxu0 0
        %1125 = vmatpush1.bf16.msra.mxu0 0
        %1126 = vmatprep.subr.bf16.mxu0 0
        %1127 = vmatpush1.bf16.msra.mxu0 0
        %1128 = vmatprep.subr.bf16.mxu0 0
        %1129 = vmatpush1.bf16.msra.mxu0 0
        %1130 = vmatprep.subr.bf16.mxu0 0
        %1131 = vmatpush1.bf16.msra.mxu0 0
        %1132 = vmatprep.subr.bf16.mxu0 0
        %1133 = vmatpush1.bf16.msra.mxu0 0
        %1134 = vmatprep.subr.bf16.mxu0 0
        %1135 = vmatpush1.bf16.msra.mxu0 0
        %1136 = vmatprep.subr.bf16.mxu0 0
        %1137 = vmatpush1.bf16.msra.mxu0 0
        %1138 = vmatprep.subr.bf16.mxu0 0
        %1139 = vmatpush1.bf16.msra.mxu0 0
        %1140 = vmatprep.mubr.bf16.mxu0 0
        %1141 = vmatmul.mubr.bf16.gmra.mrb[0].mxu0 %v1094
        %v1142 = vpop.f32.mrb[0].mxu0
        %v1143 = vadd.f32 %v1079, %v1142
        %v1144 = vpop.f32.mrb[0].mxu0
        %v1145 = vpop.f32.mrb[0].mxu0
        %v1146 = vadd.f32 %v1079, %v1145
        %v1147 = vpop.f32.mrb[0].mxu0
        %1148 = vmatprep.mubr.bf16.mxu0 0
        %1149 = vmatmul.mubr.bf16.gmra.mrb[0].mxu0 %v1097
        %v1150 = vpop.f32.mrb[0].mxu0
        %v1151 = vadd.f32 %v1079, %v1150
        %v1152 = vpop.f32.mrb[0].mxu0
        %v1153 = vpop.f32.mrb[0].mxu0
        %v1154 = vadd.f32 %v1079, %v1153
        %v1155 = vpop.f32.mrb[0].mxu0
        %1156 = vmatprep.mubr.bf16.mxu0 0
        %1157 = vmatmul.mubr.bf16.gmra.mrb[0].mxu0 %v1100
        %v1158 = vpop.f32.mrb[0].mxu0
        %v1159 = vadd.f32 %v1079, %v1158
        %v1160 = vpop.f32.mrb[0].mxu0
        %v1161 = vpop.f32.mrb[0].mxu0
        %v1162 = vadd.f32 %v1079, %v1161
        %v1163 = vpop.f32.mrb[0].mxu0
        %1164 = vmatprep.mubr.bf16.mxu0 0
        %1165 = vmatmul.mubr.bf16.gmra.mrb[0].mxu0 %v1103
        %v1166 = vpop.f32.mrb[0].mxu0
        %v1167 = vadd.f32 %v1079, %v1166
        %v1168 = vpop.f32.mrb[0].mxu0
        %v1169 = vpop.f32.mrb[0].mxu0
        %v1170 = vadd.f32 %v1079, %v1169
        %v1171 = vpop.f32.mrb[0].mxu0
        %1172 = vmatprep.mubr.bf16.mxu0 0
        %1173 = vmatmul.mubr.bf16.gmra.mrb[0].mxu0 %v1106
        %v1174 = vpop.f32.mrb[0].mxu0
        %v1175 = vadd.f32 %v1079, %v1174
        %v1176 = vpop.f32.mrb[0].mxu0
        %v1177 = vpop.f32.mrb[0].mxu0
        %v1178 = vpop.f32.mrb[0].mxu0
        %1179 = vdwg.mxu0
        %v1180 = vld [vmem:[%s371] sm:$0xf]
        %v1181 = vld [vmem:[%s371 + $0x4] sm:$0xf]
        %v1182 = vld [vmem:[%s371 + $0x8] sm:$0xf]
        %v1183 = vld [vmem:[%s371 + $0xc] sm:$0xf]
        %v1184 = vld [vmem:[%s371 + $0x10] sm:$0xf]
        %v1185 = vld [vmem:[%s371 + $0x14] sm:$0xf]
        %v1186 = vld [vmem:[%s371 + $0x18] sm:$0xf]
        %v1187 = vld [vmem:[%s371 + $0x1c] sm:$0xf]
        %v1188 = vld [vmem:[%s371 + $0x20] sm:$0xf]
        %v1189 = vunpack.c.l.bf16 %v1180
        %v1190 = vunpack.c.l.bf16 %v1181
        %v1191 = vunpack.c.l.bf16 %v1182
        %v1192 = vunpack.c.l.bf16 %v1183
        %v1193 = vunpack.c.l.bf16 %v1184
        %v1194 = vunpack.c.l.bf16 %v1185
        %v1195 = vunpack.c.l.bf16 %v1186
        %v1196 = vunpack.c.l.bf16 %v1187
        %v1197 = vunpack.c.l.bf16 %v1188
        %v1198 = vlaneseq
        %v1199 = vshrl.u32 %v1198, 7
        %v1200 = vsub.s32 1, %v1199
        %v1201 = vrot.slane %v437, %v1200
        %v1202 = vmul.f32 %v1201, %v1143
        %v1203 = vmul.f32 %v1201, %v1146
        %v1204 = vmul.f32 %v1201, %v1151
        %v1205 = vmul.f32 %v1201, %v1154
        %v1206 = vmul.f32 %v1201, %v1159
        %v1207 = vmul.f32 %v1201, %v1162
        %v1208 = vmul.f32 %v1201, %v1167
        %v1209 = vmul.f32 %v1201, %v1170
        %v1210 = vmul.f32 %v1201, %v1175
        %v1211 = vadd.f32 %v1189, %v1202
        %v1212 = vadd.f32 %v1190, %v1203
        %v1213 = vadd.f32 %v1191, %v1204
        %v1214 = vadd.f32 %v1192, %v1205
        %v1215 = vadd.f32 %v1193, %v1206
        %v1216 = vadd.f32 %v1194, %v1207
        %v1217 = vadd.f32 %v1195, %v1208
        %v1218 = vadd.f32 %v1196, %v1209
        %v1219 = vadd.f32 %v1197, %v1210
        %v1220 = vsel %vm590, %v1211, 0.0
        %1221 = vadd.xlane.f32.xlu0 %v1220
        %v1222 = vpop.xlane.xlu0 %1221
        %v1223 = vsel %vm590, %v1212, 0.0
        %1224 = vadd.xlane.f32.xlu0 %v1223
        %v1225 = vpop.xlane.xlu0 %1224
        %v1226 = vsel %vm590, %v1213, 0.0
        %1227 = vadd.xlane.f32.xlu0 %v1226
        %v1228 = vpop.xlane.xlu0 %1227
        %v1229 = vsel %vm590, %v1214, 0.0
        %1230 = vadd.xlane.f32.xlu0 %v1229
        %v1231 = vpop.xlane.xlu0 %1230
        %v1232 = vsel %vm590, %v1215, 0.0
        %1233 = vadd.xlane.f32.xlu0 %v1232
        %v1234 = vpop.xlane.xlu0 %1233
        %v1235 = vsel %vm590, %v1216, 0.0
        %1236 = vadd.xlane.f32.xlu0 %v1235
        %v1237 = vpop.xlane.xlu0 %1236
        %v1238 = vsel %vm590, %v1217, 0.0
        %1239 = vadd.xlane.f32.xlu0 %v1238
        %v1240 = vpop.xlane.xlu0 %1239
        %v1241 = vsel %vm590, %v1218, 0.0
        %1242 = vadd.xlane.f32.xlu0 %v1241
        %v1243 = vpop.xlane.xlu0 %1242
        %v1244 = vsel %vm590, %v1219, 0.0
        %1245 = vadd.xlane.f32.xlu0 %v1244
        %v1246 = vpop.xlane.xlu0 %1245
        %v1247 = vmul.f32 %v1222, %v618
        %v1248 = vmul.f32 %v1225, %v618
        %v1249 = vmul.f32 %v1228, %v618
        %v1250 = vmul.f32 %v1231, %v618
        %v1251 = vmul.f32 %v1234, %v618
        %v1252 = vmul.f32 %v1237, %v618
        %v1253 = vmul.f32 %v1240, %v618
        %v1254 = vmul.f32 %v1243, %v618
        %v1255 = vmul.f32 %v1246, %v618
        %1265 = vrot.lane.b32.xlu0 %v1211, 120
        %v1266 = vpop.permute.xlu0 %1265
        %1267 = vrot.lane.b32.xlu0 %v1212, 120
        %v1268 = vpop.permute.xlu0 %1267
        %1269 = vrot.lane.b32.xlu0 %v1213, 120
        %v1270 = vpop.permute.xlu0 %1269
        %1271 = vrot.lane.b32.xlu0 %v1214, 120
        %v1272 = vpop.permute.xlu0 %1271
        %1273 = vrot.lane.b32.xlu0 %v1215, 120
        %v1274 = vpop.permute.xlu0 %1273
        %1275 = vrot.lane.b32.xlu0 %v1216, 120
        %v1276 = vpop.permute.xlu0 %1275
        %1277 = vrot.lane.b32.xlu0 %v1217, 120
        %v1278 = vpop.permute.xlu0 %1277
        %1279 = vrot.lane.b32.xlu0 %v1218, 120
        %v1280 = vpop.permute.xlu0 %1279
        %1281 = vrot.lane.b32.xlu0 %v1219, 120
        %v1282 = vpop.permute.xlu0 %1281
        %v1292 = vsel %vm590, %v1266, 0.0
        %1293 = vadd.xlane.f32.xlu0 %v1292
        %v1294 = vpop.xlane.xlu0 %1293
        %v1295 = vsel %vm590, %v1268, 0.0
        %1296 = vadd.xlane.f32.xlu0 %v1295
        %v1297 = vpop.xlane.xlu0 %1296
        %v1298 = vsel %vm590, %v1270, 0.0
        %1299 = vadd.xlane.f32.xlu0 %v1298
        %v1300 = vpop.xlane.xlu0 %1299
        %v1301 = vsel %vm590, %v1272, 0.0
        %1302 = vadd.xlane.f32.xlu0 %v1301
        %v1303 = vpop.xlane.xlu0 %1302
        %v1304 = vsel %vm590, %v1274, 0.0
        %1305 = vadd.xlane.f32.xlu0 %v1304
        %v1306 = vpop.xlane.xlu0 %1305
        %v1307 = vsel %vm590, %v1276, 0.0
        %1308 = vadd.xlane.f32.xlu0 %v1307
        %v1309 = vpop.xlane.xlu0 %1308
        %v1310 = vsel %vm590, %v1278, 0.0
        %1311 = vadd.xlane.f32.xlu0 %v1310
        %v1312 = vpop.xlane.xlu0 %1311
        %v1313 = vsel %vm590, %v1280, 0.0
        %1314 = vadd.xlane.f32.xlu0 %v1313
        %v1315 = vpop.xlane.xlu0 %1314
        %v1316 = vsel %vm590, %v1282, 0.0
        %1317 = vadd.xlane.f32.xlu0 %v1316
        %v1318 = vpop.xlane.xlu0 %1317
        %v1319 = vmul.f32 %v1294, %v618
        %v1320 = vmul.f32 %v1297, %v618
        %v1321 = vmul.f32 %v1300, %v618
        %v1322 = vmul.f32 %v1303, %v618
        %v1323 = vmul.f32 %v1306, %v618
        %v1324 = vmul.f32 %v1309, %v618
        %v1325 = vmul.f32 %v1312, %v618
        %v1326 = vmul.f32 %v1315, %v618
        %v1327 = vmul.f32 %v1318, %v618
        %v1328 = vsub.f32 %v1211, %v1247
        %v1329 = vsub.f32 %v1212, %v1248
        %v1330 = vsub.f32 %v1213, %v1249
        %v1331 = vsub.f32 %v1214, %v1250
        %v1332 = vsub.f32 %v1215, %v1251
        %v1333 = vsub.f32 %v1216, %v1252
        %v1334 = vsub.f32 %v1217, %v1253
        %v1335 = vsub.f32 %v1218, %v1254
        %v1336 = vsub.f32 %v1219, %v1255
        %v1337 = vsub.f32 %v1211, %v1319
        %v1338 = vsub.f32 %v1212, %v1320
        %v1339 = vsub.f32 %v1213, %v1321
        %v1340 = vsub.f32 %v1214, %v1322
        %v1341 = vsub.f32 %v1215, %v1323
        %v1342 = vsub.f32 %v1216, %v1324
        %v1343 = vsub.f32 %v1217, %v1325
        %v1344 = vsub.f32 %v1218, %v1326
        %v1345 = vsub.f32 %v1219, %v1327
        %v1346 = vmul.f32 %v1328, %v1328
        %v1347 = vmul.f32 %v1329, %v1329
        %v1348 = vmul.f32 %v1330, %v1330
        %v1349 = vmul.f32 %v1331, %v1331
        %v1350 = vmul.f32 %v1332, %v1332
        %v1351 = vmul.f32 %v1333, %v1333
        %v1352 = vmul.f32 %v1334, %v1334
        %v1353 = vmul.f32 %v1335, %v1335
        %v1354 = vmul.f32 %v1336, %v1336
        %v1355 = vmul.f32 %v1337, %v1337
        %v1356 = vmul.f32 %v1338, %v1338
        %v1357 = vmul.f32 %v1339, %v1339
        %v1358 = vmul.f32 %v1340, %v1340
        %v1359 = vmul.f32 %v1341, %v1341
        %v1360 = vmul.f32 %v1342, %v1342
        %v1361 = vmul.f32 %v1343, %v1343
        %v1362 = vmul.f32 %v1344, %v1344
        %v1363 = vmul.f32 %v1345, %v1345
        %1373 = vrot.lane.b32.xlu0 %v1355, 120
        %v1374 = vpop.permute.xlu0 %1373
        %1375 = vrot.lane.b32.xlu0 %v1356, 120
        %v1376 = vpop.permute.xlu0 %1375
        %1377 = vrot.lane.b32.xlu0 %v1357, 120
        %v1378 = vpop.permute.xlu0 %1377
        %1379 = vrot.lane.b32.xlu0 %v1358, 120
        %v1380 = vpop.permute.xlu0 %1379
        %1381 = vrot.lane.b32.xlu0 %v1359, 120
        %v1382 = vpop.permute.xlu0 %1381
        %1383 = vrot.lane.b32.xlu0 %v1360, 120
        %v1384 = vpop.permute.xlu0 %1383
        %1385 = vrot.lane.b32.xlu0 %v1361, 120
        %v1386 = vpop.permute.xlu0 %1385
        %1387 = vrot.lane.b32.xlu0 %v1362, 120
        %v1388 = vpop.permute.xlu0 %1387
        %1389 = vrot.lane.b32.xlu0 %v1363, 120
        %v1390 = vpop.permute.xlu0 %1389
        %v1400 = vadd.f32 %v1346, %v1374
        %v1401 = vadd.f32 %v1347, %v1376
        %v1402 = vadd.f32 %v1348, %v1378
        %v1403 = vadd.f32 %v1349, %v1380
        %v1404 = vadd.f32 %v1350, %v1382
        %v1405 = vadd.f32 %v1351, %v1384
        %v1406 = vadd.f32 %v1352, %v1386
        %v1407 = vadd.f32 %v1353, %v1388
        %v1408 = vadd.f32 %v1354, %v1390
        %v1409 = vsel %vm590, %v1400, 0.0
        %1410 = vadd.xlane.f32.xlu0 %v1409
        %v1411 = vpop.xlane.xlu0 %1410
        %v1412 = vsel %vm590, %v1401, 0.0
        %1413 = vadd.xlane.f32.xlu0 %v1412
        %v1414 = vpop.xlane.xlu0 %1413
        %v1415 = vsel %vm590, %v1402, 0.0
        %1416 = vadd.xlane.f32.xlu0 %v1415
        %v1417 = vpop.xlane.xlu0 %1416
        %v1418 = vsel %vm590, %v1403, 0.0
        %1419 = vadd.xlane.f32.xlu0 %v1418
        %v1420 = vpop.xlane.xlu0 %1419
        %v1421 = vsel %vm590, %v1404, 0.0
        %1422 = vadd.xlane.f32.xlu0 %v1421
        %v1423 = vpop.xlane.xlu0 %1422
        %v1424 = vsel %vm590, %v1405, 0.0
        %1425 = vadd.xlane.f32.xlu0 %v1424
        %v1426 = vpop.xlane.xlu0 %1425
        %v1427 = vsel %vm590, %v1406, 0.0
        %1428 = vadd.xlane.f32.xlu0 %v1427
        %v1429 = vpop.xlane.xlu0 %1428
        %v1430 = vsel %vm590, %v1407, 0.0
        %1431 = vadd.xlane.f32.xlu0 %v1430
        %v1432 = vpop.xlane.xlu0 %1431
        %v1433 = vsel %vm590, %v1408, 0.0
        %1434 = vadd.xlane.f32.xlu0 %v1433
        %v1435 = vpop.xlane.xlu0 %1434
        %v1436 = vmul.f32 %v1411, %v618
        %v1437 = vmul.f32 %v1414, %v618
        %v1438 = vmul.f32 %v1417, %v618
        %v1439 = vmul.f32 %v1420, %v618
        %v1440 = vmul.f32 %v1423, %v618
        %v1441 = vmul.f32 %v1426, %v618
        %v1442 = vmul.f32 %v1429, %v618
        %v1443 = vmul.f32 %v1432, %v618
        %v1444 = vmul.f32 %v1435, %v618
        %v1445 = vadd.f32 %v1436, 1e-06
        %v1446 = vadd.f32 %v1437, 1e-06
        %v1447 = vadd.f32 %v1438, 1e-06
        %v1448 = vadd.f32 %v1439, 1e-06
        %v1449 = vadd.f32 %v1440, 1e-06
        %v1450 = vadd.f32 %v1441, 1e-06
        %v1451 = vadd.f32 %v1442, 1e-06
        %v1452 = vadd.f32 %v1443, 1e-06
        %v1453 = vadd.f32 %v1444, 1e-06
        %v1454 = vrsqrt.pop %v1445
        %v1455 = vrsqrt.pop %v1446
        %v1456 = vrsqrt.pop %v1447
        %v1457 = vrsqrt.pop %v1448
        %v1458 = vrsqrt.pop %v1449
        %v1459 = vrsqrt.pop %v1450
        %v1460 = vrsqrt.pop %v1451
        %v1461 = vrsqrt.pop %v1452
        %v1462 = vrsqrt.pop %v1453
        %v1463 = vmul.f32 %v1328, %v1454
        %v1464 = vmul.f32 %v1329, %v1455
        %v1465 = vmul.f32 %v1330, %v1456
        %v1466 = vmul.f32 %v1331, %v1457
        %v1467 = vmul.f32 %v1332, %v1458
        %v1468 = vmul.f32 %v1333, %v1459
        %v1469 = vmul.f32 %v1334, %v1460
        %v1470 = vmul.f32 %v1335, %v1461
        %v1471 = vmul.f32 %v1336, %v1462
        %v1472 = vmul.f32 %v1337, %v1454
        %v1473 = vmul.f32 %v1338, %v1455
        %v1474 = vmul.f32 %v1339, %v1456
        %v1475 = vmul.f32 %v1340, %v1457
        %v1476 = vmul.f32 %v1341, %v1458
        %v1477 = vmul.f32 %v1342, %v1459
        %v1478 = vmul.f32 %v1343, %v1460
        %v1479 = vmul.f32 %v1344, %v1461
        %v1480 = vmul.f32 %v1345, %v1462
        %v1481 = vlaneseq
        %v1482 = vshrl.u32 %v1481, 7
        %v1483 = vsub.s32 5, %v1482
        %v1484 = vrot.slane %v437, %v1483
        %v1485 = vmul.f32 %v1463, %v1484
        %v1486 = vmul.f32 %v1464, %v1484
        %v1487 = vmul.f32 %v1465, %v1484
        %v1488 = vmul.f32 %v1466, %v1484
        %v1489 = vmul.f32 %v1467, %v1484
        %v1490 = vmul.f32 %v1468, %v1484
        %v1491 = vmul.f32 %v1469, %v1484
        %v1492 = vmul.f32 %v1470, %v1484
        %v1493 = vmul.f32 %v1471, %v1484
        %v1494 = vmul.f32 %v1472, %v1484
        %v1495 = vmul.f32 %v1473, %v1484
        %v1496 = vmul.f32 %v1474, %v1484
        %v1497 = vmul.f32 %v1475, %v1484
        %v1498 = vmul.f32 %v1476, %v1484
        %v1499 = vmul.f32 %v1477, %v1484
        %v1500 = vmul.f32 %v1478, %v1484
        %v1501 = vmul.f32 %v1479, %v1484
        %v1502 = vmul.f32 %v1480, %v1484
        %1512 = vrot.lane.b32.xlu0 %v1494, 120
        %v1513 = vpop.permute.xlu0 %1512
        %1514 = vrot.lane.b32.xlu0 %v1495, 120
        %v1515 = vpop.permute.xlu0 %1514
        %1516 = vrot.lane.b32.xlu0 %v1496, 120
        %v1517 = vpop.permute.xlu0 %1516
        %1518 = vrot.lane.b32.xlu0 %v1497, 120
        %v1519 = vpop.permute.xlu0 %1518
        %1520 = vrot.lane.b32.xlu0 %v1498, 120
        %v1521 = vpop.permute.xlu0 %1520
        %1522 = vrot.lane.b32.xlu0 %v1499, 120
        %v1523 = vpop.permute.xlu0 %1522
        %1524 = vrot.lane.b32.xlu0 %v1500, 120
        %v1525 = vpop.permute.xlu0 %1524
        %1526 = vrot.lane.b32.xlu0 %v1501, 120
        %v1527 = vpop.permute.xlu0 %1526
        %1528 = vrot.lane.b32.xlu0 %v1502, 120
        %v1529 = vpop.permute.xlu0 %1528
        %v1539 = vsub.f32 %v1485, %v1513
        %v1540 = vsub.f32 %v1486, %v1515
        %v1541 = vsub.f32 %v1487, %v1517
        %v1542 = vsub.f32 %v1488, %v1519
        %v1543 = vsub.f32 %v1489, %v1521
        %v1544 = vsub.f32 %v1490, %v1523
        %v1545 = vsub.f32 %v1491, %v1525
        %v1546 = vsub.f32 %v1492, %v1527
        %v1547 = vsub.f32 %v1493, %v1529
        %v1548 = vlaneseq
        %v1549 = vshrl.u32 %v1548, 7
        %v1550 = vsub.s32 6, %v1549
        %v1551 = vrot.slane %v437, %v1550
        %v1552 = vadd.f32 %v1539, %v1551
        %v1553 = vadd.f32 %v1540, %v1551
        %v1554 = vadd.f32 %v1541, %v1551
        %v1555 = vadd.f32 %v1542, %v1551
        %v1556 = vadd.f32 %v1543, %v1551
        %v1557 = vadd.f32 %v1544, %v1551
        %v1558 = vadd.f32 %v1545, %v1551
        %v1559 = vadd.f32 %v1546, %v1551
        %v1560 = vadd.f32 %v1547, %v1551
        %1562 = vrot.lane.b32.xlu0 %v1484, 120
        %v1563 = vpop.permute.xlu0 %1562
        %v1565 = vmul.f32 %v1463, %v1563
        %v1566 = vmul.f32 %v1464, %v1563
        %v1567 = vmul.f32 %v1465, %v1563
        %v1568 = vmul.f32 %v1466, %v1563
        %v1569 = vmul.f32 %v1467, %v1563
        %v1570 = vmul.f32 %v1468, %v1563
        %v1571 = vmul.f32 %v1469, %v1563
        %v1572 = vmul.f32 %v1470, %v1563
        %v1573 = vmul.f32 %v1471, %v1563
        %1574 = vrot.lane.b32.xlu0 %v1484, 8
        %v1575 = vpop.permute.xlu0 %1574
        %v1577 = vmul.f32 %v1472, %v1575
        %v1578 = vmul.f32 %v1473, %v1575
        %v1579 = vmul.f32 %v1474, %v1575
        %v1580 = vmul.f32 %v1475, %v1575
        %v1581 = vmul.f32 %v1476, %v1575
        %v1582 = vmul.f32 %v1477, %v1575
        %v1583 = vmul.f32 %v1478, %v1575
        %v1584 = vmul.f32 %v1479, %v1575
        %v1585 = vmul.f32 %v1480, %v1575
        %1595 = vrot.lane.b32.xlu0 %v1577, 120
        %v1596 = vpop.permute.xlu0 %1595
        %1597 = vrot.lane.b32.xlu0 %v1578, 120
        %v1598 = vpop.permute.xlu0 %1597
        %1599 = vrot.lane.b32.xlu0 %v1579, 120
        %v1600 = vpop.permute.xlu0 %1599
        %1601 = vrot.lane.b32.xlu0 %v1580, 120
        %v1602 = vpop.permute.xlu0 %1601
        %1603 = vrot.lane.b32.xlu0 %v1581, 120
        %v1604 = vpop.permute.xlu0 %1603
        %1605 = vrot.lane.b32.xlu0 %v1582, 120
        %v1606 = vpop.permute.xlu0 %1605
        %1607 = vrot.lane.b32.xlu0 %v1583, 120
        %v1608 = vpop.permute.xlu0 %1607
        %1609 = vrot.lane.b32.xlu0 %v1584, 120
        %v1610 = vpop.permute.xlu0 %1609
        %1611 = vrot.lane.b32.xlu0 %v1585, 120
        %v1612 = vpop.permute.xlu0 %1611
        %v1622 = vadd.f32 %v1565, %v1596
        %v1623 = vadd.f32 %v1566, %v1598
        %v1624 = vadd.f32 %v1567, %v1600
        %v1625 = vadd.f32 %v1568, %v1602
        %v1626 = vadd.f32 %v1569, %v1604
        %v1627 = vadd.f32 %v1570, %v1606
        %v1628 = vadd.f32 %v1571, %v1608
        %v1629 = vadd.f32 %v1572, %v1610
        %v1630 = vadd.f32 %v1573, %v1612
        %1632 = vrot.lane.b32.xlu0 %v1551, 120
        %v1633 = vpop.permute.xlu0 %1632
        %v1635 = vadd.f32 %v1622, %v1633
        %v1636 = vadd.f32 %v1623, %v1633
        %v1637 = vadd.f32 %v1624, %v1633
        %v1638 = vadd.f32 %v1625, %v1633
        %v1639 = vadd.f32 %v1626, %v1633
        %v1640 = vadd.f32 %v1627, %v1633
        %v1641 = vadd.f32 %v1628, %v1633
        %v1642 = vadd.f32 %v1629, %v1633
        %v1643 = vadd.f32 %v1630, %v1633
        %1653 = vrot.lane.b32.xlu0 %v1635, 8
        %v1654 = vpop.permute.xlu0 %1653
        %1655 = vrot.lane.b32.xlu0 %v1636, 8
        %v1656 = vpop.permute.xlu0 %1655
        %1657 = vrot.lane.b32.xlu0 %v1637, 8
        %v1658 = vpop.permute.xlu0 %1657
        %1659 = vrot.lane.b32.xlu0 %v1638, 8
        %v1660 = vpop.permute.xlu0 %1659
        %1661 = vrot.lane.b32.xlu0 %v1639, 8
        %v1662 = vpop.permute.xlu0 %1661
        %1663 = vrot.lane.b32.xlu0 %v1640, 8
        %v1664 = vpop.permute.xlu0 %1663
        %1665 = vrot.lane.b32.xlu0 %v1641, 8
        %v1666 = vpop.permute.xlu0 %1665
        %1667 = vrot.lane.b32.xlu0 %v1642, 8
        %v1668 = vpop.permute.xlu0 %1667
        %1669 = vrot.lane.b32.xlu0 %v1643, 8
        %v1670 = vpop.permute.xlu0 %1669
        %v1680 = vsel %vm590, %v1552, %v1654
        %v1681 = vsel %vm590, %v1553, %v1656
        %v1682 = vsel %vm590, %v1554, %v1658
        %v1683 = vsel %vm590, %v1555, %v1660
        %v1684 = vsel %vm590, %v1556, %v1662
        %v1685 = vsel %vm590, %v1557, %v1664
        %v1686 = vsel %vm590, %v1558, %v1666
        %v1687 = vsel %vm590, %v1559, %v1668
        %v1688 = vsel %vm590, %v1560, %v1670
        %v1689 = vpack.c.bf16 %v1681, %v1680
        %v1690 = vpack.c.bf16 %v1683, %v1682
        %v1691 = vpack.c.bf16 %v1685, %v1684
        %v1692 = vpack.c.bf16 %v1687, %v1686
        %v1693 = vpack.c.bf16 %v1688, %v1688
        %v1699 = vunpack.c.l.b16 %v1689
        %v1700 = vunpack.c.h.b16 %v1689
        %v1701 = vunpack.c.l.b16 %v1690
        %v1702 = vunpack.c.h.b16 %v1690
        %v1703 = vunpack.c.l.b16 %v1691
        %v1704 = vunpack.c.h.b16 %v1691
        %v1705 = vunpack.c.l.b16 %v1692
        %v1706 = vunpack.c.h.b16 %v1692
        %v1707 = vunpack.c.l.b16 %v1693
        %v1708 = vpack.c.b16 %v1699, %v1699
        %v1709 = vpack.c.b16 %v1700, %v1700
        %v1710 = vpack.c.b16 %v1701, %v1701
        %v1711 = vpack.c.b16 %v1702, %v1702
        %v1712 = vpack.c.b16 %v1703, %v1703
        %v1713 = vpack.c.b16 %v1704, %v1704
        %v1714 = vpack.c.b16 %v1705, %v1705
        %v1715 = vpack.c.b16 %v1706, %v1706
        %v1716 = vpack.c.b16 %v1707, %v1707
        %vm1726 = vcmask 125952
        %1727 = vst.msk [vmem:[%s427] sm:$0xf] %vm1726, %v1708
        %1728 = vst.msk [vmem:[%s427 + $0x4] sm:$0xf] %vm1726, %v1709
        %1729 = vst.msk [vmem:[%s427 + $0x8] sm:$0xf] %vm1726, %v1710
        %1730 = vst.msk [vmem:[%s427 + $0xc] sm:$0xf] %vm1726, %v1711
        %1731 = vst.msk [vmem:[%s427 + $0x10] sm:$0xf] %vm1726, %v1712
        %1732 = vst.msk [vmem:[%s427 + $0x14] sm:$0xf] %vm1726, %v1713
        %1733 = vst.msk [vmem:[%s427 + $0x18] sm:$0xf] %vm1726, %v1714
        %1734 = vst.msk [vmem:[%s427 + $0x1c] sm:$0xf] %vm1726, %v1715
        %1735 = vst.msk [vmem:[%s427 + $0x20] sm:$0xf] %vm1726, %v1716
        %s1736 = sand.u32 %s199, 1
        %s1737 = scalar_lea.sflag [#allocation4], %s1736
        %s1738 = sand.u32 %s199, 1
        %s1739 = smul.addr %s1738, 36
        %s1740 = scalar_lea.vmem [#allocation14], %s1739
        // Predicated region
        $region77: #{complex_wavehax_forward.12} parent=47 // pred_check
          %p1741 = pneg %p209
        $region78: #{complex_wavehax_forward.12} parent=47 // pred_check_branch
          %1743 = sbr.rel (%p1741) target = $region80
        $region79: #{complex_wavehax_forward.12} parent=47 // pred_region
          %s1744 = smul.u32 9, %s29
          %s1746 = ssub.s32 576, 576
          %1747 = vsyncadd %s1737, %s1746
          %s1748 = smul.addr %s1744, 64
          %s1749 = scalar_lea.hbm %s7, %s1748
          %s1750 = sshll.u32 %s1740, 4
          %s1751 = int_to_ptr.vmem [resolvable:$true] %s1750
          %1756 = dma.vmem_to_hbm [thread:$0]  %s1751, 576, %s1749, %s1737, 64, 64, 4
        $region80: #{complex_wavehax_forward.12} parent=47 // pred_fallthru
          _
      $region48: #{complex_wavehax_forward.12} parent=5 // pred_fallthru
        _
      %p1757 = scmp.le.s32.totalorder 2, %s24
      // Predicated region
      $region81: #{complex_wavehax_forward.12} parent=5 // pred_check
        %p1758 = pneg %p1757
      $region82: #{complex_wavehax_forward.12} parent=5 // pred_check_branch
        %1760 = sbr.rel (%p1758) target = $region84
      $region83: #{complex_wavehax_forward.12} parent=5 // pred_region
        %s1761 = ssub.s32 %s24, 2
        // Predicated region
        $region85: #{complex_wavehax_forward.12} parent=83 // pred_check
          %p1762 = pneg %p215
        $region86: #{complex_wavehax_forward.12} parent=83 // pred_check_branch
          %1764 = sbr.rel (%p1762) target = $region88
        $region87: #{complex_wavehax_forward.12} parent=83 // pred_region
          %s1765 = sand.u32 %s200, 1
          %s1766 = scalar_lea.sflag [#allocation4], %s1765
          %s1767 = sand.u32 %s200, 1
          %s1768 = smul.addr %s1767, 36
          %s1769 = scalar_lea.vmem [#allocation14], %s1768
          %1770 = dma.done %s1766, 576
        $region88: #{complex_wavehax_forward.12} parent=83 // pred_fallthru
          _
      $region84: #{complex_wavehax_forward.12} parent=5 // pred_fallthru
        _
    $region6: #{complex_wavehax_forward.12} parent=1 // loop_footer
      %s28 = sadd.s32 1, %s24
    $region7: #{complex_wavehax_forward.12} parent=1 // loop_footer_branch
      %23 = sbr.rel target = $region3
    $region8: #{complex_wavehax_forward.12} parent=1 // loop_exit
      _
    %1771 = vsyncpa [#allocation3], 1
    %s1772 = scalar_lea.sflag [#allocation3], 1
    %1773 = vsyncpa %s1772, 1
    %1774 = vsyncpa [#allocation6], 1
    %s1775 = scalar_lea.sflag [#allocation6], 1
    %1776 = vsyncpa %s1775, 1
    %1777 = vsyncpa [#allocation9], 1
    %1778 = vsyncpa [#allocation12], 1
    %1779 = vsyncpa [#allocation4], 1
    %s1780 = scalar_lea.sflag [#allocation4], 1
    %1781 = vsyncpa %s1780, 1

// kernel: complex_wavehax_forward.13
$region0: #{complex_wavehax_forward.13}
  #allocation0 [shape = 'u32[]', space=smem, size = 0x4, offset = 0x4, fixed_abs, tag = 'smem constant byte address 0x4 - core index']
  #allocation1 [shape = 'u32[144,128]{1,0:T(1,128)}', space=vmem, size = 0x12000, scoped, tag = 'internal scratch']
  #allocation2 [shape = 'f32[8,16]{1,0:T(8,128)}', space=vmem, size = 0x1000, scoped, tag = 'scratch operand']
  %s0 = inlined_call_operand.hbm [shape: bf16[16,144], index: 0, kind: input, shape index: {}]
  %s1 = inlined_call_operand.hbm [shape: bf16[144,16], index: 1, kind: input, shape index: {}]
  %s2 = inlined_call_operand.hbm [shape: f32[1,16], index: 2, kind: input, shape index: {}]
  %s3 = inlined_call_operand.hbm [shape: f32[16,16], index: 3, kind: output, shape index: {}]
  %s4 = sld [smem:[#allocation0]]
  $region65: #{complex_wavehax_forward.13} parent=0
    _
  %s6 = ssub.s32 1, %s4
  %s7 = scalar_select 0, %s6, %s4
  $region1: #{complex_wavehax_forward.13} parent=0
    #allocation3 [shape = 'u8[8192]{0}', space=vmem, size = 0x2000, scoped, tag = 'input window, operand 0']
    #allocation4 [shape = 's32[2]{0}', space=sflag, size = 0x8, scoped, tag = 'scoped memory for complex_wavehax_forward.13']
    #allocation5 [shape = 's32[2]{0}', space=sflag, size = 0x8, scoped, tag = 'scoped memory for complex_wavehax_forward.13']
    #allocation6 [shape = 'u8[36864]{0}', space=vmem, size = 0x9000, scoped, tag = 'input window, operand 1, single buffered']
    #allocation7 [shape = 's32[1]{0}', space=sflag, size = 0x4, scoped, tag = 'scoped memory for complex_wavehax_forward.13']
    #allocation8 [shape = 'u8[512]{0}', space=vmem, size = 0x400, scoped, tag = 'input window, operand 2, single buffered']
    #allocation9 [shape = 'u8[8192]{0}', space=vmem, size = 0x2000, scoped, tag = 'output window, operand 0']
    %8 = vsyncpa [#allocation4], 0
    %s9 = scalar_lea.sflag [#allocation4], 1
    %10 = vsyncpa %s9, 0
    %11 = vsyncpa [#allocation7], 0
    %12 = vsyncpa [#allocation5], 0
    %s13 = scalar_lea.sflag [#allocation5], 1
    %14 = vsyncpa %s13, 0
    loop: start=0, step=1, limit=4
    $region2: #{complex_wavehax_forward.13} parent=1 // loop_pre_header
      _
    $region3: #{complex_wavehax_forward.13} parent=1 // loop_header
      %s16 = sphi 0, %s20
      %p17 = scmp.ge.s32.totalorder %s16, 4
      %s23 = sphi 0, %s35
      %s24 = sphi 0, %s31
      %s25 = sphi 0, %s23
      %s26 = sphi 0, %s24
      %s27 = sphi 0, %s25
      %s28 = sphi 0, %s26
      %s40 = sphi 0, %s42
      %s43 = sphi 0, %s40
      %s44 = sphi 0, %s43
      %s60 = sphi 0, %s44
      %s66 = sphi 0, %s68
      %s69 = sphi 0, %s66
      %s70 = sphi 0, %s69
      %s86 = sphi 0, %s70
      %s90 = sphi 0, %s90
      %s92 = sphi 0, %s90
      %s93 = sphi 0, %s92
      %s107 = sphi 0, %s93
      %s113 = sphi 0, %s115
      %s116 = sphi 0, %s113
      %s117 = sphi 0, %s116
      %s133 = sphi 0, %s117
    $region4: #{complex_wavehax_forward.13} parent=1 // loop_header_branch
      %19 = sbr.rel (%p17) target = $region8
    $region5: #{complex_wavehax_forward.13} parent=1 // loop_body
      %s21 = ssub.s32 %s16, 1
      %s22 = ssub.s32 %s16, 2
      %s29 = sadd.s32 1, %s24
      %p30 = scmp.ge.s32.totalorder %s29, 1
      %s31 = scalar_select %p30, 0, %s29
      %s32 = sadd.s32 1, %s23
      %s33 = scalar_select %p30, %s32, %s23
      %p34 = scmp.ge.s32.totalorder %s33, 2
      %s35 = scalar_select %p34, 0, %s33
      %s36 = ssub.s32 %s23, %s35
      %s37 = ssub.s32 %s24, %s31
      %s38 = sor.u32 %s36, %s37
      %p39 = scmp.eq.s32.totalorder %s38, 0
      %s41 = sadd.s32 %s40, 1
      %s42 = scalar_select %p39, %s40, %s41
      %p45 = pneg %p39
      %p46 = scmp.eq.s32.totalorder %s16, 1
      %p47 = por %p45, %p46
      %p48 = scmp.ne.s32.totalorder %s40, %s43
      %p49 = scmp.eq.s32.totalorder %s16, 0
      %p50 = por %p48, %p49
      %p51 = scmp.ne.s32.totalorder %s40, %s43
      %p52 = scmp.eq.s32.totalorder %s21, 1
      %p53 = por %p51, %p52
      %p54 = scmp.ne.s32.totalorder %s43, %s44
      %p55 = scmp.eq.s32.totalorder %s21, 0
      %p56 = por %p54, %p55
      %p57 = scmp.ne.s32.totalorder %s43, %s44
      %p58 = scmp.eq.s32.totalorder %s22, 1
      %p59 = por %p57, %p58
      %p61 = scmp.ne.s32.totalorder %s44, %s60
      %p62 = scmp.eq.s32.totalorder %s22, 0
      %p63 = por %p61, %p62
      %s64 = ssub.s32 %s24, %s31
      %p65 = scmp.eq.s32.totalorder %s64, 0
      %s67 = sadd.s32 %s66, 1
      %s68 = scalar_select %p65, %s66, %s67
      %p71 = pneg %p65
      %p72 = scmp.eq.s32.totalorder %s16, 1
      %p73 = por %p71, %p72
      %p74 = scmp.ne.s32.totalorder %s66, %s69
      %p75 = scmp.eq.s32.totalorder %s16, 0
      %p76 = por %p74, %p75
      %p77 = scmp.ne.s32.totalorder %s66, %s69
      %p78 = scmp.eq.s32.totalorder %s21, 1
      %p79 = por %p77, %p78
      %p80 = scmp.ne.s32.totalorder %s69, %s70
      %p81 = scmp.eq.s32.totalorder %s21, 0
      %p82 = por %p80, %p81
      %p83 = scmp.ne.s32.totalorder %s69, %s70
      %p84 = scmp.eq.s32.totalorder %s22, 1
      %p85 = por %p83, %p84
      %p87 = scmp.ne.s32.totalorder %s70, %s86
      %p88 = scmp.eq.s32.totalorder %s22, 0
      %p89 = por %p87, %p88
      %s91 = sadd.s32 %s90, 1
      %p94 = scmp.eq.s32.totalorder %s16, 1
      %p95 = scmp.ne.s32.totalorder %s90, %s92
      %p96 = scmp.eq.s32.totalorder %s16, 0
      %p97 = por %p95, %p96
      %p98 = scmp.ne.s32.totalorder %s90, %s92
      %p99 = scmp.eq.s32.totalorder %s21, 1
      %p100 = por %p98, %p99
      %p101 = scmp.ne.s32.totalorder %s92, %s93
      %p102 = scmp.eq.s32.totalorder %s21, 0
      %p103 = por %p101, %p102
      %p104 = scmp.ne.s32.totalorder %s92, %s93
      %p105 = scmp.eq.s32.totalorder %s22, 1
      %p106 = por %p104, %p105
      %p108 = scmp.ne.s32.totalorder %s93, %s107
      %p109 = scmp.eq.s32.totalorder %s22, 0
      %p110 = por %p108, %p109
      %s111 = ssub.s32 %s23, %s35
      %p112 = scmp.eq.s32.totalorder %s111, 0
      %s114 = sadd.s32 %s113, 1
      %s115 = scalar_select %p112, %s113, %s114
      %p118 = pneg %p112
      %p119 = scmp.eq.s32.totalorder %s16, 1
      %p120 = por %p118, %p119
      %p121 = scmp.ne.s32.totalorder %s113, %s116
      %p122 = scmp.eq.s32.totalorder %s16, 0
      %p123 = por %p121, %p122
      %p124 = scmp.ne.s32.totalorder %s113, %s116
      %p125 = scmp.eq.s32.totalorder %s21, 1
      %p126 = por %p124, %p125
      %p127 = scmp.ne.s32.totalorder %s116, %s117
      %p128 = scmp.eq.s32.totalorder %s21, 0
      %p129 = por %p127, %p128
      %p130 = scmp.ne.s32.totalorder %s116, %s117
      %p131 = scmp.eq.s32.totalorder %s22, 1
      %p132 = por %p130, %p131
      %p134 = scmp.ne.s32.totalorder %s117, %s133
      %p135 = scmp.eq.s32.totalorder %s22, 0
      %p136 = por %p134, %p135
      %p137 = scmp.le.s32.totalorder 1, %s16
      %p138 = scmp.lt.s32.totalorder %s16, 3
      %p139 = pnand %p137, %p138
      %p140 = pneg %p139
      // Predicated region
      $region9: #{complex_wavehax_forward.13} parent=5 // pred_check
        _
      $region10: #{complex_wavehax_forward.13} parent=5 // pred_check_branch
        %142 = sbr.rel (%p139) target = $region12
      $region11: #{complex_wavehax_forward.13} parent=5 // pred_region
        %s143 = ssub.s32 %s16, 1
        // Predicated region
        $region13: #{complex_wavehax_forward.13} parent=11 // pred_check
          %p144 = pneg %p82
        $region14: #{complex_wavehax_forward.13} parent=11 // pred_check_branch
          %146 = sbr.rel (%p144) target = $region16
        $region15: #{complex_wavehax_forward.13} parent=11 // pred_region
          %s147 = smul.u32 18, %s26
          %s149 = ssub.s32 1152, 1152
          %150 = vsyncadd [#allocation7], %s149
          %s151 = smul.addr %s147, 64
          %s152 = scalar_lea.hbm %s1, %s151
          %s153 = sshll.u32 [#allocation6], 4
          %s154 = int_to_ptr.vmem [resolvable:$true] %s153
          %159 = dma.hbm_to_vmem [thread:$0]  %s152, 1152, %s154, [#allocation7], 64, 64, 4
        $region16: #{complex_wavehax_forward.13} parent=11 // pred_fallthru
          _
        // Predicated region
        $region17: #{complex_wavehax_forward.13} parent=11 // pred_check
          %p160 = pneg %p103
        $region18: #{complex_wavehax_forward.13} parent=11 // pred_check_branch
          %162 = sbr.rel (%p160) target = $region20
        $region19: #{complex_wavehax_forward.13} parent=11 // pred_region
          %s164 = ssub.s32 16, 16
          %165 = vsyncadd [#allocation7], %s164
          %s167 = sshll.u32 [#allocation8], 4
          %s168 = int_to_ptr.vmem [resolvable:$true] %s167
          %170 = dma.hbm_to_vmem [thread:$0]  %s2, 16, %s168, [#allocation7]
        $region20: #{complex_wavehax_forward.13} parent=11 // pred_fallthru
          _
      $region12: #{complex_wavehax_forward.13} parent=5 // pred_fallthru
        _
      %p171 = scmp.lt.s32.totalorder %s16, 2
      // Predicated region
      $region21: #{complex_wavehax_forward.13} parent=5 // pred_check
        %p172 = pneg %p171
      $region22: #{complex_wavehax_forward.13} parent=5 // pred_check_branch
        %174 = sbr.rel (%p172) target = $region24
      $region23: #{complex_wavehax_forward.13} parent=5 // pred_region
        // Predicated region
        $region25: #{complex_wavehax_forward.13} parent=23 // pred_check
          %p175 = pneg %p50
        $region26: #{complex_wavehax_forward.13} parent=23 // pred_check_branch
          %177 = sbr.rel (%p175) target = $region28
        $region27: #{complex_wavehax_forward.13} parent=23 // pred_region
          %s178 = sand.u32 %s40, 1
          %s179 = scalar_lea.sflag [#allocation4], %s178
          %s180 = sand.u32 %s40, 1
          %s181 = smul.addr %s180, 8
          %s182 = scalar_lea.vmem [#allocation3], %s181
          %s183 = smul.u32 2, %s24
          %s185 = ssub.s32 128, 128
          %186 = vsyncadd %s179, %s185
          %s187 = smul.addr %s23, 2
          %s188 = sadd.s32 %s183, %s187
          %s189 = smul.addr %s188, 64
          %s190 = scalar_lea.hbm %s0, %s189
          %s192 = sshll.u32 %s182, 4
          %s193 = int_to_ptr.vmem [resolvable:$true] %s192
          %195 = dma.hbm_to_vmem [thread:$0]  %s190, 128, %s193, %s179
        $region28: #{complex_wavehax_forward.13} parent=23 // pred_fallthru
          _
      $region24: #{complex_wavehax_forward.13} parent=5 // pred_fallthru
        _
      %p196 = scmp.le.s32.totalorder 1, %s16
      %p197 = scmp.lt.s32.totalorder %s16, 3
      %p198 = pnand %p196, %p197
      %p199 = pneg %p198
      // Predicated region
      $region29: #{complex_wavehax_forward.13} parent=5 // pred_check
        _
      $region30: #{complex_wavehax_forward.13} parent=5 // pred_check_branch
        %201 = sbr.rel (%p198) target = $region32
      $region31: #{complex_wavehax_forward.13} parent=5 // pred_region
        %s202 = ssub.s32 %s16, 1
        %s203 = sand.u32 %s43, 1
        %s204 = scalar_lea.sflag [#allocation4], %s203
        %s205 = sand.u32 %s43, 1
        %s206 = smul.addr %s205, 8
        %s207 = scalar_lea.vmem [#allocation3], %s206
        // Predicated region
        $region33: #{complex_wavehax_forward.13} parent=31 // pred_check
          %p208 = pneg %p56
        $region34: #{complex_wavehax_forward.13} parent=31 // pred_check_branch
          %210 = sbr.rel (%p208) target = $region36
        $region35: #{complex_wavehax_forward.13} parent=31 // pred_region
          %211 = dma.done %s204, 128
        $region36: #{complex_wavehax_forward.13} parent=31 // pred_fallthru
          _
        // Predicated region
        $region37: #{complex_wavehax_forward.13} parent=31 // pred_check
          %p212 = pneg %p82
        $region38: #{complex_wavehax_forward.13} parent=31 // pred_check_branch
          %214 = sbr.rel (%p212) target = $region40
        $region39: #{complex_wavehax_forward.13} parent=31 // pred_region
          %215 = dma.done [#allocation7], 1152
        $region40: #{complex_wavehax_forward.13} parent=31 // pred_fallthru
          _
        // Predicated region
        $region41: #{complex_wavehax_forward.13} parent=31 // pred_check
          %p216 = pneg %p103
        $region42: #{complex_wavehax_forward.13} parent=31 // pred_check_branch
          %218 = sbr.rel (%p216) target = $region44
        $region43: #{complex_wavehax_forward.13} parent=31 // pred_region
          %219 = dma.done [#allocation7], 16
        $region44: #{complex_wavehax_forward.13} parent=31 // pred_fallthru
          _
        %s220 = sand.u32 %s43, 1
        %s221 = scalar_lea.sflag [#allocation4], %s220
        %s222 = sand.u32 %s43, 1
        %s223 = smul.addr %s222, 8
        %s224 = scalar_lea.vmem [#allocation3], %s223
        %p225 = pneg %p56
        %p226 = pneg %p53
        %p227 = pneg %p82
        %p228 = pneg %p79
        %p229 = pneg %p103
        %p230 = pneg %p100
        %p231 = pneg %p129
        %p232 = pneg %p126
        %s233 = sand.u32 %s116, 1
        %s234 = scalar_lea.sflag [#allocation5], %s233
        %s235 = sand.u32 %s116, 1
        %s236 = smul.addr %s235, 8
        %s237 = scalar_lea.vmem [#allocation9], %s236
        %s238 = smul.u32 2, %s26
        %s239 = smul.u32 18, %s26
        %p241 = scmp.eq.s32.totalorder %s26, 0
        // Predicated region
        $region45: #{complex_wavehax_forward.13} parent=31 // pred_check
          %p242 = pneg %p241
        $region46: #{complex_wavehax_forward.13} parent=31 // pred_check_branch
          %244 = sbr.rel (%p242) target = $region48
        $region47: #{complex_wavehax_forward.13} parent=31 // pred_region
          %vm245 = vcmask 130048
          %246 = vst.msk [vmem:[#allocation2] sm:$0xff] %vm245, 0.0
        $region48: #{complex_wavehax_forward.13} parent=31 // pred_fallthru
          _
        %v247 = vld [vmem:[#allocation2] sm:$0xff]
        %v248 = vld [vmem:[%s207] sm:$0xff]
        %v249 = vld [vmem:[#allocation6] sm:$0xf]
        %v250 = vld [vmem:[#allocation6 + $0x4] sm:$0xf]
        %v251 = vld [vmem:[#allocation6 + $0x8] sm:$0xf]
        %v252 = vld [vmem:[#allocation6 + $0xc] sm:$0xf]
        %v253 = vld [vmem:[#allocation6 + $0x10] sm:$0xf]
        %v254 = vld [vmem:[#allocation6 + $0x14] sm:$0xf]
        %v255 = vld [vmem:[#allocation6 + $0x18] sm:$0xf]
        %v256 = vld [vmem:[#allocation6 + $0x1c] sm:$0xf]
        %v257 = vld [vmem:[#allocation6 + $0x20] sm:$0xf]
        %v258 = vld [vmem:[#allocation6 + $0x24] sm:$0xf]
        %v259 = vld [vmem:[#allocation6 + $0x28] sm:$0xf]
        %v260 = vld [vmem:[#allocation6 + $0x2c] sm:$0xf]
        %v261 = vld [vmem:[#allocation6 + $0x30] sm:$0xf]
        %v262 = vld [vmem:[#allocation6 + $0x34] sm:$0xf]
        %v263 = vld [vmem:[#allocation6 + $0x38] sm:$0xf]
        %v264 = vld [vmem:[#allocation6 + $0x3c] sm:$0xf]
        %v265 = vld [vmem:[#allocation6 + $0x40] sm:$0xf]
        %v266 = vld [vmem:[#allocation6 + $0x44] sm:$0xf]
        %v268 = vunpack.c.l.b16 %v248
        %v269 = vunpack.c.h.b16 %v248
        %v270 = vpack.c.b16 %v268, %v268
        %v271 = vpack.c.b16 %v269, %v269
        %v291 = vunpack.c.l.b16 %v249
        %v292 = vunpack.c.l.b16 %v250
        %v293 = vunpack.c.l.b16 %v251
        %v294 = vunpack.c.l.b16 %v252
        %v295 = vunpack.c.l.b16 %v253
        %v296 = vunpack.c.l.b16 %v254
        %v297 = vunpack.c.l.b16 %v255
        %v298 = vunpack.c.l.b16 %v256
        %v299 = vunpack.c.l.b16 %v257
        %v300 = vunpack.c.l.b16 %v258
        %v301 = vunpack.c.l.b16 %v259
        %v302 = vunpack.c.l.b16 %v260
        %v303 = vunpack.c.l.b16 %v261
        %v304 = vunpack.c.l.b16 %v262
        %v305 = vunpack.c.l.b16 %v263
        %v306 = vunpack.c.l.b16 %v264
        %v307 = vunpack.c.l.b16 %v265
        %v308 = vunpack.c.l.b16 %v266
        %v309 = vpack.c.b16 %v292, %v291
        %v310 = vpack.c.b16 %v294, %v293
        %v311 = vpack.c.b16 %v296, %v295
        %v312 = vpack.c.b16 %v298, %v297
        %v313 = vpack.c.b16 %v300, %v299
        %v314 = vpack.c.b16 %v302, %v301
        %v315 = vpack.c.b16 %v304, %v303
        %v316 = vpack.c.b16 %v306, %v305
        %v317 = vpack.c.b16 %v308, %v307
        %vm327 = vcmask 130048
        %v329 = vsel %vm327, %v271, 0
        %331 = vmatprep.subr.bf16.mxu0 0
        %332 = vmatpush1.bf16.msra.mxu0 %v309
        %333 = vmatprep.subr.bf16.mxu0 0
        %334 = vmatpush1.bf16.msra.mxu0 %v310
        %335 = vmatprep.subr.bf16.mxu0 0
        %336 = vmatpush1.bf16.msra.mxu0 %v311
        %337 = vmatprep.subr.bf16.mxu0 0
        %338 = vmatpush1.bf16.msra.mxu0 %v312
        %339 = vmatprep.subr.bf16.mxu0 0
        %340 = vmatpush1.bf16.msra.mxu0 %v313
        %341 = vmatprep.subr.bf16.mxu0 0
        %342 = vmatpush1.bf16.msra.mxu0 %v314
        %343 = vmatprep.subr.bf16.mxu0 0
        %344 = vmatpush1.bf16.msra.mxu0 %v315
        %345 = vmatprep.subr.bf16.mxu0 0
        %346 = vmatpush1.bf16.msra.mxu0 %v316
        %347 = vmatprep.subr.bf16.mxu0 0
        %348 = vmatpush1.bf16.msra.mxu0 %v317
        %349 = vmatprep.subr.bf16.mxu0 0
        %350 = vmatpush1.bf16.msra.mxu0 0
        %351 = vmatprep.subr.bf16.mxu0 0
        %352 = vmatpush1.bf16.msra.mxu0 0
        %353 = vmatprep.subr.bf16.mxu0 0
        %354 = vmatpush1.bf16.msra.mxu0 0
        %355 = vmatprep.subr.bf16.mxu0 0
        %356 = vmatpush1.bf16.msra.mxu0 0
        %357 = vmatprep.subr.bf16.mxu0 0
        %358 = vmatpush1.bf16.msra.mxu0 0
        %359 = vmatprep.subr.bf16.mxu0 0
        %360 = vmatpush1.bf16.msra.mxu0 0
        %361 = vmatprep.subr.bf16.mxu0 0
        %362 = vmatpush1.bf16.msra.mxu0 0
        %363 = vmatprep.mubr.bf16.mxu0 %v329
        %364 = vmatmul.mubr.bf16.gmra.mrb[0].mxu0 %v270
        %v365 = vpop.f32.mrb[0].mxu0
        %v366 = vadd.f32 0.0, %v365
        %v367 = vpop.f32.mrb[0].mxu0
        %v368 = vpop.f32.mrb[0].mxu0
        %v369 = vpop.f32.mrb[0].mxu0
        %370 = vdwg.mxu0
        %v371 = vadd.f32 %v247, %v366
        %372 = vst.msk [vmem:[#allocation2] sm:$0xff] %vm327, %v371
        // Predicated region
        $region49: #{complex_wavehax_forward.13} parent=31 // pred_check
          %p373 = pneg %p241
        $region50: #{complex_wavehax_forward.13} parent=31 // pred_check_branch
          %375 = sbr.rel (%p373) target = $region52
        $region51: #{complex_wavehax_forward.13} parent=31 // pred_region
          %v376 = vld [vmem:[#allocation2] sm:$0xff]
          %v377 = vld [vmem:[#allocation8] sm:$0x1]
          %v379 = vlaneseq
          %v380 = vshrl.u32 %v379, 7
          %v381 = vsub.s32 0, %v380
          %v382 = vrot.slane %v377, %v381
          %v384 = vadd.f32 %v376, %v382
          %385 = vst.msk [vmem:[%s237] sm:$0xff] %vm327, %v384
        $region52: #{complex_wavehax_forward.13} parent=31 // pred_fallthru
          _
        %s386 = sand.u32 %s116, 1
        %s387 = scalar_lea.sflag [#allocation5], %s386
        %s388 = sand.u32 %s116, 1
        %s389 = smul.addr %s388, 8
        %s390 = scalar_lea.vmem [#allocation9], %s389
        // Predicated region
        $region53: #{complex_wavehax_forward.13} parent=31 // pred_check
          %p391 = pneg %p126
        $region54: #{complex_wavehax_forward.13} parent=31 // pred_check_branch
          %393 = sbr.rel (%p391) target = $region56
        $region55: #{complex_wavehax_forward.13} parent=31 // pred_region
          %s395 = ssub.s32 128, 128
          %396 = vsyncadd %s387, %s395
          %s397 = smul.addr %s25, 128
          %s398 = scalar_lea.hbm %s3, %s397
          %s400 = sshll.u32 %s390, 4
          %s401 = int_to_ptr.vmem [resolvable:$true] %s400
          %403 = dma.vmem_to_hbm [thread:$0]  %s401, 128, %s398, %s387
        $region56: #{complex_wavehax_forward.13} parent=31 // pred_fallthru
          _
      $region32: #{complex_wavehax_forward.13} parent=5 // pred_fallthru
        _
      %p404 = scmp.le.s32.totalorder 2, %s16
      // Predicated region
      $region57: #{complex_wavehax_forward.13} parent=5 // pred_check
        %p405 = pneg %p404
      $region58: #{complex_wavehax_forward.13} parent=5 // pred_check_branch
        %407 = sbr.rel (%p405) target = $region60
      $region59: #{complex_wavehax_forward.13} parent=5 // pred_region
        %s408 = ssub.s32 %s16, 2
        // Predicated region
        $region61: #{complex_wavehax_forward.13} parent=59 // pred_check
          %p409 = pneg %p132
        $region62: #{complex_wavehax_forward.13} parent=59 // pred_check_branch
          %411 = sbr.rel (%p409) target = $region64
        $region63: #{complex_wavehax_forward.13} parent=59 // pred_region
          %s412 = sand.u32 %s117, 1
          %s413 = scalar_lea.sflag [#allocation5], %s412
          %s414 = sand.u32 %s117, 1
          %s415 = smul.addr %s414, 8
          %s416 = scalar_lea.vmem [#allocation9], %s415
          %417 = dma.done %s413, 128
        $region64: #{complex_wavehax_forward.13} parent=59 // pred_fallthru
          _
      $region60: #{complex_wavehax_forward.13} parent=5 // pred_fallthru
        _
    $region6: #{complex_wavehax_forward.13} parent=1 // loop_footer
      %s20 = sadd.s32 1, %s16
    $region7: #{complex_wavehax_forward.13} parent=1 // loop_footer_branch
      %15 = sbr.rel target = $region3
    $region8: #{complex_wavehax_forward.13} parent=1 // loop_exit
      _
    %418 = vsyncpa [#allocation4], 1
    %s419 = scalar_lea.sflag [#allocation4], 1
    %420 = vsyncpa %s419, 1
    %421 = vsyncpa [#allocation7], 1
    %422 = vsyncpa [#allocation5], 1
    %s423 = scalar_lea.sflag [#allocation5], 1
    %424 = vsyncpa %s423, 1

</llo_original>
